<compile_context>
chip_gen: v7x
topology: tpu7x:2x2x1
jax: 0.10.0
libtpu: 0.0.40
codegen_flags: <defaults>
</compile_context>

<pallas_src>
import numpy as np

import jax
import jax.numpy as jnp
from jax.experimental import pallas as pl
from jax.experimental.pallas import tpu as pltpu


# -----------------------------------------------------------------------------
# Pallas kernel: full 4-layer encoder for ONE batch element (grid axis = batch)
# -----------------------------------------------------------------------------
def _encoder_kernel(x_ref, *refs):
    """refs = [S1, W1, b1, S2, W2, b2, ..., o_ref].

    x_ref : (1, H*W, C_in)       flattened NHWC input for this batch element
    S_l   : (9, M_l, HW_l)       0/1 tap-gather matrices (zero rows = padding)
    W_l   : (9, C_in_l, C_out)   tap-major conv weights
    b_l   : (1, C_out)
    o_ref : (1, M_last, C_out)   final activation, HWC order per sample
    """
    o_ref = refs[-1]
    layer_refs = refs[:-1]
    num_layers = len(layer_refs) // 3

    x = x_ref[0]                                     # (HW, C_in), f32, VMEM resident
    for l in range(num_layers):
        s_ref, w_ref, b_ref = layer_refs[3 * l: 3 * l + 3]
        m = s_ref.shape[1]
        c_out = w_ref.shape[2]
        acc = jnp.zeros((m, c_out), jnp.float32)
        # 3x3 / stride-2 / pad-1 conv as 9 gathered taps, all on the MXU.
        for t in range(9):
            patch_t = jnp.dot(s_ref[t], x, preferred_element_type=jnp.float32)
            acc = acc + jnp.dot(patch_t, w_ref[t],
                                preferred_element_type=jnp.float32)
        acc = acc + b_ref[...]
        # ELU(alpha=1):  x if x > 0 else exp(x) - 1   (clamped exp arg)
        x = jnp.where(acc > 0.0, acc, jnp.exp(jnp.minimum(acc, 0.0)) - 1.0)

    o_ref[0] = x.astype(o_ref.dtype)


def _encoder_pallas(x_flat, layer_params):
    """x_flat: (N, H*W, C_in).  layer_params: list of (S, W_packed, b_row)."""
    N, HW1, C_in = x_flat.shape

    in_specs = [pl.BlockSpec((1, HW1, C_in), lambda n: (n, 0, 0))]
    args = [x_flat]
    for (S, Wp, b) in layer_params:
        in_specs.append(pl.BlockSpec(S.shape, lambda n: (0, 0, 0)))
        in_specs.append(pl.BlockSpec(Wp.shape, lambda n: (0, 0, 0)))
        in_specs.append(pl.BlockSpec(b.shape, lambda n: (0, 0)))
        args.extend([S, Wp, b])

    M_last = layer_params[-1][0].shape[1]
    C_last = layer_params[-1][1].shape[2]

    return pl.pallas_call(
        _encoder_kernel,
        out_shape=jax.ShapeDtypeStruct((N, M_last, C_last), jnp.float32),
        grid=(N,),
        in_specs=in_specs,
        out_specs=pl.BlockSpec((1, M_last, C_last), lambda n: (n, 0, 0)),
        compiler_params=pltpu.CompilerParams(
            dimension_semantics=("parallel",),      # shard batch over TCs (v7x)
            vmem_limit_bytes=32 * 1024 * 1024,       # explicit; actual need ~1 MiB
        ),
    )(*args)


# -----------------------------------------------------------------------------
# One-time parameter preparation (hoisted out of the forward path)
# -----------------------------------------------------------------------------
def _make_selection_matrix(H, W):
    """0/1 gather matrices for a 3x3 / stride-2 / pad-1 conv on an (H, W) map."""
    Ho = (H - 1) // 2 + 1
    Wo = (W - 1) // 2 + 1
    S = np.zeros((9, Ho * Wo, H * W), np.float32)
    for kh in range(3):
        for kw in range(3):
            t = kh * 3 + kw
            for i in range(Ho):
                for j in range(Wo):
                    r = 2 * i + kh - 1
                    c = 2 * j + kw - 1
                    if 0 <= r < H and 0 <= c < W:
                        S[t, i * Wo + j, r * W + c] = 1.0
    return S, (Ho, Wo)


def prepare_params(params, H, W):
    """Pack PyTorch-layout conv params + build tap-gather matrices (runs once)."""
    packed = []
    h, w = H, W
    for (wt, b) in params:
        C_out, C_in, kH, kW = wt.shape
        S, (ho, wo) = _make_selection_matrix(h, w)
        w_packed = jnp.transpose(wt, (2, 3, 1, 0)).reshape(kH * kW, C_in, C_out)
        packed.append((jnp.asarray(S), w_packed, b.reshape(1, C_out)))
        h, w = ho, wo
    return packed


# -----------------------------------------------------------------------------
# Encoder forward
# -----------------------------------------------------------------------------
@jax.jit
def encoder_forward(img_nchw, packed_params):
    N, C_in, H, W = img_nchw.shape
    x = jnp.transpose(img_nchw, (0, 2, 3, 1)).reshape(N, H * W, C_in)  # NHWC flat
    out = _encoder_pallas(x, packed_params)            # (N, Ho*Wo, C), HWC order
    # match torch.flatten(NCHW, start_dim=1): channel-major flatten
    return jnp.transpose(out, (0, 2, 1)).reshape(N, -1)


def init_params(key, in_channels):
    """Deterministic synthetic weights matching nn.Conv2d shapes."""
    params = []
    c_in = in_channels
    for _ in range(4):
        k_w, k_b, key = jax.random.split(key, 3)
        fan_in = c_in * 3 * 3
        bound = 1.0 / jnp.sqrt(fan_in)
        w = jax.random.uniform(k_w, (32, c_in, 3, 3), jnp.float32, -bound, bound)
        b = jax.random.uniform(k_b, (32,), jnp.float32, -bound, bound)
        params.append((w, b))
        c_in = 32
    return params


# -----------------------------------------------------------------------------
# Pure-JAX reference for verification
# -----------------------------------------------------------------------------
def _reference_forward(img_nchw, params):
    x = img_nchw
    for (w, b) in params:
        x = jax.lax.conv_general_dilated(
            x, w, window_strides=(2, 2), padding=((1, 1), (1, 1)),
            dimension_numbers=("NCHW", "OIHW", "NCHW"))
        x = x + b[None, :, None, None]
        x = jnp.where(x > 0, x, jnp.exp(jnp.minimum(x, 0.0)) - 1.0)
    return x.reshape(x.shape[0], -1)


if __name__ == "__main__":
    key = jax.random.PRNGKey(0)
    k_img, k_par = jax.random.split(key)

    # batch=2, channels=4, 16x16 spatial: 16 -> 8 -> 4 -> 2 -> 1, 32 channels
    img = jax.random.normal(k_img, (2, 4, 16, 16), jnp.float32)
    params = init_params(k_par, in_channels=4)
    packed = prepare_params(params, H=16, W=16)   # one-time prep, off the hot path

    out = encoder_forward(img, packed)
    out = jax.block_until_ready(out)

    ref = _reference_forward(img, params)
    assert out.shape == (2, 32), out.shape
    if not jnp.allclose(out, ref, atol=1e-4, rtol=1e-4):
        raise AssertionError("Pallas encoder does not match reference")

    print("KERNEL_OK")
</pallas_src>

<mosaic_0001>
module attributes {stable_mosaic.version = 11 : i64} {
  func.func @_encoder_kernel(%arg0: i32, %arg1: memref<1x256x4xf32, #tpu.memory_space<vmem>>, %arg2: memref<9x64x256xf32, #tpu.memory_space<vmem>>, %arg3: memref<9x4x32xf32, #tpu.memory_space<vmem>>, %arg4: memref<1x32xf32, #tpu.memory_space<vmem>>, %arg5: memref<9x16x64xf32, #tpu.memory_space<vmem>>, %arg6: memref<9x32x32xf32, #tpu.memory_space<vmem>>, %arg7: memref<1x32xf32, #tpu.memory_space<vmem>>, %arg8: memref<9x4x16xf32, #tpu.memory_space<vmem>>, %arg9: memref<9x32x32xf32, #tpu.memory_space<vmem>>, %arg10: memref<1x32xf32, #tpu.memory_space<vmem>>, %arg11: memref<9x1x4xf32, #tpu.memory_space<vmem>>, %arg12: memref<9x32x32xf32, #tpu.memory_space<vmem>>, %arg13: memref<1x32xf32, #tpu.memory_space<vmem>>, %arg14: memref<1x1x32xf32, #tpu.memory_space<vmem>>) attributes {dimension_semantics = [#tpu.dimension_semantics<parallel>], iteration_bounds = array<i64: 2>, scalar_prefetch = 0 : i64, scratch_operands = 0 : i64, tpu.core_type = #tpu.core_type<tc>, window_params = [{transform_indices = @transform_0, window_bounds = array<i64: 1, 256, 4>}, {pipeline_mode = #tpu.pipeline_mode<synchronous>, transform_indices = @transform_1, window_bounds = array<i64: 9, 64, 256>}, {pipeline_mode = #tpu.pipeline_mode<synchronous>, transform_indices = @transform_2, window_bounds = array<i64: 9, 4, 32>}, {pipeline_mode = #tpu.pipeline_mode<synchronous>, transform_indices = @transform_3, window_bounds = array<i64: 1, 32>}, {pipeline_mode = #tpu.pipeline_mode<synchronous>, transform_indices = @transform_4, window_bounds = array<i64: 9, 16, 64>}, {pipeline_mode = #tpu.pipeline_mode<synchronous>, transform_indices = @transform_5, window_bounds = array<i64: 9, 32, 32>}, {pipeline_mode = #tpu.pipeline_mode<synchronous>, transform_indices = @transform_6, window_bounds = array<i64: 1, 32>}, {pipeline_mode = #tpu.pipeline_mode<synchronous>, transform_indices = @transform_7, window_bounds = array<i64: 9, 4, 16>}, {pipeline_mode = #tpu.pipeline_mode<synchronous>, transform_indices = @transform_8, window_bounds = array<i64: 9, 32, 32>}, {pipeline_mode = #tpu.pipeline_mode<synchronous>, transform_indices = @transform_9, window_bounds = array<i64: 1, 32>}, {pipeline_mode = #tpu.pipeline_mode<synchronous>, transform_indices = @transform_10, window_bounds = array<i64: 9, 1, 4>}, {pipeline_mode = #tpu.pipeline_mode<synchronous>, transform_indices = @transform_11, window_bounds = array<i64: 9, 32, 32>}, {pipeline_mode = #tpu.pipeline_mode<synchronous>, transform_indices = @transform_12, window_bounds = array<i64: 1, 32>}, {transform_indices = @transform_13, window_bounds = array<i64: 1, 1, 32>}]} {
    %c0 = arith.constant 0 : index
    %c0_0 = arith.constant 0 : index
    %c0_1 = arith.constant 0 : index
    %0 = vector.load %arg1[%c0, %c0_0, %c0_1] : memref<1x256x4xf32, #tpu.memory_space<vmem>>, vector<1x256x4xf32>
    %1 = vector.shape_cast %0 : vector<1x256x4xf32> to vector<256x4xf32>
    %cst = arith.constant 0.000000e+00 : f32
    %2 = vector.broadcast %cst : f32 to vector<64x32xf32>
    %c0_2 = arith.constant 0 : index
    %c0_3 = arith.constant 0 : index
    %c0_4 = arith.constant 0 : index
    %3 = vector.load %arg2[%c0_2, %c0_3, %c0_4] : memref<9x64x256xf32, #tpu.memory_space<vmem>>, vector<1x64x256xf32>
    %4 = vector.shape_cast %3 : vector<1x64x256xf32> to vector<64x256xf32>
    %cst_5 = arith.constant dense<0.000000e+00> : vector<64x4xf32>
    %5 = tpu.matmul %4, %1, %cst_5 {dimension_numbers = #tpu.dot_dimension_numbers<[1], [0], [0], [1], [0, 0, 1, 1], [], []>} : vector<64x256xf32>, vector<256x4xf32>, vector<64x4xf32> -> vector<64x4xf32>
    %c0_6 = arith.constant 0 : index
    %c0_7 = arith.constant 0 : index
    %c0_8 = arith.constant 0 : index
    %6 = vector.load %arg3[%c0_6, %c0_7, %c0_8] : memref<9x4x32xf32, #tpu.memory_space<vmem>>, vector<1x4x32xf32>
    %7 = vector.shape_cast %6 : vector<1x4x32xf32> to vector<4x32xf32>
    %cst_9 = arith.constant dense<0.000000e+00> : vector<64x32xf32>
    %8 = tpu.matmul %5, %7, %cst_9 {dimension_numbers = #tpu.dot_dimension_numbers<[1], [0], [0], [1], [0, 0, 1, 1], [], []>} : vector<64x4xf32>, vector<4x32xf32>, vector<64x32xf32> -> vector<64x32xf32>
    %9 = arith.addf %2, %8 : vector<64x32xf32>
    %c1 = arith.constant 1 : index
    %c0_10 = arith.constant 0 : index
    %c0_11 = arith.constant 0 : index
    %10 = vector.load %arg2[%c1, %c0_10, %c0_11] : memref<9x64x256xf32, #tpu.memory_space<vmem>>, vector<1x64x256xf32>
    %11 = vector.shape_cast %10 : vector<1x64x256xf32> to vector<64x256xf32>
    %cst_12 = arith.constant dense<0.000000e+00> : vector<64x4xf32>
    %12 = tpu.matmul %11, %1, %cst_12 {dimension_numbers = #tpu.dot_dimension_numbers<[1], [0], [0], [1], [0, 0, 1, 1], [], []>} : vector<64x256xf32>, vector<256x4xf32>, vector<64x4xf32> -> vector<64x4xf32>
    %c1_13 = arith.constant 1 : index
    %c0_14 = arith.constant 0 : index
    %c0_15 = arith.constant 0 : index
    %13 = vector.load %arg3[%c1_13, %c0_14, %c0_15] : memref<9x4x32xf32, #tpu.memory_space<vmem>>, vector<1x4x32xf32>
    %14 = vector.shape_cast %13 : vector<1x4x32xf32> to vector<4x32xf32>
    %cst_16 = arith.constant dense<0.000000e+00> : vector<64x32xf32>
    %15 = tpu.matmul %12, %14, %cst_16 {dimension_numbers = #tpu.dot_dimension_numbers<[1], [0], [0], [1], [0, 0, 1, 1], [], []>} : vector<64x4xf32>, vector<4x32xf32>, vector<64x32xf32> -> vector<64x32xf32>
    %16 = arith.addf %9, %15 : vector<64x32xf32>
    %c2 = arith.constant 2 : index
    %c0_17 = arith.constant 0 : index
    %c0_18 = arith.constant 0 : index
    %17 = vector.load %arg2[%c2, %c0_17, %c0_18] : memref<9x64x256xf32, #tpu.memory_space<vmem>>, vector<1x64x256xf32>
    %18 = vector.shape_cast %17 : vector<1x64x256xf32> to vector<64x256xf32>
    %cst_19 = arith.constant dense<0.000000e+00> : vector<64x4xf32>
    %19 = tpu.matmul %18, %1, %cst_19 {dimension_numbers = #tpu.dot_dimension_numbers<[1], [0], [0], [1], [0, 0, 1, 1], [], []>} : vector<64x256xf32>, vector<256x4xf32>, vector<64x4xf32> -> vector<64x4xf32>
    %c2_20 = arith.constant 2 : index
    %c0_21 = arith.constant 0 : index
    %c0_22 = arith.constant 0 : index
    %20 = vector.load %arg3[%c2_20, %c0_21, %c0_22] : memref<9x4x32xf32, #tpu.memory_space<vmem>>, vector<1x4x32xf32>
    %21 = vector.shape_cast %20 : vector<1x4x32xf32> to vector<4x32xf32>
    %cst_23 = arith.constant dense<0.000000e+00> : vector<64x32xf32>
    %22 = tpu.matmul %19, %21, %cst_23 {dimension_numbers = #tpu.dot_dimension_numbers<[1], [0], [0], [1], [0, 0, 1, 1], [], []>} : vector<64x4xf32>, vector<4x32xf32>, vector<64x32xf32> -> vector<64x32xf32>
    %23 = arith.addf %16, %22 : vector<64x32xf32>
    %c3 = arith.constant 3 : index
    %c0_24 = arith.constant 0 : index
    %c0_25 = arith.constant 0 : index
    %24 = vector.load %arg2[%c3, %c0_24, %c0_25] : memref<9x64x256xf32, #tpu.memory_space<vmem>>, vector<1x64x256xf32>
    %25 = vector.shape_cast %24 : vector<1x64x256xf32> to vector<64x256xf32>
    %cst_26 = arith.constant dense<0.000000e+00> : vector<64x4xf32>
    %26 = tpu.matmul %25, %1, %cst_26 {dimension_numbers = #tpu.dot_dimension_numbers<[1], [0], [0], [1], [0, 0, 1, 1], [], []>} : vector<64x256xf32>, vector<256x4xf32>, vector<64x4xf32> -> vector<64x4xf32>
    %c3_27 = arith.constant 3 : index
    %c0_28 = arith.constant 0 : index
    %c0_29 = arith.constant 0 : index
    %27 = vector.load %arg3[%c3_27, %c0_28, %c0_29] : memref<9x4x32xf32, #tpu.memory_space<vmem>>, vector<1x4x32xf32>
    %28 = vector.shape_cast %27 : vector<1x4x32xf32> to vector<4x32xf32>
    %cst_30 = arith.constant dense<0.000000e+00> : vector<64x32xf32>
    %29 = tpu.matmul %26, %28, %cst_30 {dimension_numbers = #tpu.dot_dimension_numbers<[1], [0], [0], [1], [0, 0, 1, 1], [], []>} : vector<64x4xf32>, vector<4x32xf32>, vector<64x32xf32> -> vector<64x32xf32>
    %30 = arith.addf %23, %29 : vector<64x32xf32>
    %c4 = arith.constant 4 : index
    %c0_31 = arith.constant 0 : index
    %c0_32 = arith.constant 0 : index
    %31 = vector.load %arg2[%c4, %c0_31, %c0_32] : memref<9x64x256xf32, #tpu.memory_space<vmem>>, vector<1x64x256xf32>
    %32 = vector.shape_cast %31 : vector<1x64x256xf32> to vector<64x256xf32>
    %cst_33 = arith.constant dense<0.000000e+00> : vector<64x4xf32>
    %33 = tpu.matmul %32, %1, %cst_33 {dimension_numbers = #tpu.dot_dimension_numbers<[1], [0], [0], [1], [0, 0, 1, 1], [], []>} : vector<64x256xf32>, vector<256x4xf32>, vector<64x4xf32> -> vector<64x4xf32>
    %c4_34 = arith.constant 4 : index
    %c0_35 = arith.constant 0 : index
    %c0_36 = arith.constant 0 : index
    %34 = vector.load %arg3[%c4_34, %c0_35, %c0_36] : memref<9x4x32xf32, #tpu.memory_space<vmem>>, vector<1x4x32xf32>
    %35 = vector.shape_cast %34 : vector<1x4x32xf32> to vector<4x32xf32>
    %cst_37 = arith.constant dense<0.000000e+00> : vector<64x32xf32>
    %36 = tpu.matmul %33, %35, %cst_37 {dimension_numbers = #tpu.dot_dimension_numbers<[1], [0], [0], [1], [0, 0, 1, 1], [], []>} : vector<64x4xf32>, vector<4x32xf32>, vector<64x32xf32> -> vector<64x32xf32>
    %37 = arith.addf %30, %36 : vector<64x32xf32>
    %c5 = arith.constant 5 : index
    %c0_38 = arith.constant 0 : index
    %c0_39 = arith.constant 0 : index
    %38 = vector.load %arg2[%c5, %c0_38, %c0_39] : memref<9x64x256xf32, #tpu.memory_space<vmem>>, vector<1x64x256xf32>
    %39 = vector.shape_cast %38 : vector<1x64x256xf32> to vector<64x256xf32>
    %cst_40 = arith.constant dense<0.000000e+00> : vector<64x4xf32>
    %40 = tpu.matmul %39, %1, %cst_40 {dimension_numbers = #tpu.dot_dimension_numbers<[1], [0], [0], [1], [0, 0, 1, 1], [], []>} : vector<64x256xf32>, vector<256x4xf32>, vector<64x4xf32> -> vector<64x4xf32>
    %c5_41 = arith.constant 5 : index
    %c0_42 = arith.constant 0 : index
    %c0_43 = arith.constant 0 : index
    %41 = vector.load %arg3[%c5_41, %c0_42, %c0_43] : memref<9x4x32xf32, #tpu.memory_space<vmem>>, vector<1x4x32xf32>
    %42 = vector.shape_cast %41 : vector<1x4x32xf32> to vector<4x32xf32>
    %cst_44 = arith.constant dense<0.000000e+00> : vector<64x32xf32>
    %43 = tpu.matmul %40, %42, %cst_44 {dimension_numbers = #tpu.dot_dimension_numbers<[1], [0], [0], [1], [0, 0, 1, 1], [], []>} : vector<64x4xf32>, vector<4x32xf32>, vector<64x32xf32> -> vector<64x32xf32>
    %44 = arith.addf %37, %43 : vector<64x32xf32>
    %c6 = arith.constant 6 : index
    %c0_45 = arith.constant 0 : index
    %c0_46 = arith.constant 0 : index
    %45 = vector.load %arg2[%c6, %c0_45, %c0_46] : memref<9x64x256xf32, #tpu.memory_space<vmem>>, vector<1x64x256xf32>
    %46 = vector.shape_cast %45 : vector<1x64x256xf32> to vector<64x256xf32>
    %cst_47 = arith.constant dense<0.000000e+00> : vector<64x4xf32>
    %47 = tpu.matmul %46, %1, %cst_47 {dimension_numbers = #tpu.dot_dimension_numbers<[1], [0], [0], [1], [0, 0, 1, 1], [], []>} : vector<64x256xf32>, vector<256x4xf32>, vector<64x4xf32> -> vector<64x4xf32>
    %c6_48 = arith.constant 6 : index
    %c0_49 = arith.constant 0 : index
    %c0_50 = arith.constant 0 : index
    %48 = vector.load %arg3[%c6_48, %c0_49, %c0_50] : memref<9x4x32xf32, #tpu.memory_space<vmem>>, vector<1x4x32xf32>
    %49 = vector.shape_cast %48 : vector<1x4x32xf32> to vector<4x32xf32>
    %cst_51 = arith.constant dense<0.000000e+00> : vector<64x32xf32>
    %50 = tpu.matmul %47, %49, %cst_51 {dimension_numbers = #tpu.dot_dimension_numbers<[1], [0], [0], [1], [0, 0, 1, 1], [], []>} : vector<64x4xf32>, vector<4x32xf32>, vector<64x32xf32> -> vector<64x32xf32>
    %51 = arith.addf %44, %50 : vector<64x32xf32>
    %c7 = arith.constant 7 : index
    %c0_52 = arith.constant 0 : index
    %c0_53 = arith.constant 0 : index
    %52 = vector.load %arg2[%c7, %c0_52, %c0_53] : memref<9x64x256xf32, #tpu.memory_space<vmem>>, vector<1x64x256xf32>
    %53 = vector.shape_cast %52 : vector<1x64x256xf32> to vector<64x256xf32>
    %cst_54 = arith.constant dense<0.000000e+00> : vector<64x4xf32>
    %54 = tpu.matmul %53, %1, %cst_54 {dimension_numbers = #tpu.dot_dimension_numbers<[1], [0], [0], [1], [0, 0, 1, 1], [], []>} : vector<64x256xf32>, vector<256x4xf32>, vector<64x4xf32> -> vector<64x4xf32>
    %c7_55 = arith.constant 7 : index
    %c0_56 = arith.constant 0 : index
    %c0_57 = arith.constant 0 : index
    %55 = vector.load %arg3[%c7_55, %c0_56, %c0_57] : memref<9x4x32xf32, #tpu.memory_space<vmem>>, vector<1x4x32xf32>
    %56 = vector.shape_cast %55 : vector<1x4x32xf32> to vector<4x32xf32>
    %cst_58 = arith.constant dense<0.000000e+00> : vector<64x32xf32>
    %57 = tpu.matmul %54, %56, %cst_58 {dimension_numbers = #tpu.dot_dimension_numbers<[1], [0], [0], [1], [0, 0, 1, 1], [], []>} : vector<64x4xf32>, vector<4x32xf32>, vector<64x32xf32> -> vector<64x32xf32>
    %58 = arith.addf %51, %57 : vector<64x32xf32>
    %c8 = arith.constant 8 : index
    %c0_59 = arith.constant 0 : index
    %c0_60 = arith.constant 0 : index
    %59 = vector.load %arg2[%c8, %c0_59, %c0_60] : memref<9x64x256xf32, #tpu.memory_space<vmem>>, vector<1x64x256xf32>
    %60 = vector.shape_cast %59 : vector<1x64x256xf32> to vector<64x256xf32>
    %cst_61 = arith.constant dense<0.000000e+00> : vector<64x4xf32>
    %61 = tpu.matmul %60, %1, %cst_61 {dimension_numbers = #tpu.dot_dimension_numbers<[1], [0], [0], [1], [0, 0, 1, 1], [], []>} : vector<64x256xf32>, vector<256x4xf32>, vector<64x4xf32> -> vector<64x4xf32>
    %c8_62 = arith.constant 8 : index
    %c0_63 = arith.constant 0 : index
    %c0_64 = arith.constant 0 : index
    %62 = vector.load %arg3[%c8_62, %c0_63, %c0_64] : memref<9x4x32xf32, #tpu.memory_space<vmem>>, vector<1x4x32xf32>
    %63 = vector.shape_cast %62 : vector<1x4x32xf32> to vector<4x32xf32>
    %cst_65 = arith.constant dense<0.000000e+00> : vector<64x32xf32>
    %64 = tpu.matmul %61, %63, %cst_65 {dimension_numbers = #tpu.dot_dimension_numbers<[1], [0], [0], [1], [0, 0, 1, 1], [], []>} : vector<64x4xf32>, vector<4x32xf32>, vector<64x32xf32> -> vector<64x32xf32>
    %65 = arith.addf %58, %64 : vector<64x32xf32>
    %c0_66 = arith.constant 0 : index
    %c0_67 = arith.constant 0 : index
    %66 = vector.load %arg4[%c0_66, %c0_67] : memref<1x32xf32, #tpu.memory_space<vmem>>, vector<1x32xf32>
    %67 = vector.broadcast %66 : vector<1x32xf32> to vector<64x32xf32>
    %68 = arith.addf %65, %67 : vector<64x32xf32>
    %cst_68 = arith.constant 0.000000e+00 : f32
    %69 = vector.broadcast %cst_68 : f32 to vector<64x32xf32>
    %70 = arith.cmpf ogt, %68, %69 : vector<64x32xf32>
    %cst_69 = arith.constant 0.000000e+00 : f32
    %71 = vector.broadcast %cst_69 : f32 to vector<64x32xf32>
    %72 = arith.minimumf %68, %71 : vector<64x32xf32>
    %73 = math.exp %72 : vector<64x32xf32>
    %cst_70 = arith.constant 1.000000e+00 : f32
    %74 = vector.broadcast %cst_70 : f32 to vector<64x32xf32>
    %75 = arith.subf %73, %74 : vector<64x32xf32>
    %76 = arith.select %70, %68, %75 : vector<64x32xi1>, vector<64x32xf32>
    %cst_71 = arith.constant 0.000000e+00 : f32
    %77 = vector.broadcast %cst_71 : f32 to vector<16x32xf32>
    %c0_72 = arith.constant 0 : index
    %c0_73 = arith.constant 0 : index
    %c0_74 = arith.constant 0 : index
    %78 = vector.load %arg5[%c0_72, %c0_73, %c0_74] : memref<9x16x64xf32, #tpu.memory_space<vmem>>, vector<1x16x64xf32>
    %79 = vector.shape_cast %78 : vector<1x16x64xf32> to vector<16x64xf32>
    %cst_75 = arith.constant dense<0.000000e+00> : vector<16x32xf32>
    %80 = tpu.matmul %79, %76, %cst_75 {dimension_numbers = #tpu.dot_dimension_numbers<[1], [0], [0], [1], [0, 0, 1, 1], [], []>} : vector<16x64xf32>, vector<64x32xf32>, vector<16x32xf32> -> vector<16x32xf32>
    %c0_76 = arith.constant 0 : index
    %c0_77 = arith.constant 0 : index
    %c0_78 = arith.constant 0 : index
    %81 = vector.load %arg6[%c0_76, %c0_77, %c0_78] : memref<9x32x32xf32, #tpu.memory_space<vmem>>, vector<1x32x32xf32>
    %82 = vector.shape_cast %81 : vector<1x32x32xf32> to vector<32x32xf32>
    %cst_79 = arith.constant dense<0.000000e+00> : vector<16x32xf32>
    %83 = tpu.matmul %80, %82, %cst_79 {dimension_numbers = #tpu.dot_dimension_numbers<[1], [0], [0], [1], [0, 0, 1, 1], [], []>} : vector<16x32xf32>, vector<32x32xf32>, vector<16x32xf32> -> vector<16x32xf32>
    %84 = arith.addf %77, %83 : vector<16x32xf32>
    %c1_80 = arith.constant 1 : index
    %c0_81 = arith.constant 0 : index
    %c0_82 = arith.constant 0 : index
    %85 = vector.load %arg5[%c1_80, %c0_81, %c0_82] : memref<9x16x64xf32, #tpu.memory_space<vmem>>, vector<1x16x64xf32>
    %86 = vector.shape_cast %85 : vector<1x16x64xf32> to vector<16x64xf32>
    %cst_83 = arith.constant dense<0.000000e+00> : vector<16x32xf32>
    %87 = tpu.matmul %86, %76, %cst_83 {dimension_numbers = #tpu.dot_dimension_numbers<[1], [0], [0], [1], [0, 0, 1, 1], [], []>} : vector<16x64xf32>, vector<64x32xf32>, vector<16x32xf32> -> vector<16x32xf32>
    %c1_84 = arith.constant 1 : index
    %c0_85 = arith.constant 0 : index
    %c0_86 = arith.constant 0 : index
    %88 = vector.load %arg6[%c1_84, %c0_85, %c0_86] : memref<9x32x32xf32, #tpu.memory_space<vmem>>, vector<1x32x32xf32>
    %89 = vector.shape_cast %88 : vector<1x32x32xf32> to vector<32x32xf32>
    %cst_87 = arith.constant dense<0.000000e+00> : vector<16x32xf32>
    %90 = tpu.matmul %87, %89, %cst_87 {dimension_numbers = #tpu.dot_dimension_numbers<[1], [0], [0], [1], [0, 0, 1, 1], [], []>} : vector<16x32xf32>, vector<32x32xf32>, vector<16x32xf32> -> vector<16x32xf32>
    %91 = arith.addf %84, %90 : vector<16x32xf32>
    %c2_88 = arith.constant 2 : index
    %c0_89 = arith.constant 0 : index
    %c0_90 = arith.constant 0 : index
    %92 = vector.load %arg5[%c2_88, %c0_89, %c0_90] : memref<9x16x64xf32, #tpu.memory_space<vmem>>, vector<1x16x64xf32>
    %93 = vector.shape_cast %92 : vector<1x16x64xf32> to vector<16x64xf32>
    %cst_91 = arith.constant dense<0.000000e+00> : vector<16x32xf32>
    %94 = tpu.matmul %93, %76, %cst_91 {dimension_numbers = #tpu.dot_dimension_numbers<[1], [0], [0], [1], [0, 0, 1, 1], [], []>} : vector<16x64xf32>, vector<64x32xf32>, vector<16x32xf32> -> vector<16x32xf32>
    %c2_92 = arith.constant 2 : index
    %c0_93 = arith.constant 0 : index
    %c0_94 = arith.constant 0 : index
    %95 = vector.load %arg6[%c2_92, %c0_93, %c0_94] : memref<9x32x32xf32, #tpu.memory_space<vmem>>, vector<1x32x32xf32>
    %96 = vector.shape_cast %95 : vector<1x32x32xf32> to vector<32x32xf32>
    %cst_95 = arith.constant dense<0.000000e+00> : vector<16x32xf32>
    %97 = tpu.matmul %94, %96, %cst_95 {dimension_numbers = #tpu.dot_dimension_numbers<[1], [0], [0], [1], [0, 0, 1, 1], [], []>} : vector<16x32xf32>, vector<32x32xf32>, vector<16x32xf32> -> vector<16x32xf32>
    %98 = arith.addf %91, %97 : vector<16x32xf32>
    %c3_96 = arith.constant 3 : index
    %c0_97 = arith.constant 0 : index
    %c0_98 = arith.constant 0 : index
    %99 = vector.load %arg5[%c3_96, %c0_97, %c0_98] : memref<9x16x64xf32, #tpu.memory_space<vmem>>, vector<1x16x64xf32>
    %100 = vector.shape_cast %99 : vector<1x16x64xf32> to vector<16x64xf32>
    %cst_99 = arith.constant dense<0.000000e+00> : vector<16x32xf32>
    %101 = tpu.matmul %100, %76, %cst_99 {dimension_numbers = #tpu.dot_dimension_numbers<[1], [0], [0], [1], [0, 0, 1, 1], [], []>} : vector<16x64xf32>, vector<64x32xf32>, vector<16x32xf32> -> vector<16x32xf32>
    %c3_100 = arith.constant 3 : index
    %c0_101 = arith.constant 0 : index
    %c0_102 = arith.constant 0 : index
    %102 = vector.load %arg6[%c3_100, %c0_101, %c0_102] : memref<9x32x32xf32, #tpu.memory_space<vmem>>, vector<1x32x32xf32>
    %103 = vector.shape_cast %102 : vector<1x32x32xf32> to vector<32x32xf32>
    %cst_103 = arith.constant dense<0.000000e+00> : vector<16x32xf32>
    %104 = tpu.matmul %101, %103, %cst_103 {dimension_numbers = #tpu.dot_dimension_numbers<[1], [0], [0], [1], [0, 0, 1, 1], [], []>} : vector<16x32xf32>, vector<32x32xf32>, vector<16x32xf32> -> vector<16x32xf32>
    %105 = arith.addf %98, %104 : vector<16x32xf32>
    %c4_104 = arith.constant 4 : index
    %c0_105 = arith.constant 0 : index
    %c0_106 = arith.constant 0 : index
    %106 = vector.load %arg5[%c4_104, %c0_105, %c0_106] : memref<9x16x64xf32, #tpu.memory_space<vmem>>, vector<1x16x64xf32>
    %107 = vector.shape_cast %106 : vector<1x16x64xf32> to vector<16x64xf32>
    %cst_107 = arith.constant dense<0.000000e+00> : vector<16x32xf32>
    %108 = tpu.matmul %107, %76, %cst_107 {dimension_numbers = #tpu.dot_dimension_numbers<[1], [0], [0], [1], [0, 0, 1, 1], [], []>} : vector<16x64xf32>, vector<64x32xf32>, vector<16x32xf32> -> vector<16x32xf32>
    %c4_108 = arith.constant 4 : index
    %c0_109 = arith.constant 0 : index
    %c0_110 = arith.constant 0 : index
    %109 = vector.load %arg6[%c4_108, %c0_109, %c0_110] : memref<9x32x32xf32, #tpu.memory_space<vmem>>, vector<1x32x32xf32>
    %110 = vector.shape_cast %109 : vector<1x32x32xf32> to vector<32x32xf32>
    %cst_111 = arith.constant dense<0.000000e+00> : vector<16x32xf32>
    %111 = tpu.matmul %108, %110, %cst_111 {dimension_numbers = #tpu.dot_dimension_numbers<[1], [0], [0], [1], [0, 0, 1, 1], [], []>} : vector<16x32xf32>, vector<32x32xf32>, vector<16x32xf32> -> vector<16x32xf32>
    %112 = arith.addf %105, %111 : vector<16x32xf32>
    %c5_112 = arith.constant 5 : index
    %c0_113 = arith.constant 0 : index
    %c0_114 = arith.constant 0 : index
    %113 = vector.load %arg5[%c5_112, %c0_113, %c0_114] : memref<9x16x64xf32, #tpu.memory_space<vmem>>, vector<1x16x64xf32>
    %114 = vector.shape_cast %113 : vector<1x16x64xf32> to vector<16x64xf32>
    %cst_115 = arith.constant dense<0.000000e+00> : vector<16x32xf32>
    %115 = tpu.matmul %114, %76, %cst_115 {dimension_numbers = #tpu.dot_dimension_numbers<[1], [0], [0], [1], [0, 0, 1, 1], [], []>} : vector<16x64xf32>, vector<64x32xf32>, vector<16x32xf32> -> vector<16x32xf32>
    %c5_116 = arith.constant 5 : index
    %c0_117 = arith.constant 0 : index
    %c0_118 = arith.constant 0 : index
    %116 = vector.load %arg6[%c5_116, %c0_117, %c0_118] : memref<9x32x32xf32, #tpu.memory_space<vmem>>, vector<1x32x32xf32>
    %117 = vector.shape_cast %116 : vector<1x32x32xf32> to vector<32x32xf32>
    %cst_119 = arith.constant dense<0.000000e+00> : vector<16x32xf32>
    %118 = tpu.matmul %115, %117, %cst_119 {dimension_numbers = #tpu.dot_dimension_numbers<[1], [0], [0], [1], [0, 0, 1, 1], [], []>} : vector<16x32xf32>, vector<32x32xf32>, vector<16x32xf32> -> vector<16x32xf32>
    %119 = arith.addf %112, %118 : vector<16x32xf32>
    %c6_120 = arith.constant 6 : index
    %c0_121 = arith.constant 0 : index
    %c0_122 = arith.constant 0 : index
    %120 = vector.load %arg5[%c6_120, %c0_121, %c0_122] : memref<9x16x64xf32, #tpu.memory_space<vmem>>, vector<1x16x64xf32>
    %121 = vector.shape_cast %120 : vector<1x16x64xf32> to vector<16x64xf32>
    %cst_123 = arith.constant dense<0.000000e+00> : vector<16x32xf32>
    %122 = tpu.matmul %121, %76, %cst_123 {dimension_numbers = #tpu.dot_dimension_numbers<[1], [0], [0], [1], [0, 0, 1, 1], [], []>} : vector<16x64xf32>, vector<64x32xf32>, vector<16x32xf32> -> vector<16x32xf32>
    %c6_124 = arith.constant 6 : index
    %c0_125 = arith.constant 0 : index
    %c0_126 = arith.constant 0 : index
    %123 = vector.load %arg6[%c6_124, %c0_125, %c0_126] : memref<9x32x32xf32, #tpu.memory_space<vmem>>, vector<1x32x32xf32>
    %124 = vector.shape_cast %123 : vector<1x32x32xf32> to vector<32x32xf32>
    %cst_127 = arith.constant dense<0.000000e+00> : vector<16x32xf32>
    %125 = tpu.matmul %122, %124, %cst_127 {dimension_numbers = #tpu.dot_dimension_numbers<[1], [0], [0], [1], [0, 0, 1, 1], [], []>} : vector<16x32xf32>, vector<32x32xf32>, vector<16x32xf32> -> vector<16x32xf32>
    %126 = arith.addf %119, %125 : vector<16x32xf32>
    %c7_128 = arith.constant 7 : index
    %c0_129 = arith.constant 0 : index
    %c0_130 = arith.constant 0 : index
    %127 = vector.load %arg5[%c7_128, %c0_129, %c0_130] : memref<9x16x64xf32, #tpu.memory_space<vmem>>, vector<1x16x64xf32>
    %128 = vector.shape_cast %127 : vector<1x16x64xf32> to vector<16x64xf32>
    %cst_131 = arith.constant dense<0.000000e+00> : vector<16x32xf32>
    %129 = tpu.matmul %128, %76, %cst_131 {dimension_numbers = #tpu.dot_dimension_numbers<[1], [0], [0], [1], [0, 0, 1, 1], [], []>} : vector<16x64xf32>, vector<64x32xf32>, vector<16x32xf32> -> vector<16x32xf32>
    %c7_132 = arith.constant 7 : index
    %c0_133 = arith.constant 0 : index
    %c0_134 = arith.constant 0 : index
    %130 = vector.load %arg6[%c7_132, %c0_133, %c0_134] : memref<9x32x32xf32, #tpu.memory_space<vmem>>, vector<1x32x32xf32>
    %131 = vector.shape_cast %130 : vector<1x32x32xf32> to vector<32x32xf32>
    %cst_135 = arith.constant dense<0.000000e+00> : vector<16x32xf32>
    %132 = tpu.matmul %129, %131, %cst_135 {dimension_numbers = #tpu.dot_dimension_numbers<[1], [0], [0], [1], [0, 0, 1, 1], [], []>} : vector<16x32xf32>, vector<32x32xf32>, vector<16x32xf32> -> vector<16x32xf32>
    %133 = arith.addf %126, %132 : vector<16x32xf32>
    %c8_136 = arith.constant 8 : index
    %c0_137 = arith.constant 0 : index
    %c0_138 = arith.constant 0 : index
    %134 = vector.load %arg5[%c8_136, %c0_137, %c0_138] : memref<9x16x64xf32, #tpu.memory_space<vmem>>, vector<1x16x64xf32>
    %135 = vector.shape_cast %134 : vector<1x16x64xf32> to vector<16x64xf32>
    %cst_139 = arith.constant dense<0.000000e+00> : vector<16x32xf32>
    %136 = tpu.matmul %135, %76, %cst_139 {dimension_numbers = #tpu.dot_dimension_numbers<[1], [0], [0], [1], [0, 0, 1, 1], [], []>} : vector<16x64xf32>, vector<64x32xf32>, vector<16x32xf32> -> vector<16x32xf32>
    %c8_140 = arith.constant 8 : index
    %c0_141 = arith.constant 0 : index
    %c0_142 = arith.constant 0 : index
    %137 = vector.load %arg6[%c8_140, %c0_141, %c0_142] : memref<9x32x32xf32, #tpu.memory_space<vmem>>, vector<1x32x32xf32>
    %138 = vector.shape_cast %137 : vector<1x32x32xf32> to vector<32x32xf32>
    %cst_143 = arith.constant dense<0.000000e+00> : vector<16x32xf32>
    %139 = tpu.matmul %136, %138, %cst_143 {dimension_numbers = #tpu.dot_dimension_numbers<[1], [0], [0], [1], [0, 0, 1, 1], [], []>} : vector<16x32xf32>, vector<32x32xf32>, vector<16x32xf32> -> vector<16x32xf32>
    %140 = arith.addf %133, %139 : vector<16x32xf32>
    %c0_144 = arith.constant 0 : index
    %c0_145 = arith.constant 0 : index
    %141 = vector.load %arg7[%c0_144, %c0_145] : memref<1x32xf32, #tpu.memory_space<vmem>>, vector<1x32xf32>
    %142 = vector.broadcast %141 : vector<1x32xf32> to vector<16x32xf32>
    %143 = arith.addf %140, %142 : vector<16x32xf32>
    %cst_146 = arith.constant 0.000000e+00 : f32
    %144 = vector.broadcast %cst_146 : f32 to vector<16x32xf32>
    %145 = arith.cmpf ogt, %143, %144 : vector<16x32xf32>
    %cst_147 = arith.constant 0.000000e+00 : f32
    %146 = vector.broadcast %cst_147 : f32 to vector<16x32xf32>
    %147 = arith.minimumf %143, %146 : vector<16x32xf32>
    %148 = math.exp %147 : vector<16x32xf32>
    %cst_148 = arith.constant 1.000000e+00 : f32
    %149 = vector.broadcast %cst_148 : f32 to vector<16x32xf32>
    %150 = arith.subf %148, %149 : vector<16x32xf32>
    %151 = arith.select %145, %143, %150 : vector<16x32xi1>, vector<16x32xf32>
    %cst_149 = arith.constant 0.000000e+00 : f32
    %152 = vector.broadcast %cst_149 : f32 to vector<4x32xf32>
    %c0_150 = arith.constant 0 : index
    %c0_151 = arith.constant 0 : index
    %c0_152 = arith.constant 0 : index
    %153 = vector.load %arg8[%c0_150, %c0_151, %c0_152] : memref<9x4x16xf32, #tpu.memory_space<vmem>>, vector<1x4x16xf32>
    %154 = vector.shape_cast %153 : vector<1x4x16xf32> to vector<4x16xf32>
    %cst_153 = arith.constant dense<0.000000e+00> : vector<4x32xf32>
    %155 = tpu.matmul %154, %151, %cst_153 {dimension_numbers = #tpu.dot_dimension_numbers<[1], [0], [0], [1], [0, 0, 1, 1], [], []>} : vector<4x16xf32>, vector<16x32xf32>, vector<4x32xf32> -> vector<4x32xf32>
    %c0_154 = arith.constant 0 : index
    %c0_155 = arith.constant 0 : index
    %c0_156 = arith.constant 0 : index
    %156 = vector.load %arg9[%c0_154, %c0_155, %c0_156] : memref<9x32x32xf32, #tpu.memory_space<vmem>>, vector<1x32x32xf32>
    %157 = vector.shape_cast %156 : vector<1x32x32xf32> to vector<32x32xf32>
    %cst_157 = arith.constant dense<0.000000e+00> : vector<4x32xf32>
    %158 = tpu.matmul %155, %157, %cst_157 {dimension_numbers = #tpu.dot_dimension_numbers<[1], [0], [0], [1], [0, 0, 1, 1], [], []>} : vector<4x32xf32>, vector<32x32xf32>, vector<4x32xf32> -> vector<4x32xf32>
    %159 = arith.addf %152, %158 : vector<4x32xf32>
    %c1_158 = arith.constant 1 : index
    %c0_159 = arith.constant 0 : index
    %c0_160 = arith.constant 0 : index
    %160 = vector.load %arg8[%c1_158, %c0_159, %c0_160] : memref<9x4x16xf32, #tpu.memory_space<vmem>>, vector<1x4x16xf32>
    %161 = vector.shape_cast %160 : vector<1x4x16xf32> to vector<4x16xf32>
    %cst_161 = arith.constant dense<0.000000e+00> : vector<4x32xf32>
    %162 = tpu.matmul %161, %151, %cst_161 {dimension_numbers = #tpu.dot_dimension_numbers<[1], [0], [0], [1], [0, 0, 1, 1], [], []>} : vector<4x16xf32>, vector<16x32xf32>, vector<4x32xf32> -> vector<4x32xf32>
    %c1_162 = arith.constant 1 : index
    %c0_163 = arith.constant 0 : index
    %c0_164 = arith.constant 0 : index
    %163 = vector.load %arg9[%c1_162, %c0_163, %c0_164] : memref<9x32x32xf32, #tpu.memory_space<vmem>>, vector<1x32x32xf32>
    %164 = vector.shape_cast %163 : vector<1x32x32xf32> to vector<32x32xf32>
    %cst_165 = arith.constant dense<0.000000e+00> : vector<4x32xf32>
    %165 = tpu.matmul %162, %164, %cst_165 {dimension_numbers = #tpu.dot_dimension_numbers<[1], [0], [0], [1], [0, 0, 1, 1], [], []>} : vector<4x32xf32>, vector<32x32xf32>, vector<4x32xf32> -> vector<4x32xf32>
    %166 = arith.addf %159, %165 : vector<4x32xf32>
    %c2_166 = arith.constant 2 : index
    %c0_167 = arith.constant 0 : index
    %c0_168 = arith.constant 0 : index
    %167 = vector.load %arg8[%c2_166, %c0_167, %c0_168] : memref<9x4x16xf32, #tpu.memory_space<vmem>>, vector<1x4x16xf32>
    %168 = vector.shape_cast %167 : vector<1x4x16xf32> to vector<4x16xf32>
    %cst_169 = arith.constant dense<0.000000e+00> : vector<4x32xf32>
    %169 = tpu.matmul %168, %151, %cst_169 {dimension_numbers = #tpu.dot_dimension_numbers<[1], [0], [0], [1], [0, 0, 1, 1], [], []>} : vector<4x16xf32>, vector<16x32xf32>, vector<4x32xf32> -> vector<4x32xf32>
    %c2_170 = arith.constant 2 : index
    %c0_171 = arith.constant 0 : index
    %c0_172 = arith.constant 0 : index
    %170 = vector.load %arg9[%c2_170, %c0_171, %c0_172] : memref<9x32x32xf32, #tpu.memory_space<vmem>>, vector<1x32x32xf32>
    %171 = vector.shape_cast %170 : vector<1x32x32xf32> to vector<32x32xf32>
    %cst_173 = arith.constant dense<0.000000e+00> : vector<4x32xf32>
    %172 = tpu.matmul %169, %171, %cst_173 {dimension_numbers = #tpu.dot_dimension_numbers<[1], [0], [0], [1], [0, 0, 1, 1], [], []>} : vector<4x32xf32>, vector<32x32xf32>, vector<4x32xf32> -> vector<4x32xf32>
    %173 = arith.addf %166, %172 : vector<4x32xf32>
    %c3_174 = arith.constant 3 : index
    %c0_175 = arith.constant 0 : index
    %c0_176 = arith.constant 0 : index
    %174 = vector.load %arg8[%c3_174, %c0_175, %c0_176] : memref<9x4x16xf32, #tpu.memory_space<vmem>>, vector<1x4x16xf32>
    %175 = vector.shape_cast %174 : vector<1x4x16xf32> to vector<4x16xf32>
    %cst_177 = arith.constant dense<0.000000e+00> : vector<4x32xf32>
    %176 = tpu.matmul %175, %151, %cst_177 {dimension_numbers = #tpu.dot_dimension_numbers<[1], [0], [0], [1], [0, 0, 1, 1], [], []>} : vector<4x16xf32>, vector<16x32xf32>, vector<4x32xf32> -> vector<4x32xf32>
    %c3_178 = arith.constant 3 : index
    %c0_179 = arith.constant 0 : index
    %c0_180 = arith.constant 0 : index
    %177 = vector.load %arg9[%c3_178, %c0_179, %c0_180] : memref<9x32x32xf32, #tpu.memory_space<vmem>>, vector<1x32x32xf32>
    %178 = vector.shape_cast %177 : vector<1x32x32xf32> to vector<32x32xf32>
    %cst_181 = arith.constant dense<0.000000e+00> : vector<4x32xf32>
    %179 = tpu.matmul %176, %178, %cst_181 {dimension_numbers = #tpu.dot_dimension_numbers<[1], [0], [0], [1], [0, 0, 1, 1], [], []>} : vector<4x32xf32>, vector<32x32xf32>, vector<4x32xf32> -> vector<4x32xf32>
    %180 = arith.addf %173, %179 : vector<4x32xf32>
    %c4_182 = arith.constant 4 : index
    %c0_183 = arith.constant 0 : index
    %c0_184 = arith.constant 0 : index
    %181 = vector.load %arg8[%c4_182, %c0_183, %c0_184] : memref<9x4x16xf32, #tpu.memory_space<vmem>>, vector<1x4x16xf32>
    %182 = vector.shape_cast %181 : vector<1x4x16xf32> to vector<4x16xf32>
    %cst_185 = arith.constant dense<0.000000e+00> : vector<4x32xf32>
    %183 = tpu.matmul %182, %151, %cst_185 {dimension_numbers = #tpu.dot_dimension_numbers<[1], [0], [0], [1], [0, 0, 1, 1], [], []>} : vector<4x16xf32>, vector<16x32xf32>, vector<4x32xf32> -> vector<4x32xf32>
    %c4_186 = arith.constant 4 : index
    %c0_187 = arith.constant 0 : index
    %c0_188 = arith.constant 0 : index
    %184 = vector.load %arg9[%c4_186, %c0_187, %c0_188] : memref<9x32x32xf32, #tpu.memory_space<vmem>>, vector<1x32x32xf32>
    %185 = vector.shape_cast %184 : vector<1x32x32xf32> to vector<32x32xf32>
    %cst_189 = arith.constant dense<0.000000e+00> : vector<4x32xf32>
    %186 = tpu.matmul %183, %185, %cst_189 {dimension_numbers = #tpu.dot_dimension_numbers<[1], [0], [0], [1], [0, 0, 1, 1], [], []>} : vector<4x32xf32>, vector<32x32xf32>, vector<4x32xf32> -> vector<4x32xf32>
    %187 = arith.addf %180, %186 : vector<4x32xf32>
    %c5_190 = arith.constant 5 : index
    %c0_191 = arith.constant 0 : index
    %c0_192 = arith.constant 0 : index
    %188 = vector.load %arg8[%c5_190, %c0_191, %c0_192] : memref<9x4x16xf32, #tpu.memory_space<vmem>>, vector<1x4x16xf32>
    %189 = vector.shape_cast %188 : vector<1x4x16xf32> to vector<4x16xf32>
    %cst_193 = arith.constant dense<0.000000e+00> : vector<4x32xf32>
    %190 = tpu.matmul %189, %151, %cst_193 {dimension_numbers = #tpu.dot_dimension_numbers<[1], [0], [0], [1], [0, 0, 1, 1], [], []>} : vector<4x16xf32>, vector<16x32xf32>, vector<4x32xf32> -> vector<4x32xf32>
    %c5_194 = arith.constant 5 : index
    %c0_195 = arith.constant 0 : index
    %c0_196 = arith.constant 0 : index
    %191 = vector.load %arg9[%c5_194, %c0_195, %c0_196] : memref<9x32x32xf32, #tpu.memory_space<vmem>>, vector<1x32x32xf32>
    %192 = vector.shape_cast %191 : vector<1x32x32xf32> to vector<32x32xf32>
    %cst_197 = arith.constant dense<0.000000e+00> : vector<4x32xf32>
    %193 = tpu.matmul %190, %192, %cst_197 {dimension_numbers = #tpu.dot_dimension_numbers<[1], [0], [0], [1], [0, 0, 1, 1], [], []>} : vector<4x32xf32>, vector<32x32xf32>, vector<4x32xf32> -> vector<4x32xf32>
    %194 = arith.addf %187, %193 : vector<4x32xf32>
    %c6_198 = arith.constant 6 : index
    %c0_199 = arith.constant 0 : index
    %c0_200 = arith.constant 0 : index
    %195 = vector.load %arg8[%c6_198, %c0_199, %c0_200] : memref<9x4x16xf32, #tpu.memory_space<vmem>>, vector<1x4x16xf32>
    %196 = vector.shape_cast %195 : vector<1x4x16xf32> to vector<4x16xf32>
    %cst_201 = arith.constant dense<0.000000e+00> : vector<4x32xf32>
    %197 = tpu.matmul %196, %151, %cst_201 {dimension_numbers = #tpu.dot_dimension_numbers<[1], [0], [0], [1], [0, 0, 1, 1], [], []>} : vector<4x16xf32>, vector<16x32xf32>, vector<4x32xf32> -> vector<4x32xf32>
    %c6_202 = arith.constant 6 : index
    %c0_203 = arith.constant 0 : index
    %c0_204 = arith.constant 0 : index
    %198 = vector.load %arg9[%c6_202, %c0_203, %c0_204] : memref<9x32x32xf32, #tpu.memory_space<vmem>>, vector<1x32x32xf32>
    %199 = vector.shape_cast %198 : vector<1x32x32xf32> to vector<32x32xf32>
    %cst_205 = arith.constant dense<0.000000e+00> : vector<4x32xf32>
    %200 = tpu.matmul %197, %199, %cst_205 {dimension_numbers = #tpu.dot_dimension_numbers<[1], [0], [0], [1], [0, 0, 1, 1], [], []>} : vector<4x32xf32>, vector<32x32xf32>, vector<4x32xf32> -> vector<4x32xf32>
    %201 = arith.addf %194, %200 : vector<4x32xf32>
    %c7_206 = arith.constant 7 : index
    %c0_207 = arith.constant 0 : index
    %c0_208 = arith.constant 0 : index
    %202 = vector.load %arg8[%c7_206, %c0_207, %c0_208] : memref<9x4x16xf32, #tpu.memory_space<vmem>>, vector<1x4x16xf32>
    %203 = vector.shape_cast %202 : vector<1x4x16xf32> to vector<4x16xf32>
    %cst_209 = arith.constant dense<0.000000e+00> : vector<4x32xf32>
    %204 = tpu.matmul %203, %151, %cst_209 {dimension_numbers = #tpu.dot_dimension_numbers<[1], [0], [0], [1], [0, 0, 1, 1], [], []>} : vector<4x16xf32>, vector<16x32xf32>, vector<4x32xf32> -> vector<4x32xf32>
    %c7_210 = arith.constant 7 : index
    %c0_211 = arith.constant 0 : index
    %c0_212 = arith.constant 0 : index
    %205 = vector.load %arg9[%c7_210, %c0_211, %c0_212] : memref<9x32x32xf32, #tpu.memory_space<vmem>>, vector<1x32x32xf32>
    %206 = vector.shape_cast %205 : vector<1x32x32xf32> to vector<32x32xf32>
    %cst_213 = arith.constant dense<0.000000e+00> : vector<4x32xf32>
    %207 = tpu.matmul %204, %206, %cst_213 {dimension_numbers = #tpu.dot_dimension_numbers<[1], [0], [0], [1], [0, 0, 1, 1], [], []>} : vector<4x32xf32>, vector<32x32xf32>, vector<4x32xf32> -> vector<4x32xf32>
    %208 = arith.addf %201, %207 : vector<4x32xf32>
    %c8_214 = arith.constant 8 : index
    %c0_215 = arith.constant 0 : index
    %c0_216 = arith.constant 0 : index
    %209 = vector.load %arg8[%c8_214, %c0_215, %c0_216] : memref<9x4x16xf32, #tpu.memory_space<vmem>>, vector<1x4x16xf32>
    %210 = vector.shape_cast %209 : vector<1x4x16xf32> to vector<4x16xf32>
    %cst_217 = arith.constant dense<0.000000e+00> : vector<4x32xf32>
    %211 = tpu.matmul %210, %151, %cst_217 {dimension_numbers = #tpu.dot_dimension_numbers<[1], [0], [0], [1], [0, 0, 1, 1], [], []>} : vector<4x16xf32>, vector<16x32xf32>, vector<4x32xf32> -> vector<4x32xf32>
    %c8_218 = arith.constant 8 : index
    %c0_219 = arith.constant 0 : index
    %c0_220 = arith.constant 0 : index
    %212 = vector.load %arg9[%c8_218, %c0_219, %c0_220] : memref<9x32x32xf32, #tpu.memory_space<vmem>>, vector<1x32x32xf32>
    %213 = vector.shape_cast %212 : vector<1x32x32xf32> to vector<32x32xf32>
    %cst_221 = arith.constant dense<0.000000e+00> : vector<4x32xf32>
    %214 = tpu.matmul %211, %213, %cst_221 {dimension_numbers = #tpu.dot_dimension_numbers<[1], [0], [0], [1], [0, 0, 1, 1], [], []>} : vector<4x32xf32>, vector<32x32xf32>, vector<4x32xf32> -> vector<4x32xf32>
    %215 = arith.addf %208, %214 : vector<4x32xf32>
    %c0_222 = arith.constant 0 : index
    %c0_223 = arith.constant 0 : index
    %216 = vector.load %arg10[%c0_222, %c0_223] : memref<1x32xf32, #tpu.memory_space<vmem>>, vector<1x32xf32>
    %217 = vector.broadcast %216 : vector<1x32xf32> to vector<4x32xf32>
    %218 = arith.addf %215, %217 : vector<4x32xf32>
    %cst_224 = arith.constant 0.000000e+00 : f32
    %219 = vector.broadcast %cst_224 : f32 to vector<4x32xf32>
    %220 = arith.cmpf ogt, %218, %219 : vector<4x32xf32>
    %cst_225 = arith.constant 0.000000e+00 : f32
    %221 = vector.broadcast %cst_225 : f32 to vector<4x32xf32>
    %222 = arith.minimumf %218, %221 : vector<4x32xf32>
    %223 = math.exp %222 : vector<4x32xf32>
    %cst_226 = arith.constant 1.000000e+00 : f32
    %224 = vector.broadcast %cst_226 : f32 to vector<4x32xf32>
    %225 = arith.subf %223, %224 : vector<4x32xf32>
    %226 = arith.select %220, %218, %225 : vector<4x32xi1>, vector<4x32xf32>
    %cst_227 = arith.constant 0.000000e+00 : f32
    %227 = vector.broadcast %cst_227 : f32 to vector<1x32xf32>
    %c0_228 = arith.constant 0 : index
    %c0_229 = arith.constant 0 : index
    %c0_230 = arith.constant 0 : index
    %228 = vector.load %arg11[%c0_228, %c0_229, %c0_230] : memref<9x1x4xf32, #tpu.memory_space<vmem>>, vector<1x1x4xf32>
    %229 = vector.shape_cast %228 : vector<1x1x4xf32> to vector<1x4xf32>
    %cst_231 = arith.constant dense<0.000000e+00> : vector<1x32xf32>
    %230 = tpu.matmul %229, %226, %cst_231 {dimension_numbers = #tpu.dot_dimension_numbers<[1], [0], [0], [1], [0, 0, 1, 1], [], []>} : vector<1x4xf32>, vector<4x32xf32>, vector<1x32xf32> -> vector<1x32xf32>
    %c0_232 = arith.constant 0 : index
    %c0_233 = arith.constant 0 : index
    %c0_234 = arith.constant 0 : index
    %231 = vector.load %arg12[%c0_232, %c0_233, %c0_234] : memref<9x32x32xf32, #tpu.memory_space<vmem>>, vector<1x32x32xf32>
    %232 = vector.shape_cast %231 : vector<1x32x32xf32> to vector<32x32xf32>
    %cst_235 = arith.constant dense<0.000000e+00> : vector<1x32xf32>
    %233 = tpu.matmul %230, %232, %cst_235 {dimension_numbers = #tpu.dot_dimension_numbers<[1], [0], [0], [1], [0, 0, 1, 1], [], []>} : vector<1x32xf32>, vector<32x32xf32>, vector<1x32xf32> -> vector<1x32xf32>
    %234 = arith.addf %227, %233 : vector<1x32xf32>
    %c1_236 = arith.constant 1 : index
    %c0_237 = arith.constant 0 : index
    %c0_238 = arith.constant 0 : index
    %235 = vector.load %arg11[%c1_236, %c0_237, %c0_238] : memref<9x1x4xf32, #tpu.memory_space<vmem>>, vector<1x1x4xf32>
    %236 = vector.shape_cast %235 : vector<1x1x4xf32> to vector<1x4xf32>
    %cst_239 = arith.constant dense<0.000000e+00> : vector<1x32xf32>
    %237 = tpu.matmul %236, %226, %cst_239 {dimension_numbers = #tpu.dot_dimension_numbers<[1], [0], [0], [1], [0, 0, 1, 1], [], []>} : vector<1x4xf32>, vector<4x32xf32>, vector<1x32xf32> -> vector<1x32xf32>
    %c1_240 = arith.constant 1 : index
    %c0_241 = arith.constant 0 : index
    %c0_242 = arith.constant 0 : index
    %238 = vector.load %arg12[%c1_240, %c0_241, %c0_242] : memref<9x32x32xf32, #tpu.memory_space<vmem>>, vector<1x32x32xf32>
    %239 = vector.shape_cast %238 : vector<1x32x32xf32> to vector<32x32xf32>
    %cst_243 = arith.constant dense<0.000000e+00> : vector<1x32xf32>
    %240 = tpu.matmul %237, %239, %cst_243 {dimension_numbers = #tpu.dot_dimension_numbers<[1], [0], [0], [1], [0, 0, 1, 1], [], []>} : vector<1x32xf32>, vector<32x32xf32>, vector<1x32xf32> -> vector<1x32xf32>
    %241 = arith.addf %234, %240 : vector<1x32xf32>
    %c2_244 = arith.constant 2 : index
    %c0_245 = arith.constant 0 : index
    %c0_246 = arith.constant 0 : index
    %242 = vector.load %arg11[%c2_244, %c0_245, %c0_246] : memref<9x1x4xf32, #tpu.memory_space<vmem>>, vector<1x1x4xf32>
    %243 = vector.shape_cast %242 : vector<1x1x4xf32> to vector<1x4xf32>
    %cst_247 = arith.constant dense<0.000000e+00> : vector<1x32xf32>
    %244 = tpu.matmul %243, %226, %cst_247 {dimension_numbers = #tpu.dot_dimension_numbers<[1], [0], [0], [1], [0, 0, 1, 1], [], []>} : vector<1x4xf32>, vector<4x32xf32>, vector<1x32xf32> -> vector<1x32xf32>
    %c2_248 = arith.constant 2 : index
    %c0_249 = arith.constant 0 : index
    %c0_250 = arith.constant 0 : index
    %245 = vector.load %arg12[%c2_248, %c0_249, %c0_250] : memref<9x32x32xf32, #tpu.memory_space<vmem>>, vector<1x32x32xf32>
    %246 = vector.shape_cast %245 : vector<1x32x32xf32> to vector<32x32xf32>
    %cst_251 = arith.constant dense<0.000000e+00> : vector<1x32xf32>
    %247 = tpu.matmul %244, %246, %cst_251 {dimension_numbers = #tpu.dot_dimension_numbers<[1], [0], [0], [1], [0, 0, 1, 1], [], []>} : vector<1x32xf32>, vector<32x32xf32>, vector<1x32xf32> -> vector<1x32xf32>
    %248 = arith.addf %241, %247 : vector<1x32xf32>
    %c3_252 = arith.constant 3 : index
    %c0_253 = arith.constant 0 : index
    %c0_254 = arith.constant 0 : index
    %249 = vector.load %arg11[%c3_252, %c0_253, %c0_254] : memref<9x1x4xf32, #tpu.memory_space<vmem>>, vector<1x1x4xf32>
    %250 = vector.shape_cast %249 : vector<1x1x4xf32> to vector<1x4xf32>
    %cst_255 = arith.constant dense<0.000000e+00> : vector<1x32xf32>
    %251 = tpu.matmul %250, %226, %cst_255 {dimension_numbers = #tpu.dot_dimension_numbers<[1], [0], [0], [1], [0, 0, 1, 1], [], []>} : vector<1x4xf32>, vector<4x32xf32>, vector<1x32xf32> -> vector<1x32xf32>
    %c3_256 = arith.constant 3 : index
    %c0_257 = arith.constant 0 : index
    %c0_258 = arith.constant 0 : index
    %252 = vector.load %arg12[%c3_256, %c0_257, %c0_258] : memref<9x32x32xf32, #tpu.memory_space<vmem>>, vector<1x32x32xf32>
    %253 = vector.shape_cast %252 : vector<1x32x32xf32> to vector<32x32xf32>
    %cst_259 = arith.constant dense<0.000000e+00> : vector<1x32xf32>
    %254 = tpu.matmul %251, %253, %cst_259 {dimension_numbers = #tpu.dot_dimension_numbers<[1], [0], [0], [1], [0, 0, 1, 1], [], []>} : vector<1x32xf32>, vector<32x32xf32>, vector<1x32xf32> -> vector<1x32xf32>
    %255 = arith.addf %248, %254 : vector<1x32xf32>
    %c4_260 = arith.constant 4 : index
    %c0_261 = arith.constant 0 : index
    %c0_262 = arith.constant 0 : index
    %256 = vector.load %arg11[%c4_260, %c0_261, %c0_262] : memref<9x1x4xf32, #tpu.memory_space<vmem>>, vector<1x1x4xf32>
    %257 = vector.shape_cast %256 : vector<1x1x4xf32> to vector<1x4xf32>
    %cst_263 = arith.constant dense<0.000000e+00> : vector<1x32xf32>
    %258 = tpu.matmul %257, %226, %cst_263 {dimension_numbers = #tpu.dot_dimension_numbers<[1], [0], [0], [1], [0, 0, 1, 1], [], []>} : vector<1x4xf32>, vector<4x32xf32>, vector<1x32xf32> -> vector<1x32xf32>
    %c4_264 = arith.constant 4 : index
    %c0_265 = arith.constant 0 : index
    %c0_266 = arith.constant 0 : index
    %259 = vector.load %arg12[%c4_264, %c0_265, %c0_266] : memref<9x32x32xf32, #tpu.memory_space<vmem>>, vector<1x32x32xf32>
    %260 = vector.shape_cast %259 : vector<1x32x32xf32> to vector<32x32xf32>
    %cst_267 = arith.constant dense<0.000000e+00> : vector<1x32xf32>
    %261 = tpu.matmul %258, %260, %cst_267 {dimension_numbers = #tpu.dot_dimension_numbers<[1], [0], [0], [1], [0, 0, 1, 1], [], []>} : vector<1x32xf32>, vector<32x32xf32>, vector<1x32xf32> -> vector<1x32xf32>
    %262 = arith.addf %255, %261 : vector<1x32xf32>
    %c5_268 = arith.constant 5 : index
    %c0_269 = arith.constant 0 : index
    %c0_270 = arith.constant 0 : index
    %263 = vector.load %arg11[%c5_268, %c0_269, %c0_270] : memref<9x1x4xf32, #tpu.memory_space<vmem>>, vector<1x1x4xf32>
    %264 = vector.shape_cast %263 : vector<1x1x4xf32> to vector<1x4xf32>
    %cst_271 = arith.constant dense<0.000000e+00> : vector<1x32xf32>
    %265 = tpu.matmul %264, %226, %cst_271 {dimension_numbers = #tpu.dot_dimension_numbers<[1], [0], [0], [1], [0, 0, 1, 1], [], []>} : vector<1x4xf32>, vector<4x32xf32>, vector<1x32xf32> -> vector<1x32xf32>
    %c5_272 = arith.constant 5 : index
    %c0_273 = arith.constant 0 : index
    %c0_274 = arith.constant 0 : index
    %266 = vector.load %arg12[%c5_272, %c0_273, %c0_274] : memref<9x32x32xf32, #tpu.memory_space<vmem>>, vector<1x32x32xf32>
    %267 = vector.shape_cast %266 : vector<1x32x32xf32> to vector<32x32xf32>
    %cst_275 = arith.constant dense<0.000000e+00> : vector<1x32xf32>
    %268 = tpu.matmul %265, %267, %cst_275 {dimension_numbers = #tpu.dot_dimension_numbers<[1], [0], [0], [1], [0, 0, 1, 1], [], []>} : vector<1x32xf32>, vector<32x32xf32>, vector<1x32xf32> -> vector<1x32xf32>
    %269 = arith.addf %262, %268 : vector<1x32xf32>
    %c6_276 = arith.constant 6 : index
    %c0_277 = arith.constant 0 : index
    %c0_278 = arith.constant 0 : index
    %270 = vector.load %arg11[%c6_276, %c0_277, %c0_278] : memref<9x1x4xf32, #tpu.memory_space<vmem>>, vector<1x1x4xf32>
    %271 = vector.shape_cast %270 : vector<1x1x4xf32> to vector<1x4xf32>
    %cst_279 = arith.constant dense<0.000000e+00> : vector<1x32xf32>
    %272 = tpu.matmul %271, %226, %cst_279 {dimension_numbers = #tpu.dot_dimension_numbers<[1], [0], [0], [1], [0, 0, 1, 1], [], []>} : vector<1x4xf32>, vector<4x32xf32>, vector<1x32xf32> -> vector<1x32xf32>
    %c6_280 = arith.constant 6 : index
    %c0_281 = arith.constant 0 : index
    %c0_282 = arith.constant 0 : index
    %273 = vector.load %arg12[%c6_280, %c0_281, %c0_282] : memref<9x32x32xf32, #tpu.memory_space<vmem>>, vector<1x32x32xf32>
    %274 = vector.shape_cast %273 : vector<1x32x32xf32> to vector<32x32xf32>
    %cst_283 = arith.constant dense<0.000000e+00> : vector<1x32xf32>
    %275 = tpu.matmul %272, %274, %cst_283 {dimension_numbers = #tpu.dot_dimension_numbers<[1], [0], [0], [1], [0, 0, 1, 1], [], []>} : vector<1x32xf32>, vector<32x32xf32>, vector<1x32xf32> -> vector<1x32xf32>
    %276 = arith.addf %269, %275 : vector<1x32xf32>
    %c7_284 = arith.constant 7 : index
    %c0_285 = arith.constant 0 : index
    %c0_286 = arith.constant 0 : index
    %277 = vector.load %arg11[%c7_284, %c0_285, %c0_286] : memref<9x1x4xf32, #tpu.memory_space<vmem>>, vector<1x1x4xf32>
    %278 = vector.shape_cast %277 : vector<1x1x4xf32> to vector<1x4xf32>
    %cst_287 = arith.constant dense<0.000000e+00> : vector<1x32xf32>
    %279 = tpu.matmul %278, %226, %cst_287 {dimension_numbers = #tpu.dot_dimension_numbers<[1], [0], [0], [1], [0, 0, 1, 1], [], []>} : vector<1x4xf32>, vector<4x32xf32>, vector<1x32xf32> -> vector<1x32xf32>
    %c7_288 = arith.constant 7 : index
    %c0_289 = arith.constant 0 : index
    %c0_290 = arith.constant 0 : index
    %280 = vector.load %arg12[%c7_288, %c0_289, %c0_290] : memref<9x32x32xf32, #tpu.memory_space<vmem>>, vector<1x32x32xf32>
    %281 = vector.shape_cast %280 : vector<1x32x32xf32> to vector<32x32xf32>
    %cst_291 = arith.constant dense<0.000000e+00> : vector<1x32xf32>
    %282 = tpu.matmul %279, %281, %cst_291 {dimension_numbers = #tpu.dot_dimension_numbers<[1], [0], [0], [1], [0, 0, 1, 1], [], []>} : vector<1x32xf32>, vector<32x32xf32>, vector<1x32xf32> -> vector<1x32xf32>
    %283 = arith.addf %276, %282 : vector<1x32xf32>
    %c8_292 = arith.constant 8 : index
    %c0_293 = arith.constant 0 : index
    %c0_294 = arith.constant 0 : index
    %284 = vector.load %arg11[%c8_292, %c0_293, %c0_294] : memref<9x1x4xf32, #tpu.memory_space<vmem>>, vector<1x1x4xf32>
    %285 = vector.shape_cast %284 : vector<1x1x4xf32> to vector<1x4xf32>
    %cst_295 = arith.constant dense<0.000000e+00> : vector<1x32xf32>
    %286 = tpu.matmul %285, %226, %cst_295 {dimension_numbers = #tpu.dot_dimension_numbers<[1], [0], [0], [1], [0, 0, 1, 1], [], []>} : vector<1x4xf32>, vector<4x32xf32>, vector<1x32xf32> -> vector<1x32xf32>
    %c8_296 = arith.constant 8 : index
    %c0_297 = arith.constant 0 : index
    %c0_298 = arith.constant 0 : index
    %287 = vector.load %arg12[%c8_296, %c0_297, %c0_298] : memref<9x32x32xf32, #tpu.memory_space<vmem>>, vector<1x32x32xf32>
    %288 = vector.shape_cast %287 : vector<1x32x32xf32> to vector<32x32xf32>
    %cst_299 = arith.constant dense<0.000000e+00> : vector<1x32xf32>
    %289 = tpu.matmul %286, %288, %cst_299 {dimension_numbers = #tpu.dot_dimension_numbers<[1], [0], [0], [1], [0, 0, 1, 1], [], []>} : vector<1x32xf32>, vector<32x32xf32>, vector<1x32xf32> -> vector<1x32xf32>
    %290 = arith.addf %283, %289 : vector<1x32xf32>
    %c0_300 = arith.constant 0 : index
    %c0_301 = arith.constant 0 : index
    %291 = vector.load %arg13[%c0_300, %c0_301] : memref<1x32xf32, #tpu.memory_space<vmem>>, vector<1x32xf32>
    %292 = arith.addf %290, %291 : vector<1x32xf32>
    %cst_302 = arith.constant 0.000000e+00 : f32
    %293 = vector.broadcast %cst_302 : f32 to vector<1x32xf32>
    %294 = arith.cmpf ogt, %292, %293 : vector<1x32xf32>
    %cst_303 = arith.constant 0.000000e+00 : f32
    %295 = vector.broadcast %cst_303 : f32 to vector<1x32xf32>
    %296 = arith.minimumf %292, %295 : vector<1x32xf32>
    %297 = math.exp %296 : vector<1x32xf32>
    %cst_304 = arith.constant 1.000000e+00 : f32
    %298 = vector.broadcast %cst_304 : f32 to vector<1x32xf32>
    %299 = arith.subf %297, %298 : vector<1x32xf32>
    %300 = arith.select %294, %292, %299 : vector<1x32xi1>, vector<1x32xf32>
    %c0_305 = arith.constant 0 : index
    %c0_306 = arith.constant 0 : index
    %c0_307 = arith.constant 0 : index
    %301 = vector.load %arg14[%c0_305, %c0_306, %c0_307] : memref<1x1x32xf32, #tpu.memory_space<vmem>>, vector<1x1x32xf32>
    %302 = vector.shape_cast %301 : vector<1x1x32xf32> to vector<1x32xf32>
    %303 = vector.shape_cast %300 : vector<1x32xf32> to vector<1x1x32xf32>
    tpu.vector_store %arg14[%c0_305, %c0_306, %c0_307], %303 {strides = array<i32>} : memref<1x1x32xf32, #tpu.memory_space<vmem>>, vector<1x1x32xf32>,
    return
  }
  func.func @transform_0(%arg0: i32) -> (i32, i32, i32) {
    %c0_i32 = arith.constant 0 : i32
    %c0_i32_0 = arith.constant 0 : i32
    %c0_i32_1 = arith.constant 0 : i32
    return %arg0, %c0_i32, %c0_i32_0 : i32, i32, i32
  }
  func.func @transform_1(%arg0: i32) -> (i32, i32, i32) {
    %c0_i32 = arith.constant 0 : i32
    %c0_i32_0 = arith.constant 0 : i32
    %c0_i32_1 = arith.constant 0 : i32
    %c0_i32_2 = arith.constant 0 : i32
    return %c0_i32, %c0_i32_0, %c0_i32_1 : i32, i32, i32
  }
  func.func @transform_2(%arg0: i32) -> (i32, i32, i32) {
    %c0_i32 = arith.constant 0 : i32
    %c0_i32_0 = arith.constant 0 : i32
    %c0_i32_1 = arith.constant 0 : i32
    %c0_i32_2 = arith.constant 0 : i32
    return %c0_i32, %c0_i32_0, %c0_i32_1 : i32, i32, i32
  }
  func.func @transform_3(%arg0: i32) -> (i32, i32) {
    %c0_i32 = arith.constant 0 : i32
    %c0_i32_0 = arith.constant 0 : i32
    %c0_i32_1 = arith.constant 0 : i32
    return %c0_i32, %c0_i32_0 : i32, i32
  }
  func.func @transform_4(%arg0: i32) -> (i32, i32, i32) {
    %c0_i32 = arith.constant 0 : i32
    %c0_i32_0 = arith.constant 0 : i32
    %c0_i32_1 = arith.constant 0 : i32
    %c0_i32_2 = arith.constant 0 : i32
    return %c0_i32, %c0_i32_0, %c0_i32_1 : i32, i32, i32
  }
  func.func @transform_5(%arg0: i32) -> (i32, i32, i32) {
    %c0_i32 = arith.constant 0 : i32
    %c0_i32_0 = arith.constant 0 : i32
    %c0_i32_1 = arith.constant 0 : i32
    %c0_i32_2 = arith.constant 0 : i32
    return %c0_i32, %c0_i32_0, %c0_i32_1 : i32, i32, i32
  }
  func.func @transform_6(%arg0: i32) -> (i32, i32) {
    %c0_i32 = arith.constant 0 : i32
    %c0_i32_0 = arith.constant 0 : i32
    %c0_i32_1 = arith.constant 0 : i32
    return %c0_i32, %c0_i32_0 : i32, i32
  }
  func.func @transform_7(%arg0: i32) -> (i32, i32, i32) {
    %c0_i32 = arith.constant 0 : i32
    %c0_i32_0 = arith.constant 0 : i32
    %c0_i32_1 = arith.constant 0 : i32
    %c0_i32_2 = arith.constant 0 : i32
    return %c0_i32, %c0_i32_0, %c0_i32_1 : i32, i32, i32
  }
  func.func @transform_8(%arg0: i32) -> (i32, i32, i32) {
    %c0_i32 = arith.constant 0 : i32
    %c0_i32_0 = arith.constant 0 : i32
    %c0_i32_1 = arith.constant 0 : i32
    %c0_i32_2 = arith.constant 0 : i32
    return %c0_i32, %c0_i32_0, %c0_i32_1 : i32, i32, i32
  }
  func.func @transform_9(%arg0: i32) -> (i32, i32) {
    %c0_i32 = arith.constant 0 : i32
    %c0_i32_0 = arith.constant 0 : i32
    %c0_i32_1 = arith.constant 0 : i32
    return %c0_i32, %c0_i32_0 : i32, i32
  }
  func.func @transform_10(%arg0: i32) -> (i32, i32, i32) {
    %c0_i32 = arith.constant 0 : i32
    %c0_i32_0 = arith.constant 0 : i32
    %c0_i32_1 = arith.constant 0 : i32
    %c0_i32_2 = arith.constant 0 : i32
    return %c0_i32, %c0_i32_0, %c0_i32_1 : i32, i32, i32
  }
  func.func @transform_11(%arg0: i32) -> (i32, i32, i32) {
    %c0_i32 = arith.constant 0 : i32
    %c0_i32_0 = arith.constant 0 : i32
    %c0_i32_1 = arith.constant 0 : i32
    %c0_i32_2 = arith.constant 0 : i32
    return %c0_i32, %c0_i32_0, %c0_i32_1 : i32, i32, i32
  }
  func.func @transform_12(%arg0: i32) -> (i32, i32) {
    %c0_i32 = arith.constant 0 : i32
    %c0_i32_0 = arith.constant 0 : i32
    %c0_i32_1 = arith.constant 0 : i32
    return %c0_i32, %c0_i32_0 : i32, i32
  }
  func.func @transform_13(%arg0: i32) -> (i32, i32, i32) {
    %c0_i32 = arith.constant 0 : i32
    %c0_i32_0 = arith.constant 0 : i32
    %c0_i32_1 = arith.constant 0 : i32
    return %arg0, %c0_i32, %c0_i32_0 : i32, i32, i32
  }
}

</mosaic_0001>

<llo_original>
// kernel: encoder_forward.1
$region0: #{encoder_forward.1}
  #allocation0 [shape = 'u32[]', space=smem, size = 0x4, offset = 0x4, fixed_abs, tag = 'smem constant byte address 0x4 - core index']
  #allocation1 [shape = 'u32[144,128]{1,0:T(1,128)}', space=vmem, size = 0x12000, scoped, tag = 'internal scratch']
  %s0 = inlined_call_operand.vmem [shape: f32[2,256,4], index: 0, kind: input, shape index: {}]
  %s1 = inlined_call_operand.hbm [shape: f32[9,64,256], index: 1, kind: input, shape index: {}]
  %s2 = inlined_call_operand.vmem [shape: f32[9,4,32], index: 2, kind: input, shape index: {}]
  %s3 = inlined_call_operand.vmem [shape: f32[1,32], index: 3, kind: input, shape index: {}]
  %s4 = inlined_call_operand.hbm [shape: f32[9,16,64], index: 4, kind: input, shape index: {}]
  %s5 = inlined_call_operand.vmem [shape: f32[9,32,32], index: 5, kind: input, shape index: {}]
  %s6 = inlined_call_operand.vmem [shape: f32[1,32], index: 6, kind: input, shape index: {}]
  %s7 = inlined_call_operand.vmem [shape: f32[9,4,16], index: 7, kind: input, shape index: {}]
  %s8 = inlined_call_operand.vmem [shape: f32[9,32,32], index: 8, kind: input, shape index: {}]
  %s9 = inlined_call_operand.vmem [shape: f32[1,32], index: 9, kind: input, shape index: {}]
  %s10 = inlined_call_operand.vmem [shape: f32[9,1,4], index: 10, kind: input, shape index: {}]
  %s11 = inlined_call_operand.hbm [shape: f32[9,32,32], index: 11, kind: input, shape index: {}]
  %s12 = inlined_call_operand.vmem [shape: f32[1,32], index: 12, kind: input, shape index: {}]
  %s13 = inlined_call_operand.hbm [shape: f32[2,1,32], index: 13, kind: output, shape index: {}]
  %s14 = sld [smem:[#allocation0]]
  $region97: #{encoder_forward.1} parent=0
    _
  %s16 = ssub.s32 1, %s14
  %s17 = scalar_select 0, %s16, %s14
  $region1: #{encoder_forward.1} parent=0
    #allocation2 [shape = 'u8[589824]{0}', space=vmem, size = 0x90000, scoped, tag = 'input window, operand 1, single buffered']
    #allocation3 [shape = 's32[2]{0}', space=sflag, size = 0x8, scoped, tag = 'scoped memory for encoder_forward.1']
    #allocation4 [shape = 's32[2]{0}', space=sflag, size = 0x8, scoped, tag = 'scoped memory for encoder_forward.1']
    #allocation5 [shape = 'u8[73728]{0}', space=vmem, size = 0x12000, scoped, tag = 'input window, operand 4, single buffered']
    #allocation6 [shape = 's32[1]{0}', space=sflag, size = 0x4, scoped, tag = 'scoped memory for encoder_forward.1']
    #allocation7 [shape = 'u8[147456]{0}', space=vmem, size = 0x24000, scoped, tag = 'input window, operand 11, single buffered']
    #allocation8 [shape = 'u8[1024]{0}', space=vmem, size = 0x400, scoped, tag = 'output window, operand 0']
    %18 = vsyncpa [#allocation3], 0
    %19 = vsyncpa [#allocation6], 0
    %20 = vsyncpa [#allocation4], 0
    %s21 = scalar_lea.sflag [#allocation4], 1
    %22 = vsyncpa %s21, 0
    loop: start=0, step=1, limit=4
    $region2: #{encoder_forward.1} parent=1 // loop_pre_header
      _
    $region3: #{encoder_forward.1} parent=1 // loop_header
      %s24 = sphi 0, %s28
      %p25 = scmp.ge.s32.totalorder %s24, 4
      %s34 = sphi 0, %s36
      %s37 = sphi 0, %s34
      %s38 = sphi 0, %s37
      %s54 = sphi 0, %s38
      %s58 = sphi 0, %s58
      %s60 = sphi 0, %s58
      %s61 = sphi 0, %s60
      %s75 = sphi 0, %s61
      %s79 = sphi 0, %s79
      %s81 = sphi 0, %s79
      %s82 = sphi 0, %s81
      %s96 = sphi 0, %s82
      %s100 = sphi 0, %s100
      %s102 = sphi 0, %s100
      %s103 = sphi 0, %s102
      %s117 = sphi 0, %s103
      %s121 = sphi 0, %s121
      %s123 = sphi 0, %s121
      %s124 = sphi 0, %s123
      %s138 = sphi 0, %s124
      %s142 = sphi 0, %s142
      %s144 = sphi 0, %s142
      %s145 = sphi 0, %s144
      %s159 = sphi 0, %s145
      %s163 = sphi 0, %s163
      %s165 = sphi 0, %s163
      %s166 = sphi 0, %s165
      %s180 = sphi 0, %s166
      %s184 = sphi 0, %s184
      %s186 = sphi 0, %s184
      %s187 = sphi 0, %s186
      %s201 = sphi 0, %s187
      %s205 = sphi 0, %s205
      %s207 = sphi 0, %s205
      %s208 = sphi 0, %s207
      %s222 = sphi 0, %s208
      %s226 = sphi 0, %s226
      %s228 = sphi 0, %s226
      %s229 = sphi 0, %s228
      %s243 = sphi 0, %s229
      %s247 = sphi 0, %s247
      %s249 = sphi 0, %s247
      %s250 = sphi 0, %s249
      %s264 = sphi 0, %s250
      %s268 = sphi 0, %s268
      %s270 = sphi 0, %s268
      %s271 = sphi 0, %s270
      %s285 = sphi 0, %s271
      %s289 = sphi 0, %s289
      %s291 = sphi 0, %s289
      %s292 = sphi 0, %s291
      %s306 = sphi 0, %s292
      %s312 = sphi 0, %s314
      %s315 = sphi 0, %s312
      %s316 = sphi 0, %s315
      %s332 = sphi 0, %s316
    $region4: #{encoder_forward.1} parent=1 // loop_header_branch
      %27 = sbr.rel (%p25) target = $region8
    $region5: #{encoder_forward.1} parent=1 // loop_body
      %s29 = ssub.s32 %s24, 1
      %s30 = ssub.s32 %s24, 2
      %s31 = sadd.s32 %s24, 1
      %s32 = ssub.s32 %s24, %s31
      %p33 = scmp.eq.s32.totalorder %s32, 0
      %s35 = sadd.s32 %s34, 1
      %s36 = scalar_select %p33, %s34, %s35
      %p39 = pneg %p33
      %p40 = scmp.eq.s32.totalorder %s24, 1
      %p41 = por %p39, %p40
      %p42 = scmp.ne.s32.totalorder %s34, %s37
      %p43 = scmp.eq.s32.totalorder %s24, 0
      %p44 = por %p42, %p43
      %p45 = scmp.ne.s32.totalorder %s34, %s37
      %p46 = scmp.eq.s32.totalorder %s29, 1
      %p47 = por %p45, %p46
      %p48 = scmp.ne.s32.totalorder %s37, %s38
      %p49 = scmp.eq.s32.totalorder %s29, 0
      %p50 = por %p48, %p49
      %p51 = scmp.ne.s32.totalorder %s37, %s38
      %p52 = scmp.eq.s32.totalorder %s30, 1
      %p53 = por %p51, %p52
      %p55 = scmp.ne.s32.totalorder %s38, %s54
      %p56 = scmp.eq.s32.totalorder %s30, 0
      %p57 = por %p55, %p56
      %s59 = sadd.s32 %s58, 1
      %p62 = scmp.eq.s32.totalorder %s24, 1
      %p63 = scmp.ne.s32.totalorder %s58, %s60
      %p64 = scmp.eq.s32.totalorder %s24, 0
      %p65 = por %p63, %p64
      %p66 = scmp.ne.s32.totalorder %s58, %s60
      %p67 = scmp.eq.s32.totalorder %s29, 1
      %p68 = por %p66, %p67
      %p69 = scmp.ne.s32.totalorder %s60, %s61
      %p70 = scmp.eq.s32.totalorder %s29, 0
      %p71 = por %p69, %p70
      %p72 = scmp.ne.s32.totalorder %s60, %s61
      %p73 = scmp.eq.s32.totalorder %s30, 1
      %p74 = por %p72, %p73
      %p76 = scmp.ne.s32.totalorder %s61, %s75
      %p77 = scmp.eq.s32.totalorder %s30, 0
      %p78 = por %p76, %p77
      %s80 = sadd.s32 %s79, 1
      %p83 = scmp.eq.s32.totalorder %s24, 1
      %p84 = scmp.ne.s32.totalorder %s79, %s81
      %p85 = scmp.eq.s32.totalorder %s24, 0
      %p86 = por %p84, %p85
      %p87 = scmp.ne.s32.totalorder %s79, %s81
      %p88 = scmp.eq.s32.totalorder %s29, 1
      %p89 = por %p87, %p88
      %p90 = scmp.ne.s32.totalorder %s81, %s82
      %p91 = scmp.eq.s32.totalorder %s29, 0
      %p92 = por %p90, %p91
      %p93 = scmp.ne.s32.totalorder %s81, %s82
      %p94 = scmp.eq.s32.totalorder %s30, 1
      %p95 = por %p93, %p94
      %p97 = scmp.ne.s32.totalorder %s82, %s96
      %p98 = scmp.eq.s32.totalorder %s30, 0
      %p99 = por %p97, %p98
      %s101 = sadd.s32 %s100, 1
      %p104 = scmp.eq.s32.totalorder %s24, 1
      %p105 = scmp.ne.s32.totalorder %s100, %s102
      %p106 = scmp.eq.s32.totalorder %s24, 0
      %p107 = por %p105, %p106
      %p108 = scmp.ne.s32.totalorder %s100, %s102
      %p109 = scmp.eq.s32.totalorder %s29, 1
      %p110 = por %p108, %p109
      %p111 = scmp.ne.s32.totalorder %s102, %s103
      %p112 = scmp.eq.s32.totalorder %s29, 0
      %p113 = por %p111, %p112
      %p114 = scmp.ne.s32.totalorder %s102, %s103
      %p115 = scmp.eq.s32.totalorder %s30, 1
      %p116 = por %p114, %p115
      %p118 = scmp.ne.s32.totalorder %s103, %s117
      %p119 = scmp.eq.s32.totalorder %s30, 0
      %p120 = por %p118, %p119
      %s122 = sadd.s32 %s121, 1
      %p125 = scmp.eq.s32.totalorder %s24, 1
      %p126 = scmp.ne.s32.totalorder %s121, %s123
      %p127 = scmp.eq.s32.totalorder %s24, 0
      %p128 = por %p126, %p127
      %p129 = scmp.ne.s32.totalorder %s121, %s123
      %p130 = scmp.eq.s32.totalorder %s29, 1
      %p131 = por %p129, %p130
      %p132 = scmp.ne.s32.totalorder %s123, %s124
      %p133 = scmp.eq.s32.totalorder %s29, 0
      %p134 = por %p132, %p133
      %p135 = scmp.ne.s32.totalorder %s123, %s124
      %p136 = scmp.eq.s32.totalorder %s30, 1
      %p137 = por %p135, %p136
      %p139 = scmp.ne.s32.totalorder %s124, %s138
      %p140 = scmp.eq.s32.totalorder %s30, 0
      %p141 = por %p139, %p140
      %s143 = sadd.s32 %s142, 1
      %p146 = scmp.eq.s32.totalorder %s24, 1
      %p147 = scmp.ne.s32.totalorder %s142, %s144
      %p148 = scmp.eq.s32.totalorder %s24, 0
      %p149 = por %p147, %p148
      %p150 = scmp.ne.s32.totalorder %s142, %s144
      %p151 = scmp.eq.s32.totalorder %s29, 1
      %p152 = por %p150, %p151
      %p153 = scmp.ne.s32.totalorder %s144, %s145
      %p154 = scmp.eq.s32.totalorder %s29, 0
      %p155 = por %p153, %p154
      %p156 = scmp.ne.s32.totalorder %s144, %s145
      %p157 = scmp.eq.s32.totalorder %s30, 1
      %p158 = por %p156, %p157
      %p160 = scmp.ne.s32.totalorder %s145, %s159
      %p161 = scmp.eq.s32.totalorder %s30, 0
      %p162 = por %p160, %p161
      %s164 = sadd.s32 %s163, 1
      %p167 = scmp.eq.s32.totalorder %s24, 1
      %p168 = scmp.ne.s32.totalorder %s163, %s165
      %p169 = scmp.eq.s32.totalorder %s24, 0
      %p170 = por %p168, %p169
      %p171 = scmp.ne.s32.totalorder %s163, %s165
      %p172 = scmp.eq.s32.totalorder %s29, 1
      %p173 = por %p171, %p172
      %p174 = scmp.ne.s32.totalorder %s165, %s166
      %p175 = scmp.eq.s32.totalorder %s29, 0
      %p176 = por %p174, %p175
      %p177 = scmp.ne.s32.totalorder %s165, %s166
      %p178 = scmp.eq.s32.totalorder %s30, 1
      %p179 = por %p177, %p178
      %p181 = scmp.ne.s32.totalorder %s166, %s180
      %p182 = scmp.eq.s32.totalorder %s30, 0
      %p183 = por %p181, %p182
      %s185 = sadd.s32 %s184, 1
      %p188 = scmp.eq.s32.totalorder %s24, 1
      %p189 = scmp.ne.s32.totalorder %s184, %s186
      %p190 = scmp.eq.s32.totalorder %s24, 0
      %p191 = por %p189, %p190
      %p192 = scmp.ne.s32.totalorder %s184, %s186
      %p193 = scmp.eq.s32.totalorder %s29, 1
      %p194 = por %p192, %p193
      %p195 = scmp.ne.s32.totalorder %s186, %s187
      %p196 = scmp.eq.s32.totalorder %s29, 0
      %p197 = por %p195, %p196
      %p198 = scmp.ne.s32.totalorder %s186, %s187
      %p199 = scmp.eq.s32.totalorder %s30, 1
      %p200 = por %p198, %p199
      %p202 = scmp.ne.s32.totalorder %s187, %s201
      %p203 = scmp.eq.s32.totalorder %s30, 0
      %p204 = por %p202, %p203
      %s206 = sadd.s32 %s205, 1
      %p209 = scmp.eq.s32.totalorder %s24, 1
      %p210 = scmp.ne.s32.totalorder %s205, %s207
      %p211 = scmp.eq.s32.totalorder %s24, 0
      %p212 = por %p210, %p211
      %p213 = scmp.ne.s32.totalorder %s205, %s207
      %p214 = scmp.eq.s32.totalorder %s29, 1
      %p215 = por %p213, %p214
      %p216 = scmp.ne.s32.totalorder %s207, %s208
      %p217 = scmp.eq.s32.totalorder %s29, 0
      %p218 = por %p216, %p217
      %p219 = scmp.ne.s32.totalorder %s207, %s208
      %p220 = scmp.eq.s32.totalorder %s30, 1
      %p221 = por %p219, %p220
      %p223 = scmp.ne.s32.totalorder %s208, %s222
      %p224 = scmp.eq.s32.totalorder %s30, 0
      %p225 = por %p223, %p224
      %s227 = sadd.s32 %s226, 1
      %p230 = scmp.eq.s32.totalorder %s24, 1
      %p231 = scmp.ne.s32.totalorder %s226, %s228
      %p232 = scmp.eq.s32.totalorder %s24, 0
      %p233 = por %p231, %p232
      %p234 = scmp.ne.s32.totalorder %s226, %s228
      %p235 = scmp.eq.s32.totalorder %s29, 1
      %p236 = por %p234, %p235
      %p237 = scmp.ne.s32.totalorder %s228, %s229
      %p238 = scmp.eq.s32.totalorder %s29, 0
      %p239 = por %p237, %p238
      %p240 = scmp.ne.s32.totalorder %s228, %s229
      %p241 = scmp.eq.s32.totalorder %s30, 1
      %p242 = por %p240, %p241
      %p244 = scmp.ne.s32.totalorder %s229, %s243
      %p245 = scmp.eq.s32.totalorder %s30, 0
      %p246 = por %p244, %p245
      %s248 = sadd.s32 %s247, 1
      %p251 = scmp.eq.s32.totalorder %s24, 1
      %p252 = scmp.ne.s32.totalorder %s247, %s249
      %p253 = scmp.eq.s32.totalorder %s24, 0
      %p254 = por %p252, %p253
      %p255 = scmp.ne.s32.totalorder %s247, %s249
      %p256 = scmp.eq.s32.totalorder %s29, 1
      %p257 = por %p255, %p256
      %p258 = scmp.ne.s32.totalorder %s249, %s250
      %p259 = scmp.eq.s32.totalorder %s29, 0
      %p260 = por %p258, %p259
      %p261 = scmp.ne.s32.totalorder %s249, %s250
      %p262 = scmp.eq.s32.totalorder %s30, 1
      %p263 = por %p261, %p262
      %p265 = scmp.ne.s32.totalorder %s250, %s264
      %p266 = scmp.eq.s32.totalorder %s30, 0
      %p267 = por %p265, %p266
      %s269 = sadd.s32 %s268, 1
      %p272 = scmp.eq.s32.totalorder %s24, 1
      %p273 = scmp.ne.s32.totalorder %s268, %s270
      %p274 = scmp.eq.s32.totalorder %s24, 0
      %p275 = por %p273, %p274
      %p276 = scmp.ne.s32.totalorder %s268, %s270
      %p277 = scmp.eq.s32.totalorder %s29, 1
      %p278 = por %p276, %p277
      %p279 = scmp.ne.s32.totalorder %s270, %s271
      %p280 = scmp.eq.s32.totalorder %s29, 0
      %p281 = por %p279, %p280
      %p282 = scmp.ne.s32.totalorder %s270, %s271
      %p283 = scmp.eq.s32.totalorder %s30, 1
      %p284 = por %p282, %p283
      %p286 = scmp.ne.s32.totalorder %s271, %s285
      %p287 = scmp.eq.s32.totalorder %s30, 0
      %p288 = por %p286, %p287
      %s290 = sadd.s32 %s289, 1
      %p293 = scmp.eq.s32.totalorder %s24, 1
      %p294 = scmp.ne.s32.totalorder %s289, %s291
      %p295 = scmp.eq.s32.totalorder %s24, 0
      %p296 = por %p294, %p295
      %p297 = scmp.ne.s32.totalorder %s289, %s291
      %p298 = scmp.eq.s32.totalorder %s29, 1
      %p299 = por %p297, %p298
      %p300 = scmp.ne.s32.totalorder %s291, %s292
      %p301 = scmp.eq.s32.totalorder %s29, 0
      %p302 = por %p300, %p301
      %p303 = scmp.ne.s32.totalorder %s291, %s292
      %p304 = scmp.eq.s32.totalorder %s30, 1
      %p305 = por %p303, %p304
      %p307 = scmp.ne.s32.totalorder %s292, %s306
      %p308 = scmp.eq.s32.totalorder %s30, 0
      %p309 = por %p307, %p308
      %s310 = ssub.s32 %s24, %s31
      %p311 = scmp.eq.s32.totalorder %s310, 0
      %s313 = sadd.s32 %s312, 1
      %s314 = scalar_select %p311, %s312, %s313
      %p317 = pneg %p311
      %p318 = scmp.eq.s32.totalorder %s24, 1
      %p319 = por %p317, %p318
      %p320 = scmp.ne.s32.totalorder %s312, %s315
      %p321 = scmp.eq.s32.totalorder %s24, 0
      %p322 = por %p320, %p321
      %p323 = scmp.ne.s32.totalorder %s312, %s315
      %p324 = scmp.eq.s32.totalorder %s29, 1
      %p325 = por %p323, %p324
      %p326 = scmp.ne.s32.totalorder %s315, %s316
      %p327 = scmp.eq.s32.totalorder %s29, 0
      %p328 = por %p326, %p327
      %p329 = scmp.ne.s32.totalorder %s315, %s316
      %p330 = scmp.eq.s32.totalorder %s30, 1
      %p331 = por %p329, %p330
      %p333 = scmp.ne.s32.totalorder %s316, %s332
      %p334 = scmp.eq.s32.totalorder %s30, 0
      %p335 = por %p333, %p334
      %p336 = scmp.le.s32.totalorder 1, %s24
      %p337 = scmp.lt.s32.totalorder %s24, 3
      %p338 = pnand %p336, %p337
      %p339 = pneg %p338
      // Predicated region
      $region9: #{encoder_forward.1} parent=5 // pred_check
        _
      $region10: #{encoder_forward.1} parent=5 // pred_check_branch
        %341 = sbr.rel (%p338) target = $region12
      $region11: #{encoder_forward.1} parent=5 // pred_region
        %s342 = ssub.s32 %s24, 1
        // Predicated region
        $region13: #{encoder_forward.1} parent=11 // pred_check
          %p343 = pneg %p71
        $region14: #{encoder_forward.1} parent=11 // pred_check_branch
          %345 = sbr.rel (%p343) target = $region16
        $region15: #{encoder_forward.1} parent=11 // pred_region
          %s347 = ssub.s32 18432, 18432
          %348 = vsyncadd [#allocation3], %s347
          %s349 = sshll.u32 [#allocation2], 4
          %s350 = int_to_ptr.vmem [resolvable:$true] %s349
          %355 = dma.hbm_to_vmem [thread:$0]  %s1, 18432, %s350, [#allocation3], 256, 256, 16
        $region16: #{encoder_forward.1} parent=11 // pred_fallthru
          _
        // Predicated region
        $region17: #{encoder_forward.1} parent=11 // pred_check
          %p356 = pneg %p92
        $region18: #{encoder_forward.1} parent=11 // pred_check_branch
          %358 = sbr.rel (%p356) target = $region20
        $region19: #{encoder_forward.1} parent=11 // pred_region
          _
        $region20: #{encoder_forward.1} parent=11 // pred_fallthru
          _
        // Predicated region
        $region21: #{encoder_forward.1} parent=11 // pred_check
          %p359 = pneg %p113
        $region22: #{encoder_forward.1} parent=11 // pred_check_branch
          %361 = sbr.rel (%p359) target = $region24
        $region23: #{encoder_forward.1} parent=11 // pred_region
          _
        $region24: #{encoder_forward.1} parent=11 // pred_fallthru
          _
        // Predicated region
        $region25: #{encoder_forward.1} parent=11 // pred_check
          %p362 = pneg %p134
        $region26: #{encoder_forward.1} parent=11 // pred_check_branch
          %364 = sbr.rel (%p362) target = $region28
        $region27: #{encoder_forward.1} parent=11 // pred_region
          %s366 = ssub.s32 2304, 2304
          %367 = vsyncadd [#allocation6], %s366
          %s368 = sshll.u32 [#allocation5], 4
          %s369 = int_to_ptr.vmem [resolvable:$true] %s368
          %374 = dma.hbm_to_vmem [thread:$0]  %s4, 2304, %s369, [#allocation6], 128, 128, 8
        $region28: #{encoder_forward.1} parent=11 // pred_fallthru
          _
        // Predicated region
        $region29: #{encoder_forward.1} parent=11 // pred_check
          %p375 = pneg %p155
        $region30: #{encoder_forward.1} parent=11 // pred_check_branch
          %377 = sbr.rel (%p375) target = $region32
        $region31: #{encoder_forward.1} parent=11 // pred_region
          _
        $region32: #{encoder_forward.1} parent=11 // pred_fallthru
          _
        // Predicated region
        $region33: #{encoder_forward.1} parent=11 // pred_check
          %p378 = pneg %p176
        $region34: #{encoder_forward.1} parent=11 // pred_check_branch
          %380 = sbr.rel (%p378) target = $region36
        $region35: #{encoder_forward.1} parent=11 // pred_region
          _
        $region36: #{encoder_forward.1} parent=11 // pred_fallthru
          _
        // Predicated region
        $region37: #{encoder_forward.1} parent=11 // pred_check
          %p381 = pneg %p197
        $region38: #{encoder_forward.1} parent=11 // pred_check_branch
          %383 = sbr.rel (%p381) target = $region40
        $region39: #{encoder_forward.1} parent=11 // pred_region
          _
        $region40: #{encoder_forward.1} parent=11 // pred_fallthru
          _
        // Predicated region
        $region41: #{encoder_forward.1} parent=11 // pred_check
          %p384 = pneg %p218
        $region42: #{encoder_forward.1} parent=11 // pred_check_branch
          %386 = sbr.rel (%p384) target = $region44
        $region43: #{encoder_forward.1} parent=11 // pred_region
          _
        $region44: #{encoder_forward.1} parent=11 // pred_fallthru
          _
        // Predicated region
        $region45: #{encoder_forward.1} parent=11 // pred_check
          %p387 = pneg %p239
        $region46: #{encoder_forward.1} parent=11 // pred_check_branch
          %389 = sbr.rel (%p387) target = $region48
        $region47: #{encoder_forward.1} parent=11 // pred_region
          _
        $region48: #{encoder_forward.1} parent=11 // pred_fallthru
          _
        // Predicated region
        $region49: #{encoder_forward.1} parent=11 // pred_check
          %p390 = pneg %p260
        $region50: #{encoder_forward.1} parent=11 // pred_check_branch
          %392 = sbr.rel (%p390) target = $region52
        $region51: #{encoder_forward.1} parent=11 // pred_region
          _
        $region52: #{encoder_forward.1} parent=11 // pred_fallthru
          _
        // Predicated region
        $region53: #{encoder_forward.1} parent=11 // pred_check
          %p393 = pneg %p281
        $region54: #{encoder_forward.1} parent=11 // pred_check_branch
          %395 = sbr.rel (%p393) target = $region56
        $region55: #{encoder_forward.1} parent=11 // pred_region
          %s397 = ssub.s32 4608, 4608
          %398 = vsyncadd [#allocation6], %s397
          %s399 = sshll.u32 [#allocation7], 4
          %s400 = int_to_ptr.vmem [resolvable:$true] %s399
          %405 = dma.hbm_to_vmem [thread:$0]  %s11, 4608, %s400, [#allocation6], 128, 128, 8
        $region56: #{encoder_forward.1} parent=11 // pred_fallthru
          _
        // Predicated region
        $region57: #{encoder_forward.1} parent=11 // pred_check
          %p406 = pneg %p302
        $region58: #{encoder_forward.1} parent=11 // pred_check_branch
          %408 = sbr.rel (%p406) target = $region60
        $region59: #{encoder_forward.1} parent=11 // pred_region
          _
        $region60: #{encoder_forward.1} parent=11 // pred_fallthru
          _
      $region12: #{encoder_forward.1} parent=5 // pred_fallthru
        _
      %p409 = scmp.lt.s32.totalorder %s24, 2
      // Predicated region
      $region61: #{encoder_forward.1} parent=5 // pred_check
        %p410 = pneg %p409
      $region62: #{encoder_forward.1} parent=5 // pred_check_branch
        %412 = sbr.rel (%p410) target = $region64
      $region63: #{encoder_forward.1} parent=5 // pred_region
        // Predicated region
        $region65: #{encoder_forward.1} parent=63 // pred_check
          %p413 = pneg %p44
        $region66: #{encoder_forward.1} parent=63 // pred_check_branch
          %415 = sbr.rel (%p413) target = $region68
        $region67: #{encoder_forward.1} parent=63 // pred_region
          %p416 = scmp.lt.s32.totalorder %s24, 1
          %s417 = scalar_select %p416, %s24, 1
          %s418 = smul.addr %s417, 32
          %s419 = smul.addr %s418, 8
          %s420 = scalar_lea.vmem %s0, %s419
        $region68: #{encoder_forward.1} parent=63 // pred_fallthru
          _
      $region64: #{encoder_forward.1} parent=5 // pred_fallthru
        _
      %p421 = scmp.le.s32.totalorder 1, %s24
      %p422 = scmp.lt.s32.totalorder %s24, 3
      %p423 = pnand %p421, %p422
      %p424 = pneg %p423
      // Predicated region
      $region69: #{encoder_forward.1} parent=5 // pred_check
        _
      $region70: #{encoder_forward.1} parent=5 // pred_check_branch
        %426 = sbr.rel (%p423) target = $region72
      $region71: #{encoder_forward.1} parent=5 // pred_region
        %s427 = ssub.s32 %s24, 1
        // Predicated region
        $region73: #{encoder_forward.1} parent=71 // pred_check
          %p428 = pneg %p71
        $region74: #{encoder_forward.1} parent=71 // pred_check_branch
          %430 = sbr.rel (%p428) target = $region76
        $region75: #{encoder_forward.1} parent=71 // pred_region
          %431 = dma.done [#allocation3], 18432
        $region76: #{encoder_forward.1} parent=71 // pred_fallthru
          _
        // Predicated region
        $region77: #{encoder_forward.1} parent=71 // pred_check
          %p432 = pneg %p134
        $region78: #{encoder_forward.1} parent=71 // pred_check_branch
          %434 = sbr.rel (%p432) target = $region80
        $region79: #{encoder_forward.1} parent=71 // pred_region
          %435 = dma.done [#allocation6], 2304
        $region80: #{encoder_forward.1} parent=71 // pred_fallthru
          _
        // Predicated region
        $region81: #{encoder_forward.1} parent=71 // pred_check
          %p436 = pneg %p281
        $region82: #{encoder_forward.1} parent=71 // pred_check_branch
          %438 = sbr.rel (%p436) target = $region84
        $region83: #{encoder_forward.1} parent=71 // pred_region
          %439 = dma.done [#allocation6], 4608
        $region84: #{encoder_forward.1} parent=71 // pred_fallthru
          _
        %p440 = scmp.lt.s32.totalorder %s29, 1
        %s441 = scalar_select %p440, %s29, 1
        %s442 = smul.addr %s441, 32
        %s443 = smul.addr %s442, 8
        %s444 = scalar_lea.vmem %s0, %s443
        %p445 = pneg %p50
        %p446 = pneg %p47
        %p447 = pneg %p71
        %p448 = pneg %p68
        %p449 = pneg %p92
        %p450 = pneg %p89
        %p451 = pneg %p113
        %p452 = pneg %p110
        %p453 = pneg %p134
        %p454 = pneg %p131
        %p455 = pneg %p155
        %p456 = pneg %p152
        %p457 = pneg %p176
        %p458 = pneg %p173
        %p459 = pneg %p197
        %p460 = pneg %p194
        %p461 = pneg %p218
        %p462 = pneg %p215
        %p463 = pneg %p239
        %p464 = pneg %p236
        %p465 = pneg %p260
        %p466 = pneg %p257
        %p467 = pneg %p281
        %p468 = pneg %p278
        %p469 = pneg %p302
        %p470 = pneg %p299
        %p471 = pneg %p328
        %p472 = pneg %p325
        %s473 = sand.u32 %s315, 1
        %s474 = scalar_lea.sflag [#allocation4], %s473
        %s475 = sand.u32 %s315, 1
        %s476 = scalar_lea.vmem [#allocation8], %s475
        %p477 = scmp.lt.s32.totalorder %s29, 1
        %s478 = scalar_select %p477, %s29, 1
        %s479 = smul.addr %s478, 32
        %s480 = smul.addr %s479, 8
        %s481 = scalar_lea.vmem %s0, %s480
        %v482 = vld [vmem:[%s481] sm:$0xff]
        %v483 = vld [vmem:[%s481 + $0x8] sm:$0xff]
        %v484 = vld [vmem:[%s481 + $0x10] sm:$0xff]
        %v485 = vld [vmem:[%s481 + $0x18] sm:$0xff]
        %v486 = vld [vmem:[%s481 + $0x20] sm:$0xff]
        %v487 = vld [vmem:[%s481 + $0x28] sm:$0xff]
        %v488 = vld [vmem:[%s481 + $0x30] sm:$0xff]
        %v489 = vld [vmem:[%s481 + $0x38] sm:$0xff]
        %v490 = vld [vmem:[%s481 + $0x40] sm:$0xff]
        %v491 = vld [vmem:[%s481 + $0x48] sm:$0xff]
        %v492 = vld [vmem:[%s481 + $0x50] sm:$0xff]
        %v493 = vld [vmem:[%s481 + $0x58] sm:$0xff]
        %v494 = vld [vmem:[%s481 + $0x60] sm:$0xff]
        %v495 = vld [vmem:[%s481 + $0x68] sm:$0xff]
        %v496 = vld [vmem:[%s481 + $0x70] sm:$0xff]
        %v497 = vld [vmem:[%s481 + $0x78] sm:$0xff]
        %v498 = vld [vmem:[%s481 + $0x80] sm:$0xff]
        %v499 = vld [vmem:[%s481 + $0x88] sm:$0xff]
        %v500 = vld [vmem:[%s481 + $0x90] sm:$0xff]
        %v501 = vld [vmem:[%s481 + $0x98] sm:$0xff]
        %v502 = vld [vmem:[%s481 + $0xa0] sm:$0xff]
        %v503 = vld [vmem:[%s481 + $0xa8] sm:$0xff]
        %v504 = vld [vmem:[%s481 + $0xb0] sm:$0xff]
        %v505 = vld [vmem:[%s481 + $0xb8] sm:$0xff]
        %v506 = vld [vmem:[%s481 + $0xc0] sm:$0xff]
        %v507 = vld [vmem:[%s481 + $0xc8] sm:$0xff]
        %v508 = vld [vmem:[%s481 + $0xd0] sm:$0xff]
        %v509 = vld [vmem:[%s481 + $0xd8] sm:$0xff]
        %v510 = vld [vmem:[%s481 + $0xe0] sm:$0xff]
        %v511 = vld [vmem:[%s481 + $0xe8] sm:$0xff]
        %v512 = vld [vmem:[%s481 + $0xf0] sm:$0xff]
        %v513 = vld [vmem:[%s481 + $0xf8] sm:$0xff]
        %v514 = vld [vmem:[#allocation2] sm:$0xff]
        %v515 = vld [vmem:[#allocation2 + $0x8] sm:$0xff]
        %v516 = vld [vmem:[#allocation2 + $0x10] sm:$0xff]
        %v517 = vld [vmem:[#allocation2 + $0x18] sm:$0xff]
        %v518 = vld [vmem:[#allocation2 + $0x20] sm:$0xff]
        %v519 = vld [vmem:[#allocation2 + $0x28] sm:$0xff]
        %v520 = vld [vmem:[#allocation2 + $0x30] sm:$0xff]
        %v521 = vld [vmem:[#allocation2 + $0x38] sm:$0xff]
        %v522 = vld [vmem:[#allocation2 + $0x40] sm:$0xff]
        %v523 = vld [vmem:[#allocation2 + $0x48] sm:$0xff]
        %v524 = vld [vmem:[#allocation2 + $0x50] sm:$0xff]
        %v525 = vld [vmem:[#allocation2 + $0x58] sm:$0xff]
        %v526 = vld [vmem:[#allocation2 + $0x60] sm:$0xff]
        %v527 = vld [vmem:[#allocation2 + $0x68] sm:$0xff]
        %v528 = vld [vmem:[#allocation2 + $0x70] sm:$0xff]
        %v529 = vld [vmem:[#allocation2 + $0x78] sm:$0xff]
        %530 = vmatprep.subr.mxu0 0.0
        %531 = vmatpush1.msra.mxu0 %v482
        %532 = vmatprep.subr.mxu0 0.0
        %533 = vmatpush1.msra.mxu0 %v483
        %534 = vmatprep.subr.mxu0 0.0
        %535 = vmatpush1.msra.mxu0 %v484
        %536 = vmatprep.subr.mxu0 0.0
        %537 = vmatpush1.msra.mxu0 %v485
        %538 = vmatprep.subr.mxu0 0.0
        %539 = vmatpush1.msra.mxu0 %v486
        %540 = vmatprep.subr.mxu0 0.0
        %541 = vmatpush1.msra.mxu0 %v487
        %542 = vmatprep.subr.mxu0 0.0
        %543 = vmatpush1.msra.mxu0 %v488
        %544 = vmatprep.subr.mxu0 0.0
        %545 = vmatpush1.msra.mxu0 %v489
        %546 = vmatprep.subr.mxu0 0.0
        %547 = vmatpush1.msra.mxu0 %v490
        %548 = vmatprep.subr.mxu0 0.0
        %549 = vmatpush1.msra.mxu0 %v491
        %550 = vmatprep.subr.mxu0 0.0
        %551 = vmatpush1.msra.mxu0 %v492
        %552 = vmatprep.subr.mxu0 0.0
        %553 = vmatpush1.msra.mxu0 %v493
        %554 = vmatprep.subr.mxu0 0.0
        %555 = vmatpush1.msra.mxu0 %v494
        %556 = vmatprep.subr.mxu0 0.0
        %557 = vmatpush1.msra.mxu0 %v495
        %558 = vmatprep.subr.mxu0 0.0
        %559 = vmatpush1.msra.mxu0 %v496
        %560 = vmatprep.subr.mxu0 0.0
        %561 = vmatpush1.msra.mxu0 %v497
        %562 = vmatprep.subr.mxu0 0.0
        %563 = vmatpush1.msra.mxu0 %v498
        %564 = vmatprep.subr.mxu0 0.0
        %565 = vmatpush1.msra.mxu0 %v499
        %566 = vmatprep.subr.mxu0 0.0
        %567 = vmatpush1.msra.mxu0 %v500
        %568 = vmatprep.subr.mxu0 0.0
        %569 = vmatpush1.msra.mxu0 %v501
        %570 = vmatprep.subr.mxu0 0.0
        %571 = vmatpush1.msra.mxu0 %v502
        %572 = vmatprep.subr.mxu0 0.0
        %573 = vmatpush1.msra.mxu0 %v503
        %574 = vmatprep.subr.mxu0 0.0
        %575 = vmatpush1.msra.mxu0 %v504
        %576 = vmatprep.subr.mxu0 0.0
        %577 = vmatpush1.msra.mxu0 %v505
        %578 = vmatprep.subr.mxu0 0.0
        %579 = vmatpush1.msra.mxu0 %v506
        %580 = vmatprep.subr.mxu0 0.0
        %581 = vmatpush1.msra.mxu0 %v507
        %582 = vmatprep.subr.mxu0 0.0
        %583 = vmatpush1.msra.mxu0 %v508
        %584 = vmatprep.subr.mxu0 0.0
        %585 = vmatpush1.msra.mxu0 %v509
        %586 = vmatprep.subr.mxu0 0.0
        %587 = vmatpush1.msra.mxu0 %v510
        %588 = vmatprep.subr.mxu0 0.0
        %589 = vmatpush1.msra.mxu0 %v511
        %590 = vmatprep.subr.mxu0 0.0
        %591 = vmatpush1.msra.mxu0 %v512
        %592 = vmatprep.subr.mxu0 0.0
        %593 = vmatpush1.msra.mxu0 %v513
        %594 = vmatprep.mubr.f32.mxu0 %v515
        %595 = vmatmul.mubr.f32.gmra.mrb[0].mxu0 %v514
        %v596 = vpop.f32.mrb[0].mxu0
        %v597 = vadd.f32 0.0, %v596
        %v598 = vpop.f32.mrb[0].mxu0
        %599 = vmatprep.mubr.f32.mxu0 %v517
        %600 = vmatmul.mubr.f32.gmra.mrb[0].mxu0 %v516
        %v601 = vpop.f32.mrb[0].mxu0
        %v602 = vadd.f32 0.0, %v601
        %v603 = vpop.f32.mrb[0].mxu0
        %604 = vmatprep.mubr.f32.mxu0 %v519
        %605 = vmatmul.mubr.f32.gmra.mrb[0].mxu0 %v518
        %v606 = vpop.f32.mrb[0].mxu0
        %v607 = vadd.f32 0.0, %v606
        %v608 = vpop.f32.mrb[0].mxu0
        %609 = vmatprep.mubr.f32.mxu0 %v521
        %610 = vmatmul.mubr.f32.gmra.mrb[0].mxu0 %v520
        %v611 = vpop.f32.mrb[0].mxu0
        %v612 = vadd.f32 0.0, %v611
        %v613 = vpop.f32.mrb[0].mxu0
        %614 = vmatprep.mubr.f32.mxu0 %v523
        %615 = vmatmul.mubr.f32.gmra.mrb[0].mxu0 %v522
        %v616 = vpop.f32.mrb[0].mxu0
        %v617 = vadd.f32 0.0, %v616
        %v618 = vpop.f32.mrb[0].mxu0
        %619 = vmatprep.mubr.f32.mxu0 %v525
        %620 = vmatmul.mubr.f32.gmra.mrb[0].mxu0 %v524
        %v621 = vpop.f32.mrb[0].mxu0
        %v622 = vadd.f32 0.0, %v621
        %v623 = vpop.f32.mrb[0].mxu0
        %624 = vmatprep.mubr.f32.mxu0 %v527
        %625 = vmatmul.mubr.f32.gmra.mrb[0].mxu0 %v526
        %v626 = vpop.f32.mrb[0].mxu0
        %v627 = vadd.f32 0.0, %v626
        %v628 = vpop.f32.mrb[0].mxu0
        %629 = vmatprep.mubr.f32.mxu0 %v529
        %630 = vmatmul.mubr.f32.gmra.mrb[0].mxu0 %v528
        %v631 = vpop.f32.mrb[0].mxu0
        %v632 = vadd.f32 0.0, %v631
        %v633 = vpop.f32.mrb[0].mxu0
        %634 = vdwg.mxu0
        %v635 = vld [vmem:[%s2] sm:$0xf]
        %s636 = scalar_lea.vmem [#allocation2], 128
        %v637 = vld [vmem:[%s636] sm:$0xff]
        %v638 = vld [vmem:[%s636 + $0x8] sm:$0xff]
        %v639 = vld [vmem:[%s636 + $0x10] sm:$0xff]
        %v640 = vld [vmem:[%s636 + $0x18] sm:$0xff]
        %v641 = vld [vmem:[%s636 + $0x20] sm:$0xff]
        %v642 = vld [vmem:[%s636 + $0x28] sm:$0xff]
        %v643 = vld [vmem:[%s636 + $0x30] sm:$0xff]
        %v644 = vld [vmem:[%s636 + $0x38] sm:$0xff]
        %v645 = vld [vmem:[%s636 + $0x40] sm:$0xff]
        %v646 = vld [vmem:[%s636 + $0x48] sm:$0xff]
        %v647 = vld [vmem:[%s636 + $0x50] sm:$0xff]
        %v648 = vld [vmem:[%s636 + $0x58] sm:$0xff]
        %v649 = vld [vmem:[%s636 + $0x60] sm:$0xff]
        %v650 = vld [vmem:[%s636 + $0x68] sm:$0xff]
        %v651 = vld [vmem:[%s636 + $0x70] sm:$0xff]
        %v652 = vld [vmem:[%s636 + $0x78] sm:$0xff]
        %653 = vmatprep.subr.mxu0 0.0
        %654 = vmatpush1.msra.mxu0 %v482
        %655 = vmatprep.subr.mxu0 0.0
        %656 = vmatpush1.msra.mxu0 %v483
        %657 = vmatprep.subr.mxu0 0.0
        %658 = vmatpush1.msra.mxu0 %v484
        %659 = vmatprep.subr.mxu0 0.0
        %660 = vmatpush1.msra.mxu0 %v485
        %661 = vmatprep.subr.mxu0 0.0
        %662 = vmatpush1.msra.mxu0 %v486
        %663 = vmatprep.subr.mxu0 0.0
        %664 = vmatpush1.msra.mxu0 %v487
        %665 = vmatprep.subr.mxu0 0.0
        %666 = vmatpush1.msra.mxu0 %v488
        %667 = vmatprep.subr.mxu0 0.0
        %668 = vmatpush1.msra.mxu0 %v489
        %669 = vmatprep.subr.mxu0 0.0
        %670 = vmatpush1.msra.mxu0 %v490
        %671 = vmatprep.subr.mxu0 0.0
        %672 = vmatpush1.msra.mxu0 %v491
        %673 = vmatprep.subr.mxu0 0.0
        %674 = vmatpush1.msra.mxu0 %v492
        %675 = vmatprep.subr.mxu0 0.0
        %676 = vmatpush1.msra.mxu0 %v493
        %677 = vmatprep.subr.mxu0 0.0
        %678 = vmatpush1.msra.mxu0 %v494
        %679 = vmatprep.subr.mxu0 0.0
        %680 = vmatpush1.msra.mxu0 %v495
        %681 = vmatprep.subr.mxu0 0.0
        %682 = vmatpush1.msra.mxu0 %v496
        %683 = vmatprep.subr.mxu0 0.0
        %684 = vmatpush1.msra.mxu0 %v497
        %685 = vmatprep.subr.mxu0 0.0
        %686 = vmatpush1.msra.mxu0 %v498
        %687 = vmatprep.subr.mxu0 0.0
        %688 = vmatpush1.msra.mxu0 %v499
        %689 = vmatprep.subr.mxu0 0.0
        %690 = vmatpush1.msra.mxu0 %v500
        %691 = vmatprep.subr.mxu0 0.0
        %692 = vmatpush1.msra.mxu0 %v501
        %693 = vmatprep.subr.mxu0 0.0
        %694 = vmatpush1.msra.mxu0 %v502
        %695 = vmatprep.subr.mxu0 0.0
        %696 = vmatpush1.msra.mxu0 %v503
        %697 = vmatprep.subr.mxu0 0.0
        %698 = vmatpush1.msra.mxu0 %v504
        %699 = vmatprep.subr.mxu0 0.0
        %700 = vmatpush1.msra.mxu0 %v505
        %701 = vmatprep.subr.mxu0 0.0
        %702 = vmatpush1.msra.mxu0 %v506
        %703 = vmatprep.subr.mxu0 0.0
        %704 = vmatpush1.msra.mxu0 %v507
        %705 = vmatprep.subr.mxu0 0.0
        %706 = vmatpush1.msra.mxu0 %v508
        %707 = vmatprep.subr.mxu0 0.0
        %708 = vmatpush1.msra.mxu0 %v509
        %709 = vmatprep.subr.mxu0 0.0
        %710 = vmatpush1.msra.mxu0 %v510
        %711 = vmatprep.subr.mxu0 0.0
        %712 = vmatpush1.msra.mxu0 %v511
        %713 = vmatprep.subr.mxu0 0.0
        %714 = vmatpush1.msra.mxu0 %v512
        %715 = vmatprep.subr.mxu0 0.0
        %716 = vmatpush1.msra.mxu0 %v513
        %717 = vmatprep.mubr.f32.mxu0 %v638
        %718 = vmatmul.mubr.f32.gmra.mrb[0].mxu0 %v637
        %v719 = vpop.f32.mrb[0].mxu0
        %v720 = vadd.f32 0.0, %v719
        %v721 = vpop.f32.mrb[0].mxu0
        %722 = vmatprep.mubr.f32.mxu0 %v640
        %723 = vmatmul.mubr.f32.gmra.mrb[0].mxu0 %v639
        %v724 = vpop.f32.mrb[0].mxu0
        %v725 = vadd.f32 0.0, %v724
        %v726 = vpop.f32.mrb[0].mxu0
        %727 = vmatprep.mubr.f32.mxu0 %v642
        %728 = vmatmul.mubr.f32.gmra.mrb[0].mxu0 %v641
        %v729 = vpop.f32.mrb[0].mxu0
        %v730 = vadd.f32 0.0, %v729
        %v731 = vpop.f32.mrb[0].mxu0
        %732 = vmatprep.mubr.f32.mxu0 %v644
        %733 = vmatmul.mubr.f32.gmra.mrb[0].mxu0 %v643
        %v734 = vpop.f32.mrb[0].mxu0
        %v735 = vadd.f32 0.0, %v734
        %v736 = vpop.f32.mrb[0].mxu0
        %737 = vmatprep.mubr.f32.mxu0 %v646
        %738 = vmatmul.mubr.f32.gmra.mrb[0].mxu0 %v645
        %v739 = vpop.f32.mrb[0].mxu0
        %v740 = vadd.f32 0.0, %v739
        %v741 = vpop.f32.mrb[0].mxu0
        %742 = vmatprep.mubr.f32.mxu0 %v648
        %743 = vmatmul.mubr.f32.gmra.mrb[0].mxu0 %v647
        %v744 = vpop.f32.mrb[0].mxu0
        %v745 = vadd.f32 0.0, %v744
        %v746 = vpop.f32.mrb[0].mxu0
        %747 = vmatprep.mubr.f32.mxu0 %v650
        %748 = vmatmul.mubr.f32.gmra.mrb[0].mxu0 %v649
        %v749 = vpop.f32.mrb[0].mxu0
        %v750 = vadd.f32 0.0, %v749
        %v751 = vpop.f32.mrb[0].mxu0
        %752 = vmatprep.mubr.f32.mxu0 %v652
        %753 = vmatmul.mubr.f32.gmra.mrb[0].mxu0 %v651
        %v754 = vpop.f32.mrb[0].mxu0
        %v755 = vadd.f32 0.0, %v754
        %v756 = vpop.f32.mrb[0].mxu0
        %757 = vdwg.mxu0
        %s758 = scalar_lea.vmem %s2, 4
        %v759 = vld [vmem:[%s758] sm:$0xf]
        %vm760 = vcmask 31744
        %v762 = vsel %vm760, %v720, 0
        %v765 = vsel %vm760, %v725, 0
        %v768 = vsel %vm760, %v730, 0
        %v771 = vsel %vm760, %v735, 0
        %v774 = vsel %vm760, %v740, 0
        %v777 = vsel %vm760, %v745, 0
        %v780 = vsel %vm760, %v750, 0
        %v783 = vsel %vm760, %v755, 0
        %vm785 = vcmask 1043456
        %v787 = vsel %vm785, %v759, 0
        %789 = vmatprep.subr.mxu0 0.0
        %790 = vmatpush1.msra.mxu0 %v787
        %791 = vmatprep.subr.mxu0 0.0
        %792 = vmatpush1.msra.mxu0 0.0
        %793 = vmatprep.subr.mxu0 0.0
        %794 = vmatpush1.msra.mxu0 0.0
        %795 = vmatprep.subr.mxu0 0.0
        %796 = vmatpush1.msra.mxu0 0.0
        %797 = vmatprep.subr.mxu0 0.0
        %798 = vmatpush1.msra.mxu0 0.0
        %799 = vmatprep.subr.mxu0 0.0
        %800 = vmatpush1.msra.mxu0 0.0
        %801 = vmatprep.subr.mxu0 0.0
        %802 = vmatpush1.msra.mxu0 0.0
        %803 = vmatprep.subr.mxu0 0.0
        %804 = vmatpush1.msra.mxu0 0.0
        %805 = vmatprep.subr.mxu0 0.0
        %806 = vmatpush1.msra.mxu0 0.0
        %807 = vmatprep.subr.mxu0 0.0
        %808 = vmatpush1.msra.mxu0 0.0
        %809 = vmatprep.subr.mxu0 0.0
        %810 = vmatpush1.msra.mxu0 0.0
        %811 = vmatprep.subr.mxu0 0.0
        %812 = vmatpush1.msra.mxu0 0.0
        %813 = vmatprep.subr.mxu0 0.0
        %814 = vmatpush1.msra.mxu0 0.0
        %815 = vmatprep.subr.mxu0 0.0
        %816 = vmatpush1.msra.mxu0 0.0
        %817 = vmatprep.subr.mxu0 0.0
        %818 = vmatpush1.msra.mxu0 0.0
        %819 = vmatprep.subr.mxu0 0.0
        %820 = vmatpush1.msra.mxu0 0.0
        %821 = vmatprep.subr.mxu0 0.0
        %822 = vmatpush1.msra.mxu0 0.0
        %823 = vmatprep.subr.mxu0 0.0
        %824 = vmatpush1.msra.mxu0 0.0
        %825 = vmatprep.subr.mxu0 0.0
        %826 = vmatpush1.msra.mxu0 0.0
        %827 = vmatprep.subr.mxu0 0.0
        %828 = vmatpush1.msra.mxu0 0.0
        %829 = vmatprep.subr.mxu0 0.0
        %830 = vmatpush1.msra.mxu0 0.0
        %831 = vmatprep.subr.mxu0 0.0
        %832 = vmatpush1.msra.mxu0 0.0
        %833 = vmatprep.subr.mxu0 0.0
        %834 = vmatpush1.msra.mxu0 0.0
        %835 = vmatprep.subr.mxu0 0.0
        %836 = vmatpush1.msra.mxu0 0.0
        %837 = vmatprep.subr.mxu0 0.0
        %838 = vmatpush1.msra.mxu0 0.0
        %839 = vmatprep.subr.mxu0 0.0
        %840 = vmatpush1.msra.mxu0 0.0
        %841 = vmatprep.subr.mxu0 0.0
        %842 = vmatpush1.msra.mxu0 0.0
        %843 = vmatprep.subr.mxu0 0.0
        %844 = vmatpush1.msra.mxu0 0.0
        %845 = vmatprep.subr.mxu0 0.0
        %846 = vmatpush1.msra.mxu0 0.0
        %847 = vmatprep.subr.mxu0 0.0
        %848 = vmatpush1.msra.mxu0 0.0
        %849 = vmatprep.subr.mxu0 0.0
        %850 = vmatpush1.msra.mxu0 0.0
        %851 = vmatprep.subr.mxu0 0.0
        %852 = vmatpush1.msra.mxu0 0.0
        %853 = vmatprep.mubr.f32.mxu0 0.0
        %854 = vmatmul.mubr.f32.gmra.mrb[0].mxu0 %v762
        %v855 = vpop.f32.mrb[0].mxu0
        %v856 = vadd.f32 0.0, %v855
        %v857 = vpop.f32.mrb[0].mxu0
        %858 = vmatprep.mubr.f32.mxu0 0.0
        %859 = vmatmul.mubr.f32.gmra.mrb[0].mxu0 %v765
        %v860 = vpop.f32.mrb[0].mxu0
        %v861 = vadd.f32 0.0, %v860
        %v862 = vpop.f32.mrb[0].mxu0
        %863 = vmatprep.mubr.f32.mxu0 0.0
        %864 = vmatmul.mubr.f32.gmra.mrb[0].mxu0 %v768
        %v865 = vpop.f32.mrb[0].mxu0
        %v866 = vadd.f32 0.0, %v865
        %v867 = vpop.f32.mrb[0].mxu0
        %868 = vmatprep.mubr.f32.mxu0 0.0
        %869 = vmatmul.mubr.f32.gmra.mrb[0].mxu0 %v771
        %v870 = vpop.f32.mrb[0].mxu0
        %v871 = vadd.f32 0.0, %v870
        %v872 = vpop.f32.mrb[0].mxu0
        %873 = vmatprep.mubr.f32.mxu0 0.0
        %874 = vmatmul.mubr.f32.gmra.mrb[0].mxu0 %v774
        %v875 = vpop.f32.mrb[0].mxu0
        %v876 = vadd.f32 0.0, %v875
        %v877 = vpop.f32.mrb[0].mxu0
        %878 = vmatprep.mubr.f32.mxu0 0.0
        %879 = vmatmul.mubr.f32.gmra.mrb[0].mxu0 %v777
        %v880 = vpop.f32.mrb[0].mxu0
        %v881 = vadd.f32 0.0, %v880
        %v882 = vpop.f32.mrb[0].mxu0
        %883 = vmatprep.mubr.f32.mxu0 0.0
        %884 = vmatmul.mubr.f32.gmra.mrb[0].mxu0 %v780
        %v885 = vpop.f32.mrb[0].mxu0
        %v886 = vadd.f32 0.0, %v885
        %v887 = vpop.f32.mrb[0].mxu0
        %888 = vmatprep.mubr.f32.mxu0 0.0
        %889 = vmatmul.mubr.f32.gmra.mrb[0].mxu0 %v783
        %v890 = vpop.f32.mrb[0].mxu0
        %v891 = vadd.f32 0.0, %v890
        %v892 = vpop.f32.mrb[0].mxu0
        %893 = vdwg.mxu0
        %v895 = vsel %vm760, %v597, 0
        %v898 = vsel %vm760, %v602, 0
        %v901 = vsel %vm760, %v607, 0
        %v904 = vsel %vm760, %v612, 0
        %v907 = vsel %vm760, %v617, 0
        %v910 = vsel %vm760, %v622, 0
        %v913 = vsel %vm760, %v627, 0
        %v916 = vsel %vm760, %v632, 0
        %v919 = vsel %vm785, %v635, 0
        %921 = vmatprep.subr.mxu0 0.0
        %922 = vmatpush1.msra.mxu0 %v919
        %923 = vmatprep.subr.mxu0 0.0
        %924 = vmatpush1.msra.mxu0 0.0
        %925 = vmatprep.subr.mxu0 0.0
        %926 = vmatpush1.msra.mxu0 0.0
        %927 = vmatprep.subr.mxu0 0.0
        %928 = vmatpush1.msra.mxu0 0.0
        %929 = vmatprep.subr.mxu0 0.0
        %930 = vmatpush1.msra.mxu0 0.0
        %931 = vmatprep.subr.mxu0 0.0
        %932 = vmatpush1.msra.mxu0 0.0
        %933 = vmatprep.subr.mxu0 0.0
        %934 = vmatpush1.msra.mxu0 0.0
        %935 = vmatprep.subr.mxu0 0.0
        %936 = vmatpush1.msra.mxu0 0.0
        %937 = vmatprep.subr.mxu0 0.0
        %938 = vmatpush1.msra.mxu0 0.0
        %939 = vmatprep.subr.mxu0 0.0
        %940 = vmatpush1.msra.mxu0 0.0
        %941 = vmatprep.subr.mxu0 0.0
        %942 = vmatpush1.msra.mxu0 0.0
        %943 = vmatprep.subr.mxu0 0.0
        %944 = vmatpush1.msra.mxu0 0.0
        %945 = vmatprep.subr.mxu0 0.0
        %946 = vmatpush1.msra.mxu0 0.0
        %947 = vmatprep.subr.mxu0 0.0
        %948 = vmatpush1.msra.mxu0 0.0
        %949 = vmatprep.subr.mxu0 0.0
        %950 = vmatpush1.msra.mxu0 0.0
        %951 = vmatprep.subr.mxu0 0.0
        %952 = vmatpush1.msra.mxu0 0.0
        %953 = vmatprep.subr.mxu0 0.0
        %954 = vmatpush1.msra.mxu0 0.0
        %955 = vmatprep.subr.mxu0 0.0
        %956 = vmatpush1.msra.mxu0 0.0
        %957 = vmatprep.subr.mxu0 0.0
        %958 = vmatpush1.msra.mxu0 0.0
        %959 = vmatprep.subr.mxu0 0.0
        %960 = vmatpush1.msra.mxu0 0.0
        %961 = vmatprep.subr.mxu0 0.0
        %962 = vmatpush1.msra.mxu0 0.0
        %963 = vmatprep.subr.mxu0 0.0
        %964 = vmatpush1.msra.mxu0 0.0
        %965 = vmatprep.subr.mxu0 0.0
        %966 = vmatpush1.msra.mxu0 0.0
        %967 = vmatprep.subr.mxu0 0.0
        %968 = vmatpush1.msra.mxu0 0.0
        %969 = vmatprep.subr.mxu0 0.0
        %970 = vmatpush1.msra.mxu0 0.0
        %971 = vmatprep.subr.mxu0 0.0
        %972 = vmatpush1.msra.mxu0 0.0
        %973 = vmatprep.subr.mxu0 0.0
        %974 = vmatpush1.msra.mxu0 0.0
        %975 = vmatprep.subr.mxu0 0.0
        %976 = vmatpush1.msra.mxu0 0.0
        %977 = vmatprep.subr.mxu0 0.0
        %978 = vmatpush1.msra.mxu0 0.0
        %979 = vmatprep.subr.mxu0 0.0
        %980 = vmatpush1.msra.mxu0 0.0
        %981 = vmatprep.subr.mxu0 0.0
        %982 = vmatpush1.msra.mxu0 0.0
        %983 = vmatprep.subr.mxu0 0.0
        %984 = vmatpush1.msra.mxu0 0.0
        %985 = vmatprep.mubr.f32.mxu0 0.0
        %986 = vmatmul.mubr.f32.gmra.mrb[0].mxu0 %v895
        %v987 = vpop.f32.mrb[0].mxu0
        %v988 = vadd.f32 %v856, %v987
        %v989 = vpop.f32.mrb[0].mxu0
        %990 = vmatprep.mubr.f32.mxu0 0.0
        %991 = vmatmul.mubr.f32.gmra.mrb[0].mxu0 %v898
        %v992 = vpop.f32.mrb[0].mxu0
        %v993 = vadd.f32 %v861, %v992
        %v994 = vpop.f32.mrb[0].mxu0
        %995 = vmatprep.mubr.f32.mxu0 0.0
        %996 = vmatmul.mubr.f32.gmra.mrb[0].mxu0 %v901
        %v997 = vpop.f32.mrb[0].mxu0
        %v998 = vadd.f32 %v866, %v997
        %v999 = vpop.f32.mrb[0].mxu0
        %1000 = vmatprep.mubr.f32.mxu0 0.0
        %1001 = vmatmul.mubr.f32.gmra.mrb[0].mxu0 %v904
        %v1002 = vpop.f32.mrb[0].mxu0
        %v1003 = vadd.f32 %v871, %v1002
        %v1004 = vpop.f32.mrb[0].mxu0
        %1005 = vmatprep.mubr.f32.mxu0 0.0
        %1006 = vmatmul.mubr.f32.gmra.mrb[0].mxu0 %v907
        %v1007 = vpop.f32.mrb[0].mxu0
        %v1008 = vadd.f32 %v876, %v1007
        %v1009 = vpop.f32.mrb[0].mxu0
        %1010 = vmatprep.mubr.f32.mxu0 0.0
        %1011 = vmatmul.mubr.f32.gmra.mrb[0].mxu0 %v910
        %v1012 = vpop.f32.mrb[0].mxu0
        %v1013 = vadd.f32 %v881, %v1012
        %v1014 = vpop.f32.mrb[0].mxu0
        %1015 = vmatprep.mubr.f32.mxu0 0.0
        %1016 = vmatmul.mubr.f32.gmra.mrb[0].mxu0 %v913
        %v1017 = vpop.f32.mrb[0].mxu0
        %v1018 = vadd.f32 %v886, %v1017
        %v1019 = vpop.f32.mrb[0].mxu0
        %1020 = vmatprep.mubr.f32.mxu0 0.0
        %1021 = vmatmul.mubr.f32.gmra.mrb[0].mxu0 %v916
        %v1022 = vpop.f32.mrb[0].mxu0
        %v1023 = vadd.f32 %v891, %v1022
        %v1024 = vpop.f32.mrb[0].mxu0
        %1025 = vdwg.mxu0
        %s1026 = scalar_lea.vmem [#allocation2], 256
        %v1027 = vld [vmem:[%s1026] sm:$0xff]
        %v1028 = vld [vmem:[%s1026 + $0x8] sm:$0xff]
        %v1029 = vld [vmem:[%s1026 + $0x10] sm:$0xff]
        %v1030 = vld [vmem:[%s1026 + $0x18] sm:$0xff]
        %v1031 = vld [vmem:[%s1026 + $0x20] sm:$0xff]
        %v1032 = vld [vmem:[%s1026 + $0x28] sm:$0xff]
        %v1033 = vld [vmem:[%s1026 + $0x30] sm:$0xff]
        %v1034 = vld [vmem:[%s1026 + $0x38] sm:$0xff]
        %v1035 = vld [vmem:[%s1026 + $0x40] sm:$0xff]
        %v1036 = vld [vmem:[%s1026 + $0x48] sm:$0xff]
        %v1037 = vld [vmem:[%s1026 + $0x50] sm:$0xff]
        %v1038 = vld [vmem:[%s1026 + $0x58] sm:$0xff]
        %v1039 = vld [vmem:[%s1026 + $0x60] sm:$0xff]
        %v1040 = vld [vmem:[%s1026 + $0x68] sm:$0xff]
        %v1041 = vld [vmem:[%s1026 + $0x70] sm:$0xff]
        %v1042 = vld [vmem:[%s1026 + $0x78] sm:$0xff]
        %1043 = vmatprep.subr.mxu0 0.0
        %1044 = vmatpush1.msra.mxu0 %v482
        %1045 = vmatprep.subr.mxu0 0.0
        %1046 = vmatpush1.msra.mxu0 %v483
        %1047 = vmatprep.subr.mxu0 0.0
        %1048 = vmatpush1.msra.mxu0 %v484
        %1049 = vmatprep.subr.mxu0 0.0
        %1050 = vmatpush1.msra.mxu0 %v485
        %1051 = vmatprep.subr.mxu0 0.0
        %1052 = vmatpush1.msra.mxu0 %v486
        %1053 = vmatprep.subr.mxu0 0.0
        %1054 = vmatpush1.msra.mxu0 %v487
        %1055 = vmatprep.subr.mxu0 0.0
        %1056 = vmatpush1.msra.mxu0 %v488
        %1057 = vmatprep.subr.mxu0 0.0
        %1058 = vmatpush1.msra.mxu0 %v489
        %1059 = vmatprep.subr.mxu0 0.0
        %1060 = vmatpush1.msra.mxu0 %v490
        %1061 = vmatprep.subr.mxu0 0.0
        %1062 = vmatpush1.msra.mxu0 %v491
        %1063 = vmatprep.subr.mxu0 0.0
        %1064 = vmatpush1.msra.mxu0 %v492
        %1065 = vmatprep.subr.mxu0 0.0
        %1066 = vmatpush1.msra.mxu0 %v493
        %1067 = vmatprep.subr.mxu0 0.0
        %1068 = vmatpush1.msra.mxu0 %v494
        %1069 = vmatprep.subr.mxu0 0.0
        %1070 = vmatpush1.msra.mxu0 %v495
        %1071 = vmatprep.subr.mxu0 0.0
        %1072 = vmatpush1.msra.mxu0 %v496
        %1073 = vmatprep.subr.mxu0 0.0
        %1074 = vmatpush1.msra.mxu0 %v497
        %1075 = vmatprep.subr.mxu0 0.0
        %1076 = vmatpush1.msra.mxu0 %v498
        %1077 = vmatprep.subr.mxu0 0.0
        %1078 = vmatpush1.msra.mxu0 %v499
        %1079 = vmatprep.subr.mxu0 0.0
        %1080 = vmatpush1.msra.mxu0 %v500
        %1081 = vmatprep.subr.mxu0 0.0
        %1082 = vmatpush1.msra.mxu0 %v501
        %1083 = vmatprep.subr.mxu0 0.0
        %1084 = vmatpush1.msra.mxu0 %v502
        %1085 = vmatprep.subr.mxu0 0.0
        %1086 = vmatpush1.msra.mxu0 %v503
        %1087 = vmatprep.subr.mxu0 0.0
        %1088 = vmatpush1.msra.mxu0 %v504
        %1089 = vmatprep.subr.mxu0 0.0
        %1090 = vmatpush1.msra.mxu0 %v505
        %1091 = vmatprep.subr.mxu0 0.0
        %1092 = vmatpush1.msra.mxu0 %v506
        %1093 = vmatprep.subr.mxu0 0.0
        %1094 = vmatpush1.msra.mxu0 %v507
        %1095 = vmatprep.subr.mxu0 0.0
        %1096 = vmatpush1.msra.mxu0 %v508
        %1097 = vmatprep.subr.mxu0 0.0
        %1098 = vmatpush1.msra.mxu0 %v509
        %1099 = vmatprep.subr.mxu0 0.0
        %1100 = vmatpush1.msra.mxu0 %v510
        %1101 = vmatprep.subr.mxu0 0.0
        %1102 = vmatpush1.msra.mxu0 %v511
        %1103 = vmatprep.subr.mxu0 0.0
        %1104 = vmatpush1.msra.mxu0 %v512
        %1105 = vmatprep.subr.mxu0 0.0
        %1106 = vmatpush1.msra.mxu0 %v513
        %1107 = vmatprep.mubr.f32.mxu0 %v1028
        %1108 = vmatmul.mubr.f32.gmra.mrb[0].mxu0 %v1027
        %v1109 = vpop.f32.mrb[0].mxu0
        %v1110 = vadd.f32 0.0, %v1109
        %v1111 = vpop.f32.mrb[0].mxu0
        %1112 = vmatprep.mubr.f32.mxu0 %v1030
        %1113 = vmatmul.mubr.f32.gmra.mrb[0].mxu0 %v1029
        %v1114 = vpop.f32.mrb[0].mxu0
        %v1115 = vadd.f32 0.0, %v1114
        %v1116 = vpop.f32.mrb[0].mxu0
        %1117 = vmatprep.mubr.f32.mxu0 %v1032
        %1118 = vmatmul.mubr.f32.gmra.mrb[0].mxu0 %v1031
        %v1119 = vpop.f32.mrb[0].mxu0
        %v1120 = vadd.f32 0.0, %v1119
        %v1121 = vpop.f32.mrb[0].mxu0
        %1122 = vmatprep.mubr.f32.mxu0 %v1034
        %1123 = vmatmul.mubr.f32.gmra.mrb[0].mxu0 %v1033
        %v1124 = vpop.f32.mrb[0].mxu0
        %v1125 = vadd.f32 0.0, %v1124
        %v1126 = vpop.f32.mrb[0].mxu0
        %1127 = vmatprep.mubr.f32.mxu0 %v1036
        %1128 = vmatmul.mubr.f32.gmra.mrb[0].mxu0 %v1035
        %v1129 = vpop.f32.mrb[0].mxu0
        %v1130 = vadd.f32 0.0, %v1129
        %v1131 = vpop.f32.mrb[0].mxu0
        %1132 = vmatprep.mubr.f32.mxu0 %v1038
        %1133 = vmatmul.mubr.f32.gmra.mrb[0].mxu0 %v1037
        %v1134 = vpop.f32.mrb[0].mxu0
        %v1135 = vadd.f32 0.0, %v1134
        %v1136 = vpop.f32.mrb[0].mxu0
        %1137 = vmatprep.mubr.f32.mxu0 %v1040
        %1138 = vmatmul.mubr.f32.gmra.mrb[0].mxu0 %v1039
        %v1139 = vpop.f32.mrb[0].mxu0
        %v1140 = vadd.f32 0.0, %v1139
        %v1141 = vpop.f32.mrb[0].mxu0
        %1142 = vmatprep.mubr.f32.mxu0 %v1042
        %1143 = vmatmul.mubr.f32.gmra.mrb[0].mxu0 %v1041
        %v1144 = vpop.f32.mrb[0].mxu0
        %v1145 = vadd.f32 0.0, %v1144
        %v1146 = vpop.f32.mrb[0].mxu0
        %1147 = vdwg.mxu0
        %s1148 = scalar_lea.vmem %s2, 8
        %v1149 = vld [vmem:[%s1148] sm:$0xf]
        %v1151 = vsel %vm760, %v1110, 0
        %v1154 = vsel %vm760, %v1115, 0
        %v1157 = vsel %vm760, %v1120, 0
        %v1160 = vsel %vm760, %v1125, 0
        %v1163 = vsel %vm760, %v1130, 0
        %v1166 = vsel %vm760, %v1135, 0
        %v1169 = vsel %vm760, %v1140, 0
        %v1172 = vsel %vm760, %v1145, 0
        %v1175 = vsel %vm785, %v1149, 0
        %1177 = vmatprep.subr.mxu0 0.0
        %1178 = vmatpush1.msra.mxu0 %v1175
        %1179 = vmatprep.subr.mxu0 0.0
        %1180 = vmatpush1.msra.mxu0 0.0
        %1181 = vmatprep.subr.mxu0 0.0
        %1182 = vmatpush1.msra.mxu0 0.0
        %1183 = vmatprep.subr.mxu0 0.0
        %1184 = vmatpush1.msra.mxu0 0.0
        %1185 = vmatprep.subr.mxu0 0.0
        %1186 = vmatpush1.msra.mxu0 0.0
        %1187 = vmatprep.subr.mxu0 0.0
        %1188 = vmatpush1.msra.mxu0 0.0
        %1189 = vmatprep.subr.mxu0 0.0
        %1190 = vmatpush1.msra.mxu0 0.0
        %1191 = vmatprep.subr.mxu0 0.0
        %1192 = vmatpush1.msra.mxu0 0.0
        %1193 = vmatprep.subr.mxu0 0.0
        %1194 = vmatpush1.msra.mxu0 0.0
        %1195 = vmatprep.subr.mxu0 0.0
        %1196 = vmatpush1.msra.mxu0 0.0
        %1197 = vmatprep.subr.mxu0 0.0
        %1198 = vmatpush1.msra.mxu0 0.0
        %1199 = vmatprep.subr.mxu0 0.0
        %1200 = vmatpush1.msra.mxu0 0.0
        %1201 = vmatprep.subr.mxu0 0.0
        %1202 = vmatpush1.msra.mxu0 0.0
        %1203 = vmatprep.subr.mxu0 0.0
        %1204 = vmatpush1.msra.mxu0 0.0
        %1205 = vmatprep.subr.mxu0 0.0
        %1206 = vmatpush1.msra.mxu0 0.0
        %1207 = vmatprep.subr.mxu0 0.0
        %1208 = vmatpush1.msra.mxu0 0.0
        %1209 = vmatprep.subr.mxu0 0.0
        %1210 = vmatpush1.msra.mxu0 0.0
        %1211 = vmatprep.subr.mxu0 0.0
        %1212 = vmatpush1.msra.mxu0 0.0
        %1213 = vmatprep.subr.mxu0 0.0
        %1214 = vmatpush1.msra.mxu0 0.0
        %1215 = vmatprep.subr.mxu0 0.0
        %1216 = vmatpush1.msra.mxu0 0.0
        %1217 = vmatprep.subr.mxu0 0.0
        %1218 = vmatpush1.msra.mxu0 0.0
        %1219 = vmatprep.subr.mxu0 0.0
        %1220 = vmatpush1.msra.mxu0 0.0
        %1221 = vmatprep.subr.mxu0 0.0
        %1222 = vmatpush1.msra.mxu0 0.0
        %1223 = vmatprep.subr.mxu0 0.0
        %1224 = vmatpush1.msra.mxu0 0.0
        %1225 = vmatprep.subr.mxu0 0.0
        %1226 = vmatpush1.msra.mxu0 0.0
        %1227 = vmatprep.subr.mxu0 0.0
        %1228 = vmatpush1.msra.mxu0 0.0
        %1229 = vmatprep.subr.mxu0 0.0
        %1230 = vmatpush1.msra.mxu0 0.0
        %1231 = vmatprep.subr.mxu0 0.0
        %1232 = vmatpush1.msra.mxu0 0.0
        %1233 = vmatprep.subr.mxu0 0.0
        %1234 = vmatpush1.msra.mxu0 0.0
        %1235 = vmatprep.subr.mxu0 0.0
        %1236 = vmatpush1.msra.mxu0 0.0
        %1237 = vmatprep.subr.mxu0 0.0
        %1238 = vmatpush1.msra.mxu0 0.0
        %1239 = vmatprep.subr.mxu0 0.0
        %1240 = vmatpush1.msra.mxu0 0.0
        %1241 = vmatprep.mubr.f32.mxu0 0.0
        %1242 = vmatmul.mubr.f32.gmra.mrb[0].mxu0 %v1151
        %v1243 = vpop.f32.mrb[0].mxu0
        %v1244 = vadd.f32 0.0, %v1243
        %v1245 = vpop.f32.mrb[0].mxu0
        %1246 = vmatprep.mubr.f32.mxu0 0.0
        %1247 = vmatmul.mubr.f32.gmra.mrb[0].mxu0 %v1154
        %v1248 = vpop.f32.mrb[0].mxu0
        %v1249 = vadd.f32 0.0, %v1248
        %v1250 = vpop.f32.mrb[0].mxu0
        %1251 = vmatprep.mubr.f32.mxu0 0.0
        %1252 = vmatmul.mubr.f32.gmra.mrb[0].mxu0 %v1157
        %v1253 = vpop.f32.mrb[0].mxu0
        %v1254 = vadd.f32 0.0, %v1253
        %v1255 = vpop.f32.mrb[0].mxu0
        %1256 = vmatprep.mubr.f32.mxu0 0.0
        %1257 = vmatmul.mubr.f32.gmra.mrb[0].mxu0 %v1160
        %v1258 = vpop.f32.mrb[0].mxu0
        %v1259 = vadd.f32 0.0, %v1258
        %v1260 = vpop.f32.mrb[0].mxu0
        %1261 = vmatprep.mubr.f32.mxu0 0.0
        %1262 = vmatmul.mubr.f32.gmra.mrb[0].mxu0 %v1163
        %v1263 = vpop.f32.mrb[0].mxu0
        %v1264 = vadd.f32 0.0, %v1263
        %v1265 = vpop.f32.mrb[0].mxu0
        %1266 = vmatprep.mubr.f32.mxu0 0.0
        %1267 = vmatmul.mubr.f32.gmra.mrb[0].mxu0 %v1166
        %v1268 = vpop.f32.mrb[0].mxu0
        %v1269 = vadd.f32 0.0, %v1268
        %v1270 = vpop.f32.mrb[0].mxu0
        %1271 = vmatprep.mubr.f32.mxu0 0.0
        %1272 = vmatmul.mubr.f32.gmra.mrb[0].mxu0 %v1169
        %v1273 = vpop.f32.mrb[0].mxu0
        %v1274 = vadd.f32 0.0, %v1273
        %v1275 = vpop.f32.mrb[0].mxu0
        %1276 = vmatprep.mubr.f32.mxu0 0.0
        %1277 = vmatmul.mubr.f32.gmra.mrb[0].mxu0 %v1172
        %v1278 = vpop.f32.mrb[0].mxu0
        %v1279 = vadd.f32 0.0, %v1278
        %v1280 = vpop.f32.mrb[0].mxu0
        %1281 = vdwg.mxu0
        %v1282 = vadd.f32 %v988, %v1244
        %v1283 = vadd.f32 %v993, %v1249
        %v1284 = vadd.f32 %v998, %v1254
        %v1285 = vadd.f32 %v1003, %v1259
        %v1286 = vadd.f32 %v1008, %v1264
        %v1287 = vadd.f32 %v1013, %v1269
        %v1288 = vadd.f32 %v1018, %v1274
        %v1289 = vadd.f32 %v1023, %v1279
        %s1290 = scalar_lea.vmem [#allocation2], 384
        %v1291 = vld [vmem:[%s1290] sm:$0xff]
        %v1292 = vld [vmem:[%s1290 + $0x8] sm:$0xff]
        %v1293 = vld [vmem:[%s1290 + $0x10] sm:$0xff]
        %v1294 = vld [vmem:[%s1290 + $0x18] sm:$0xff]
        %v1295 = vld [vmem:[%s1290 + $0x20] sm:$0xff]
        %v1296 = vld [vmem:[%s1290 + $0x28] sm:$0xff]
        %v1297 = vld [vmem:[%s1290 + $0x30] sm:$0xff]
        %v1298 = vld [vmem:[%s1290 + $0x38] sm:$0xff]
        %v1299 = vld [vmem:[%s1290 + $0x40] sm:$0xff]
        %v1300 = vld [vmem:[%s1290 + $0x48] sm:$0xff]
        %v1301 = vld [vmem:[%s1290 + $0x50] sm:$0xff]
        %v1302 = vld [vmem:[%s1290 + $0x58] sm:$0xff]
        %v1303 = vld [vmem:[%s1290 + $0x60] sm:$0xff]
        %v1304 = vld [vmem:[%s1290 + $0x68] sm:$0xff]
        %v1305 = vld [vmem:[%s1290 + $0x70] sm:$0xff]
        %v1306 = vld [vmem:[%s1290 + $0x78] sm:$0xff]
        %1307 = vmatprep.subr.mxu0 0.0
        %1308 = vmatpush1.msra.mxu0 %v482
        %1309 = vmatprep.subr.mxu0 0.0
        %1310 = vmatpush1.msra.mxu0 %v483
        %1311 = vmatprep.subr.mxu0 0.0
        %1312 = vmatpush1.msra.mxu0 %v484
        %1313 = vmatprep.subr.mxu0 0.0
        %1314 = vmatpush1.msra.mxu0 %v485
        %1315 = vmatprep.subr.mxu0 0.0
        %1316 = vmatpush1.msra.mxu0 %v486
        %1317 = vmatprep.subr.mxu0 0.0
        %1318 = vmatpush1.msra.mxu0 %v487
        %1319 = vmatprep.subr.mxu0 0.0
        %1320 = vmatpush1.msra.mxu0 %v488
        %1321 = vmatprep.subr.mxu0 0.0
        %1322 = vmatpush1.msra.mxu0 %v489
        %1323 = vmatprep.subr.mxu0 0.0
        %1324 = vmatpush1.msra.mxu0 %v490
        %1325 = vmatprep.subr.mxu0 0.0
        %1326 = vmatpush1.msra.mxu0 %v491
        %1327 = vmatprep.subr.mxu0 0.0
        %1328 = vmatpush1.msra.mxu0 %v492
        %1329 = vmatprep.subr.mxu0 0.0
        %1330 = vmatpush1.msra.mxu0 %v493
        %1331 = vmatprep.subr.mxu0 0.0
        %1332 = vmatpush1.msra.mxu0 %v494
        %1333 = vmatprep.subr.mxu0 0.0
        %1334 = vmatpush1.msra.mxu0 %v495
        %1335 = vmatprep.subr.mxu0 0.0
        %1336 = vmatpush1.msra.mxu0 %v496
        %1337 = vmatprep.subr.mxu0 0.0
        %1338 = vmatpush1.msra.mxu0 %v497
        %1339 = vmatprep.subr.mxu0 0.0
        %1340 = vmatpush1.msra.mxu0 %v498
        %1341 = vmatprep.subr.mxu0 0.0
        %1342 = vmatpush1.msra.mxu0 %v499
        %1343 = vmatprep.subr.mxu0 0.0
        %1344 = vmatpush1.msra.mxu0 %v500
        %1345 = vmatprep.subr.mxu0 0.0
        %1346 = vmatpush1.msra.mxu0 %v501
        %1347 = vmatprep.subr.mxu0 0.0
        %1348 = vmatpush1.msra.mxu0 %v502
        %1349 = vmatprep.subr.mxu0 0.0
        %1350 = vmatpush1.msra.mxu0 %v503
        %1351 = vmatprep.subr.mxu0 0.0
        %1352 = vmatpush1.msra.mxu0 %v504
        %1353 = vmatprep.subr.mxu0 0.0
        %1354 = vmatpush1.msra.mxu0 %v505
        %1355 = vmatprep.subr.mxu0 0.0
        %1356 = vmatpush1.msra.mxu0 %v506
        %1357 = vmatprep.subr.mxu0 0.0
        %1358 = vmatpush1.msra.mxu0 %v507
        %1359 = vmatprep.subr.mxu0 0.0
        %1360 = vmatpush1.msra.mxu0 %v508
        %1361 = vmatprep.subr.mxu0 0.0
        %1362 = vmatpush1.msra.mxu0 %v509
        %1363 = vmatprep.subr.mxu0 0.0
        %1364 = vmatpush1.msra.mxu0 %v510
        %1365 = vmatprep.subr.mxu0 0.0
        %1366 = vmatpush1.msra.mxu0 %v511
        %1367 = vmatprep.subr.mxu0 0.0
        %1368 = vmatpush1.msra.mxu0 %v512
        %1369 = vmatprep.subr.mxu0 0.0
        %1370 = vmatpush1.msra.mxu0 %v513
        %1371 = vmatprep.mubr.f32.mxu0 %v1292
        %1372 = vmatmul.mubr.f32.gmra.mrb[0].mxu0 %v1291
        %v1373 = vpop.f32.mrb[0].mxu0
        %v1374 = vadd.f32 0.0, %v1373
        %v1375 = vpop.f32.mrb[0].mxu0
        %1376 = vmatprep.mubr.f32.mxu0 %v1294
        %1377 = vmatmul.mubr.f32.gmra.mrb[0].mxu0 %v1293
        %v1378 = vpop.f32.mrb[0].mxu0
        %v1379 = vadd.f32 0.0, %v1378
        %v1380 = vpop.f32.mrb[0].mxu0
        %1381 = vmatprep.mubr.f32.mxu0 %v1296
        %1382 = vmatmul.mubr.f32.gmra.mrb[0].mxu0 %v1295
        %v1383 = vpop.f32.mrb[0].mxu0
        %v1384 = vadd.f32 0.0, %v1383
        %v1385 = vpop.f32.mrb[0].mxu0
        %1386 = vmatprep.mubr.f32.mxu0 %v1298
        %1387 = vmatmul.mubr.f32.gmra.mrb[0].mxu0 %v1297
        %v1388 = vpop.f32.mrb[0].mxu0
        %v1389 = vadd.f32 0.0, %v1388
        %v1390 = vpop.f32.mrb[0].mxu0
        %1391 = vmatprep.mubr.f32.mxu0 %v1300
        %1392 = vmatmul.mubr.f32.gmra.mrb[0].mxu0 %v1299
        %v1393 = vpop.f32.mrb[0].mxu0
        %v1394 = vadd.f32 0.0, %v1393
        %v1395 = vpop.f32.mrb[0].mxu0
        %1396 = vmatprep.mubr.f32.mxu0 %v1302
        %1397 = vmatmul.mubr.f32.gmra.mrb[0].mxu0 %v1301
        %v1398 = vpop.f32.mrb[0].mxu0
        %v1399 = vadd.f32 0.0, %v1398
        %v1400 = vpop.f32.mrb[0].mxu0
        %1401 = vmatprep.mubr.f32.mxu0 %v1304
        %1402 = vmatmul.mubr.f32.gmra.mrb[0].mxu0 %v1303
        %v1403 = vpop.f32.mrb[0].mxu0
        %v1404 = vadd.f32 0.0, %v1403
        %v1405 = vpop.f32.mrb[0].mxu0
        %1406 = vmatprep.mubr.f32.mxu0 %v1306
        %1407 = vmatmul.mubr.f32.gmra.mrb[0].mxu0 %v1305
        %v1408 = vpop.f32.mrb[0].mxu0
        %v1409 = vadd.f32 0.0, %v1408
        %v1410 = vpop.f32.mrb[0].mxu0
        %1411 = vdwg.mxu0
        %s1412 = scalar_lea.vmem %s2, 12
        %v1413 = vld [vmem:[%s1412] sm:$0xf]
        %v1415 = vsel %vm760, %v1374, 0
        %v1418 = vsel %vm760, %v1379, 0
        %v1421 = vsel %vm760, %v1384, 0
        %v1424 = vsel %vm760, %v1389, 0
        %v1427 = vsel %vm760, %v1394, 0
        %v1430 = vsel %vm760, %v1399, 0
        %v1433 = vsel %vm760, %v1404, 0
        %v1436 = vsel %vm760, %v1409, 0
        %v1439 = vsel %vm785, %v1413, 0
        %1441 = vmatprep.subr.mxu0 0.0
        %1442 = vmatpush1.msra.mxu0 %v1439
        %1443 = vmatprep.subr.mxu0 0.0
        %1444 = vmatpush1.msra.mxu0 0.0
        %1445 = vmatprep.subr.mxu0 0.0
        %1446 = vmatpush1.msra.mxu0 0.0
        %1447 = vmatprep.subr.mxu0 0.0
        %1448 = vmatpush1.msra.mxu0 0.0
        %1449 = vmatprep.subr.mxu0 0.0
        %1450 = vmatpush1.msra.mxu0 0.0
        %1451 = vmatprep.subr.mxu0 0.0
        %1452 = vmatpush1.msra.mxu0 0.0
        %1453 = vmatprep.subr.mxu0 0.0
        %1454 = vmatpush1.msra.mxu0 0.0
        %1455 = vmatprep.subr.mxu0 0.0
        %1456 = vmatpush1.msra.mxu0 0.0
        %1457 = vmatprep.subr.mxu0 0.0
        %1458 = vmatpush1.msra.mxu0 0.0
        %1459 = vmatprep.subr.mxu0 0.0
        %1460 = vmatpush1.msra.mxu0 0.0
        %1461 = vmatprep.subr.mxu0 0.0
        %1462 = vmatpush1.msra.mxu0 0.0
        %1463 = vmatprep.subr.mxu0 0.0
        %1464 = vmatpush1.msra.mxu0 0.0
        %1465 = vmatprep.subr.mxu0 0.0
        %1466 = vmatpush1.msra.mxu0 0.0
        %1467 = vmatprep.subr.mxu0 0.0
        %1468 = vmatpush1.msra.mxu0 0.0
        %1469 = vmatprep.subr.mxu0 0.0
        %1470 = vmatpush1.msra.mxu0 0.0
        %1471 = vmatprep.subr.mxu0 0.0
        %1472 = vmatpush1.msra.mxu0 0.0
        %1473 = vmatprep.subr.mxu0 0.0
        %1474 = vmatpush1.msra.mxu0 0.0
        %1475 = vmatprep.subr.mxu0 0.0
        %1476 = vmatpush1.msra.mxu0 0.0
        %1477 = vmatprep.subr.mxu0 0.0
        %1478 = vmatpush1.msra.mxu0 0.0
        %1479 = vmatprep.subr.mxu0 0.0
        %1480 = vmatpush1.msra.mxu0 0.0
        %1481 = vmatprep.subr.mxu0 0.0
        %1482 = vmatpush1.msra.mxu0 0.0
        %1483 = vmatprep.subr.mxu0 0.0
        %1484 = vmatpush1.msra.mxu0 0.0
        %1485 = vmatprep.subr.mxu0 0.0
        %1486 = vmatpush1.msra.mxu0 0.0
        %1487 = vmatprep.subr.mxu0 0.0
        %1488 = vmatpush1.msra.mxu0 0.0
        %1489 = vmatprep.subr.mxu0 0.0
        %1490 = vmatpush1.msra.mxu0 0.0
        %1491 = vmatprep.subr.mxu0 0.0
        %1492 = vmatpush1.msra.mxu0 0.0
        %1493 = vmatprep.subr.mxu0 0.0
        %1494 = vmatpush1.msra.mxu0 0.0
        %1495 = vmatprep.subr.mxu0 0.0
        %1496 = vmatpush1.msra.mxu0 0.0
        %1497 = vmatprep.subr.mxu0 0.0
        %1498 = vmatpush1.msra.mxu0 0.0
        %1499 = vmatprep.subr.mxu0 0.0
        %1500 = vmatpush1.msra.mxu0 0.0
        %1501 = vmatprep.subr.mxu0 0.0
        %1502 = vmatpush1.msra.mxu0 0.0
        %1503 = vmatprep.subr.mxu0 0.0
        %1504 = vmatpush1.msra.mxu0 0.0
        %1505 = vmatprep.mubr.f32.mxu0 0.0
        %1506 = vmatmul.mubr.f32.gmra.mrb[0].mxu0 %v1415
        %v1507 = vpop.f32.mrb[0].mxu0
        %v1508 = vadd.f32 0.0, %v1507
        %v1509 = vpop.f32.mrb[0].mxu0
        %1510 = vmatprep.mubr.f32.mxu0 0.0
        %1511 = vmatmul.mubr.f32.gmra.mrb[0].mxu0 %v1418
        %v1512 = vpop.f32.mrb[0].mxu0
        %v1513 = vadd.f32 0.0, %v1512
        %v1514 = vpop.f32.mrb[0].mxu0
        %1515 = vmatprep.mubr.f32.mxu0 0.0
        %1516 = vmatmul.mubr.f32.gmra.mrb[0].mxu0 %v1421
        %v1517 = vpop.f32.mrb[0].mxu0
        %v1518 = vadd.f32 0.0, %v1517
        %v1519 = vpop.f32.mrb[0].mxu0
        %1520 = vmatprep.mubr.f32.mxu0 0.0
        %1521 = vmatmul.mubr.f32.gmra.mrb[0].mxu0 %v1424
        %v1522 = vpop.f32.mrb[0].mxu0
        %v1523 = vadd.f32 0.0, %v1522
        %v1524 = vpop.f32.mrb[0].mxu0
        %1525 = vmatprep.mubr.f32.mxu0 0.0
        %1526 = vmatmul.mubr.f32.gmra.mrb[0].mxu0 %v1427
        %v1527 = vpop.f32.mrb[0].mxu0
        %v1528 = vadd.f32 0.0, %v1527
        %v1529 = vpop.f32.mrb[0].mxu0
        %1530 = vmatprep.mubr.f32.mxu0 0.0
        %1531 = vmatmul.mubr.f32.gmra.mrb[0].mxu0 %v1430
        %v1532 = vpop.f32.mrb[0].mxu0
        %v1533 = vadd.f32 0.0, %v1532
        %v1534 = vpop.f32.mrb[0].mxu0
        %1535 = vmatprep.mubr.f32.mxu0 0.0
        %1536 = vmatmul.mubr.f32.gmra.mrb[0].mxu0 %v1433
        %v1537 = vpop.f32.mrb[0].mxu0
        %v1538 = vadd.f32 0.0, %v1537
        %v1539 = vpop.f32.mrb[0].mxu0
        %1540 = vmatprep.mubr.f32.mxu0 0.0
        %1541 = vmatmul.mubr.f32.gmra.mrb[0].mxu0 %v1436
        %v1542 = vpop.f32.mrb[0].mxu0
        %v1543 = vadd.f32 0.0, %v1542
        %v1544 = vpop.f32.mrb[0].mxu0
        %1545 = vdwg.mxu0
        %v1546 = vadd.f32 %v1282, %v1508
        %v1547 = vadd.f32 %v1283, %v1513
        %v1548 = vadd.f32 %v1284, %v1518
        %v1549 = vadd.f32 %v1285, %v1523
        %v1550 = vadd.f32 %v1286, %v1528
        %v1551 = vadd.f32 %v1287, %v1533
        %v1552 = vadd.f32 %v1288, %v1538
        %v1553 = vadd.f32 %v1289, %v1543
        %s1554 = scalar_lea.vmem [#allocation2], 512
        %v1555 = vld [vmem:[%s1554] sm:$0xff]
        %v1556 = vld [vmem:[%s1554 + $0x8] sm:$0xff]
        %v1557 = vld [vmem:[%s1554 + $0x10] sm:$0xff]
        %v1558 = vld [vmem:[%s1554 + $0x18] sm:$0xff]
        %v1559 = vld [vmem:[%s1554 + $0x20] sm:$0xff]
        %v1560 = vld [vmem:[%s1554 + $0x28] sm:$0xff]
        %v1561 = vld [vmem:[%s1554 + $0x30] sm:$0xff]
        %v1562 = vld [vmem:[%s1554 + $0x38] sm:$0xff]
        %v1563 = vld [vmem:[%s1554 + $0x40] sm:$0xff]
        %v1564 = vld [vmem:[%s1554 + $0x48] sm:$0xff]
        %v1565 = vld [vmem:[%s1554 + $0x50] sm:$0xff]
        %v1566 = vld [vmem:[%s1554 + $0x58] sm:$0xff]
        %v1567 = vld [vmem:[%s1554 + $0x60] sm:$0xff]
        %v1568 = vld [vmem:[%s1554 + $0x68] sm:$0xff]
        %v1569 = vld [vmem:[%s1554 + $0x70] sm:$0xff]
        %v1570 = vld [vmem:[%s1554 + $0x78] sm:$0xff]
        %1571 = vmatprep.subr.mxu0 0.0
        %1572 = vmatpush1.msra.mxu0 %v482
        %1573 = vmatprep.subr.mxu0 0.0
        %1574 = vmatpush1.msra.mxu0 %v483
        %1575 = vmatprep.subr.mxu0 0.0
        %1576 = vmatpush1.msra.mxu0 %v484
        %1577 = vmatprep.subr.mxu0 0.0
        %1578 = vmatpush1.msra.mxu0 %v485
        %1579 = vmatprep.subr.mxu0 0.0
        %1580 = vmatpush1.msra.mxu0 %v486
        %1581 = vmatprep.subr.mxu0 0.0
        %1582 = vmatpush1.msra.mxu0 %v487
        %1583 = vmatprep.subr.mxu0 0.0
        %1584 = vmatpush1.msra.mxu0 %v488
        %1585 = vmatprep.subr.mxu0 0.0
        %1586 = vmatpush1.msra.mxu0 %v489
        %1587 = vmatprep.subr.mxu0 0.0
        %1588 = vmatpush1.msra.mxu0 %v490
        %1589 = vmatprep.subr.mxu0 0.0
        %1590 = vmatpush1.msra.mxu0 %v491
        %1591 = vmatprep.subr.mxu0 0.0
        %1592 = vmatpush1.msra.mxu0 %v492
        %1593 = vmatprep.subr.mxu0 0.0
        %1594 = vmatpush1.msra.mxu0 %v493
        %1595 = vmatprep.subr.mxu0 0.0
        %1596 = vmatpush1.msra.mxu0 %v494
        %1597 = vmatprep.subr.mxu0 0.0
        %1598 = vmatpush1.msra.mxu0 %v495
        %1599 = vmatprep.subr.mxu0 0.0
        %1600 = vmatpush1.msra.mxu0 %v496
        %1601 = vmatprep.subr.mxu0 0.0
        %1602 = vmatpush1.msra.mxu0 %v497
        %1603 = vmatprep.subr.mxu0 0.0
        %1604 = vmatpush1.msra.mxu0 %v498
        %1605 = vmatprep.subr.mxu0 0.0
        %1606 = vmatpush1.msra.mxu0 %v499
        %1607 = vmatprep.subr.mxu0 0.0
        %1608 = vmatpush1.msra.mxu0 %v500
        %1609 = vmatprep.subr.mxu0 0.0
        %1610 = vmatpush1.msra.mxu0 %v501
        %1611 = vmatprep.subr.mxu0 0.0
        %1612 = vmatpush1.msra.mxu0 %v502
        %1613 = vmatprep.subr.mxu0 0.0
        %1614 = vmatpush1.msra.mxu0 %v503
        %1615 = vmatprep.subr.mxu0 0.0
        %1616 = vmatpush1.msra.mxu0 %v504
        %1617 = vmatprep.subr.mxu0 0.0
        %1618 = vmatpush1.msra.mxu0 %v505
        %1619 = vmatprep.subr.mxu0 0.0
        %1620 = vmatpush1.msra.mxu0 %v506
        %1621 = vmatprep.subr.mxu0 0.0
        %1622 = vmatpush1.msra.mxu0 %v507
        %1623 = vmatprep.subr.mxu0 0.0
        %1624 = vmatpush1.msra.mxu0 %v508
        %1625 = vmatprep.subr.mxu0 0.0
        %1626 = vmatpush1.msra.mxu0 %v509
        %1627 = vmatprep.subr.mxu0 0.0
        %1628 = vmatpush1.msra.mxu0 %v510
        %1629 = vmatprep.subr.mxu0 0.0
        %1630 = vmatpush1.msra.mxu0 %v511
        %1631 = vmatprep.subr.mxu0 0.0
        %1632 = vmatpush1.msra.mxu0 %v512
        %1633 = vmatprep.subr.mxu0 0.0
        %1634 = vmatpush1.msra.mxu0 %v513
        %1635 = vmatprep.mubr.f32.mxu0 %v1556
        %1636 = vmatmul.mubr.f32.gmra.mrb[0].mxu0 %v1555
        %v1637 = vpop.f32.mrb[0].mxu0
        %v1638 = vadd.f32 0.0, %v1637
        %v1639 = vpop.f32.mrb[0].mxu0
        %1640 = vmatprep.mubr.f32.mxu0 %v1558
        %1641 = vmatmul.mubr.f32.gmra.mrb[0].mxu0 %v1557
        %v1642 = vpop.f32.mrb[0].mxu0
        %v1643 = vadd.f32 0.0, %v1642
        %v1644 = vpop.f32.mrb[0].mxu0
        %1645 = vmatprep.mubr.f32.mxu0 %v1560
        %1646 = vmatmul.mubr.f32.gmra.mrb[0].mxu0 %v1559
        %v1647 = vpop.f32.mrb[0].mxu0
        %v1648 = vadd.f32 0.0, %v1647
        %v1649 = vpop.f32.mrb[0].mxu0
        %1650 = vmatprep.mubr.f32.mxu0 %v1562
        %1651 = vmatmul.mubr.f32.gmra.mrb[0].mxu0 %v1561
        %v1652 = vpop.f32.mrb[0].mxu0
        %v1653 = vadd.f32 0.0, %v1652
        %v1654 = vpop.f32.mrb[0].mxu0
        %1655 = vmatprep.mubr.f32.mxu0 %v1564
        %1656 = vmatmul.mubr.f32.gmra.mrb[0].mxu0 %v1563
        %v1657 = vpop.f32.mrb[0].mxu0
        %v1658 = vadd.f32 0.0, %v1657
        %v1659 = vpop.f32.mrb[0].mxu0
        %1660 = vmatprep.mubr.f32.mxu0 %v1566
        %1661 = vmatmul.mubr.f32.gmra.mrb[0].mxu0 %v1565
        %v1662 = vpop.f32.mrb[0].mxu0
        %v1663 = vadd.f32 0.0, %v1662
        %v1664 = vpop.f32.mrb[0].mxu0
        %1665 = vmatprep.mubr.f32.mxu0 %v1568
        %1666 = vmatmul.mubr.f32.gmra.mrb[0].mxu0 %v1567
        %v1667 = vpop.f32.mrb[0].mxu0
        %v1668 = vadd.f32 0.0, %v1667
        %v1669 = vpop.f32.mrb[0].mxu0
        %1670 = vmatprep.mubr.f32.mxu0 %v1570
        %1671 = vmatmul.mubr.f32.gmra.mrb[0].mxu0 %v1569
        %v1672 = vpop.f32.mrb[0].mxu0
        %v1673 = vadd.f32 0.0, %v1672
        %v1674 = vpop.f32.mrb[0].mxu0
        %1675 = vdwg.mxu0
        %s1676 = scalar_lea.vmem %s2, 16
        %v1677 = vld [vmem:[%s1676] sm:$0xf]
        %v1679 = vsel %vm760, %v1638, 0
        %v1682 = vsel %vm760, %v1643, 0
        %v1685 = vsel %vm760, %v1648, 0
        %v1688 = vsel %vm760, %v1653, 0
        %v1691 = vsel %vm760, %v1658, 0
        %v1694 = vsel %vm760, %v1663, 0
        %v1697 = vsel %vm760, %v1668, 0
        %v1700 = vsel %vm760, %v1673, 0
        %v1703 = vsel %vm785, %v1677, 0
        %1705 = vmatprep.subr.mxu0 0.0
        %1706 = vmatpush1.msra.mxu0 %v1703
        %1707 = vmatprep.subr.mxu0 0.0
        %1708 = vmatpush1.msra.mxu0 0.0
        %1709 = vmatprep.subr.mxu0 0.0
        %1710 = vmatpush1.msra.mxu0 0.0
        %1711 = vmatprep.subr.mxu0 0.0
        %1712 = vmatpush1.msra.mxu0 0.0
        %1713 = vmatprep.subr.mxu0 0.0
        %1714 = vmatpush1.msra.mxu0 0.0
        %1715 = vmatprep.subr.mxu0 0.0
        %1716 = vmatpush1.msra.mxu0 0.0
        %1717 = vmatprep.subr.mxu0 0.0
        %1718 = vmatpush1.msra.mxu0 0.0
        %1719 = vmatprep.subr.mxu0 0.0
        %1720 = vmatpush1.msra.mxu0 0.0
        %1721 = vmatprep.subr.mxu0 0.0
        %1722 = vmatpush1.msra.mxu0 0.0
        %1723 = vmatprep.subr.mxu0 0.0
        %1724 = vmatpush1.msra.mxu0 0.0
        %1725 = vmatprep.subr.mxu0 0.0
        %1726 = vmatpush1.msra.mxu0 0.0
        %1727 = vmatprep.subr.mxu0 0.0
        %1728 = vmatpush1.msra.mxu0 0.0
        %1729 = vmatprep.subr.mxu0 0.0
        %1730 = vmatpush1.msra.mxu0 0.0
        %1731 = vmatprep.subr.mxu0 0.0
        %1732 = vmatpush1.msra.mxu0 0.0
        %1733 = vmatprep.subr.mxu0 0.0
        %1734 = vmatpush1.msra.mxu0 0.0
        %1735 = vmatprep.subr.mxu0 0.0
        %1736 = vmatpush1.msra.mxu0 0.0
        %1737 = vmatprep.subr.mxu0 0.0
        %1738 = vmatpush1.msra.mxu0 0.0
        %1739 = vmatprep.subr.mxu0 0.0
        %1740 = vmatpush1.msra.mxu0 0.0
        %1741 = vmatprep.subr.mxu0 0.0
        %1742 = vmatpush1.msra.mxu0 0.0
        %1743 = vmatprep.subr.mxu0 0.0
        %1744 = vmatpush1.msra.mxu0 0.0
        %1745 = vmatprep.subr.mxu0 0.0
        %1746 = vmatpush1.msra.mxu0 0.0
        %1747 = vmatprep.subr.mxu0 0.0
        %1748 = vmatpush1.msra.mxu0 0.0
        %1749 = vmatprep.subr.mxu0 0.0
        %1750 = vmatpush1.msra.mxu0 0.0
        %1751 = vmatprep.subr.mxu0 0.0
        %1752 = vmatpush1.msra.mxu0 0.0
        %1753 = vmatprep.subr.mxu0 0.0
        %1754 = vmatpush1.msra.mxu0 0.0
        %1755 = vmatprep.subr.mxu0 0.0
        %1756 = vmatpush1.msra.mxu0 0.0
        %1757 = vmatprep.subr.mxu0 0.0
        %1758 = vmatpush1.msra.mxu0 0.0
        %1759 = vmatprep.subr.mxu0 0.0
        %1760 = vmatpush1.msra.mxu0 0.0
        %1761 = vmatprep.subr.mxu0 0.0
        %1762 = vmatpush1.msra.mxu0 0.0
        %1763 = vmatprep.subr.mxu0 0.0
        %1764 = vmatpush1.msra.mxu0 0.0
        %1765 = vmatprep.subr.mxu0 0.0
        %1766 = vmatpush1.msra.mxu0 0.0
        %1767 = vmatprep.subr.mxu0 0.0
        %1768 = vmatpush1.msra.mxu0 0.0
        %1769 = vmatprep.mubr.f32.mxu0 0.0
        %1770 = vmatmul.mubr.f32.gmra.mrb[0].mxu0 %v1679
        %v1771 = vpop.f32.mrb[0].mxu0
        %v1772 = vadd.f32 0.0, %v1771
        %v1773 = vpop.f32.mrb[0].mxu0
        %1774 = vmatprep.mubr.f32.mxu0 0.0
        %1775 = vmatmul.mubr.f32.gmra.mrb[0].mxu0 %v1682
        %v1776 = vpop.f32.mrb[0].mxu0
        %v1777 = vadd.f32 0.0, %v1776
        %v1778 = vpop.f32.mrb[0].mxu0
        %1779 = vmatprep.mubr.f32.mxu0 0.0
        %1780 = vmatmul.mubr.f32.gmra.mrb[0].mxu0 %v1685
        %v1781 = vpop.f32.mrb[0].mxu0
        %v1782 = vadd.f32 0.0, %v1781
        %v1783 = vpop.f32.mrb[0].mxu0
        %1784 = vmatprep.mubr.f32.mxu0 0.0
        %1785 = vmatmul.mubr.f32.gmra.mrb[0].mxu0 %v1688
        %v1786 = vpop.f32.mrb[0].mxu0
        %v1787 = vadd.f32 0.0, %v1786
        %v1788 = vpop.f32.mrb[0].mxu0
        %1789 = vmatprep.mubr.f32.mxu0 0.0
        %1790 = vmatmul.mubr.f32.gmra.mrb[0].mxu0 %v1691
        %v1791 = vpop.f32.mrb[0].mxu0
        %v1792 = vadd.f32 0.0, %v1791
        %v1793 = vpop.f32.mrb[0].mxu0
        %1794 = vmatprep.mubr.f32.mxu0 0.0
        %1795 = vmatmul.mubr.f32.gmra.mrb[0].mxu0 %v1694
        %v1796 = vpop.f32.mrb[0].mxu0
        %v1797 = vadd.f32 0.0, %v1796
        %v1798 = vpop.f32.mrb[0].mxu0
        %1799 = vmatprep.mubr.f32.mxu0 0.0
        %1800 = vmatmul.mubr.f32.gmra.mrb[0].mxu0 %v1697
        %v1801 = vpop.f32.mrb[0].mxu0
        %v1802 = vadd.f32 0.0, %v1801
        %v1803 = vpop.f32.mrb[0].mxu0
        %1804 = vmatprep.mubr.f32.mxu0 0.0
        %1805 = vmatmul.mubr.f32.gmra.mrb[0].mxu0 %v1700
        %v1806 = vpop.f32.mrb[0].mxu0
        %v1807 = vadd.f32 0.0, %v1806
        %v1808 = vpop.f32.mrb[0].mxu0
        %1809 = vdwg.mxu0
        %v1810 = vadd.f32 %v1546, %v1772
        %v1811 = vadd.f32 %v1547, %v1777
        %v1812 = vadd.f32 %v1548, %v1782
        %v1813 = vadd.f32 %v1549, %v1787
        %v1814 = vadd.f32 %v1550, %v1792
        %v1815 = vadd.f32 %v1551, %v1797
        %v1816 = vadd.f32 %v1552, %v1802
        %v1817 = vadd.f32 %v1553, %v1807
        %s1818 = scalar_lea.vmem [#allocation2], 640
        %v1819 = vld [vmem:[%s1818] sm:$0xff]
        %v1820 = vld [vmem:[%s1818 + $0x8] sm:$0xff]
        %v1821 = vld [vmem:[%s1818 + $0x10] sm:$0xff]
        %v1822 = vld [vmem:[%s1818 + $0x18] sm:$0xff]
        %v1823 = vld [vmem:[%s1818 + $0x20] sm:$0xff]
        %v1824 = vld [vmem:[%s1818 + $0x28] sm:$0xff]
        %v1825 = vld [vmem:[%s1818 + $0x30] sm:$0xff]
        %v1826 = vld [vmem:[%s1818 + $0x38] sm:$0xff]
        %v1827 = vld [vmem:[%s1818 + $0x40] sm:$0xff]
        %v1828 = vld [vmem:[%s1818 + $0x48] sm:$0xff]
        %v1829 = vld [vmem:[%s1818 + $0x50] sm:$0xff]
        %v1830 = vld [vmem:[%s1818 + $0x58] sm:$0xff]
        %v1831 = vld [vmem:[%s1818 + $0x60] sm:$0xff]
        %v1832 = vld [vmem:[%s1818 + $0x68] sm:$0xff]
        %v1833 = vld [vmem:[%s1818 + $0x70] sm:$0xff]
        %v1834 = vld [vmem:[%s1818 + $0x78] sm:$0xff]
        %1835 = vmatprep.subr.mxu0 0.0
        %1836 = vmatpush1.msra.mxu0 %v482
        %1837 = vmatprep.subr.mxu0 0.0
        %1838 = vmatpush1.msra.mxu0 %v483
        %1839 = vmatprep.subr.mxu0 0.0
        %1840 = vmatpush1.msra.mxu0 %v484
        %1841 = vmatprep.subr.mxu0 0.0
        %1842 = vmatpush1.msra.mxu0 %v485
        %1843 = vmatprep.subr.mxu0 0.0
        %1844 = vmatpush1.msra.mxu0 %v486
        %1845 = vmatprep.subr.mxu0 0.0
        %1846 = vmatpush1.msra.mxu0 %v487
        %1847 = vmatprep.subr.mxu0 0.0
        %1848 = vmatpush1.msra.mxu0 %v488
        %1849 = vmatprep.subr.mxu0 0.0
        %1850 = vmatpush1.msra.mxu0 %v489
        %1851 = vmatprep.subr.mxu0 0.0
        %1852 = vmatpush1.msra.mxu0 %v490
        %1853 = vmatprep.subr.mxu0 0.0
        %1854 = vmatpush1.msra.mxu0 %v491
        %1855 = vmatprep.subr.mxu0 0.0
        %1856 = vmatpush1.msra.mxu0 %v492
        %1857 = vmatprep.subr.mxu0 0.0
        %1858 = vmatpush1.msra.mxu0 %v493
        %1859 = vmatprep.subr.mxu0 0.0
        %1860 = vmatpush1.msra.mxu0 %v494
        %1861 = vmatprep.subr.mxu0 0.0
        %1862 = vmatpush1.msra.mxu0 %v495
        %1863 = vmatprep.subr.mxu0 0.0
        %1864 = vmatpush1.msra.mxu0 %v496
        %1865 = vmatprep.subr.mxu0 0.0
        %1866 = vmatpush1.msra.mxu0 %v497
        %1867 = vmatprep.subr.mxu0 0.0
        %1868 = vmatpush1.msra.mxu0 %v498
        %1869 = vmatprep.subr.mxu0 0.0
        %1870 = vmatpush1.msra.mxu0 %v499
        %1871 = vmatprep.subr.mxu0 0.0
        %1872 = vmatpush1.msra.mxu0 %v500
        %1873 = vmatprep.subr.mxu0 0.0
        %1874 = vmatpush1.msra.mxu0 %v501
        %1875 = vmatprep.subr.mxu0 0.0
        %1876 = vmatpush1.msra.mxu0 %v502
        %1877 = vmatprep.subr.mxu0 0.0
        %1878 = vmatpush1.msra.mxu0 %v503
        %1879 = vmatprep.subr.mxu0 0.0
        %1880 = vmatpush1.msra.mxu0 %v504
        %1881 = vmatprep.subr.mxu0 0.0
        %1882 = vmatpush1.msra.mxu0 %v505
        %1883 = vmatprep.subr.mxu0 0.0
        %1884 = vmatpush1.msra.mxu0 %v506
        %1885 = vmatprep.subr.mxu0 0.0
        %1886 = vmatpush1.msra.mxu0 %v507
        %1887 = vmatprep.subr.mxu0 0.0
        %1888 = vmatpush1.msra.mxu0 %v508
        %1889 = vmatprep.subr.mxu0 0.0
        %1890 = vmatpush1.msra.mxu0 %v509
        %1891 = vmatprep.subr.mxu0 0.0
        %1892 = vmatpush1.msra.mxu0 %v510
        %1893 = vmatprep.subr.mxu0 0.0
        %1894 = vmatpush1.msra.mxu0 %v511
        %1895 = vmatprep.subr.mxu0 0.0
        %1896 = vmatpush1.msra.mxu0 %v512
        %1897 = vmatprep.subr.mxu0 0.0
        %1898 = vmatpush1.msra.mxu0 %v513
        %1899 = vmatprep.mubr.f32.mxu0 %v1820
        %1900 = vmatmul.mubr.f32.gmra.mrb[0].mxu0 %v1819
        %v1901 = vpop.f32.mrb[0].mxu0
        %v1902 = vadd.f32 0.0, %v1901
        %v1903 = vpop.f32.mrb[0].mxu0
        %1904 = vmatprep.mubr.f32.mxu0 %v1822
        %1905 = vmatmul.mubr.f32.gmra.mrb[0].mxu0 %v1821
        %v1906 = vpop.f32.mrb[0].mxu0
        %v1907 = vadd.f32 0.0, %v1906
        %v1908 = vpop.f32.mrb[0].mxu0
        %1909 = vmatprep.mubr.f32.mxu0 %v1824
        %1910 = vmatmul.mubr.f32.gmra.mrb[0].mxu0 %v1823
        %v1911 = vpop.f32.mrb[0].mxu0
        %v1912 = vadd.f32 0.0, %v1911
        %v1913 = vpop.f32.mrb[0].mxu0
        %1914 = vmatprep.mubr.f32.mxu0 %v1826
        %1915 = vmatmul.mubr.f32.gmra.mrb[0].mxu0 %v1825
        %v1916 = vpop.f32.mrb[0].mxu0
        %v1917 = vadd.f32 0.0, %v1916
        %v1918 = vpop.f32.mrb[0].mxu0
        %1919 = vmatprep.mubr.f32.mxu0 %v1828
        %1920 = vmatmul.mubr.f32.gmra.mrb[0].mxu0 %v1827
        %v1921 = vpop.f32.mrb[0].mxu0
        %v1922 = vadd.f32 0.0, %v1921
        %v1923 = vpop.f32.mrb[0].mxu0
        %1924 = vmatprep.mubr.f32.mxu0 %v1830
        %1925 = vmatmul.mubr.f32.gmra.mrb[0].mxu0 %v1829
        %v1926 = vpop.f32.mrb[0].mxu0
        %v1927 = vadd.f32 0.0, %v1926
        %v1928 = vpop.f32.mrb[0].mxu0
        %1929 = vmatprep.mubr.f32.mxu0 %v1832
        %1930 = vmatmul.mubr.f32.gmra.mrb[0].mxu0 %v1831
        %v1931 = vpop.f32.mrb[0].mxu0
        %v1932 = vadd.f32 0.0, %v1931
        %v1933 = vpop.f32.mrb[0].mxu0
        %1934 = vmatprep.mubr.f32.mxu0 %v1834
        %1935 = vmatmul.mubr.f32.gmra.mrb[0].mxu0 %v1833
        %v1936 = vpop.f32.mrb[0].mxu0
        %v1937 = vadd.f32 0.0, %v1936
        %v1938 = vpop.f32.mrb[0].mxu0
        %1939 = vdwg.mxu0
        %s1940 = scalar_lea.vmem %s2, 20
        %v1941 = vld [vmem:[%s1940] sm:$0xf]
        %v1943 = vsel %vm760, %v1902, 0
        %v1946 = vsel %vm760, %v1907, 0
        %v1949 = vsel %vm760, %v1912, 0
        %v1952 = vsel %vm760, %v1917, 0
        %v1955 = vsel %vm760, %v1922, 0
        %v1958 = vsel %vm760, %v1927, 0
        %v1961 = vsel %vm760, %v1932, 0
        %v1964 = vsel %vm760, %v1937, 0
        %v1967 = vsel %vm785, %v1941, 0
        %1969 = vmatprep.subr.mxu0 0.0
        %1970 = vmatpush1.msra.mxu0 %v1967
        %1971 = vmatprep.subr.mxu0 0.0
        %1972 = vmatpush1.msra.mxu0 0.0
        %1973 = vmatprep.subr.mxu0 0.0
        %1974 = vmatpush1.msra.mxu0 0.0
        %1975 = vmatprep.subr.mxu0 0.0
        %1976 = vmatpush1.msra.mxu0 0.0
        %1977 = vmatprep.subr.mxu0 0.0
        %1978 = vmatpush1.msra.mxu0 0.0
        %1979 = vmatprep.subr.mxu0 0.0
        %1980 = vmatpush1.msra.mxu0 0.0
        %1981 = vmatprep.subr.mxu0 0.0
        %1982 = vmatpush1.msra.mxu0 0.0
        %1983 = vmatprep.subr.mxu0 0.0
        %1984 = vmatpush1.msra.mxu0 0.0
        %1985 = vmatprep.subr.mxu0 0.0
        %1986 = vmatpush1.msra.mxu0 0.0
        %1987 = vmatprep.subr.mxu0 0.0
        %1988 = vmatpush1.msra.mxu0 0.0
        %1989 = vmatprep.subr.mxu0 0.0
        %1990 = vmatpush1.msra.mxu0 0.0
        %1991 = vmatprep.subr.mxu0 0.0
        %1992 = vmatpush1.msra.mxu0 0.0
        %1993 = vmatprep.subr.mxu0 0.0
        %1994 = vmatpush1.msra.mxu0 0.0
        %1995 = vmatprep.subr.mxu0 0.0
        %1996 = vmatpush1.msra.mxu0 0.0
        %1997 = vmatprep.subr.mxu0 0.0
        %1998 = vmatpush1.msra.mxu0 0.0
        %1999 = vmatprep.subr.mxu0 0.0
        %2000 = vmatpush1.msra.mxu0 0.0
        %2001 = vmatprep.subr.mxu0 0.0
        %2002 = vmatpush1.msra.mxu0 0.0
        %2003 = vmatprep.subr.mxu0 0.0
        %2004 = vmatpush1.msra.mxu0 0.0
        %2005 = vmatprep.subr.mxu0 0.0
        %2006 = vmatpush1.msra.mxu0 0.0
        %2007 = vmatprep.subr.mxu0 0.0
        %2008 = vmatpush1.msra.mxu0 0.0
        %2009 = vmatprep.subr.mxu0 0.0
        %2010 = vmatpush1.msra.mxu0 0.0
        %2011 = vmatprep.subr.mxu0 0.0
        %2012 = vmatpush1.msra.mxu0 0.0
        %2013 = vmatprep.subr.mxu0 0.0
        %2014 = vmatpush1.msra.mxu0 0.0
        %2015 = vmatprep.subr.mxu0 0.0
        %2016 = vmatpush1.msra.mxu0 0.0
        %2017 = vmatprep.subr.mxu0 0.0
        %2018 = vmatpush1.msra.mxu0 0.0
        %2019 = vmatprep.subr.mxu0 0.0
        %2020 = vmatpush1.msra.mxu0 0.0
        %2021 = vmatprep.subr.mxu0 0.0
        %2022 = vmatpush1.msra.mxu0 0.0
        %2023 = vmatprep.subr.mxu0 0.0
        %2024 = vmatpush1.msra.mxu0 0.0
        %2025 = vmatprep.subr.mxu0 0.0
        %2026 = vmatpush1.msra.mxu0 0.0
        %2027 = vmatprep.subr.mxu0 0.0
        %2028 = vmatpush1.msra.mxu0 0.0
        %2029 = vmatprep.subr.mxu0 0.0
        %2030 = vmatpush1.msra.mxu0 0.0
        %2031 = vmatprep.subr.mxu0 0.0
        %2032 = vmatpush1.msra.mxu0 0.0
        %2033 = vmatprep.mubr.f32.mxu0 0.0
        %2034 = vmatmul.mubr.f32.gmra.mrb[0].mxu0 %v1943
        %v2035 = vpop.f32.mrb[0].mxu0
        %v2036 = vadd.f32 0.0, %v2035
        %v2037 = vpop.f32.mrb[0].mxu0
        %2038 = vmatprep.mubr.f32.mxu0 0.0
        %2039 = vmatmul.mubr.f32.gmra.mrb[0].mxu0 %v1946
        %v2040 = vpop.f32.mrb[0].mxu0
        %v2041 = vadd.f32 0.0, %v2040
        %v2042 = vpop.f32.mrb[0].mxu0
        %2043 = vmatprep.mubr.f32.mxu0 0.0
        %2044 = vmatmul.mubr.f32.gmra.mrb[0].mxu0 %v1949
        %v2045 = vpop.f32.mrb[0].mxu0
        %v2046 = vadd.f32 0.0, %v2045
        %v2047 = vpop.f32.mrb[0].mxu0
        %2048 = vmatprep.mubr.f32.mxu0 0.0
        %2049 = vmatmul.mubr.f32.gmra.mrb[0].mxu0 %v1952
        %v2050 = vpop.f32.mrb[0].mxu0
        %v2051 = vadd.f32 0.0, %v2050
        %v2052 = vpop.f32.mrb[0].mxu0
        %2053 = vmatprep.mubr.f32.mxu0 0.0
        %2054 = vmatmul.mubr.f32.gmra.mrb[0].mxu0 %v1955
        %v2055 = vpop.f32.mrb[0].mxu0
        %v2056 = vadd.f32 0.0, %v2055
        %v2057 = vpop.f32.mrb[0].mxu0
        %2058 = vmatprep.mubr.f32.mxu0 0.0
        %2059 = vmatmul.mubr.f32.gmra.mrb[0].mxu0 %v1958
        %v2060 = vpop.f32.mrb[0].mxu0
        %v2061 = vadd.f32 0.0, %v2060
        %v2062 = vpop.f32.mrb[0].mxu0
        %2063 = vmatprep.mubr.f32.mxu0 0.0
        %2064 = vmatmul.mubr.f32.gmra.mrb[0].mxu0 %v1961
        %v2065 = vpop.f32.mrb[0].mxu0
        %v2066 = vadd.f32 0.0, %v2065
        %v2067 = vpop.f32.mrb[0].mxu0
        %2068 = vmatprep.mubr.f32.mxu0 0.0
        %2069 = vmatmul.mubr.f32.gmra.mrb[0].mxu0 %v1964
        %v2070 = vpop.f32.mrb[0].mxu0
        %v2071 = vadd.f32 0.0, %v2070
        %v2072 = vpop.f32.mrb[0].mxu0
        %2073 = vdwg.mxu0
        %v2074 = vadd.f32 %v1810, %v2036
        %v2075 = vadd.f32 %v1811, %v2041
        %v2076 = vadd.f32 %v1812, %v2046
        %v2077 = vadd.f32 %v1813, %v2051
        %v2078 = vadd.f32 %v1814, %v2056
        %v2079 = vadd.f32 %v1815, %v2061
        %v2080 = vadd.f32 %v1816, %v2066
        %v2081 = vadd.f32 %v1817, %v2071
        %s2082 = scalar_lea.vmem [#allocation2], 768
        %v2083 = vld [vmem:[%s2082] sm:$0xff]
        %v2084 = vld [vmem:[%s2082 + $0x8] sm:$0xff]
        %v2085 = vld [vmem:[%s2082 + $0x10] sm:$0xff]
        %v2086 = vld [vmem:[%s2082 + $0x18] sm:$0xff]
        %v2087 = vld [vmem:[%s2082 + $0x20] sm:$0xff]
        %v2088 = vld [vmem:[%s2082 + $0x28] sm:$0xff]
        %v2089 = vld [vmem:[%s2082 + $0x30] sm:$0xff]
        %v2090 = vld [vmem:[%s2082 + $0x38] sm:$0xff]
        %v2091 = vld [vmem:[%s2082 + $0x40] sm:$0xff]
        %v2092 = vld [vmem:[%s2082 + $0x48] sm:$0xff]
        %v2093 = vld [vmem:[%s2082 + $0x50] sm:$0xff]
        %v2094 = vld [vmem:[%s2082 + $0x58] sm:$0xff]
        %v2095 = vld [vmem:[%s2082 + $0x60] sm:$0xff]
        %v2096 = vld [vmem:[%s2082 + $0x68] sm:$0xff]
        %v2097 = vld [vmem:[%s2082 + $0x70] sm:$0xff]
        %v2098 = vld [vmem:[%s2082 + $0x78] sm:$0xff]
        %2099 = vmatprep.subr.mxu0 0.0
        %2100 = vmatpush1.msra.mxu0 %v482
        %2101 = vmatprep.subr.mxu0 0.0
        %2102 = vmatpush1.msra.mxu0 %v483
        %2103 = vmatprep.subr.mxu0 0.0
        %2104 = vmatpush1.msra.mxu0 %v484
        %2105 = vmatprep.subr.mxu0 0.0
        %2106 = vmatpush1.msra.mxu0 %v485
        %2107 = vmatprep.subr.mxu0 0.0
        %2108 = vmatpush1.msra.mxu0 %v486
        %2109 = vmatprep.subr.mxu0 0.0
        %2110 = vmatpush1.msra.mxu0 %v487
        %2111 = vmatprep.subr.mxu0 0.0
        %2112 = vmatpush1.msra.mxu0 %v488
        %2113 = vmatprep.subr.mxu0 0.0
        %2114 = vmatpush1.msra.mxu0 %v489
        %2115 = vmatprep.subr.mxu0 0.0
        %2116 = vmatpush1.msra.mxu0 %v490
        %2117 = vmatprep.subr.mxu0 0.0
        %2118 = vmatpush1.msra.mxu0 %v491
        %2119 = vmatprep.subr.mxu0 0.0
        %2120 = vmatpush1.msra.mxu0 %v492
        %2121 = vmatprep.subr.mxu0 0.0
        %2122 = vmatpush1.msra.mxu0 %v493
        %2123 = vmatprep.subr.mxu0 0.0
        %2124 = vmatpush1.msra.mxu0 %v494
        %2125 = vmatprep.subr.mxu0 0.0
        %2126 = vmatpush1.msra.mxu0 %v495
        %2127 = vmatprep.subr.mxu0 0.0
        %2128 = vmatpush1.msra.mxu0 %v496
        %2129 = vmatprep.subr.mxu0 0.0
        %2130 = vmatpush1.msra.mxu0 %v497
        %2131 = vmatprep.subr.mxu0 0.0
        %2132 = vmatpush1.msra.mxu0 %v498
        %2133 = vmatprep.subr.mxu0 0.0
        %2134 = vmatpush1.msra.mxu0 %v499
        %2135 = vmatprep.subr.mxu0 0.0
        %2136 = vmatpush1.msra.mxu0 %v500
        %2137 = vmatprep.subr.mxu0 0.0
        %2138 = vmatpush1.msra.mxu0 %v501
        %2139 = vmatprep.subr.mxu0 0.0
        %2140 = vmatpush1.msra.mxu0 %v502
        %2141 = vmatprep.subr.mxu0 0.0
        %2142 = vmatpush1.msra.mxu0 %v503
        %2143 = vmatprep.subr.mxu0 0.0
        %2144 = vmatpush1.msra.mxu0 %v504
        %2145 = vmatprep.subr.mxu0 0.0
        %2146 = vmatpush1.msra.mxu0 %v505
        %2147 = vmatprep.subr.mxu0 0.0
        %2148 = vmatpush1.msra.mxu0 %v506
        %2149 = vmatprep.subr.mxu0 0.0
        %2150 = vmatpush1.msra.mxu0 %v507
        %2151 = vmatprep.subr.mxu0 0.0
        %2152 = vmatpush1.msra.mxu0 %v508
        %2153 = vmatprep.subr.mxu0 0.0
        %2154 = vmatpush1.msra.mxu0 %v509
        %2155 = vmatprep.subr.mxu0 0.0
        %2156 = vmatpush1.msra.mxu0 %v510
        %2157 = vmatprep.subr.mxu0 0.0
        %2158 = vmatpush1.msra.mxu0 %v511
        %2159 = vmatprep.subr.mxu0 0.0
        %2160 = vmatpush1.msra.mxu0 %v512
        %2161 = vmatprep.subr.mxu0 0.0
        %2162 = vmatpush1.msra.mxu0 %v513
        %2163 = vmatprep.mubr.f32.mxu0 %v2084
        %2164 = vmatmul.mubr.f32.gmra.mrb[0].mxu0 %v2083
        %v2165 = vpop.f32.mrb[0].mxu0
        %v2166 = vadd.f32 0.0, %v2165
        %v2167 = vpop.f32.mrb[0].mxu0
        %2168 = vmatprep.mubr.f32.mxu0 %v2086
        %2169 = vmatmul.mubr.f32.gmra.mrb[0].mxu0 %v2085
        %v2170 = vpop.f32.mrb[0].mxu0
        %v2171 = vadd.f32 0.0, %v2170
        %v2172 = vpop.f32.mrb[0].mxu0
        %2173 = vmatprep.mubr.f32.mxu0 %v2088
        %2174 = vmatmul.mubr.f32.gmra.mrb[0].mxu0 %v2087
        %v2175 = vpop.f32.mrb[0].mxu0
        %v2176 = vadd.f32 0.0, %v2175
        %v2177 = vpop.f32.mrb[0].mxu0
        %2178 = vmatprep.mubr.f32.mxu0 %v2090
        %2179 = vmatmul.mubr.f32.gmra.mrb[0].mxu0 %v2089
        %v2180 = vpop.f32.mrb[0].mxu0
        %v2181 = vadd.f32 0.0, %v2180
        %v2182 = vpop.f32.mrb[0].mxu0
        %2183 = vmatprep.mubr.f32.mxu0 %v2092
        %2184 = vmatmul.mubr.f32.gmra.mrb[0].mxu0 %v2091
        %v2185 = vpop.f32.mrb[0].mxu0
        %v2186 = vadd.f32 0.0, %v2185
        %v2187 = vpop.f32.mrb[0].mxu0
        %2188 = vmatprep.mubr.f32.mxu0 %v2094
        %2189 = vmatmul.mubr.f32.gmra.mrb[0].mxu0 %v2093
        %v2190 = vpop.f32.mrb[0].mxu0
        %v2191 = vadd.f32 0.0, %v2190
        %v2192 = vpop.f32.mrb[0].mxu0
        %2193 = vmatprep.mubr.f32.mxu0 %v2096
        %2194 = vmatmul.mubr.f32.gmra.mrb[0].mxu0 %v2095
        %v2195 = vpop.f32.mrb[0].mxu0
        %v2196 = vadd.f32 0.0, %v2195
        %v2197 = vpop.f32.mrb[0].mxu0
        %2198 = vmatprep.mubr.f32.mxu0 %v2098
        %2199 = vmatmul.mubr.f32.gmra.mrb[0].mxu0 %v2097
        %v2200 = vpop.f32.mrb[0].mxu0
        %v2201 = vadd.f32 0.0, %v2200
        %v2202 = vpop.f32.mrb[0].mxu0
        %2203 = vdwg.mxu0
        %s2204 = scalar_lea.vmem %s2, 24
        %v2205 = vld [vmem:[%s2204] sm:$0xf]
        %v2207 = vsel %vm760, %v2166, 0
        %v2210 = vsel %vm760, %v2171, 0
        %v2213 = vsel %vm760, %v2176, 0
        %v2216 = vsel %vm760, %v2181, 0
        %v2219 = vsel %vm760, %v2186, 0
        %v2222 = vsel %vm760, %v2191, 0
        %v2225 = vsel %vm760, %v2196, 0
        %v2228 = vsel %vm760, %v2201, 0
        %v2231 = vsel %vm785, %v2205, 0
        %2233 = vmatprep.subr.mxu0 0.0
        %2234 = vmatpush1.msra.mxu0 %v2231
        %2235 = vmatprep.subr.mxu0 0.0
        %2236 = vmatpush1.msra.mxu0 0.0
        %2237 = vmatprep.subr.mxu0 0.0
        %2238 = vmatpush1.msra.mxu0 0.0
        %2239 = vmatprep.subr.mxu0 0.0
        %2240 = vmatpush1.msra.mxu0 0.0
        %2241 = vmatprep.subr.mxu0 0.0
        %2242 = vmatpush1.msra.mxu0 0.0
        %2243 = vmatprep.subr.mxu0 0.0
        %2244 = vmatpush1.msra.mxu0 0.0
        %2245 = vmatprep.subr.mxu0 0.0
        %2246 = vmatpush1.msra.mxu0 0.0
        %2247 = vmatprep.subr.mxu0 0.0
        %2248 = vmatpush1.msra.mxu0 0.0
        %2249 = vmatprep.subr.mxu0 0.0
        %2250 = vmatpush1.msra.mxu0 0.0
        %2251 = vmatprep.subr.mxu0 0.0
        %2252 = vmatpush1.msra.mxu0 0.0
        %2253 = vmatprep.subr.mxu0 0.0
        %2254 = vmatpush1.msra.mxu0 0.0
        %2255 = vmatprep.subr.mxu0 0.0
        %2256 = vmatpush1.msra.mxu0 0.0
        %2257 = vmatprep.subr.mxu0 0.0
        %2258 = vmatpush1.msra.mxu0 0.0
        %2259 = vmatprep.subr.mxu0 0.0
        %2260 = vmatpush1.msra.mxu0 0.0
        %2261 = vmatprep.subr.mxu0 0.0
        %2262 = vmatpush1.msra.mxu0 0.0
        %2263 = vmatprep.subr.mxu0 0.0
        %2264 = vmatpush1.msra.mxu0 0.0
        %2265 = vmatprep.subr.mxu0 0.0
        %2266 = vmatpush1.msra.mxu0 0.0
        %2267 = vmatprep.subr.mxu0 0.0
        %2268 = vmatpush1.msra.mxu0 0.0
        %2269 = vmatprep.subr.mxu0 0.0
        %2270 = vmatpush1.msra.mxu0 0.0
        %2271 = vmatprep.subr.mxu0 0.0
        %2272 = vmatpush1.msra.mxu0 0.0
        %2273 = vmatprep.subr.mxu0 0.0
        %2274 = vmatpush1.msra.mxu0 0.0
        %2275 = vmatprep.subr.mxu0 0.0
        %2276 = vmatpush1.msra.mxu0 0.0
        %2277 = vmatprep.subr.mxu0 0.0
        %2278 = vmatpush1.msra.mxu0 0.0
        %2279 = vmatprep.subr.mxu0 0.0
        %2280 = vmatpush1.msra.mxu0 0.0
        %2281 = vmatprep.subr.mxu0 0.0
        %2282 = vmatpush1.msra.mxu0 0.0
        %2283 = vmatprep.subr.mxu0 0.0
        %2284 = vmatpush1.msra.mxu0 0.0
        %2285 = vmatprep.subr.mxu0 0.0
        %2286 = vmatpush1.msra.mxu0 0.0
        %2287 = vmatprep.subr.mxu0 0.0
        %2288 = vmatpush1.msra.mxu0 0.0
        %2289 = vmatprep.subr.mxu0 0.0
        %2290 = vmatpush1.msra.mxu0 0.0
        %2291 = vmatprep.subr.mxu0 0.0
        %2292 = vmatpush1.msra.mxu0 0.0
        %2293 = vmatprep.subr.mxu0 0.0
        %2294 = vmatpush1.msra.mxu0 0.0
        %2295 = vmatprep.subr.mxu0 0.0
        %2296 = vmatpush1.msra.mxu0 0.0
        %2297 = vmatprep.mubr.f32.mxu0 0.0
        %2298 = vmatmul.mubr.f32.gmra.mrb[0].mxu0 %v2207
        %v2299 = vpop.f32.mrb[0].mxu0
        %v2300 = vadd.f32 0.0, %v2299
        %v2301 = vpop.f32.mrb[0].mxu0
        %2302 = vmatprep.mubr.f32.mxu0 0.0
        %2303 = vmatmul.mubr.f32.gmra.mrb[0].mxu0 %v2210
        %v2304 = vpop.f32.mrb[0].mxu0
        %v2305 = vadd.f32 0.0, %v2304
        %v2306 = vpop.f32.mrb[0].mxu0
        %2307 = vmatprep.mubr.f32.mxu0 0.0
        %2308 = vmatmul.mubr.f32.gmra.mrb[0].mxu0 %v2213
        %v2309 = vpop.f32.mrb[0].mxu0
        %v2310 = vadd.f32 0.0, %v2309
        %v2311 = vpop.f32.mrb[0].mxu0
        %2312 = vmatprep.mubr.f32.mxu0 0.0
        %2313 = vmatmul.mubr.f32.gmra.mrb[0].mxu0 %v2216
        %v2314 = vpop.f32.mrb[0].mxu0
        %v2315 = vadd.f32 0.0, %v2314
        %v2316 = vpop.f32.mrb[0].mxu0
        %2317 = vmatprep.mubr.f32.mxu0 0.0
        %2318 = vmatmul.mubr.f32.gmra.mrb[0].mxu0 %v2219
        %v2319 = vpop.f32.mrb[0].mxu0
        %v2320 = vadd.f32 0.0, %v2319
        %v2321 = vpop.f32.mrb[0].mxu0
        %2322 = vmatprep.mubr.f32.mxu0 0.0
        %2323 = vmatmul.mubr.f32.gmra.mrb[0].mxu0 %v2222
        %v2324 = vpop.f32.mrb[0].mxu0
        %v2325 = vadd.f32 0.0, %v2324
        %v2326 = vpop.f32.mrb[0].mxu0
        %2327 = vmatprep.mubr.f32.mxu0 0.0
        %2328 = vmatmul.mubr.f32.gmra.mrb[0].mxu0 %v2225
        %v2329 = vpop.f32.mrb[0].mxu0
        %v2330 = vadd.f32 0.0, %v2329
        %v2331 = vpop.f32.mrb[0].mxu0
        %2332 = vmatprep.mubr.f32.mxu0 0.0
        %2333 = vmatmul.mubr.f32.gmra.mrb[0].mxu0 %v2228
        %v2334 = vpop.f32.mrb[0].mxu0
        %v2335 = vadd.f32 0.0, %v2334
        %v2336 = vpop.f32.mrb[0].mxu0
        %2337 = vdwg.mxu0
        %v2338 = vadd.f32 %v2074, %v2300
        %v2339 = vadd.f32 %v2075, %v2305
        %v2340 = vadd.f32 %v2076, %v2310
        %v2341 = vadd.f32 %v2077, %v2315
        %v2342 = vadd.f32 %v2078, %v2320
        %v2343 = vadd.f32 %v2079, %v2325
        %v2344 = vadd.f32 %v2080, %v2330
        %v2345 = vadd.f32 %v2081, %v2335
        %s2346 = scalar_lea.vmem [#allocation2], 896
        %v2347 = vld [vmem:[%s2346] sm:$0xff]
        %v2348 = vld [vmem:[%s2346 + $0x8] sm:$0xff]
        %v2349 = vld [vmem:[%s2346 + $0x10] sm:$0xff]
        %v2350 = vld [vmem:[%s2346 + $0x18] sm:$0xff]
        %v2351 = vld [vmem:[%s2346 + $0x20] sm:$0xff]
        %v2352 = vld [vmem:[%s2346 + $0x28] sm:$0xff]
        %v2353 = vld [vmem:[%s2346 + $0x30] sm:$0xff]
        %v2354 = vld [vmem:[%s2346 + $0x38] sm:$0xff]
        %v2355 = vld [vmem:[%s2346 + $0x40] sm:$0xff]
        %v2356 = vld [vmem:[%s2346 + $0x48] sm:$0xff]
        %v2357 = vld [vmem:[%s2346 + $0x50] sm:$0xff]
        %v2358 = vld [vmem:[%s2346 + $0x58] sm:$0xff]
        %v2359 = vld [vmem:[%s2346 + $0x60] sm:$0xff]
        %v2360 = vld [vmem:[%s2346 + $0x68] sm:$0xff]
        %v2361 = vld [vmem:[%s2346 + $0x70] sm:$0xff]
        %v2362 = vld [vmem:[%s2346 + $0x78] sm:$0xff]
        %2363 = vmatprep.subr.mxu0 0.0
        %2364 = vmatpush1.msra.mxu0 %v482
        %2365 = vmatprep.subr.mxu0 0.0
        %2366 = vmatpush1.msra.mxu0 %v483
        %2367 = vmatprep.subr.mxu0 0.0
        %2368 = vmatpush1.msra.mxu0 %v484
        %2369 = vmatprep.subr.mxu0 0.0
        %2370 = vmatpush1.msra.mxu0 %v485
        %2371 = vmatprep.subr.mxu0 0.0
        %2372 = vmatpush1.msra.mxu0 %v486
        %2373 = vmatprep.subr.mxu0 0.0
        %2374 = vmatpush1.msra.mxu0 %v487
        %2375 = vmatprep.subr.mxu0 0.0
        %2376 = vmatpush1.msra.mxu0 %v488
        %2377 = vmatprep.subr.mxu0 0.0
        %2378 = vmatpush1.msra.mxu0 %v489
        %2379 = vmatprep.subr.mxu0 0.0
        %2380 = vmatpush1.msra.mxu0 %v490
        %2381 = vmatprep.subr.mxu0 0.0
        %2382 = vmatpush1.msra.mxu0 %v491
        %2383 = vmatprep.subr.mxu0 0.0
        %2384 = vmatpush1.msra.mxu0 %v492
        %2385 = vmatprep.subr.mxu0 0.0
        %2386 = vmatpush1.msra.mxu0 %v493
        %2387 = vmatprep.subr.mxu0 0.0
        %2388 = vmatpush1.msra.mxu0 %v494
        %2389 = vmatprep.subr.mxu0 0.0
        %2390 = vmatpush1.msra.mxu0 %v495
        %2391 = vmatprep.subr.mxu0 0.0
        %2392 = vmatpush1.msra.mxu0 %v496
        %2393 = vmatprep.subr.mxu0 0.0
        %2394 = vmatpush1.msra.mxu0 %v497
        %2395 = vmatprep.subr.mxu0 0.0
        %2396 = vmatpush1.msra.mxu0 %v498
        %2397 = vmatprep.subr.mxu0 0.0
        %2398 = vmatpush1.msra.mxu0 %v499
        %2399 = vmatprep.subr.mxu0 0.0
        %2400 = vmatpush1.msra.mxu0 %v500
        %2401 = vmatprep.subr.mxu0 0.0
        %2402 = vmatpush1.msra.mxu0 %v501
        %2403 = vmatprep.subr.mxu0 0.0
        %2404 = vmatpush1.msra.mxu0 %v502
        %2405 = vmatprep.subr.mxu0 0.0
        %2406 = vmatpush1.msra.mxu0 %v503
        %2407 = vmatprep.subr.mxu0 0.0
        %2408 = vmatpush1.msra.mxu0 %v504
        %2409 = vmatprep.subr.mxu0 0.0
        %2410 = vmatpush1.msra.mxu0 %v505
        %2411 = vmatprep.subr.mxu0 0.0
        %2412 = vmatpush1.msra.mxu0 %v506
        %2413 = vmatprep.subr.mxu0 0.0
        %2414 = vmatpush1.msra.mxu0 %v507
        %2415 = vmatprep.subr.mxu0 0.0
        %2416 = vmatpush1.msra.mxu0 %v508
        %2417 = vmatprep.subr.mxu0 0.0
        %2418 = vmatpush1.msra.mxu0 %v509
        %2419 = vmatprep.subr.mxu0 0.0
        %2420 = vmatpush1.msra.mxu0 %v510
        %2421 = vmatprep.subr.mxu0 0.0
        %2422 = vmatpush1.msra.mxu0 %v511
        %2423 = vmatprep.subr.mxu0 0.0
        %2424 = vmatpush1.msra.mxu0 %v512
        %2425 = vmatprep.subr.mxu0 0.0
        %2426 = vmatpush1.msra.mxu0 %v513
        %2427 = vmatprep.mubr.f32.mxu0 %v2348
        %2428 = vmatmul.mubr.f32.gmra.mrb[0].mxu0 %v2347
        %v2429 = vpop.f32.mrb[0].mxu0
        %v2430 = vadd.f32 0.0, %v2429
        %v2431 = vpop.f32.mrb[0].mxu0
        %2432 = vmatprep.mubr.f32.mxu0 %v2350
        %2433 = vmatmul.mubr.f32.gmra.mrb[0].mxu0 %v2349
        %v2434 = vpop.f32.mrb[0].mxu0
        %v2435 = vadd.f32 0.0, %v2434
        %v2436 = vpop.f32.mrb[0].mxu0
        %2437 = vmatprep.mubr.f32.mxu0 %v2352
        %2438 = vmatmul.mubr.f32.gmra.mrb[0].mxu0 %v2351
        %v2439 = vpop.f32.mrb[0].mxu0
        %v2440 = vadd.f32 0.0, %v2439
        %v2441 = vpop.f32.mrb[0].mxu0
        %2442 = vmatprep.mubr.f32.mxu0 %v2354
        %2443 = vmatmul.mubr.f32.gmra.mrb[0].mxu0 %v2353
        %v2444 = vpop.f32.mrb[0].mxu0
        %v2445 = vadd.f32 0.0, %v2444
        %v2446 = vpop.f32.mrb[0].mxu0
        %2447 = vmatprep.mubr.f32.mxu0 %v2356
        %2448 = vmatmul.mubr.f32.gmra.mrb[0].mxu0 %v2355
        %v2449 = vpop.f32.mrb[0].mxu0
        %v2450 = vadd.f32 0.0, %v2449
        %v2451 = vpop.f32.mrb[0].mxu0
        %2452 = vmatprep.mubr.f32.mxu0 %v2358
        %2453 = vmatmul.mubr.f32.gmra.mrb[0].mxu0 %v2357
        %v2454 = vpop.f32.mrb[0].mxu0
        %v2455 = vadd.f32 0.0, %v2454
        %v2456 = vpop.f32.mrb[0].mxu0
        %2457 = vmatprep.mubr.f32.mxu0 %v2360
        %2458 = vmatmul.mubr.f32.gmra.mrb[0].mxu0 %v2359
        %v2459 = vpop.f32.mrb[0].mxu0
        %v2460 = vadd.f32 0.0, %v2459
        %v2461 = vpop.f32.mrb[0].mxu0
        %2462 = vmatprep.mubr.f32.mxu0 %v2362
        %2463 = vmatmul.mubr.f32.gmra.mrb[0].mxu0 %v2361
        %v2464 = vpop.f32.mrb[0].mxu0
        %v2465 = vadd.f32 0.0, %v2464
        %v2466 = vpop.f32.mrb[0].mxu0
        %2467 = vdwg.mxu0
        %s2468 = scalar_lea.vmem %s2, 28
        %v2469 = vld [vmem:[%s2468] sm:$0xf]
        %v2471 = vsel %vm760, %v2430, 0
        %v2474 = vsel %vm760, %v2435, 0
        %v2477 = vsel %vm760, %v2440, 0
        %v2480 = vsel %vm760, %v2445, 0
        %v2483 = vsel %vm760, %v2450, 0
        %v2486 = vsel %vm760, %v2455, 0
        %v2489 = vsel %vm760, %v2460, 0
        %v2492 = vsel %vm760, %v2465, 0
        %v2495 = vsel %vm785, %v2469, 0
        %2497 = vmatprep.subr.mxu0 0.0
        %2498 = vmatpush1.msra.mxu0 %v2495
        %2499 = vmatprep.subr.mxu0 0.0
        %2500 = vmatpush1.msra.mxu0 0.0
        %2501 = vmatprep.subr.mxu0 0.0
        %2502 = vmatpush1.msra.mxu0 0.0
        %2503 = vmatprep.subr.mxu0 0.0
        %2504 = vmatpush1.msra.mxu0 0.0
        %2505 = vmatprep.subr.mxu0 0.0
        %2506 = vmatpush1.msra.mxu0 0.0
        %2507 = vmatprep.subr.mxu0 0.0
        %2508 = vmatpush1.msra.mxu0 0.0
        %2509 = vmatprep.subr.mxu0 0.0
        %2510 = vmatpush1.msra.mxu0 0.0
        %2511 = vmatprep.subr.mxu0 0.0
        %2512 = vmatpush1.msra.mxu0 0.0
        %2513 = vmatprep.subr.mxu0 0.0
        %2514 = vmatpush1.msra.mxu0 0.0
        %2515 = vmatprep.subr.mxu0 0.0
        %2516 = vmatpush1.msra.mxu0 0.0
        %2517 = vmatprep.subr.mxu0 0.0
        %2518 = vmatpush1.msra.mxu0 0.0
        %2519 = vmatprep.subr.mxu0 0.0
        %2520 = vmatpush1.msra.mxu0 0.0
        %2521 = vmatprep.subr.mxu0 0.0
        %2522 = vmatpush1.msra.mxu0 0.0
        %2523 = vmatprep.subr.mxu0 0.0
        %2524 = vmatpush1.msra.mxu0 0.0
        %2525 = vmatprep.subr.mxu0 0.0
        %2526 = vmatpush1.msra.mxu0 0.0
        %2527 = vmatprep.subr.mxu0 0.0
        %2528 = vmatpush1.msra.mxu0 0.0
        %2529 = vmatprep.subr.mxu0 0.0
        %2530 = vmatpush1.msra.mxu0 0.0
        %2531 = vmatprep.subr.mxu0 0.0
        %2532 = vmatpush1.msra.mxu0 0.0
        %2533 = vmatprep.subr.mxu0 0.0
        %2534 = vmatpush1.msra.mxu0 0.0
        %2535 = vmatprep.subr.mxu0 0.0
        %2536 = vmatpush1.msra.mxu0 0.0
        %2537 = vmatprep.subr.mxu0 0.0
        %2538 = vmatpush1.msra.mxu0 0.0
        %2539 = vmatprep.subr.mxu0 0.0
        %2540 = vmatpush1.msra.mxu0 0.0
        %2541 = vmatprep.subr.mxu0 0.0
        %2542 = vmatpush1.msra.mxu0 0.0
        %2543 = vmatprep.subr.mxu0 0.0
        %2544 = vmatpush1.msra.mxu0 0.0
        %2545 = vmatprep.subr.mxu0 0.0
        %2546 = vmatpush1.msra.mxu0 0.0
        %2547 = vmatprep.subr.mxu0 0.0
        %2548 = vmatpush1.msra.mxu0 0.0
        %2549 = vmatprep.subr.mxu0 0.0
        %2550 = vmatpush1.msra.mxu0 0.0
        %2551 = vmatprep.subr.mxu0 0.0
        %2552 = vmatpush1.msra.mxu0 0.0
        %2553 = vmatprep.subr.mxu0 0.0
        %2554 = vmatpush1.msra.mxu0 0.0
        %2555 = vmatprep.subr.mxu0 0.0
        %2556 = vmatpush1.msra.mxu0 0.0
        %2557 = vmatprep.subr.mxu0 0.0
        %2558 = vmatpush1.msra.mxu0 0.0
        %2559 = vmatprep.subr.mxu0 0.0
        %2560 = vmatpush1.msra.mxu0 0.0
        %2561 = vmatprep.mubr.f32.mxu0 0.0
        %2562 = vmatmul.mubr.f32.gmra.mrb[0].mxu0 %v2471
        %v2563 = vpop.f32.mrb[0].mxu0
        %v2564 = vadd.f32 0.0, %v2563
        %v2565 = vpop.f32.mrb[0].mxu0
        %2566 = vmatprep.mubr.f32.mxu0 0.0
        %2567 = vmatmul.mubr.f32.gmra.mrb[0].mxu0 %v2474
        %v2568 = vpop.f32.mrb[0].mxu0
        %v2569 = vadd.f32 0.0, %v2568
        %v2570 = vpop.f32.mrb[0].mxu0
        %2571 = vmatprep.mubr.f32.mxu0 0.0
        %2572 = vmatmul.mubr.f32.gmra.mrb[0].mxu0 %v2477
        %v2573 = vpop.f32.mrb[0].mxu0
        %v2574 = vadd.f32 0.0, %v2573
        %v2575 = vpop.f32.mrb[0].mxu0
        %2576 = vmatprep.mubr.f32.mxu0 0.0
        %2577 = vmatmul.mubr.f32.gmra.mrb[0].mxu0 %v2480
        %v2578 = vpop.f32.mrb[0].mxu0
        %v2579 = vadd.f32 0.0, %v2578
        %v2580 = vpop.f32.mrb[0].mxu0
        %2581 = vmatprep.mubr.f32.mxu0 0.0
        %2582 = vmatmul.mubr.f32.gmra.mrb[0].mxu0 %v2483
        %v2583 = vpop.f32.mrb[0].mxu0
        %v2584 = vadd.f32 0.0, %v2583
        %v2585 = vpop.f32.mrb[0].mxu0
        %2586 = vmatprep.mubr.f32.mxu0 0.0
        %2587 = vmatmul.mubr.f32.gmra.mrb[0].mxu0 %v2486
        %v2588 = vpop.f32.mrb[0].mxu0
        %v2589 = vadd.f32 0.0, %v2588
        %v2590 = vpop.f32.mrb[0].mxu0
        %2591 = vmatprep.mubr.f32.mxu0 0.0
        %2592 = vmatmul.mubr.f32.gmra.mrb[0].mxu0 %v2489
        %v2593 = vpop.f32.mrb[0].mxu0
        %v2594 = vadd.f32 0.0, %v2593
        %v2595 = vpop.f32.mrb[0].mxu0
        %2596 = vmatprep.mubr.f32.mxu0 0.0
        %2597 = vmatmul.mubr.f32.gmra.mrb[0].mxu0 %v2492
        %v2598 = vpop.f32.mrb[0].mxu0
        %v2599 = vadd.f32 0.0, %v2598
        %v2600 = vpop.f32.mrb[0].mxu0
        %2601 = vdwg.mxu0
        %v2602 = vadd.f32 %v2338, %v2564
        %v2603 = vadd.f32 %v2339, %v2569
        %v2604 = vadd.f32 %v2340, %v2574
        %v2605 = vadd.f32 %v2341, %v2579
        %v2606 = vadd.f32 %v2342, %v2584
        %v2607 = vadd.f32 %v2343, %v2589
        %v2608 = vadd.f32 %v2344, %v2594
        %v2609 = vadd.f32 %v2345, %v2599
        %s2610 = scalar_lea.vmem [#allocation2], 1024
        %v2611 = vld [vmem:[%s2610] sm:$0xff]
        %v2612 = vld [vmem:[%s2610 + $0x8] sm:$0xff]
        %v2613 = vld [vmem:[%s2610 + $0x10] sm:$0xff]
        %v2614 = vld [vmem:[%s2610 + $0x18] sm:$0xff]
        %v2615 = vld [vmem:[%s2610 + $0x20] sm:$0xff]
        %v2616 = vld [vmem:[%s2610 + $0x28] sm:$0xff]
        %v2617 = vld [vmem:[%s2610 + $0x30] sm:$0xff]
        %v2618 = vld [vmem:[%s2610 + $0x38] sm:$0xff]
        %v2619 = vld [vmem:[%s2610 + $0x40] sm:$0xff]
        %v2620 = vld [vmem:[%s2610 + $0x48] sm:$0xff]
        %v2621 = vld [vmem:[%s2610 + $0x50] sm:$0xff]
        %v2622 = vld [vmem:[%s2610 + $0x58] sm:$0xff]
        %v2623 = vld [vmem:[%s2610 + $0x60] sm:$0xff]
        %v2624 = vld [vmem:[%s2610 + $0x68] sm:$0xff]
        %v2625 = vld [vmem:[%s2610 + $0x70] sm:$0xff]
        %v2626 = vld [vmem:[%s2610 + $0x78] sm:$0xff]
        %2627 = vmatprep.subr.mxu0 0.0
        %2628 = vmatpush1.msra.mxu0 %v482
        %2629 = vmatprep.subr.mxu0 0.0
        %2630 = vmatpush1.msra.mxu0 %v483
        %2631 = vmatprep.subr.mxu0 0.0
        %2632 = vmatpush1.msra.mxu0 %v484
        %2633 = vmatprep.subr.mxu0 0.0
        %2634 = vmatpush1.msra.mxu0 %v485
        %2635 = vmatprep.subr.mxu0 0.0
        %2636 = vmatpush1.msra.mxu0 %v486
        %2637 = vmatprep.subr.mxu0 0.0
        %2638 = vmatpush1.msra.mxu0 %v487
        %2639 = vmatprep.subr.mxu0 0.0
        %2640 = vmatpush1.msra.mxu0 %v488
        %2641 = vmatprep.subr.mxu0 0.0
        %2642 = vmatpush1.msra.mxu0 %v489
        %2643 = vmatprep.subr.mxu0 0.0
        %2644 = vmatpush1.msra.mxu0 %v490
        %2645 = vmatprep.subr.mxu0 0.0
        %2646 = vmatpush1.msra.mxu0 %v491
        %2647 = vmatprep.subr.mxu0 0.0
        %2648 = vmatpush1.msra.mxu0 %v492
        %2649 = vmatprep.subr.mxu0 0.0
        %2650 = vmatpush1.msra.mxu0 %v493
        %2651 = vmatprep.subr.mxu0 0.0
        %2652 = vmatpush1.msra.mxu0 %v494
        %2653 = vmatprep.subr.mxu0 0.0
        %2654 = vmatpush1.msra.mxu0 %v495
        %2655 = vmatprep.subr.mxu0 0.0
        %2656 = vmatpush1.msra.mxu0 %v496
        %2657 = vmatprep.subr.mxu0 0.0
        %2658 = vmatpush1.msra.mxu0 %v497
        %2659 = vmatprep.subr.mxu0 0.0
        %2660 = vmatpush1.msra.mxu0 %v498
        %2661 = vmatprep.subr.mxu0 0.0
        %2662 = vmatpush1.msra.mxu0 %v499
        %2663 = vmatprep.subr.mxu0 0.0
        %2664 = vmatpush1.msra.mxu0 %v500
        %2665 = vmatprep.subr.mxu0 0.0
        %2666 = vmatpush1.msra.mxu0 %v501
        %2667 = vmatprep.subr.mxu0 0.0
        %2668 = vmatpush1.msra.mxu0 %v502
        %2669 = vmatprep.subr.mxu0 0.0
        %2670 = vmatpush1.msra.mxu0 %v503
        %2671 = vmatprep.subr.mxu0 0.0
        %2672 = vmatpush1.msra.mxu0 %v504
        %2673 = vmatprep.subr.mxu0 0.0
        %2674 = vmatpush1.msra.mxu0 %v505
        %2675 = vmatprep.subr.mxu0 0.0
        %2676 = vmatpush1.msra.mxu0 %v506
        %2677 = vmatprep.subr.mxu0 0.0
        %2678 = vmatpush1.msra.mxu0 %v507
        %2679 = vmatprep.subr.mxu0 0.0
        %2680 = vmatpush1.msra.mxu0 %v508
        %2681 = vmatprep.subr.mxu0 0.0
        %2682 = vmatpush1.msra.mxu0 %v509
        %2683 = vmatprep.subr.mxu0 0.0
        %2684 = vmatpush1.msra.mxu0 %v510
        %2685 = vmatprep.subr.mxu0 0.0
        %2686 = vmatpush1.msra.mxu0 %v511
        %2687 = vmatprep.subr.mxu0 0.0
        %2688 = vmatpush1.msra.mxu0 %v512
        %2689 = vmatprep.subr.mxu0 0.0
        %2690 = vmatpush1.msra.mxu0 %v513
        %2691 = vmatprep.mubr.f32.mxu0 %v2612
        %2692 = vmatmul.mubr.f32.gmra.mrb[0].mxu0 %v2611
        %v2693 = vpop.f32.mrb[0].mxu0
        %v2694 = vadd.f32 0.0, %v2693
        %v2695 = vpop.f32.mrb[0].mxu0
        %2696 = vmatprep.mubr.f32.mxu0 %v2614
        %2697 = vmatmul.mubr.f32.gmra.mrb[0].mxu0 %v2613
        %v2698 = vpop.f32.mrb[0].mxu0
        %v2699 = vadd.f32 0.0, %v2698
        %v2700 = vpop.f32.mrb[0].mxu0
        %2701 = vmatprep.mubr.f32.mxu0 %v2616
        %2702 = vmatmul.mubr.f32.gmra.mrb[0].mxu0 %v2615
        %v2703 = vpop.f32.mrb[0].mxu0
        %v2704 = vadd.f32 0.0, %v2703
        %v2705 = vpop.f32.mrb[0].mxu0
        %2706 = vmatprep.mubr.f32.mxu0 %v2618
        %2707 = vmatmul.mubr.f32.gmra.mrb[0].mxu0 %v2617
        %v2708 = vpop.f32.mrb[0].mxu0
        %v2709 = vadd.f32 0.0, %v2708
        %v2710 = vpop.f32.mrb[0].mxu0
        %2711 = vmatprep.mubr.f32.mxu0 %v2620
        %2712 = vmatmul.mubr.f32.gmra.mrb[0].mxu0 %v2619
        %v2713 = vpop.f32.mrb[0].mxu0
        %v2714 = vadd.f32 0.0, %v2713
        %v2715 = vpop.f32.mrb[0].mxu0
        %2716 = vmatprep.mubr.f32.mxu0 %v2622
        %2717 = vmatmul.mubr.f32.gmra.mrb[0].mxu0 %v2621
        %v2718 = vpop.f32.mrb[0].mxu0
        %v2719 = vadd.f32 0.0, %v2718
        %v2720 = vpop.f32.mrb[0].mxu0
        %2721 = vmatprep.mubr.f32.mxu0 %v2624
        %2722 = vmatmul.mubr.f32.gmra.mrb[0].mxu0 %v2623
        %v2723 = vpop.f32.mrb[0].mxu0
        %v2724 = vadd.f32 0.0, %v2723
        %v2725 = vpop.f32.mrb[0].mxu0
        %2726 = vmatprep.mubr.f32.mxu0 %v2626
        %2727 = vmatmul.mubr.f32.gmra.mrb[0].mxu0 %v2625
        %v2728 = vpop.f32.mrb[0].mxu0
        %v2729 = vadd.f32 0.0, %v2728
        %v2730 = vpop.f32.mrb[0].mxu0
        %2731 = vdwg.mxu0
        %s2732 = scalar_lea.vmem %s2, 32
        %v2733 = vld [vmem:[%s2732] sm:$0xf]
        %v2735 = vsel %vm760, %v2694, 0
        %v2738 = vsel %vm760, %v2699, 0
        %v2741 = vsel %vm760, %v2704, 0
        %v2744 = vsel %vm760, %v2709, 0
        %v2747 = vsel %vm760, %v2714, 0
        %v2750 = vsel %vm760, %v2719, 0
        %v2753 = vsel %vm760, %v2724, 0
        %v2756 = vsel %vm760, %v2729, 0
        %v2759 = vsel %vm785, %v2733, 0
        %2761 = vmatprep.subr.mxu0 0.0
        %2762 = vmatpush1.msra.mxu0 %v2759
        %2763 = vmatprep.subr.mxu0 0.0
        %2764 = vmatpush1.msra.mxu0 0.0
        %2765 = vmatprep.subr.mxu0 0.0
        %2766 = vmatpush1.msra.mxu0 0.0
        %2767 = vmatprep.subr.mxu0 0.0
        %2768 = vmatpush1.msra.mxu0 0.0
        %2769 = vmatprep.subr.mxu0 0.0
        %2770 = vmatpush1.msra.mxu0 0.0
        %2771 = vmatprep.subr.mxu0 0.0
        %2772 = vmatpush1.msra.mxu0 0.0
        %2773 = vmatprep.subr.mxu0 0.0
        %2774 = vmatpush1.msra.mxu0 0.0
        %2775 = vmatprep.subr.mxu0 0.0
        %2776 = vmatpush1.msra.mxu0 0.0
        %2777 = vmatprep.subr.mxu0 0.0
        %2778 = vmatpush1.msra.mxu0 0.0
        %2779 = vmatprep.subr.mxu0 0.0
        %2780 = vmatpush1.msra.mxu0 0.0
        %2781 = vmatprep.subr.mxu0 0.0
        %2782 = vmatpush1.msra.mxu0 0.0
        %2783 = vmatprep.subr.mxu0 0.0
        %2784 = vmatpush1.msra.mxu0 0.0
        %2785 = vmatprep.subr.mxu0 0.0
        %2786 = vmatpush1.msra.mxu0 0.0
        %2787 = vmatprep.subr.mxu0 0.0
        %2788 = vmatpush1.msra.mxu0 0.0
        %2789 = vmatprep.subr.mxu0 0.0
        %2790 = vmatpush1.msra.mxu0 0.0
        %2791 = vmatprep.subr.mxu0 0.0
        %2792 = vmatpush1.msra.mxu0 0.0
        %2793 = vmatprep.subr.mxu0 0.0
        %2794 = vmatpush1.msra.mxu0 0.0
        %2795 = vmatprep.subr.mxu0 0.0
        %2796 = vmatpush1.msra.mxu0 0.0
        %2797 = vmatprep.subr.mxu0 0.0
        %2798 = vmatpush1.msra.mxu0 0.0
        %2799 = vmatprep.subr.mxu0 0.0
        %2800 = vmatpush1.msra.mxu0 0.0
        %2801 = vmatprep.subr.mxu0 0.0
        %2802 = vmatpush1.msra.mxu0 0.0
        %2803 = vmatprep.subr.mxu0 0.0
        %2804 = vmatpush1.msra.mxu0 0.0
        %2805 = vmatprep.subr.mxu0 0.0
        %2806 = vmatpush1.msra.mxu0 0.0
        %2807 = vmatprep.subr.mxu0 0.0
        %2808 = vmatpush1.msra.mxu0 0.0
        %2809 = vmatprep.subr.mxu0 0.0
        %2810 = vmatpush1.msra.mxu0 0.0
        %2811 = vmatprep.subr.mxu0 0.0
        %2812 = vmatpush1.msra.mxu0 0.0
        %2813 = vmatprep.subr.mxu0 0.0
        %2814 = vmatpush1.msra.mxu0 0.0
        %2815 = vmatprep.subr.mxu0 0.0
        %2816 = vmatpush1.msra.mxu0 0.0
        %2817 = vmatprep.subr.mxu0 0.0
        %2818 = vmatpush1.msra.mxu0 0.0
        %2819 = vmatprep.subr.mxu0 0.0
        %2820 = vmatpush1.msra.mxu0 0.0
        %2821 = vmatprep.subr.mxu0 0.0
        %2822 = vmatpush1.msra.mxu0 0.0
        %2823 = vmatprep.subr.mxu0 0.0
        %2824 = vmatpush1.msra.mxu0 0.0
        %2825 = vmatprep.mubr.f32.mxu0 0.0
        %2826 = vmatmul.mubr.f32.gmra.mrb[0].mxu0 %v2735
        %v2827 = vpop.f32.mrb[0].mxu0
        %v2828 = vadd.f32 0.0, %v2827
        %v2829 = vpop.f32.mrb[0].mxu0
        %2830 = vmatprep.mubr.f32.mxu0 0.0
        %2831 = vmatmul.mubr.f32.gmra.mrb[0].mxu0 %v2738
        %v2832 = vpop.f32.mrb[0].mxu0
        %v2833 = vadd.f32 0.0, %v2832
        %v2834 = vpop.f32.mrb[0].mxu0
        %2835 = vmatprep.mubr.f32.mxu0 0.0
        %2836 = vmatmul.mubr.f32.gmra.mrb[0].mxu0 %v2741
        %v2837 = vpop.f32.mrb[0].mxu0
        %v2838 = vadd.f32 0.0, %v2837
        %v2839 = vpop.f32.mrb[0].mxu0
        %2840 = vmatprep.mubr.f32.mxu0 0.0
        %2841 = vmatmul.mubr.f32.gmra.mrb[0].mxu0 %v2744
        %v2842 = vpop.f32.mrb[0].mxu0
        %v2843 = vadd.f32 0.0, %v2842
        %v2844 = vpop.f32.mrb[0].mxu0
        %2845 = vmatprep.mubr.f32.mxu0 0.0
        %2846 = vmatmul.mubr.f32.gmra.mrb[0].mxu0 %v2747
        %v2847 = vpop.f32.mrb[0].mxu0
        %v2848 = vadd.f32 0.0, %v2847
        %v2849 = vpop.f32.mrb[0].mxu0
        %2850 = vmatprep.mubr.f32.mxu0 0.0
        %2851 = vmatmul.mubr.f32.gmra.mrb[0].mxu0 %v2750
        %v2852 = vpop.f32.mrb[0].mxu0
        %v2853 = vadd.f32 0.0, %v2852
        %v2854 = vpop.f32.mrb[0].mxu0
        %2855 = vmatprep.mubr.f32.mxu0 0.0
        %2856 = vmatmul.mubr.f32.gmra.mrb[0].mxu0 %v2753
        %v2857 = vpop.f32.mrb[0].mxu0
        %v2858 = vadd.f32 0.0, %v2857
        %v2859 = vpop.f32.mrb[0].mxu0
        %2860 = vmatprep.mubr.f32.mxu0 0.0
        %2861 = vmatmul.mubr.f32.gmra.mrb[0].mxu0 %v2756
        %v2862 = vpop.f32.mrb[0].mxu0
        %v2863 = vadd.f32 0.0, %v2862
        %v2864 = vpop.f32.mrb[0].mxu0
        %2865 = vdwg.mxu0
        %v2866 = vadd.f32 %v2602, %v2828
        %v2867 = vadd.f32 %v2603, %v2833
        %v2868 = vadd.f32 %v2604, %v2838
        %v2869 = vadd.f32 %v2605, %v2843
        %v2870 = vadd.f32 %v2606, %v2848
        %v2871 = vadd.f32 %v2607, %v2853
        %v2872 = vadd.f32 %v2608, %v2858
        %v2873 = vadd.f32 %v2609, %v2863
        %v2874 = vld [vmem:[%s3] sm:$0x1]
        %v2876 = vlaneseq
        %v2877 = vshrl.u32 %v2876, 7
        %v2878 = vsub.s32 0, %v2877
        %v2879 = vrot.slane %v2874, %v2878
        %v2881 = vadd.f32 %v2866, %v2879
        %v2882 = vadd.f32 %v2867, %v2879
        %v2883 = vadd.f32 %v2868, %v2879
        %v2884 = vadd.f32 %v2869, %v2879
        %v2885 = vadd.f32 %v2870, %v2879
        %v2886 = vadd.f32 %v2871, %v2879
        %v2887 = vadd.f32 %v2872, %v2879
        %v2888 = vadd.f32 %v2873, %v2879
        %vm2889 = vcmp.gt.f32.partialorder %v2881, 0.0
        %vm2890 = vcmp.gt.f32.partialorder %v2882, 0.0
        %vm2891 = vcmp.gt.f32.partialorder %v2883, 0.0
        %vm2892 = vcmp.gt.f32.partialorder %v2884, 0.0
        %vm2893 = vcmp.gt.f32.partialorder %v2885, 0.0
        %vm2894 = vcmp.gt.f32.partialorder %v2886, 0.0
        %vm2895 = vcmp.gt.f32.partialorder %v2887, 0.0
        %vm2896 = vcmp.gt.f32.partialorder %v2888, 0.0
        %v2897 = vmin.f32 %v2881, 0.0
        %v2898 = vmin.f32 %v2882, 0.0
        %v2899 = vmin.f32 %v2883, 0.0
        %v2900 = vmin.f32 %v2884, 0.0
        %v2901 = vmin.f32 %v2885, 0.0
        %v2902 = vmin.f32 %v2886, 0.0
        %v2903 = vmin.f32 %v2887, 0.0
        %v2904 = vmin.f32 %v2888, 0.0
        %v2905 = vmul.f32 %v2897, 1.442695
        %v2906 = vpow.pop %v2905
        %v2907 = vmul.f32 %v2898, 1.442695
        %v2908 = vpow.pop %v2907
        %v2909 = vmul.f32 %v2899, 1.442695
        %v2910 = vpow.pop %v2909
        %v2911 = vmul.f32 %v2900, 1.442695
        %v2912 = vpow.pop %v2911
        %v2913 = vmul.f32 %v2901, 1.442695
        %v2914 = vpow.pop %v2913
        %v2915 = vmul.f32 %v2902, 1.442695
        %v2916 = vpow.pop %v2915
        %v2917 = vmul.f32 %v2903, 1.442695
        %v2918 = vpow.pop %v2917
        %v2919 = vmul.f32 %v2904, 1.442695
        %v2920 = vpow.pop %v2919
        %v2921 = vsub.f32 %v2906, 1.0
        %v2922 = vsub.f32 %v2908, 1.0
        %v2923 = vsub.f32 %v2910, 1.0
        %v2924 = vsub.f32 %v2912, 1.0
        %v2925 = vsub.f32 %v2914, 1.0
        %v2926 = vsub.f32 %v2916, 1.0
        %v2927 = vsub.f32 %v2918, 1.0
        %v2928 = vsub.f32 %v2920, 1.0
        %v2929 = vsel %vm2889, %v2881, %v2921
        %v2930 = vsel %vm2890, %v2882, %v2922
        %v2931 = vsel %vm2891, %v2883, %v2923
        %v2932 = vsel %vm2892, %v2884, %v2924
        %v2933 = vsel %vm2893, %v2885, %v2925
        %v2934 = vsel %vm2894, %v2886, %v2926
        %v2935 = vsel %vm2895, %v2887, %v2927
        %v2936 = vsel %vm2896, %v2888, %v2928
        %v2937 = vld [vmem:[#allocation5] sm:$0xff]
        %v2938 = vld [vmem:[#allocation5 + $0x8] sm:$0xff]
        %vm2939 = vcmask 523264
        %v2941 = vsel %vm2939, %v2937, 0
        %v2944 = vsel %vm2939, %v2938, 0
        %2946 = vmatprep.subr.mxu0 0.0
        %2947 = vmatpush1.msra.mxu0 %v2929
        %2948 = vmatprep.subr.mxu0 0.0
        %2949 = vmatpush1.msra.mxu0 %v2930
        %2950 = vmatprep.subr.mxu0 0.0
        %2951 = vmatpush1.msra.mxu0 %v2931
        %2952 = vmatprep.subr.mxu0 0.0
        %2953 = vmatpush1.msra.mxu0 %v2932
        %2954 = vmatprep.subr.mxu0 0.0
        %2955 = vmatpush1.msra.mxu0 %v2933
        %2956 = vmatprep.subr.mxu0 0.0
        %2957 = vmatpush1.msra.mxu0 %v2934
        %2958 = vmatprep.subr.mxu0 0.0
        %2959 = vmatpush1.msra.mxu0 %v2935
        %2960 = vmatprep.subr.mxu0 0.0
        %2961 = vmatpush1.msra.mxu0 %v2936
        %2962 = vmatprep.subr.mxu0 0.0
        %2963 = vmatpush1.msra.mxu0 0.0
        %2964 = vmatprep.subr.mxu0 0.0
        %2965 = vmatpush1.msra.mxu0 0.0
        %2966 = vmatprep.subr.mxu0 0.0
        %2967 = vmatpush1.msra.mxu0 0.0
        %2968 = vmatprep.subr.mxu0 0.0
        %2969 = vmatpush1.msra.mxu0 0.0
        %2970 = vmatprep.subr.mxu0 0.0
        %2971 = vmatpush1.msra.mxu0 0.0
        %2972 = vmatprep.subr.mxu0 0.0
        %2973 = vmatpush1.msra.mxu0 0.0
        %2974 = vmatprep.subr.mxu0 0.0
        %2975 = vmatpush1.msra.mxu0 0.0
        %2976 = vmatprep.subr.mxu0 0.0
        %2977 = vmatpush1.msra.mxu0 0.0
        %2978 = vmatprep.subr.mxu0 0.0
        %2979 = vmatpush1.msra.mxu0 0.0
        %2980 = vmatprep.subr.mxu0 0.0
        %2981 = vmatpush1.msra.mxu0 0.0
        %2982 = vmatprep.subr.mxu0 0.0
        %2983 = vmatpush1.msra.mxu0 0.0
        %2984 = vmatprep.subr.mxu0 0.0
        %2985 = vmatpush1.msra.mxu0 0.0
        %2986 = vmatprep.subr.mxu0 0.0
        %2987 = vmatpush1.msra.mxu0 0.0
        %2988 = vmatprep.subr.mxu0 0.0
        %2989 = vmatpush1.msra.mxu0 0.0
        %2990 = vmatprep.subr.mxu0 0.0
        %2991 = vmatpush1.msra.mxu0 0.0
        %2992 = vmatprep.subr.mxu0 0.0
        %2993 = vmatpush1.msra.mxu0 0.0
        %2994 = vmatprep.subr.mxu0 0.0
        %2995 = vmatpush1.msra.mxu0 0.0
        %2996 = vmatprep.subr.mxu0 0.0
        %2997 = vmatpush1.msra.mxu0 0.0
        %2998 = vmatprep.subr.mxu0 0.0
        %2999 = vmatpush1.msra.mxu0 0.0
        %3000 = vmatprep.subr.mxu0 0.0
        %3001 = vmatpush1.msra.mxu0 0.0
        %3002 = vmatprep.subr.mxu0 0.0
        %3003 = vmatpush1.msra.mxu0 0.0
        %3004 = vmatprep.subr.mxu0 0.0
        %3005 = vmatpush1.msra.mxu0 0.0
        %3006 = vmatprep.subr.mxu0 0.0
        %3007 = vmatpush1.msra.mxu0 0.0
        %3008 = vmatprep.subr.mxu0 0.0
        %3009 = vmatpush1.msra.mxu0 0.0
        %3010 = vmatprep.mubr.f32.mxu0 0.0
        %3011 = vmatmul.mubr.f32.gmra.mrb[0].mxu0 %v2941
        %v3012 = vpop.f32.mrb[0].mxu0
        %v3013 = vadd.f32 0.0, %v3012
        %v3014 = vpop.f32.mrb[0].mxu0
        %3015 = vmatprep.mubr.f32.mxu0 0.0
        %3016 = vmatmul.mubr.f32.gmra.mrb[0].mxu0 %v2944
        %v3017 = vpop.f32.mrb[0].mxu0
        %v3018 = vadd.f32 0.0, %v3017
        %v3019 = vpop.f32.mrb[0].mxu0
        %3020 = vdwg.mxu0
        %v3021 = vld [vmem:[%s5] sm:$0xff]
        %v3022 = vld [vmem:[%s5 + $0x8] sm:$0xff]
        %v3023 = vld [vmem:[%s5 + $0x10] sm:$0xff]
        %v3024 = vld [vmem:[%s5 + $0x18] sm:$0xff]
        %s3025 = scalar_lea.vmem [#allocation5], 16
        %v3026 = vld [vmem:[%s3025] sm:$0xff]
        %v3027 = vld [vmem:[%s3025 + $0x8] sm:$0xff]
        %v3029 = vsel %vm2939, %v3026, 0
        %v3032 = vsel %vm2939, %v3027, 0
        %3034 = vmatprep.subr.mxu0 0.0
        %3035 = vmatpush1.msra.mxu0 %v2929
        %3036 = vmatprep.subr.mxu0 0.0
        %3037 = vmatpush1.msra.mxu0 %v2930
        %3038 = vmatprep.subr.mxu0 0.0
        %3039 = vmatpush1.msra.mxu0 %v2931
        %3040 = vmatprep.subr.mxu0 0.0
        %3041 = vmatpush1.msra.mxu0 %v2932
        %3042 = vmatprep.subr.mxu0 0.0
        %3043 = vmatpush1.msra.mxu0 %v2933
        %3044 = vmatprep.subr.mxu0 0.0
        %3045 = vmatpush1.msra.mxu0 %v2934
        %3046 = vmatprep.subr.mxu0 0.0
        %3047 = vmatpush1.msra.mxu0 %v2935
        %3048 = vmatprep.subr.mxu0 0.0
        %3049 = vmatpush1.msra.mxu0 %v2936
        %3050 = vmatprep.subr.mxu0 0.0
        %3051 = vmatpush1.msra.mxu0 0.0
        %3052 = vmatprep.subr.mxu0 0.0
        %3053 = vmatpush1.msra.mxu0 0.0
        %3054 = vmatprep.subr.mxu0 0.0
        %3055 = vmatpush1.msra.mxu0 0.0
        %3056 = vmatprep.subr.mxu0 0.0
        %3057 = vmatpush1.msra.mxu0 0.0
        %3058 = vmatprep.subr.mxu0 0.0
        %3059 = vmatpush1.msra.mxu0 0.0
        %3060 = vmatprep.subr.mxu0 0.0
        %3061 = vmatpush1.msra.mxu0 0.0
        %3062 = vmatprep.subr.mxu0 0.0
        %3063 = vmatpush1.msra.mxu0 0.0
        %3064 = vmatprep.subr.mxu0 0.0
        %3065 = vmatpush1.msra.mxu0 0.0
        %3066 = vmatprep.subr.mxu0 0.0
        %3067 = vmatpush1.msra.mxu0 0.0
        %3068 = vmatprep.subr.mxu0 0.0
        %3069 = vmatpush1.msra.mxu0 0.0
        %3070 = vmatprep.subr.mxu0 0.0
        %3071 = vmatpush1.msra.mxu0 0.0
        %3072 = vmatprep.subr.mxu0 0.0
        %3073 = vmatpush1.msra.mxu0 0.0
        %3074 = vmatprep.subr.mxu0 0.0
        %3075 = vmatpush1.msra.mxu0 0.0
        %3076 = vmatprep.subr.mxu0 0.0
        %3077 = vmatpush1.msra.mxu0 0.0
        %3078 = vmatprep.subr.mxu0 0.0
        %3079 = vmatpush1.msra.mxu0 0.0
        %3080 = vmatprep.subr.mxu0 0.0
        %3081 = vmatpush1.msra.mxu0 0.0
        %3082 = vmatprep.subr.mxu0 0.0
        %3083 = vmatpush1.msra.mxu0 0.0
        %3084 = vmatprep.subr.mxu0 0.0
        %3085 = vmatpush1.msra.mxu0 0.0
        %3086 = vmatprep.subr.mxu0 0.0
        %3087 = vmatpush1.msra.mxu0 0.0
        %3088 = vmatprep.subr.mxu0 0.0
        %3089 = vmatpush1.msra.mxu0 0.0
        %3090 = vmatprep.subr.mxu0 0.0
        %3091 = vmatpush1.msra.mxu0 0.0
        %3092 = vmatprep.subr.mxu0 0.0
        %3093 = vmatpush1.msra.mxu0 0.0
        %3094 = vmatprep.subr.mxu0 0.0
        %3095 = vmatpush1.msra.mxu0 0.0
        %3096 = vmatprep.subr.mxu0 0.0
        %3097 = vmatpush1.msra.mxu0 0.0
        %3098 = vmatprep.mubr.f32.mxu0 0.0
        %3099 = vmatmul.mubr.f32.gmra.mrb[0].mxu0 %v3029
        %v3100 = vpop.f32.mrb[0].mxu0
        %v3101 = vadd.f32 0.0, %v3100
        %v3102 = vpop.f32.mrb[0].mxu0
        %3103 = vmatprep.mubr.f32.mxu0 0.0
        %3104 = vmatmul.mubr.f32.gmra.mrb[0].mxu0 %v3032
        %v3105 = vpop.f32.mrb[0].mxu0
        %v3106 = vadd.f32 0.0, %v3105
        %v3107 = vpop.f32.mrb[0].mxu0
        %3108 = vdwg.mxu0
        %s3109 = scalar_lea.vmem %s5, 32
        %v3110 = vld [vmem:[%s3109] sm:$0xff]
        %v3111 = vld [vmem:[%s3109 + $0x8] sm:$0xff]
        %v3112 = vld [vmem:[%s3109 + $0x10] sm:$0xff]
        %v3113 = vld [vmem:[%s3109 + $0x18] sm:$0xff]
        %vm3114 = vcmask 261120
        %v3116 = vsel %vm3114, %v3101, 0
        %v3119 = vsel %vm3114, %v3106, 0
        %3121 = vmatprep.subr.mxu0 0.0
        %3122 = vmatpush1.msra.mxu0 %v3110
        %3123 = vmatprep.subr.mxu0 0.0
        %3124 = vmatpush1.msra.mxu0 %v3111
        %3125 = vmatprep.subr.mxu0 0.0
        %3126 = vmatpush1.msra.mxu0 %v3112
        %3127 = vmatprep.subr.mxu0 0.0
        %3128 = vmatpush1.msra.mxu0 %v3113
        %3129 = vmatprep.subr.mxu0 0.0
        %3130 = vmatpush1.msra.mxu0 0.0
        %3131 = vmatprep.subr.mxu0 0.0
        %3132 = vmatpush1.msra.mxu0 0.0
        %3133 = vmatprep.subr.mxu0 0.0
        %3134 = vmatpush1.msra.mxu0 0.0
        %3135 = vmatprep.subr.mxu0 0.0
        %3136 = vmatpush1.msra.mxu0 0.0
        %3137 = vmatprep.subr.mxu0 0.0
        %3138 = vmatpush1.msra.mxu0 0.0
        %3139 = vmatprep.subr.mxu0 0.0
        %3140 = vmatpush1.msra.mxu0 0.0
        %3141 = vmatprep.subr.mxu0 0.0
        %3142 = vmatpush1.msra.mxu0 0.0
        %3143 = vmatprep.subr.mxu0 0.0
        %3144 = vmatpush1.msra.mxu0 0.0
        %3145 = vmatprep.subr.mxu0 0.0
        %3146 = vmatpush1.msra.mxu0 0.0
        %3147 = vmatprep.subr.mxu0 0.0
        %3148 = vmatpush1.msra.mxu0 0.0
        %3149 = vmatprep.subr.mxu0 0.0
        %3150 = vmatpush1.msra.mxu0 0.0
        %3151 = vmatprep.subr.mxu0 0.0
        %3152 = vmatpush1.msra.mxu0 0.0
        %3153 = vmatprep.subr.mxu0 0.0
        %3154 = vmatpush1.msra.mxu0 0.0
        %3155 = vmatprep.subr.mxu0 0.0
        %3156 = vmatpush1.msra.mxu0 0.0
        %3157 = vmatprep.subr.mxu0 0.0
        %3158 = vmatpush1.msra.mxu0 0.0
        %3159 = vmatprep.subr.mxu0 0.0
        %3160 = vmatpush1.msra.mxu0 0.0
        %3161 = vmatprep.subr.mxu0 0.0
        %3162 = vmatpush1.msra.mxu0 0.0
        %3163 = vmatprep.subr.mxu0 0.0
        %3164 = vmatpush1.msra.mxu0 0.0
        %3165 = vmatprep.subr.mxu0 0.0
        %3166 = vmatpush1.msra.mxu0 0.0
        %3167 = vmatprep.subr.mxu0 0.0
        %3168 = vmatpush1.msra.mxu0 0.0
        %3169 = vmatprep.subr.mxu0 0.0
        %3170 = vmatpush1.msra.mxu0 0.0
        %3171 = vmatprep.subr.mxu0 0.0
        %3172 = vmatpush1.msra.mxu0 0.0
        %3173 = vmatprep.subr.mxu0 0.0
        %3174 = vmatpush1.msra.mxu0 0.0
        %3175 = vmatprep.subr.mxu0 0.0
        %3176 = vmatpush1.msra.mxu0 0.0
        %3177 = vmatprep.subr.mxu0 0.0
        %3178 = vmatpush1.msra.mxu0 0.0
        %3179 = vmatprep.subr.mxu0 0.0
        %3180 = vmatpush1.msra.mxu0 0.0
        %3181 = vmatprep.subr.mxu0 0.0
        %3182 = vmatpush1.msra.mxu0 0.0
        %3183 = vmatprep.subr.mxu0 0.0
        %3184 = vmatpush1.msra.mxu0 0.0
        %3185 = vmatprep.mubr.f32.mxu0 0.0
        %3186 = vmatmul.mubr.f32.gmra.mrb[0].mxu0 %v3116
        %v3187 = vpop.f32.mrb[0].mxu0
        %v3188 = vadd.f32 0.0, %v3187
        %v3189 = vpop.f32.mrb[0].mxu0
        %3190 = vmatprep.mubr.f32.mxu0 0.0
        %3191 = vmatmul.mubr.f32.gmra.mrb[0].mxu0 %v3119
        %v3192 = vpop.f32.mrb[0].mxu0
        %v3193 = vadd.f32 0.0, %v3192
        %v3194 = vpop.f32.mrb[0].mxu0
        %3195 = vdwg.mxu0
        %v3197 = vsel %vm3114, %v3013, 0
        %v3200 = vsel %vm3114, %v3018, 0
        %3202 = vmatprep.subr.mxu0 0.0
        %3203 = vmatpush1.msra.mxu0 %v3021
        %3204 = vmatprep.subr.mxu0 0.0
        %3205 = vmatpush1.msra.mxu0 %v3022
        %3206 = vmatprep.subr.mxu0 0.0
        %3207 = vmatpush1.msra.mxu0 %v3023
        %3208 = vmatprep.subr.mxu0 0.0
        %3209 = vmatpush1.msra.mxu0 %v3024
        %3210 = vmatprep.subr.mxu0 0.0
        %3211 = vmatpush1.msra.mxu0 0.0
        %3212 = vmatprep.subr.mxu0 0.0
        %3213 = vmatpush1.msra.mxu0 0.0
        %3214 = vmatprep.subr.mxu0 0.0
        %3215 = vmatpush1.msra.mxu0 0.0
        %3216 = vmatprep.subr.mxu0 0.0
        %3217 = vmatpush1.msra.mxu0 0.0
        %3218 = vmatprep.subr.mxu0 0.0
        %3219 = vmatpush1.msra.mxu0 0.0
        %3220 = vmatprep.subr.mxu0 0.0
        %3221 = vmatpush1.msra.mxu0 0.0
        %3222 = vmatprep.subr.mxu0 0.0
        %3223 = vmatpush1.msra.mxu0 0.0
        %3224 = vmatprep.subr.mxu0 0.0
        %3225 = vmatpush1.msra.mxu0 0.0
        %3226 = vmatprep.subr.mxu0 0.0
        %3227 = vmatpush1.msra.mxu0 0.0
        %3228 = vmatprep.subr.mxu0 0.0
        %3229 = vmatpush1.msra.mxu0 0.0
        %3230 = vmatprep.subr.mxu0 0.0
        %3231 = vmatpush1.msra.mxu0 0.0
        %3232 = vmatprep.subr.mxu0 0.0
        %3233 = vmatpush1.msra.mxu0 0.0
        %3234 = vmatprep.subr.mxu0 0.0
        %3235 = vmatpush1.msra.mxu0 0.0
        %3236 = vmatprep.subr.mxu0 0.0
        %3237 = vmatpush1.msra.mxu0 0.0
        %3238 = vmatprep.subr.mxu0 0.0
        %3239 = vmatpush1.msra.mxu0 0.0
        %3240 = vmatprep.subr.mxu0 0.0
        %3241 = vmatpush1.msra.mxu0 0.0
        %3242 = vmatprep.subr.mxu0 0.0
        %3243 = vmatpush1.msra.mxu0 0.0
        %3244 = vmatprep.subr.mxu0 0.0
        %3245 = vmatpush1.msra.mxu0 0.0
        %3246 = vmatprep.subr.mxu0 0.0
        %3247 = vmatpush1.msra.mxu0 0.0
        %3248 = vmatprep.subr.mxu0 0.0
        %3249 = vmatpush1.msra.mxu0 0.0
        %3250 = vmatprep.subr.mxu0 0.0
        %3251 = vmatpush1.msra.mxu0 0.0
        %3252 = vmatprep.subr.mxu0 0.0
        %3253 = vmatpush1.msra.mxu0 0.0
        %3254 = vmatprep.subr.mxu0 0.0
        %3255 = vmatpush1.msra.mxu0 0.0
        %3256 = vmatprep.subr.mxu0 0.0
        %3257 = vmatpush1.msra.mxu0 0.0
        %3258 = vmatprep.subr.mxu0 0.0
        %3259 = vmatpush1.msra.mxu0 0.0
        %3260 = vmatprep.subr.mxu0 0.0
        %3261 = vmatpush1.msra.mxu0 0.0
        %3262 = vmatprep.subr.mxu0 0.0
        %3263 = vmatpush1.msra.mxu0 0.0
        %3264 = vmatprep.subr.mxu0 0.0
        %3265 = vmatpush1.msra.mxu0 0.0
        %3266 = vmatprep.mubr.f32.mxu0 0.0
        %3267 = vmatmul.mubr.f32.gmra.mrb[0].mxu0 %v3197
        %v3268 = vpop.f32.mrb[0].mxu0
        %v3269 = vadd.f32 %v3188, %v3268
        %v3270 = vpop.f32.mrb[0].mxu0
        %3271 = vmatprep.mubr.f32.mxu0 0.0
        %3272 = vmatmul.mubr.f32.gmra.mrb[0].mxu0 %v3200
        %v3273 = vpop.f32.mrb[0].mxu0
        %v3274 = vadd.f32 %v3193, %v3273
        %v3275 = vpop.f32.mrb[0].mxu0
        %3276 = vdwg.mxu0
        %s3277 = scalar_lea.vmem [#allocation5], 32
        %v3278 = vld [vmem:[%s3277] sm:$0xff]
        %v3279 = vld [vmem:[%s3277 + $0x8] sm:$0xff]
        %v3281 = vsel %vm2939, %v3278, 0
        %v3284 = vsel %vm2939, %v3279, 0
        %3286 = vmatprep.subr.mxu0 0.0
        %3287 = vmatpush1.msra.mxu0 %v2929
        %3288 = vmatprep.subr.mxu0 0.0
        %3289 = vmatpush1.msra.mxu0 %v2930
        %3290 = vmatprep.subr.mxu0 0.0
        %3291 = vmatpush1.msra.mxu0 %v2931
        %3292 = vmatprep.subr.mxu0 0.0
        %3293 = vmatpush1.msra.mxu0 %v2932
        %3294 = vmatprep.subr.mxu0 0.0
        %3295 = vmatpush1.msra.mxu0 %v2933
        %3296 = vmatprep.subr.mxu0 0.0
        %3297 = vmatpush1.msra.mxu0 %v2934
        %3298 = vmatprep.subr.mxu0 0.0
        %3299 = vmatpush1.msra.mxu0 %v2935
        %3300 = vmatprep.subr.mxu0 0.0
        %3301 = vmatpush1.msra.mxu0 %v2936
        %3302 = vmatprep.subr.mxu0 0.0
        %3303 = vmatpush1.msra.mxu0 0.0
        %3304 = vmatprep.subr.mxu0 0.0
        %3305 = vmatpush1.msra.mxu0 0.0
        %3306 = vmatprep.subr.mxu0 0.0
        %3307 = vmatpush1.msra.mxu0 0.0
        %3308 = vmatprep.subr.mxu0 0.0
        %3309 = vmatpush1.msra.mxu0 0.0
        %3310 = vmatprep.subr.mxu0 0.0
        %3311 = vmatpush1.msra.mxu0 0.0
        %3312 = vmatprep.subr.mxu0 0.0
        %3313 = vmatpush1.msra.mxu0 0.0
        %3314 = vmatprep.subr.mxu0 0.0
        %3315 = vmatpush1.msra.mxu0 0.0
        %3316 = vmatprep.subr.mxu0 0.0
        %3317 = vmatpush1.msra.mxu0 0.0
        %3318 = vmatprep.subr.mxu0 0.0
        %3319 = vmatpush1.msra.mxu0 0.0
        %3320 = vmatprep.subr.mxu0 0.0
        %3321 = vmatpush1.msra.mxu0 0.0
        %3322 = vmatprep.subr.mxu0 0.0
        %3323 = vmatpush1.msra.mxu0 0.0
        %3324 = vmatprep.subr.mxu0 0.0
        %3325 = vmatpush1.msra.mxu0 0.0
        %3326 = vmatprep.subr.mxu0 0.0
        %3327 = vmatpush1.msra.mxu0 0.0
        %3328 = vmatprep.subr.mxu0 0.0
        %3329 = vmatpush1.msra.mxu0 0.0
        %3330 = vmatprep.subr.mxu0 0.0
        %3331 = vmatpush1.msra.mxu0 0.0
        %3332 = vmatprep.subr.mxu0 0.0
        %3333 = vmatpush1.msra.mxu0 0.0
        %3334 = vmatprep.subr.mxu0 0.0
        %3335 = vmatpush1.msra.mxu0 0.0
        %3336 = vmatprep.subr.mxu0 0.0
        %3337 = vmatpush1.msra.mxu0 0.0
        %3338 = vmatprep.subr.mxu0 0.0
        %3339 = vmatpush1.msra.mxu0 0.0
        %3340 = vmatprep.subr.mxu0 0.0
        %3341 = vmatpush1.msra.mxu0 0.0
        %3342 = vmatprep.subr.mxu0 0.0
        %3343 = vmatpush1.msra.mxu0 0.0
        %3344 = vmatprep.subr.mxu0 0.0
        %3345 = vmatpush1.msra.mxu0 0.0
        %3346 = vmatprep.subr.mxu0 0.0
        %3347 = vmatpush1.msra.mxu0 0.0
        %3348 = vmatprep.subr.mxu0 0.0
        %3349 = vmatpush1.msra.mxu0 0.0
        %3350 = vmatprep.mubr.f32.mxu0 0.0
        %3351 = vmatmul.mubr.f32.gmra.mrb[0].mxu0 %v3281
        %v3352 = vpop.f32.mrb[0].mxu0
        %v3353 = vadd.f32 0.0, %v3352
        %v3354 = vpop.f32.mrb[0].mxu0
        %3355 = vmatprep.mubr.f32.mxu0 0.0
        %3356 = vmatmul.mubr.f32.gmra.mrb[0].mxu0 %v3284
        %v3357 = vpop.f32.mrb[0].mxu0
        %v3358 = vadd.f32 0.0, %v3357
        %v3359 = vpop.f32.mrb[0].mxu0
        %3360 = vdwg.mxu0
        %s3361 = scalar_lea.vmem %s5, 64
        %v3362 = vld [vmem:[%s3361] sm:$0xff]
        %v3363 = vld [vmem:[%s3361 + $0x8] sm:$0xff]
        %v3364 = vld [vmem:[%s3361 + $0x10] sm:$0xff]
        %v3365 = vld [vmem:[%s3361 + $0x18] sm:$0xff]
        %v3367 = vsel %vm3114, %v3353, 0
        %v3370 = vsel %vm3114, %v3358, 0
        %3372 = vmatprep.subr.mxu0 0.0
        %3373 = vmatpush1.msra.mxu0 %v3362
        %3374 = vmatprep.subr.mxu0 0.0
        %3375 = vmatpush1.msra.mxu0 %v3363
        %3376 = vmatprep.subr.mxu0 0.0
        %3377 = vmatpush1.msra.mxu0 %v3364
        %3378 = vmatprep.subr.mxu0 0.0
        %3379 = vmatpush1.msra.mxu0 %v3365
        %3380 = vmatprep.subr.mxu0 0.0
        %3381 = vmatpush1.msra.mxu0 0.0
        %3382 = vmatprep.subr.mxu0 0.0
        %3383 = vmatpush1.msra.mxu0 0.0
        %3384 = vmatprep.subr.mxu0 0.0
        %3385 = vmatpush1.msra.mxu0 0.0
        %3386 = vmatprep.subr.mxu0 0.0
        %3387 = vmatpush1.msra.mxu0 0.0
        %3388 = vmatprep.subr.mxu0 0.0
        %3389 = vmatpush1.msra.mxu0 0.0
        %3390 = vmatprep.subr.mxu0 0.0
        %3391 = vmatpush1.msra.mxu0 0.0
        %3392 = vmatprep.subr.mxu0 0.0
        %3393 = vmatpush1.msra.mxu0 0.0
        %3394 = vmatprep.subr.mxu0 0.0
        %3395 = vmatpush1.msra.mxu0 0.0
        %3396 = vmatprep.subr.mxu0 0.0
        %3397 = vmatpush1.msra.mxu0 0.0
        %3398 = vmatprep.subr.mxu0 0.0
        %3399 = vmatpush1.msra.mxu0 0.0
        %3400 = vmatprep.subr.mxu0 0.0
        %3401 = vmatpush1.msra.mxu0 0.0
        %3402 = vmatprep.subr.mxu0 0.0
        %3403 = vmatpush1.msra.mxu0 0.0
        %3404 = vmatprep.subr.mxu0 0.0
        %3405 = vmatpush1.msra.mxu0 0.0
        %3406 = vmatprep.subr.mxu0 0.0
        %3407 = vmatpush1.msra.mxu0 0.0
        %3408 = vmatprep.subr.mxu0 0.0
        %3409 = vmatpush1.msra.mxu0 0.0
        %3410 = vmatprep.subr.mxu0 0.0
        %3411 = vmatpush1.msra.mxu0 0.0
        %3412 = vmatprep.subr.mxu0 0.0
        %3413 = vmatpush1.msra.mxu0 0.0
        %3414 = vmatprep.subr.mxu0 0.0
        %3415 = vmatpush1.msra.mxu0 0.0
        %3416 = vmatprep.subr.mxu0 0.0
        %3417 = vmatpush1.msra.mxu0 0.0
        %3418 = vmatprep.subr.mxu0 0.0
        %3419 = vmatpush1.msra.mxu0 0.0
        %3420 = vmatprep.subr.mxu0 0.0
        %3421 = vmatpush1.msra.mxu0 0.0
        %3422 = vmatprep.subr.mxu0 0.0
        %3423 = vmatpush1.msra.mxu0 0.0
        %3424 = vmatprep.subr.mxu0 0.0
        %3425 = vmatpush1.msra.mxu0 0.0
        %3426 = vmatprep.subr.mxu0 0.0
        %3427 = vmatpush1.msra.mxu0 0.0
        %3428 = vmatprep.subr.mxu0 0.0
        %3429 = vmatpush1.msra.mxu0 0.0
        %3430 = vmatprep.subr.mxu0 0.0
        %3431 = vmatpush1.msra.mxu0 0.0
        %3432 = vmatprep.subr.mxu0 0.0
        %3433 = vmatpush1.msra.mxu0 0.0
        %3434 = vmatprep.subr.mxu0 0.0
        %3435 = vmatpush1.msra.mxu0 0.0
        %3436 = vmatprep.mubr.f32.mxu0 0.0
        %3437 = vmatmul.mubr.f32.gmra.mrb[0].mxu0 %v3367
        %v3438 = vpop.f32.mrb[0].mxu0
        %v3439 = vadd.f32 0.0, %v3438
        %v3440 = vpop.f32.mrb[0].mxu0
        %3441 = vmatprep.mubr.f32.mxu0 0.0
        %3442 = vmatmul.mubr.f32.gmra.mrb[0].mxu0 %v3370
        %v3443 = vpop.f32.mrb[0].mxu0
        %v3444 = vadd.f32 0.0, %v3443
        %v3445 = vpop.f32.mrb[0].mxu0
        %3446 = vdwg.mxu0
        %v3447 = vadd.f32 %v3269, %v3439
        %v3448 = vadd.f32 %v3274, %v3444
        %s3449 = scalar_lea.vmem [#allocation5], 48
        %v3450 = vld [vmem:[%s3449] sm:$0xff]
        %v3451 = vld [vmem:[%s3449 + $0x8] sm:$0xff]
        %v3453 = vsel %vm2939, %v3450, 0
        %v3456 = vsel %vm2939, %v3451, 0
        %3458 = vmatprep.subr.mxu0 0.0
        %3459 = vmatpush1.msra.mxu0 %v2929
        %3460 = vmatprep.subr.mxu0 0.0
        %3461 = vmatpush1.msra.mxu0 %v2930
        %3462 = vmatprep.subr.mxu0 0.0
        %3463 = vmatpush1.msra.mxu0 %v2931
        %3464 = vmatprep.subr.mxu0 0.0
        %3465 = vmatpush1.msra.mxu0 %v2932
        %3466 = vmatprep.subr.mxu0 0.0
        %3467 = vmatpush1.msra.mxu0 %v2933
        %3468 = vmatprep.subr.mxu0 0.0
        %3469 = vmatpush1.msra.mxu0 %v2934
        %3470 = vmatprep.subr.mxu0 0.0
        %3471 = vmatpush1.msra.mxu0 %v2935
        %3472 = vmatprep.subr.mxu0 0.0
        %3473 = vmatpush1.msra.mxu0 %v2936
        %3474 = vmatprep.subr.mxu0 0.0
        %3475 = vmatpush1.msra.mxu0 0.0
        %3476 = vmatprep.subr.mxu0 0.0
        %3477 = vmatpush1.msra.mxu0 0.0
        %3478 = vmatprep.subr.mxu0 0.0
        %3479 = vmatpush1.msra.mxu0 0.0
        %3480 = vmatprep.subr.mxu0 0.0
        %3481 = vmatpush1.msra.mxu0 0.0
        %3482 = vmatprep.subr.mxu0 0.0
        %3483 = vmatpush1.msra.mxu0 0.0
        %3484 = vmatprep.subr.mxu0 0.0
        %3485 = vmatpush1.msra.mxu0 0.0
        %3486 = vmatprep.subr.mxu0 0.0
        %3487 = vmatpush1.msra.mxu0 0.0
        %3488 = vmatprep.subr.mxu0 0.0
        %3489 = vmatpush1.msra.mxu0 0.0
        %3490 = vmatprep.subr.mxu0 0.0
        %3491 = vmatpush1.msra.mxu0 0.0
        %3492 = vmatprep.subr.mxu0 0.0
        %3493 = vmatpush1.msra.mxu0 0.0
        %3494 = vmatprep.subr.mxu0 0.0
        %3495 = vmatpush1.msra.mxu0 0.0
        %3496 = vmatprep.subr.mxu0 0.0
        %3497 = vmatpush1.msra.mxu0 0.0
        %3498 = vmatprep.subr.mxu0 0.0
        %3499 = vmatpush1.msra.mxu0 0.0
        %3500 = vmatprep.subr.mxu0 0.0
        %3501 = vmatpush1.msra.mxu0 0.0
        %3502 = vmatprep.subr.mxu0 0.0
        %3503 = vmatpush1.msra.mxu0 0.0
        %3504 = vmatprep.subr.mxu0 0.0
        %3505 = vmatpush1.msra.mxu0 0.0
        %3506 = vmatprep.subr.mxu0 0.0
        %3507 = vmatpush1.msra.mxu0 0.0
        %3508 = vmatprep.subr.mxu0 0.0
        %3509 = vmatpush1.msra.mxu0 0.0
        %3510 = vmatprep.subr.mxu0 0.0
        %3511 = vmatpush1.msra.mxu0 0.0
        %3512 = vmatprep.subr.mxu0 0.0
        %3513 = vmatpush1.msra.mxu0 0.0
        %3514 = vmatprep.subr.mxu0 0.0
        %3515 = vmatpush1.msra.mxu0 0.0
        %3516 = vmatprep.subr.mxu0 0.0
        %3517 = vmatpush1.msra.mxu0 0.0
        %3518 = vmatprep.subr.mxu0 0.0
        %3519 = vmatpush1.msra.mxu0 0.0
        %3520 = vmatprep.subr.mxu0 0.0
        %3521 = vmatpush1.msra.mxu0 0.0
        %3522 = vmatprep.mubr.f32.mxu0 0.0
        %3523 = vmatmul.mubr.f32.gmra.mrb[0].mxu0 %v3453
        %v3524 = vpop.f32.mrb[0].mxu0
        %v3525 = vadd.f32 0.0, %v3524
        %v3526 = vpop.f32.mrb[0].mxu0
        %3527 = vmatprep.mubr.f32.mxu0 0.0
        %3528 = vmatmul.mubr.f32.gmra.mrb[0].mxu0 %v3456
        %v3529 = vpop.f32.mrb[0].mxu0
        %v3530 = vadd.f32 0.0, %v3529
        %v3531 = vpop.f32.mrb[0].mxu0
        %3532 = vdwg.mxu0
        %s3533 = scalar_lea.vmem %s5, 96
        %v3534 = vld [vmem:[%s3533] sm:$0xff]
        %v3535 = vld [vmem:[%s3533 + $0x8] sm:$0xff]
        %v3536 = vld [vmem:[%s3533 + $0x10] sm:$0xff]
        %v3537 = vld [vmem:[%s3533 + $0x18] sm:$0xff]
        %v3539 = vsel %vm3114, %v3525, 0
        %v3542 = vsel %vm3114, %v3530, 0
        %3544 = vmatprep.subr.mxu0 0.0
        %3545 = vmatpush1.msra.mxu0 %v3534
        %3546 = vmatprep.subr.mxu0 0.0
        %3547 = vmatpush1.msra.mxu0 %v3535
        %3548 = vmatprep.subr.mxu0 0.0
        %3549 = vmatpush1.msra.mxu0 %v3536
        %3550 = vmatprep.subr.mxu0 0.0
        %3551 = vmatpush1.msra.mxu0 %v3537
        %3552 = vmatprep.subr.mxu0 0.0
        %3553 = vmatpush1.msra.mxu0 0.0
        %3554 = vmatprep.subr.mxu0 0.0
        %3555 = vmatpush1.msra.mxu0 0.0
        %3556 = vmatprep.subr.mxu0 0.0
        %3557 = vmatpush1.msra.mxu0 0.0
        %3558 = vmatprep.subr.mxu0 0.0
        %3559 = vmatpush1.msra.mxu0 0.0
        %3560 = vmatprep.subr.mxu0 0.0
        %3561 = vmatpush1.msra.mxu0 0.0
        %3562 = vmatprep.subr.mxu0 0.0
        %3563 = vmatpush1.msra.mxu0 0.0
        %3564 = vmatprep.subr.mxu0 0.0
        %3565 = vmatpush1.msra.mxu0 0.0
        %3566 = vmatprep.subr.mxu0 0.0
        %3567 = vmatpush1.msra.mxu0 0.0
        %3568 = vmatprep.subr.mxu0 0.0
        %3569 = vmatpush1.msra.mxu0 0.0
        %3570 = vmatprep.subr.mxu0 0.0
        %3571 = vmatpush1.msra.mxu0 0.0
        %3572 = vmatprep.subr.mxu0 0.0
        %3573 = vmatpush1.msra.mxu0 0.0
        %3574 = vmatprep.subr.mxu0 0.0
        %3575 = vmatpush1.msra.mxu0 0.0
        %3576 = vmatprep.subr.mxu0 0.0
        %3577 = vmatpush1.msra.mxu0 0.0
        %3578 = vmatprep.subr.mxu0 0.0
        %3579 = vmatpush1.msra.mxu0 0.0
        %3580 = vmatprep.subr.mxu0 0.0
        %3581 = vmatpush1.msra.mxu0 0.0
        %3582 = vmatprep.subr.mxu0 0.0
        %3583 = vmatpush1.msra.mxu0 0.0
        %3584 = vmatprep.subr.mxu0 0.0
        %3585 = vmatpush1.msra.mxu0 0.0
        %3586 = vmatprep.subr.mxu0 0.0
        %3587 = vmatpush1.msra.mxu0 0.0
        %3588 = vmatprep.subr.mxu0 0.0
        %3589 = vmatpush1.msra.mxu0 0.0
        %3590 = vmatprep.subr.mxu0 0.0
        %3591 = vmatpush1.msra.mxu0 0.0
        %3592 = vmatprep.subr.mxu0 0.0
        %3593 = vmatpush1.msra.mxu0 0.0
        %3594 = vmatprep.subr.mxu0 0.0
        %3595 = vmatpush1.msra.mxu0 0.0
        %3596 = vmatprep.subr.mxu0 0.0
        %3597 = vmatpush1.msra.mxu0 0.0
        %3598 = vmatprep.subr.mxu0 0.0
        %3599 = vmatpush1.msra.mxu0 0.0
        %3600 = vmatprep.subr.mxu0 0.0
        %3601 = vmatpush1.msra.mxu0 0.0
        %3602 = vmatprep.subr.mxu0 0.0
        %3603 = vmatpush1.msra.mxu0 0.0
        %3604 = vmatprep.subr.mxu0 0.0
        %3605 = vmatpush1.msra.mxu0 0.0
        %3606 = vmatprep.subr.mxu0 0.0
        %3607 = vmatpush1.msra.mxu0 0.0
        %3608 = vmatprep.mubr.f32.mxu0 0.0
        %3609 = vmatmul.mubr.f32.gmra.mrb[0].mxu0 %v3539
        %v3610 = vpop.f32.mrb[0].mxu0
        %v3611 = vadd.f32 0.0, %v3610
        %v3612 = vpop.f32.mrb[0].mxu0
        %3613 = vmatprep.mubr.f32.mxu0 0.0
        %3614 = vmatmul.mubr.f32.gmra.mrb[0].mxu0 %v3542
        %v3615 = vpop.f32.mrb[0].mxu0
        %v3616 = vadd.f32 0.0, %v3615
        %v3617 = vpop.f32.mrb[0].mxu0
        %3618 = vdwg.mxu0
        %v3619 = vadd.f32 %v3447, %v3611
        %v3620 = vadd.f32 %v3448, %v3616
        %s3621 = scalar_lea.vmem [#allocation5], 64
        %v3622 = vld [vmem:[%s3621] sm:$0xff]
        %v3623 = vld [vmem:[%s3621 + $0x8] sm:$0xff]
        %v3625 = vsel %vm2939, %v3622, 0
        %v3628 = vsel %vm2939, %v3623, 0
        %3630 = vmatprep.subr.mxu0 0.0
        %3631 = vmatpush1.msra.mxu0 %v2929
        %3632 = vmatprep.subr.mxu0 0.0
        %3633 = vmatpush1.msra.mxu0 %v2930
        %3634 = vmatprep.subr.mxu0 0.0
        %3635 = vmatpush1.msra.mxu0 %v2931
        %3636 = vmatprep.subr.mxu0 0.0
        %3637 = vmatpush1.msra.mxu0 %v2932
        %3638 = vmatprep.subr.mxu0 0.0
        %3639 = vmatpush1.msra.mxu0 %v2933
        %3640 = vmatprep.subr.mxu0 0.0
        %3641 = vmatpush1.msra.mxu0 %v2934
        %3642 = vmatprep.subr.mxu0 0.0
        %3643 = vmatpush1.msra.mxu0 %v2935
        %3644 = vmatprep.subr.mxu0 0.0
        %3645 = vmatpush1.msra.mxu0 %v2936
        %3646 = vmatprep.subr.mxu0 0.0
        %3647 = vmatpush1.msra.mxu0 0.0
        %3648 = vmatprep.subr.mxu0 0.0
        %3649 = vmatpush1.msra.mxu0 0.0
        %3650 = vmatprep.subr.mxu0 0.0
        %3651 = vmatpush1.msra.mxu0 0.0
        %3652 = vmatprep.subr.mxu0 0.0
        %3653 = vmatpush1.msra.mxu0 0.0
        %3654 = vmatprep.subr.mxu0 0.0
        %3655 = vmatpush1.msra.mxu0 0.0
        %3656 = vmatprep.subr.mxu0 0.0
        %3657 = vmatpush1.msra.mxu0 0.0
        %3658 = vmatprep.subr.mxu0 0.0
        %3659 = vmatpush1.msra.mxu0 0.0
        %3660 = vmatprep.subr.mxu0 0.0
        %3661 = vmatpush1.msra.mxu0 0.0
        %3662 = vmatprep.subr.mxu0 0.0
        %3663 = vmatpush1.msra.mxu0 0.0
        %3664 = vmatprep.subr.mxu0 0.0
        %3665 = vmatpush1.msra.mxu0 0.0
        %3666 = vmatprep.subr.mxu0 0.0
        %3667 = vmatpush1.msra.mxu0 0.0
        %3668 = vmatprep.subr.mxu0 0.0
        %3669 = vmatpush1.msra.mxu0 0.0
        %3670 = vmatprep.subr.mxu0 0.0
        %3671 = vmatpush1.msra.mxu0 0.0
        %3672 = vmatprep.subr.mxu0 0.0
        %3673 = vmatpush1.msra.mxu0 0.0
        %3674 = vmatprep.subr.mxu0 0.0
        %3675 = vmatpush1.msra.mxu0 0.0
        %3676 = vmatprep.subr.mxu0 0.0
        %3677 = vmatpush1.msra.mxu0 0.0
        %3678 = vmatprep.subr.mxu0 0.0
        %3679 = vmatpush1.msra.mxu0 0.0
        %3680 = vmatprep.subr.mxu0 0.0
        %3681 = vmatpush1.msra.mxu0 0.0
        %3682 = vmatprep.subr.mxu0 0.0
        %3683 = vmatpush1.msra.mxu0 0.0
        %3684 = vmatprep.subr.mxu0 0.0
        %3685 = vmatpush1.msra.mxu0 0.0
        %3686 = vmatprep.subr.mxu0 0.0
        %3687 = vmatpush1.msra.mxu0 0.0
        %3688 = vmatprep.subr.mxu0 0.0
        %3689 = vmatpush1.msra.mxu0 0.0
        %3690 = vmatprep.subr.mxu0 0.0
        %3691 = vmatpush1.msra.mxu0 0.0
        %3692 = vmatprep.subr.mxu0 0.0
        %3693 = vmatpush1.msra.mxu0 0.0
        %3694 = vmatprep.mubr.f32.mxu0 0.0
        %3695 = vmatmul.mubr.f32.gmra.mrb[0].mxu0 %v3625
        %v3696 = vpop.f32.mrb[0].mxu0
        %v3697 = vadd.f32 0.0, %v3696
        %v3698 = vpop.f32.mrb[0].mxu0
        %3699 = vmatprep.mubr.f32.mxu0 0.0
        %3700 = vmatmul.mubr.f32.gmra.mrb[0].mxu0 %v3628
        %v3701 = vpop.f32.mrb[0].mxu0
        %v3702 = vadd.f32 0.0, %v3701
        %v3703 = vpop.f32.mrb[0].mxu0
        %3704 = vdwg.mxu0
        %s3705 = scalar_lea.vmem %s5, 128
        %v3706 = vld [vmem:[%s3705] sm:$0xff]
        %v3707 = vld [vmem:[%s3705 + $0x8] sm:$0xff]
        %v3708 = vld [vmem:[%s3705 + $0x10] sm:$0xff]
        %v3709 = vld [vmem:[%s3705 + $0x18] sm:$0xff]
        %v3711 = vsel %vm3114, %v3697, 0
        %v3714 = vsel %vm3114, %v3702, 0
        %3716 = vmatprep.subr.mxu0 0.0
        %3717 = vmatpush1.msra.mxu0 %v3706
        %3718 = vmatprep.subr.mxu0 0.0
        %3719 = vmatpush1.msra.mxu0 %v3707
        %3720 = vmatprep.subr.mxu0 0.0
        %3721 = vmatpush1.msra.mxu0 %v3708
        %3722 = vmatprep.subr.mxu0 0.0
        %3723 = vmatpush1.msra.mxu0 %v3709
        %3724 = vmatprep.subr.mxu0 0.0
        %3725 = vmatpush1.msra.mxu0 0.0
        %3726 = vmatprep.subr.mxu0 0.0
        %3727 = vmatpush1.msra.mxu0 0.0
        %3728 = vmatprep.subr.mxu0 0.0
        %3729 = vmatpush1.msra.mxu0 0.0
        %3730 = vmatprep.subr.mxu0 0.0
        %3731 = vmatpush1.msra.mxu0 0.0
        %3732 = vmatprep.subr.mxu0 0.0
        %3733 = vmatpush1.msra.mxu0 0.0
        %3734 = vmatprep.subr.mxu0 0.0
        %3735 = vmatpush1.msra.mxu0 0.0
        %3736 = vmatprep.subr.mxu0 0.0
        %3737 = vmatpush1.msra.mxu0 0.0
        %3738 = vmatprep.subr.mxu0 0.0
        %3739 = vmatpush1.msra.mxu0 0.0
        %3740 = vmatprep.subr.mxu0 0.0
        %3741 = vmatpush1.msra.mxu0 0.0
        %3742 = vmatprep.subr.mxu0 0.0
        %3743 = vmatpush1.msra.mxu0 0.0
        %3744 = vmatprep.subr.mxu0 0.0
        %3745 = vmatpush1.msra.mxu0 0.0
        %3746 = vmatprep.subr.mxu0 0.0
        %3747 = vmatpush1.msra.mxu0 0.0
        %3748 = vmatprep.subr.mxu0 0.0
        %3749 = vmatpush1.msra.mxu0 0.0
        %3750 = vmatprep.subr.mxu0 0.0
        %3751 = vmatpush1.msra.mxu0 0.0
        %3752 = vmatprep.subr.mxu0 0.0
        %3753 = vmatpush1.msra.mxu0 0.0
        %3754 = vmatprep.subr.mxu0 0.0
        %3755 = vmatpush1.msra.mxu0 0.0
        %3756 = vmatprep.subr.mxu0 0.0
        %3757 = vmatpush1.msra.mxu0 0.0
        %3758 = vmatprep.subr.mxu0 0.0
        %3759 = vmatpush1.msra.mxu0 0.0
        %3760 = vmatprep.subr.mxu0 0.0
        %3761 = vmatpush1.msra.mxu0 0.0
        %3762 = vmatprep.subr.mxu0 0.0
        %3763 = vmatpush1.msra.mxu0 0.0
        %3764 = vmatprep.subr.mxu0 0.0
        %3765 = vmatpush1.msra.mxu0 0.0
        %3766 = vmatprep.subr.mxu0 0.0
        %3767 = vmatpush1.msra.mxu0 0.0
        %3768 = vmatprep.subr.mxu0 0.0
        %3769 = vmatpush1.msra.mxu0 0.0
        %3770 = vmatprep.subr.mxu0 0.0
        %3771 = vmatpush1.msra.mxu0 0.0
        %3772 = vmatprep.subr.mxu0 0.0
        %3773 = vmatpush1.msra.mxu0 0.0
        %3774 = vmatprep.subr.mxu0 0.0
        %3775 = vmatpush1.msra.mxu0 0.0
        %3776 = vmatprep.subr.mxu0 0.0
        %3777 = vmatpush1.msra.mxu0 0.0
        %3778 = vmatprep.subr.mxu0 0.0
        %3779 = vmatpush1.msra.mxu0 0.0
        %3780 = vmatprep.mubr.f32.mxu0 0.0
        %3781 = vmatmul.mubr.f32.gmra.mrb[0].mxu0 %v3711
        %v3782 = vpop.f32.mrb[0].mxu0
        %v3783 = vadd.f32 0.0, %v3782
        %v3784 = vpop.f32.mrb[0].mxu0
        %3785 = vmatprep.mubr.f32.mxu0 0.0
        %3786 = vmatmul.mubr.f32.gmra.mrb[0].mxu0 %v3714
        %v3787 = vpop.f32.mrb[0].mxu0
        %v3788 = vadd.f32 0.0, %v3787
        %v3789 = vpop.f32.mrb[0].mxu0
        %3790 = vdwg.mxu0
        %v3791 = vadd.f32 %v3619, %v3783
        %v3792 = vadd.f32 %v3620, %v3788
        %s3793 = scalar_lea.vmem [#allocation5], 80
        %v3794 = vld [vmem:[%s3793] sm:$0xff]
        %v3795 = vld [vmem:[%s3793 + $0x8] sm:$0xff]
        %v3797 = vsel %vm2939, %v3794, 0
        %v3800 = vsel %vm2939, %v3795, 0
        %3802 = vmatprep.subr.mxu0 0.0
        %3803 = vmatpush1.msra.mxu0 %v2929
        %3804 = vmatprep.subr.mxu0 0.0
        %3805 = vmatpush1.msra.mxu0 %v2930
        %3806 = vmatprep.subr.mxu0 0.0
        %3807 = vmatpush1.msra.mxu0 %v2931
        %3808 = vmatprep.subr.mxu0 0.0
        %3809 = vmatpush1.msra.mxu0 %v2932
        %3810 = vmatprep.subr.mxu0 0.0
        %3811 = vmatpush1.msra.mxu0 %v2933
        %3812 = vmatprep.subr.mxu0 0.0
        %3813 = vmatpush1.msra.mxu0 %v2934
        %3814 = vmatprep.subr.mxu0 0.0
        %3815 = vmatpush1.msra.mxu0 %v2935
        %3816 = vmatprep.subr.mxu0 0.0
        %3817 = vmatpush1.msra.mxu0 %v2936
        %3818 = vmatprep.subr.mxu0 0.0
        %3819 = vmatpush1.msra.mxu0 0.0
        %3820 = vmatprep.subr.mxu0 0.0
        %3821 = vmatpush1.msra.mxu0 0.0
        %3822 = vmatprep.subr.mxu0 0.0
        %3823 = vmatpush1.msra.mxu0 0.0
        %3824 = vmatprep.subr.mxu0 0.0
        %3825 = vmatpush1.msra.mxu0 0.0
        %3826 = vmatprep.subr.mxu0 0.0
        %3827 = vmatpush1.msra.mxu0 0.0
        %3828 = vmatprep.subr.mxu0 0.0
        %3829 = vmatpush1.msra.mxu0 0.0
        %3830 = vmatprep.subr.mxu0 0.0
        %3831 = vmatpush1.msra.mxu0 0.0
        %3832 = vmatprep.subr.mxu0 0.0
        %3833 = vmatpush1.msra.mxu0 0.0
        %3834 = vmatprep.subr.mxu0 0.0
        %3835 = vmatpush1.msra.mxu0 0.0
        %3836 = vmatprep.subr.mxu0 0.0
        %3837 = vmatpush1.msra.mxu0 0.0
        %3838 = vmatprep.subr.mxu0 0.0
        %3839 = vmatpush1.msra.mxu0 0.0
        %3840 = vmatprep.subr.mxu0 0.0
        %3841 = vmatpush1.msra.mxu0 0.0
        %3842 = vmatprep.subr.mxu0 0.0
        %3843 = vmatpush1.msra.mxu0 0.0
        %3844 = vmatprep.subr.mxu0 0.0
        %3845 = vmatpush1.msra.mxu0 0.0
        %3846 = vmatprep.subr.mxu0 0.0
        %3847 = vmatpush1.msra.mxu0 0.0
        %3848 = vmatprep.subr.mxu0 0.0
        %3849 = vmatpush1.msra.mxu0 0.0
        %3850 = vmatprep.subr.mxu0 0.0
        %3851 = vmatpush1.msra.mxu0 0.0
        %3852 = vmatprep.subr.mxu0 0.0
        %3853 = vmatpush1.msra.mxu0 0.0
        %3854 = vmatprep.subr.mxu0 0.0
        %3855 = vmatpush1.msra.mxu0 0.0
        %3856 = vmatprep.subr.mxu0 0.0
        %3857 = vmatpush1.msra.mxu0 0.0
        %3858 = vmatprep.subr.mxu0 0.0
        %3859 = vmatpush1.msra.mxu0 0.0
        %3860 = vmatprep.subr.mxu0 0.0
        %3861 = vmatpush1.msra.mxu0 0.0
        %3862 = vmatprep.subr.mxu0 0.0
        %3863 = vmatpush1.msra.mxu0 0.0
        %3864 = vmatprep.subr.mxu0 0.0
        %3865 = vmatpush1.msra.mxu0 0.0
        %3866 = vmatprep.mubr.f32.mxu0 0.0
        %3867 = vmatmul.mubr.f32.gmra.mrb[0].mxu0 %v3797
        %v3868 = vpop.f32.mrb[0].mxu0
        %v3869 = vadd.f32 0.0, %v3868
        %v3870 = vpop.f32.mrb[0].mxu0
        %3871 = vmatprep.mubr.f32.mxu0 0.0
        %3872 = vmatmul.mubr.f32.gmra.mrb[0].mxu0 %v3800
        %v3873 = vpop.f32.mrb[0].mxu0
        %v3874 = vadd.f32 0.0, %v3873
        %v3875 = vpop.f32.mrb[0].mxu0
        %3876 = vdwg.mxu0
        %s3877 = scalar_lea.vmem %s5, 160
        %v3878 = vld [vmem:[%s3877] sm:$0xff]
        %v3879 = vld [vmem:[%s3877 + $0x8] sm:$0xff]
        %v3880 = vld [vmem:[%s3877 + $0x10] sm:$0xff]
        %v3881 = vld [vmem:[%s3877 + $0x18] sm:$0xff]
        %v3883 = vsel %vm3114, %v3869, 0
        %v3886 = vsel %vm3114, %v3874, 0
        %3888 = vmatprep.subr.mxu0 0.0
        %3889 = vmatpush1.msra.mxu0 %v3878
        %3890 = vmatprep.subr.mxu0 0.0
        %3891 = vmatpush1.msra.mxu0 %v3879
        %3892 = vmatprep.subr.mxu0 0.0
        %3893 = vmatpush1.msra.mxu0 %v3880
        %3894 = vmatprep.subr.mxu0 0.0
        %3895 = vmatpush1.msra.mxu0 %v3881
        %3896 = vmatprep.subr.mxu0 0.0
        %3897 = vmatpush1.msra.mxu0 0.0
        %3898 = vmatprep.subr.mxu0 0.0
        %3899 = vmatpush1.msra.mxu0 0.0
        %3900 = vmatprep.subr.mxu0 0.0
        %3901 = vmatpush1.msra.mxu0 0.0
        %3902 = vmatprep.subr.mxu0 0.0
        %3903 = vmatpush1.msra.mxu0 0.0
        %3904 = vmatprep.subr.mxu0 0.0
        %3905 = vmatpush1.msra.mxu0 0.0
        %3906 = vmatprep.subr.mxu0 0.0
        %3907 = vmatpush1.msra.mxu0 0.0
        %3908 = vmatprep.subr.mxu0 0.0
        %3909 = vmatpush1.msra.mxu0 0.0
        %3910 = vmatprep.subr.mxu0 0.0
        %3911 = vmatpush1.msra.mxu0 0.0
        %3912 = vmatprep.subr.mxu0 0.0
        %3913 = vmatpush1.msra.mxu0 0.0
        %3914 = vmatprep.subr.mxu0 0.0
        %3915 = vmatpush1.msra.mxu0 0.0
        %3916 = vmatprep.subr.mxu0 0.0
        %3917 = vmatpush1.msra.mxu0 0.0
        %3918 = vmatprep.subr.mxu0 0.0
        %3919 = vmatpush1.msra.mxu0 0.0
        %3920 = vmatprep.subr.mxu0 0.0
        %3921 = vmatpush1.msra.mxu0 0.0
        %3922 = vmatprep.subr.mxu0 0.0
        %3923 = vmatpush1.msra.mxu0 0.0
        %3924 = vmatprep.subr.mxu0 0.0
        %3925 = vmatpush1.msra.mxu0 0.0
        %3926 = vmatprep.subr.mxu0 0.0
        %3927 = vmatpush1.msra.mxu0 0.0
        %3928 = vmatprep.subr.mxu0 0.0
        %3929 = vmatpush1.msra.mxu0 0.0
        %3930 = vmatprep.subr.mxu0 0.0
        %3931 = vmatpush1.msra.mxu0 0.0
        %3932 = vmatprep.subr.mxu0 0.0
        %3933 = vmatpush1.msra.mxu0 0.0
        %3934 = vmatprep.subr.mxu0 0.0
        %3935 = vmatpush1.msra.mxu0 0.0
        %3936 = vmatprep.subr.mxu0 0.0
        %3937 = vmatpush1.msra.mxu0 0.0
        %3938 = vmatprep.subr.mxu0 0.0
        %3939 = vmatpush1.msra.mxu0 0.0
        %3940 = vmatprep.subr.mxu0 0.0
        %3941 = vmatpush1.msra.mxu0 0.0
        %3942 = vmatprep.subr.mxu0 0.0
        %3943 = vmatpush1.msra.mxu0 0.0
        %3944 = vmatprep.subr.mxu0 0.0
        %3945 = vmatpush1.msra.mxu0 0.0
        %3946 = vmatprep.subr.mxu0 0.0
        %3947 = vmatpush1.msra.mxu0 0.0
        %3948 = vmatprep.subr.mxu0 0.0
        %3949 = vmatpush1.msra.mxu0 0.0
        %3950 = vmatprep.subr.mxu0 0.0
        %3951 = vmatpush1.msra.mxu0 0.0
        %3952 = vmatprep.mubr.f32.mxu0 0.0
        %3953 = vmatmul.mubr.f32.gmra.mrb[0].mxu0 %v3883
        %v3954 = vpop.f32.mrb[0].mxu0
        %v3955 = vadd.f32 0.0, %v3954
        %v3956 = vpop.f32.mrb[0].mxu0
        %3957 = vmatprep.mubr.f32.mxu0 0.0
        %3958 = vmatmul.mubr.f32.gmra.mrb[0].mxu0 %v3886
        %v3959 = vpop.f32.mrb[0].mxu0
        %v3960 = vadd.f32 0.0, %v3959
        %v3961 = vpop.f32.mrb[0].mxu0
        %3962 = vdwg.mxu0
        %v3963 = vadd.f32 %v3791, %v3955
        %v3964 = vadd.f32 %v3792, %v3960
        %s3965 = scalar_lea.vmem [#allocation5], 96
        %v3966 = vld [vmem:[%s3965] sm:$0xff]
        %v3967 = vld [vmem:[%s3965 + $0x8] sm:$0xff]
        %v3969 = vsel %vm2939, %v3966, 0
        %v3972 = vsel %vm2939, %v3967, 0
        %3974 = vmatprep.subr.mxu0 0.0
        %3975 = vmatpush1.msra.mxu0 %v2929
        %3976 = vmatprep.subr.mxu0 0.0
        %3977 = vmatpush1.msra.mxu0 %v2930
        %3978 = vmatprep.subr.mxu0 0.0
        %3979 = vmatpush1.msra.mxu0 %v2931
        %3980 = vmatprep.subr.mxu0 0.0
        %3981 = vmatpush1.msra.mxu0 %v2932
        %3982 = vmatprep.subr.mxu0 0.0
        %3983 = vmatpush1.msra.mxu0 %v2933
        %3984 = vmatprep.subr.mxu0 0.0
        %3985 = vmatpush1.msra.mxu0 %v2934
        %3986 = vmatprep.subr.mxu0 0.0
        %3987 = vmatpush1.msra.mxu0 %v2935
        %3988 = vmatprep.subr.mxu0 0.0
        %3989 = vmatpush1.msra.mxu0 %v2936
        %3990 = vmatprep.subr.mxu0 0.0
        %3991 = vmatpush1.msra.mxu0 0.0
        %3992 = vmatprep.subr.mxu0 0.0
        %3993 = vmatpush1.msra.mxu0 0.0
        %3994 = vmatprep.subr.mxu0 0.0
        %3995 = vmatpush1.msra.mxu0 0.0
        %3996 = vmatprep.subr.mxu0 0.0
        %3997 = vmatpush1.msra.mxu0 0.0
        %3998 = vmatprep.subr.mxu0 0.0
        %3999 = vmatpush1.msra.mxu0 0.0
        %4000 = vmatprep.subr.mxu0 0.0
        %4001 = vmatpush1.msra.mxu0 0.0
        %4002 = vmatprep.subr.mxu0 0.0
        %4003 = vmatpush1.msra.mxu0 0.0
        %4004 = vmatprep.subr.mxu0 0.0
        %4005 = vmatpush1.msra.mxu0 0.0
        %4006 = vmatprep.subr.mxu0 0.0
        %4007 = vmatpush1.msra.mxu0 0.0
        %4008 = vmatprep.subr.mxu0 0.0
        %4009 = vmatpush1.msra.mxu0 0.0
        %4010 = vmatprep.subr.mxu0 0.0
        %4011 = vmatpush1.msra.mxu0 0.0
        %4012 = vmatprep.subr.mxu0 0.0
        %4013 = vmatpush1.msra.mxu0 0.0
        %4014 = vmatprep.subr.mxu0 0.0
        %4015 = vmatpush1.msra.mxu0 0.0
        %4016 = vmatprep.subr.mxu0 0.0
        %4017 = vmatpush1.msra.mxu0 0.0
        %4018 = vmatprep.subr.mxu0 0.0
        %4019 = vmatpush1.msra.mxu0 0.0
        %4020 = vmatprep.subr.mxu0 0.0
        %4021 = vmatpush1.msra.mxu0 0.0
        %4022 = vmatprep.subr.mxu0 0.0
        %4023 = vmatpush1.msra.mxu0 0.0
        %4024 = vmatprep.subr.mxu0 0.0
        %4025 = vmatpush1.msra.mxu0 0.0
        %4026 = vmatprep.subr.mxu0 0.0
        %4027 = vmatpush1.msra.mxu0 0.0
        %4028 = vmatprep.subr.mxu0 0.0
        %4029 = vmatpush1.msra.mxu0 0.0
        %4030 = vmatprep.subr.mxu0 0.0
        %4031 = vmatpush1.msra.mxu0 0.0
        %4032 = vmatprep.subr.mxu0 0.0
        %4033 = vmatpush1.msra.mxu0 0.0
        %4034 = vmatprep.subr.mxu0 0.0
        %4035 = vmatpush1.msra.mxu0 0.0
        %4036 = vmatprep.subr.mxu0 0.0
        %4037 = vmatpush1.msra.mxu0 0.0
        %4038 = vmatprep.mubr.f32.mxu0 0.0
        %4039 = vmatmul.mubr.f32.gmra.mrb[0].mxu0 %v3969
        %v4040 = vpop.f32.mrb[0].mxu0
        %v4041 = vadd.f32 0.0, %v4040
        %v4042 = vpop.f32.mrb[0].mxu0
        %4043 = vmatprep.mubr.f32.mxu0 0.0
        %4044 = vmatmul.mubr.f32.gmra.mrb[0].mxu0 %v3972
        %v4045 = vpop.f32.mrb[0].mxu0
        %v4046 = vadd.f32 0.0, %v4045
        %v4047 = vpop.f32.mrb[0].mxu0
        %4048 = vdwg.mxu0
        %s4049 = scalar_lea.vmem %s5, 192
        %v4050 = vld [vmem:[%s4049] sm:$0xff]
        %v4051 = vld [vmem:[%s4049 + $0x8] sm:$0xff]
        %v4052 = vld [vmem:[%s4049 + $0x10] sm:$0xff]
        %v4053 = vld [vmem:[%s4049 + $0x18] sm:$0xff]
        %v4055 = vsel %vm3114, %v4041, 0
        %v4058 = vsel %vm3114, %v4046, 0
        %4060 = vmatprep.subr.mxu0 0.0
        %4061 = vmatpush1.msra.mxu0 %v4050
        %4062 = vmatprep.subr.mxu0 0.0
        %4063 = vmatpush1.msra.mxu0 %v4051
        %4064 = vmatprep.subr.mxu0 0.0
        %4065 = vmatpush1.msra.mxu0 %v4052
        %4066 = vmatprep.subr.mxu0 0.0
        %4067 = vmatpush1.msra.mxu0 %v4053
        %4068 = vmatprep.subr.mxu0 0.0
        %4069 = vmatpush1.msra.mxu0 0.0
        %4070 = vmatprep.subr.mxu0 0.0
        %4071 = vmatpush1.msra.mxu0 0.0
        %4072 = vmatprep.subr.mxu0 0.0
        %4073 = vmatpush1.msra.mxu0 0.0
        %4074 = vmatprep.subr.mxu0 0.0
        %4075 = vmatpush1.msra.mxu0 0.0
        %4076 = vmatprep.subr.mxu0 0.0
        %4077 = vmatpush1.msra.mxu0 0.0
        %4078 = vmatprep.subr.mxu0 0.0
        %4079 = vmatpush1.msra.mxu0 0.0
        %4080 = vmatprep.subr.mxu0 0.0
        %4081 = vmatpush1.msra.mxu0 0.0
        %4082 = vmatprep.subr.mxu0 0.0
        %4083 = vmatpush1.msra.mxu0 0.0
        %4084 = vmatprep.subr.mxu0 0.0
        %4085 = vmatpush1.msra.mxu0 0.0
        %4086 = vmatprep.subr.mxu0 0.0
        %4087 = vmatpush1.msra.mxu0 0.0
        %4088 = vmatprep.subr.mxu0 0.0
        %4089 = vmatpush1.msra.mxu0 0.0
        %4090 = vmatprep.subr.mxu0 0.0
        %4091 = vmatpush1.msra.mxu0 0.0
        %4092 = vmatprep.subr.mxu0 0.0
        %4093 = vmatpush1.msra.mxu0 0.0
        %4094 = vmatprep.subr.mxu0 0.0
        %4095 = vmatpush1.msra.mxu0 0.0
        %4096 = vmatprep.subr.mxu0 0.0
        %4097 = vmatpush1.msra.mxu0 0.0
        %4098 = vmatprep.subr.mxu0 0.0
        %4099 = vmatpush1.msra.mxu0 0.0
        %4100 = vmatprep.subr.mxu0 0.0
        %4101 = vmatpush1.msra.mxu0 0.0
        %4102 = vmatprep.subr.mxu0 0.0
        %4103 = vmatpush1.msra.mxu0 0.0
        %4104 = vmatprep.subr.mxu0 0.0
        %4105 = vmatpush1.msra.mxu0 0.0
        %4106 = vmatprep.subr.mxu0 0.0
        %4107 = vmatpush1.msra.mxu0 0.0
        %4108 = vmatprep.subr.mxu0 0.0
        %4109 = vmatpush1.msra.mxu0 0.0
        %4110 = vmatprep.subr.mxu0 0.0
        %4111 = vmatpush1.msra.mxu0 0.0
        %4112 = vmatprep.subr.mxu0 0.0
        %4113 = vmatpush1.msra.mxu0 0.0
        %4114 = vmatprep.subr.mxu0 0.0
        %4115 = vmatpush1.msra.mxu0 0.0
        %4116 = vmatprep.subr.mxu0 0.0
        %4117 = vmatpush1.msra.mxu0 0.0
        %4118 = vmatprep.subr.mxu0 0.0
        %4119 = vmatpush1.msra.mxu0 0.0
        %4120 = vmatprep.subr.mxu0 0.0
        %4121 = vmatpush1.msra.mxu0 0.0
        %4122 = vmatprep.subr.mxu0 0.0
        %4123 = vmatpush1.msra.mxu0 0.0
        %4124 = vmatprep.mubr.f32.mxu0 0.0
        %4125 = vmatmul.mubr.f32.gmra.mrb[0].mxu0 %v4055
        %v4126 = vpop.f32.mrb[0].mxu0
        %v4127 = vadd.f32 0.0, %v4126
        %v4128 = vpop.f32.mrb[0].mxu0
        %4129 = vmatprep.mubr.f32.mxu0 0.0
        %4130 = vmatmul.mubr.f32.gmra.mrb[0].mxu0 %v4058
        %v4131 = vpop.f32.mrb[0].mxu0
        %v4132 = vadd.f32 0.0, %v4131
        %v4133 = vpop.f32.mrb[0].mxu0
        %4134 = vdwg.mxu0
        %v4135 = vadd.f32 %v3963, %v4127
        %v4136 = vadd.f32 %v3964, %v4132
        %s4137 = scalar_lea.vmem [#allocation5], 112
        %v4138 = vld [vmem:[%s4137] sm:$0xff]
        %v4139 = vld [vmem:[%s4137 + $0x8] sm:$0xff]
        %v4141 = vsel %vm2939, %v4138, 0
        %v4144 = vsel %vm2939, %v4139, 0
        %4146 = vmatprep.subr.mxu0 0.0
        %4147 = vmatpush1.msra.mxu0 %v2929
        %4148 = vmatprep.subr.mxu0 0.0
        %4149 = vmatpush1.msra.mxu0 %v2930
        %4150 = vmatprep.subr.mxu0 0.0
        %4151 = vmatpush1.msra.mxu0 %v2931
        %4152 = vmatprep.subr.mxu0 0.0
        %4153 = vmatpush1.msra.mxu0 %v2932
        %4154 = vmatprep.subr.mxu0 0.0
        %4155 = vmatpush1.msra.mxu0 %v2933
        %4156 = vmatprep.subr.mxu0 0.0
        %4157 = vmatpush1.msra.mxu0 %v2934
        %4158 = vmatprep.subr.mxu0 0.0
        %4159 = vmatpush1.msra.mxu0 %v2935
        %4160 = vmatprep.subr.mxu0 0.0
        %4161 = vmatpush1.msra.mxu0 %v2936
        %4162 = vmatprep.subr.mxu0 0.0
        %4163 = vmatpush1.msra.mxu0 0.0
        %4164 = vmatprep.subr.mxu0 0.0
        %4165 = vmatpush1.msra.mxu0 0.0
        %4166 = vmatprep.subr.mxu0 0.0
        %4167 = vmatpush1.msra.mxu0 0.0
        %4168 = vmatprep.subr.mxu0 0.0
        %4169 = vmatpush1.msra.mxu0 0.0
        %4170 = vmatprep.subr.mxu0 0.0
        %4171 = vmatpush1.msra.mxu0 0.0
        %4172 = vmatprep.subr.mxu0 0.0
        %4173 = vmatpush1.msra.mxu0 0.0
        %4174 = vmatprep.subr.mxu0 0.0
        %4175 = vmatpush1.msra.mxu0 0.0
        %4176 = vmatprep.subr.mxu0 0.0
        %4177 = vmatpush1.msra.mxu0 0.0
        %4178 = vmatprep.subr.mxu0 0.0
        %4179 = vmatpush1.msra.mxu0 0.0
        %4180 = vmatprep.subr.mxu0 0.0
        %4181 = vmatpush1.msra.mxu0 0.0
        %4182 = vmatprep.subr.mxu0 0.0
        %4183 = vmatpush1.msra.mxu0 0.0
        %4184 = vmatprep.subr.mxu0 0.0
        %4185 = vmatpush1.msra.mxu0 0.0
        %4186 = vmatprep.subr.mxu0 0.0
        %4187 = vmatpush1.msra.mxu0 0.0
        %4188 = vmatprep.subr.mxu0 0.0
        %4189 = vmatpush1.msra.mxu0 0.0
        %4190 = vmatprep.subr.mxu0 0.0
        %4191 = vmatpush1.msra.mxu0 0.0
        %4192 = vmatprep.subr.mxu0 0.0
        %4193 = vmatpush1.msra.mxu0 0.0
        %4194 = vmatprep.subr.mxu0 0.0
        %4195 = vmatpush1.msra.mxu0 0.0
        %4196 = vmatprep.subr.mxu0 0.0
        %4197 = vmatpush1.msra.mxu0 0.0
        %4198 = vmatprep.subr.mxu0 0.0
        %4199 = vmatpush1.msra.mxu0 0.0
        %4200 = vmatprep.subr.mxu0 0.0
        %4201 = vmatpush1.msra.mxu0 0.0
        %4202 = vmatprep.subr.mxu0 0.0
        %4203 = vmatpush1.msra.mxu0 0.0
        %4204 = vmatprep.subr.mxu0 0.0
        %4205 = vmatpush1.msra.mxu0 0.0
        %4206 = vmatprep.subr.mxu0 0.0
        %4207 = vmatpush1.msra.mxu0 0.0
        %4208 = vmatprep.subr.mxu0 0.0
        %4209 = vmatpush1.msra.mxu0 0.0
        %4210 = vmatprep.mubr.f32.mxu0 0.0
        %4211 = vmatmul.mubr.f32.gmra.mrb[0].mxu0 %v4141
        %v4212 = vpop.f32.mrb[0].mxu0
        %v4213 = vadd.f32 0.0, %v4212
        %v4214 = vpop.f32.mrb[0].mxu0
        %4215 = vmatprep.mubr.f32.mxu0 0.0
        %4216 = vmatmul.mubr.f32.gmra.mrb[0].mxu0 %v4144
        %v4217 = vpop.f32.mrb[0].mxu0
        %v4218 = vadd.f32 0.0, %v4217
        %v4219 = vpop.f32.mrb[0].mxu0
        %4220 = vdwg.mxu0
        %s4221 = scalar_lea.vmem %s5, 224
        %v4222 = vld [vmem:[%s4221] sm:$0xff]
        %v4223 = vld [vmem:[%s4221 + $0x8] sm:$0xff]
        %v4224 = vld [vmem:[%s4221 + $0x10] sm:$0xff]
        %v4225 = vld [vmem:[%s4221 + $0x18] sm:$0xff]
        %v4227 = vsel %vm3114, %v4213, 0
        %v4230 = vsel %vm3114, %v4218, 0
        %4232 = vmatprep.subr.mxu0 0.0
        %4233 = vmatpush1.msra.mxu0 %v4222
        %4234 = vmatprep.subr.mxu0 0.0
        %4235 = vmatpush1.msra.mxu0 %v4223
        %4236 = vmatprep.subr.mxu0 0.0
        %4237 = vmatpush1.msra.mxu0 %v4224
        %4238 = vmatprep.subr.mxu0 0.0
        %4239 = vmatpush1.msra.mxu0 %v4225
        %4240 = vmatprep.subr.mxu0 0.0
        %4241 = vmatpush1.msra.mxu0 0.0
        %4242 = vmatprep.subr.mxu0 0.0
        %4243 = vmatpush1.msra.mxu0 0.0
        %4244 = vmatprep.subr.mxu0 0.0
        %4245 = vmatpush1.msra.mxu0 0.0
        %4246 = vmatprep.subr.mxu0 0.0
        %4247 = vmatpush1.msra.mxu0 0.0
        %4248 = vmatprep.subr.mxu0 0.0
        %4249 = vmatpush1.msra.mxu0 0.0
        %4250 = vmatprep.subr.mxu0 0.0
        %4251 = vmatpush1.msra.mxu0 0.0
        %4252 = vmatprep.subr.mxu0 0.0
        %4253 = vmatpush1.msra.mxu0 0.0
        %4254 = vmatprep.subr.mxu0 0.0
        %4255 = vmatpush1.msra.mxu0 0.0
        %4256 = vmatprep.subr.mxu0 0.0
        %4257 = vmatpush1.msra.mxu0 0.0
        %4258 = vmatprep.subr.mxu0 0.0
        %4259 = vmatpush1.msra.mxu0 0.0
        %4260 = vmatprep.subr.mxu0 0.0
        %4261 = vmatpush1.msra.mxu0 0.0
        %4262 = vmatprep.subr.mxu0 0.0
        %4263 = vmatpush1.msra.mxu0 0.0
        %4264 = vmatprep.subr.mxu0 0.0
        %4265 = vmatpush1.msra.mxu0 0.0
        %4266 = vmatprep.subr.mxu0 0.0
        %4267 = vmatpush1.msra.mxu0 0.0
        %4268 = vmatprep.subr.mxu0 0.0
        %4269 = vmatpush1.msra.mxu0 0.0
        %4270 = vmatprep.subr.mxu0 0.0
        %4271 = vmatpush1.msra.mxu0 0.0
        %4272 = vmatprep.subr.mxu0 0.0
        %4273 = vmatpush1.msra.mxu0 0.0
        %4274 = vmatprep.subr.mxu0 0.0
        %4275 = vmatpush1.msra.mxu0 0.0
        %4276 = vmatprep.subr.mxu0 0.0
        %4277 = vmatpush1.msra.mxu0 0.0
        %4278 = vmatprep.subr.mxu0 0.0
        %4279 = vmatpush1.msra.mxu0 0.0
        %4280 = vmatprep.subr.mxu0 0.0
        %4281 = vmatpush1.msra.mxu0 0.0
        %4282 = vmatprep.subr.mxu0 0.0
        %4283 = vmatpush1.msra.mxu0 0.0
        %4284 = vmatprep.subr.mxu0 0.0
        %4285 = vmatpush1.msra.mxu0 0.0
        %4286 = vmatprep.subr.mxu0 0.0
        %4287 = vmatpush1.msra.mxu0 0.0
        %4288 = vmatprep.subr.mxu0 0.0
        %4289 = vmatpush1.msra.mxu0 0.0
        %4290 = vmatprep.subr.mxu0 0.0
        %4291 = vmatpush1.msra.mxu0 0.0
        %4292 = vmatprep.subr.mxu0 0.0
        %4293 = vmatpush1.msra.mxu0 0.0
        %4294 = vmatprep.subr.mxu0 0.0
        %4295 = vmatpush1.msra.mxu0 0.0
        %4296 = vmatprep.mubr.f32.mxu0 0.0
        %4297 = vmatmul.mubr.f32.gmra.mrb[0].mxu0 %v4227
        %v4298 = vpop.f32.mrb[0].mxu0
        %v4299 = vadd.f32 0.0, %v4298
        %v4300 = vpop.f32.mrb[0].mxu0
        %4301 = vmatprep.mubr.f32.mxu0 0.0
        %4302 = vmatmul.mubr.f32.gmra.mrb[0].mxu0 %v4230
        %v4303 = vpop.f32.mrb[0].mxu0
        %v4304 = vadd.f32 0.0, %v4303
        %v4305 = vpop.f32.mrb[0].mxu0
        %4306 = vdwg.mxu0
        %v4307 = vadd.f32 %v4135, %v4299
        %v4308 = vadd.f32 %v4136, %v4304
        %s4309 = scalar_lea.vmem [#allocation5], 128
        %v4310 = vld [vmem:[%s4309] sm:$0xff]
        %v4311 = vld [vmem:[%s4309 + $0x8] sm:$0xff]
        %v4313 = vsel %vm2939, %v4310, 0
        %v4316 = vsel %vm2939, %v4311, 0
        %4318 = vmatprep.subr.mxu0 0.0
        %4319 = vmatpush1.msra.mxu0 %v2929
        %4320 = vmatprep.subr.mxu0 0.0
        %4321 = vmatpush1.msra.mxu0 %v2930
        %4322 = vmatprep.subr.mxu0 0.0
        %4323 = vmatpush1.msra.mxu0 %v2931
        %4324 = vmatprep.subr.mxu0 0.0
        %4325 = vmatpush1.msra.mxu0 %v2932
        %4326 = vmatprep.subr.mxu0 0.0
        %4327 = vmatpush1.msra.mxu0 %v2933
        %4328 = vmatprep.subr.mxu0 0.0
        %4329 = vmatpush1.msra.mxu0 %v2934
        %4330 = vmatprep.subr.mxu0 0.0
        %4331 = vmatpush1.msra.mxu0 %v2935
        %4332 = vmatprep.subr.mxu0 0.0
        %4333 = vmatpush1.msra.mxu0 %v2936
        %4334 = vmatprep.subr.mxu0 0.0
        %4335 = vmatpush1.msra.mxu0 0.0
        %4336 = vmatprep.subr.mxu0 0.0
        %4337 = vmatpush1.msra.mxu0 0.0
        %4338 = vmatprep.subr.mxu0 0.0
        %4339 = vmatpush1.msra.mxu0 0.0
        %4340 = vmatprep.subr.mxu0 0.0
        %4341 = vmatpush1.msra.mxu0 0.0
        %4342 = vmatprep.subr.mxu0 0.0
        %4343 = vmatpush1.msra.mxu0 0.0
        %4344 = vmatprep.subr.mxu0 0.0
        %4345 = vmatpush1.msra.mxu0 0.0
        %4346 = vmatprep.subr.mxu0 0.0
        %4347 = vmatpush1.msra.mxu0 0.0
        %4348 = vmatprep.subr.mxu0 0.0
        %4349 = vmatpush1.msra.mxu0 0.0
        %4350 = vmatprep.subr.mxu0 0.0
        %4351 = vmatpush1.msra.mxu0 0.0
        %4352 = vmatprep.subr.mxu0 0.0
        %4353 = vmatpush1.msra.mxu0 0.0
        %4354 = vmatprep.subr.mxu0 0.0
        %4355 = vmatpush1.msra.mxu0 0.0
        %4356 = vmatprep.subr.mxu0 0.0
        %4357 = vmatpush1.msra.mxu0 0.0
        %4358 = vmatprep.subr.mxu0 0.0
        %4359 = vmatpush1.msra.mxu0 0.0
        %4360 = vmatprep.subr.mxu0 0.0
        %4361 = vmatpush1.msra.mxu0 0.0
        %4362 = vmatprep.subr.mxu0 0.0
        %4363 = vmatpush1.msra.mxu0 0.0
        %4364 = vmatprep.subr.mxu0 0.0
        %4365 = vmatpush1.msra.mxu0 0.0
        %4366 = vmatprep.subr.mxu0 0.0
        %4367 = vmatpush1.msra.mxu0 0.0
        %4368 = vmatprep.subr.mxu0 0.0
        %4369 = vmatpush1.msra.mxu0 0.0
        %4370 = vmatprep.subr.mxu0 0.0
        %4371 = vmatpush1.msra.mxu0 0.0
        %4372 = vmatprep.subr.mxu0 0.0
        %4373 = vmatpush1.msra.mxu0 0.0
        %4374 = vmatprep.subr.mxu0 0.0
        %4375 = vmatpush1.msra.mxu0 0.0
        %4376 = vmatprep.subr.mxu0 0.0
        %4377 = vmatpush1.msra.mxu0 0.0
        %4378 = vmatprep.subr.mxu0 0.0
        %4379 = vmatpush1.msra.mxu0 0.0
        %4380 = vmatprep.subr.mxu0 0.0
        %4381 = vmatpush1.msra.mxu0 0.0
        %4382 = vmatprep.mubr.f32.mxu0 0.0
        %4383 = vmatmul.mubr.f32.gmra.mrb[0].mxu0 %v4313
        %v4384 = vpop.f32.mrb[0].mxu0
        %v4385 = vadd.f32 0.0, %v4384
        %v4386 = vpop.f32.mrb[0].mxu0
        %4387 = vmatprep.mubr.f32.mxu0 0.0
        %4388 = vmatmul.mubr.f32.gmra.mrb[0].mxu0 %v4316
        %v4389 = vpop.f32.mrb[0].mxu0
        %v4390 = vadd.f32 0.0, %v4389
        %v4391 = vpop.f32.mrb[0].mxu0
        %4392 = vdwg.mxu0
        %s4393 = scalar_lea.vmem %s5, 256
        %v4394 = vld [vmem:[%s4393] sm:$0xff]
        %v4395 = vld [vmem:[%s4393 + $0x8] sm:$0xff]
        %v4396 = vld [vmem:[%s4393 + $0x10] sm:$0xff]
        %v4397 = vld [vmem:[%s4393 + $0x18] sm:$0xff]
        %v4399 = vsel %vm3114, %v4385, 0
        %v4402 = vsel %vm3114, %v4390, 0
        %4404 = vmatprep.subr.mxu0 0.0
        %4405 = vmatpush1.msra.mxu0 %v4394
        %4406 = vmatprep.subr.mxu0 0.0
        %4407 = vmatpush1.msra.mxu0 %v4395
        %4408 = vmatprep.subr.mxu0 0.0
        %4409 = vmatpush1.msra.mxu0 %v4396
        %4410 = vmatprep.subr.mxu0 0.0
        %4411 = vmatpush1.msra.mxu0 %v4397
        %4412 = vmatprep.subr.mxu0 0.0
        %4413 = vmatpush1.msra.mxu0 0.0
        %4414 = vmatprep.subr.mxu0 0.0
        %4415 = vmatpush1.msra.mxu0 0.0
        %4416 = vmatprep.subr.mxu0 0.0
        %4417 = vmatpush1.msra.mxu0 0.0
        %4418 = vmatprep.subr.mxu0 0.0
        %4419 = vmatpush1.msra.mxu0 0.0
        %4420 = vmatprep.subr.mxu0 0.0
        %4421 = vmatpush1.msra.mxu0 0.0
        %4422 = vmatprep.subr.mxu0 0.0
        %4423 = vmatpush1.msra.mxu0 0.0
        %4424 = vmatprep.subr.mxu0 0.0
        %4425 = vmatpush1.msra.mxu0 0.0
        %4426 = vmatprep.subr.mxu0 0.0
        %4427 = vmatpush1.msra.mxu0 0.0
        %4428 = vmatprep.subr.mxu0 0.0
        %4429 = vmatpush1.msra.mxu0 0.0
        %4430 = vmatprep.subr.mxu0 0.0
        %4431 = vmatpush1.msra.mxu0 0.0
        %4432 = vmatprep.subr.mxu0 0.0
        %4433 = vmatpush1.msra.mxu0 0.0
        %4434 = vmatprep.subr.mxu0 0.0
        %4435 = vmatpush1.msra.mxu0 0.0
        %4436 = vmatprep.subr.mxu0 0.0
        %4437 = vmatpush1.msra.mxu0 0.0
        %4438 = vmatprep.subr.mxu0 0.0
        %4439 = vmatpush1.msra.mxu0 0.0
        %4440 = vmatprep.subr.mxu0 0.0
        %4441 = vmatpush1.msra.mxu0 0.0
        %4442 = vmatprep.subr.mxu0 0.0
        %4443 = vmatpush1.msra.mxu0 0.0
        %4444 = vmatprep.subr.mxu0 0.0
        %4445 = vmatpush1.msra.mxu0 0.0
        %4446 = vmatprep.subr.mxu0 0.0
        %4447 = vmatpush1.msra.mxu0 0.0
        %4448 = vmatprep.subr.mxu0 0.0
        %4449 = vmatpush1.msra.mxu0 0.0
        %4450 = vmatprep.subr.mxu0 0.0
        %4451 = vmatpush1.msra.mxu0 0.0
        %4452 = vmatprep.subr.mxu0 0.0
        %4453 = vmatpush1.msra.mxu0 0.0
        %4454 = vmatprep.subr.mxu0 0.0
        %4455 = vmatpush1.msra.mxu0 0.0
        %4456 = vmatprep.subr.mxu0 0.0
        %4457 = vmatpush1.msra.mxu0 0.0
        %4458 = vmatprep.subr.mxu0 0.0
        %4459 = vmatpush1.msra.mxu0 0.0
        %4460 = vmatprep.subr.mxu0 0.0
        %4461 = vmatpush1.msra.mxu0 0.0
        %4462 = vmatprep.subr.mxu0 0.0
        %4463 = vmatpush1.msra.mxu0 0.0
        %4464 = vmatprep.subr.mxu0 0.0
        %4465 = vmatpush1.msra.mxu0 0.0
        %4466 = vmatprep.subr.mxu0 0.0
        %4467 = vmatpush1.msra.mxu0 0.0
        %4468 = vmatprep.mubr.f32.mxu0 0.0
        %4469 = vmatmul.mubr.f32.gmra.mrb[0].mxu0 %v4399
        %v4470 = vpop.f32.mrb[0].mxu0
        %v4471 = vadd.f32 0.0, %v4470
        %v4472 = vpop.f32.mrb[0].mxu0
        %4473 = vmatprep.mubr.f32.mxu0 0.0
        %4474 = vmatmul.mubr.f32.gmra.mrb[0].mxu0 %v4402
        %v4475 = vpop.f32.mrb[0].mxu0
        %v4476 = vadd.f32 0.0, %v4475
        %v4477 = vpop.f32.mrb[0].mxu0
        %4478 = vdwg.mxu0
        %v4479 = vadd.f32 %v4307, %v4471
        %v4480 = vadd.f32 %v4308, %v4476
        %v4481 = vld [vmem:[%s6] sm:$0x1]
        %v4483 = vlaneseq
        %v4484 = vshrl.u32 %v4483, 7
        %v4485 = vsub.s32 0, %v4484
        %v4486 = vrot.slane %v4481, %v4485
        %v4488 = vadd.f32 %v4479, %v4486
        %v4489 = vadd.f32 %v4480, %v4486
        %vm4490 = vcmp.gt.f32.partialorder %v4488, 0.0
        %vm4491 = vcmp.gt.f32.partialorder %v4489, 0.0
        %v4492 = vmin.f32 %v4488, 0.0
        %v4493 = vmin.f32 %v4489, 0.0
        %v4494 = vmul.f32 %v4492, 1.442695
        %v4495 = vpow.pop %v4494
        %v4496 = vmul.f32 %v4493, 1.442695
        %v4497 = vpow.pop %v4496
        %v4498 = vsub.f32 %v4495, 1.0
        %v4499 = vsub.f32 %v4497, 1.0
        %v4500 = vsel %vm4490, %v4488, %v4498
        %v4501 = vsel %vm4491, %v4489, %v4499
        %v4502 = vld [vmem:[%s7] sm:$0xf]
        %vm4503 = vcmask 130048
        %v4505 = vsel %vm4503, %v4502, 0
        %4507 = vmatprep.subr.mxu0 0.0
        %4508 = vmatpush1.msra.mxu0 %v4500
        %4509 = vmatprep.subr.mxu0 0.0
        %4510 = vmatpush1.msra.mxu0 %v4501
        %4511 = vmatprep.subr.mxu0 0.0
        %4512 = vmatpush1.msra.mxu0 0.0
        %4513 = vmatprep.subr.mxu0 0.0
        %4514 = vmatpush1.msra.mxu0 0.0
        %4515 = vmatprep.subr.mxu0 0.0
        %4516 = vmatpush1.msra.mxu0 0.0
        %4517 = vmatprep.subr.mxu0 0.0
        %4518 = vmatpush1.msra.mxu0 0.0
        %4519 = vmatprep.subr.mxu0 0.0
        %4520 = vmatpush1.msra.mxu0 0.0
        %4521 = vmatprep.subr.mxu0 0.0
        %4522 = vmatpush1.msra.mxu0 0.0
        %4523 = vmatprep.subr.mxu0 0.0
        %4524 = vmatpush1.msra.mxu0 0.0
        %4525 = vmatprep.subr.mxu0 0.0
        %4526 = vmatpush1.msra.mxu0 0.0
        %4527 = vmatprep.subr.mxu0 0.0
        %4528 = vmatpush1.msra.mxu0 0.0
        %4529 = vmatprep.subr.mxu0 0.0
        %4530 = vmatpush1.msra.mxu0 0.0
        %4531 = vmatprep.subr.mxu0 0.0
        %4532 = vmatpush1.msra.mxu0 0.0
        %4533 = vmatprep.subr.mxu0 0.0
        %4534 = vmatpush1.msra.mxu0 0.0
        %4535 = vmatprep.subr.mxu0 0.0
        %4536 = vmatpush1.msra.mxu0 0.0
        %4537 = vmatprep.subr.mxu0 0.0
        %4538 = vmatpush1.msra.mxu0 0.0
        %4539 = vmatprep.subr.mxu0 0.0
        %4540 = vmatpush1.msra.mxu0 0.0
        %4541 = vmatprep.subr.mxu0 0.0
        %4542 = vmatpush1.msra.mxu0 0.0
        %4543 = vmatprep.subr.mxu0 0.0
        %4544 = vmatpush1.msra.mxu0 0.0
        %4545 = vmatprep.subr.mxu0 0.0
        %4546 = vmatpush1.msra.mxu0 0.0
        %4547 = vmatprep.subr.mxu0 0.0
        %4548 = vmatpush1.msra.mxu0 0.0
        %4549 = vmatprep.subr.mxu0 0.0
        %4550 = vmatpush1.msra.mxu0 0.0
        %4551 = vmatprep.subr.mxu0 0.0
        %4552 = vmatpush1.msra.mxu0 0.0
        %4553 = vmatprep.subr.mxu0 0.0
        %4554 = vmatpush1.msra.mxu0 0.0
        %4555 = vmatprep.subr.mxu0 0.0
        %4556 = vmatpush1.msra.mxu0 0.0
        %4557 = vmatprep.subr.mxu0 0.0
        %4558 = vmatpush1.msra.mxu0 0.0
        %4559 = vmatprep.subr.mxu0 0.0
        %4560 = vmatpush1.msra.mxu0 0.0
        %4561 = vmatprep.subr.mxu0 0.0
        %4562 = vmatpush1.msra.mxu0 0.0
        %4563 = vmatprep.subr.mxu0 0.0
        %4564 = vmatpush1.msra.mxu0 0.0
        %4565 = vmatprep.subr.mxu0 0.0
        %4566 = vmatpush1.msra.mxu0 0.0
        %4567 = vmatprep.subr.mxu0 0.0
        %4568 = vmatpush1.msra.mxu0 0.0
        %4569 = vmatprep.subr.mxu0 0.0
        %4570 = vmatpush1.msra.mxu0 0.0
        %4571 = vmatprep.mubr.f32.mxu0 0.0
        %4572 = vmatmul.mubr.f32.gmra.mrb[0].mxu0 %v4505
        %v4573 = vpop.f32.mrb[0].mxu0
        %v4574 = vadd.f32 0.0, %v4573
        %v4575 = vpop.f32.mrb[0].mxu0
        %4576 = vdwg.mxu0
        %v4577 = vld [vmem:[%s8] sm:$0xff]
        %v4578 = vld [vmem:[%s8 + $0x8] sm:$0xff]
        %v4579 = vld [vmem:[%s8 + $0x10] sm:$0xff]
        %v4580 = vld [vmem:[%s8 + $0x18] sm:$0xff]
        %s4581 = scalar_lea.vmem %s7, 4
        %v4582 = vld [vmem:[%s4581] sm:$0xf]
        %v4584 = vsel %vm4503, %v4582, 0
        %4586 = vmatprep.subr.mxu0 0.0
        %4587 = vmatpush1.msra.mxu0 %v4500
        %4588 = vmatprep.subr.mxu0 0.0
        %4589 = vmatpush1.msra.mxu0 %v4501
        %4590 = vmatprep.subr.mxu0 0.0
        %4591 = vmatpush1.msra.mxu0 0.0
        %4592 = vmatprep.subr.mxu0 0.0
        %4593 = vmatpush1.msra.mxu0 0.0
        %4594 = vmatprep.subr.mxu0 0.0
        %4595 = vmatpush1.msra.mxu0 0.0
        %4596 = vmatprep.subr.mxu0 0.0
        %4597 = vmatpush1.msra.mxu0 0.0
        %4598 = vmatprep.subr.mxu0 0.0
        %4599 = vmatpush1.msra.mxu0 0.0
        %4600 = vmatprep.subr.mxu0 0.0
        %4601 = vmatpush1.msra.mxu0 0.0
        %4602 = vmatprep.subr.mxu0 0.0
        %4603 = vmatpush1.msra.mxu0 0.0
        %4604 = vmatprep.subr.mxu0 0.0
        %4605 = vmatpush1.msra.mxu0 0.0
        %4606 = vmatprep.subr.mxu0 0.0
        %4607 = vmatpush1.msra.mxu0 0.0
        %4608 = vmatprep.subr.mxu0 0.0
        %4609 = vmatpush1.msra.mxu0 0.0
        %4610 = vmatprep.subr.mxu0 0.0
        %4611 = vmatpush1.msra.mxu0 0.0
        %4612 = vmatprep.subr.mxu0 0.0
        %4613 = vmatpush1.msra.mxu0 0.0
        %4614 = vmatprep.subr.mxu0 0.0
        %4615 = vmatpush1.msra.mxu0 0.0
        %4616 = vmatprep.subr.mxu0 0.0
        %4617 = vmatpush1.msra.mxu0 0.0
        %4618 = vmatprep.subr.mxu0 0.0
        %4619 = vmatpush1.msra.mxu0 0.0
        %4620 = vmatprep.subr.mxu0 0.0
        %4621 = vmatpush1.msra.mxu0 0.0
        %4622 = vmatprep.subr.mxu0 0.0
        %4623 = vmatpush1.msra.mxu0 0.0
        %4624 = vmatprep.subr.mxu0 0.0
        %4625 = vmatpush1.msra.mxu0 0.0
        %4626 = vmatprep.subr.mxu0 0.0
        %4627 = vmatpush1.msra.mxu0 0.0
        %4628 = vmatprep.subr.mxu0 0.0
        %4629 = vmatpush1.msra.mxu0 0.0
        %4630 = vmatprep.subr.mxu0 0.0
        %4631 = vmatpush1.msra.mxu0 0.0
        %4632 = vmatprep.subr.mxu0 0.0
        %4633 = vmatpush1.msra.mxu0 0.0
        %4634 = vmatprep.subr.mxu0 0.0
        %4635 = vmatpush1.msra.mxu0 0.0
        %4636 = vmatprep.subr.mxu0 0.0
        %4637 = vmatpush1.msra.mxu0 0.0
        %4638 = vmatprep.subr.mxu0 0.0
        %4639 = vmatpush1.msra.mxu0 0.0
        %4640 = vmatprep.subr.mxu0 0.0
        %4641 = vmatpush1.msra.mxu0 0.0
        %4642 = vmatprep.subr.mxu0 0.0
        %4643 = vmatpush1.msra.mxu0 0.0
        %4644 = vmatprep.subr.mxu0 0.0
        %4645 = vmatpush1.msra.mxu0 0.0
        %4646 = vmatprep.subr.mxu0 0.0
        %4647 = vmatpush1.msra.mxu0 0.0
        %4648 = vmatprep.subr.mxu0 0.0
        %4649 = vmatpush1.msra.mxu0 0.0
        %4650 = vmatprep.mubr.f32.mxu0 0.0
        %4651 = vmatmul.mubr.f32.gmra.mrb[0].mxu0 %v4584
        %v4652 = vpop.f32.mrb[0].mxu0
        %v4653 = vadd.f32 0.0, %v4652
        %v4654 = vpop.f32.mrb[0].mxu0
        %4655 = vdwg.mxu0
        %s4656 = scalar_lea.vmem %s8, 32
        %v4657 = vld [vmem:[%s4656] sm:$0xff]
        %v4658 = vld [vmem:[%s4656 + $0x8] sm:$0xff]
        %v4659 = vld [vmem:[%s4656 + $0x10] sm:$0xff]
        %v4660 = vld [vmem:[%s4656 + $0x18] sm:$0xff]
        %v4662 = vsel %vm3114, %v4653, 0
        %4664 = vmatprep.subr.mxu0 0.0
        %4665 = vmatpush1.msra.mxu0 %v4657
        %4666 = vmatprep.subr.mxu0 0.0
        %4667 = vmatpush1.msra.mxu0 %v4658
        %4668 = vmatprep.subr.mxu0 0.0
        %4669 = vmatpush1.msra.mxu0 %v4659
        %4670 = vmatprep.subr.mxu0 0.0
        %4671 = vmatpush1.msra.mxu0 %v4660
        %4672 = vmatprep.subr.mxu0 0.0
        %4673 = vmatpush1.msra.mxu0 0.0
        %4674 = vmatprep.subr.mxu0 0.0
        %4675 = vmatpush1.msra.mxu0 0.0
        %4676 = vmatprep.subr.mxu0 0.0
        %4677 = vmatpush1.msra.mxu0 0.0
        %4678 = vmatprep.subr.mxu0 0.0
        %4679 = vmatpush1.msra.mxu0 0.0
        %4680 = vmatprep.subr.mxu0 0.0
        %4681 = vmatpush1.msra.mxu0 0.0
        %4682 = vmatprep.subr.mxu0 0.0
        %4683 = vmatpush1.msra.mxu0 0.0
        %4684 = vmatprep.subr.mxu0 0.0
        %4685 = vmatpush1.msra.mxu0 0.0
        %4686 = vmatprep.subr.mxu0 0.0
        %4687 = vmatpush1.msra.mxu0 0.0
        %4688 = vmatprep.subr.mxu0 0.0
        %4689 = vmatpush1.msra.mxu0 0.0
        %4690 = vmatprep.subr.mxu0 0.0
        %4691 = vmatpush1.msra.mxu0 0.0
        %4692 = vmatprep.subr.mxu0 0.0
        %4693 = vmatpush1.msra.mxu0 0.0
        %4694 = vmatprep.subr.mxu0 0.0
        %4695 = vmatpush1.msra.mxu0 0.0
        %4696 = vmatprep.subr.mxu0 0.0
        %4697 = vmatpush1.msra.mxu0 0.0
        %4698 = vmatprep.subr.mxu0 0.0
        %4699 = vmatpush1.msra.mxu0 0.0
        %4700 = vmatprep.subr.mxu0 0.0
        %4701 = vmatpush1.msra.mxu0 0.0
        %4702 = vmatprep.subr.mxu0 0.0
        %4703 = vmatpush1.msra.mxu0 0.0
        %4704 = vmatprep.subr.mxu0 0.0
        %4705 = vmatpush1.msra.mxu0 0.0
        %4706 = vmatprep.subr.mxu0 0.0
        %4707 = vmatpush1.msra.mxu0 0.0
        %4708 = vmatprep.subr.mxu0 0.0
        %4709 = vmatpush1.msra.mxu0 0.0
        %4710 = vmatprep.subr.mxu0 0.0
        %4711 = vmatpush1.msra.mxu0 0.0
        %4712 = vmatprep.subr.mxu0 0.0
        %4713 = vmatpush1.msra.mxu0 0.0
        %4714 = vmatprep.subr.mxu0 0.0
        %4715 = vmatpush1.msra.mxu0 0.0
        %4716 = vmatprep.subr.mxu0 0.0
        %4717 = vmatpush1.msra.mxu0 0.0
        %4718 = vmatprep.subr.mxu0 0.0
        %4719 = vmatpush1.msra.mxu0 0.0
        %4720 = vmatprep.subr.mxu0 0.0
        %4721 = vmatpush1.msra.mxu0 0.0
        %4722 = vmatprep.subr.mxu0 0.0
        %4723 = vmatpush1.msra.mxu0 0.0
        %4724 = vmatprep.subr.mxu0 0.0
        %4725 = vmatpush1.msra.mxu0 0.0
        %4726 = vmatprep.subr.mxu0 0.0
        %4727 = vmatpush1.msra.mxu0 0.0
        %4728 = vmatprep.mubr.f32.mxu0 0.0
        %4729 = vmatmul.mubr.f32.gmra.mrb[0].mxu0 %v4662
        %v4730 = vpop.f32.mrb[0].mxu0
        %v4731 = vadd.f32 0.0, %v4730
        %v4732 = vpop.f32.mrb[0].mxu0
        %4733 = vdwg.mxu0
        %v4735 = vsel %vm3114, %v4574, 0
        %4737 = vmatprep.subr.mxu0 0.0
        %4738 = vmatpush1.msra.mxu0 %v4577
        %4739 = vmatprep.subr.mxu0 0.0
        %4740 = vmatpush1.msra.mxu0 %v4578
        %4741 = vmatprep.subr.mxu0 0.0
        %4742 = vmatpush1.msra.mxu0 %v4579
        %4743 = vmatprep.subr.mxu0 0.0
        %4744 = vmatpush1.msra.mxu0 %v4580
        %4745 = vmatprep.subr.mxu0 0.0
        %4746 = vmatpush1.msra.mxu0 0.0
        %4747 = vmatprep.subr.mxu0 0.0
        %4748 = vmatpush1.msra.mxu0 0.0
        %4749 = vmatprep.subr.mxu0 0.0
        %4750 = vmatpush1.msra.mxu0 0.0
        %4751 = vmatprep.subr.mxu0 0.0
        %4752 = vmatpush1.msra.mxu0 0.0
        %4753 = vmatprep.subr.mxu0 0.0
        %4754 = vmatpush1.msra.mxu0 0.0
        %4755 = vmatprep.subr.mxu0 0.0
        %4756 = vmatpush1.msra.mxu0 0.0
        %4757 = vmatprep.subr.mxu0 0.0
        %4758 = vmatpush1.msra.mxu0 0.0
        %4759 = vmatprep.subr.mxu0 0.0
        %4760 = vmatpush1.msra.mxu0 0.0
        %4761 = vmatprep.subr.mxu0 0.0
        %4762 = vmatpush1.msra.mxu0 0.0
        %4763 = vmatprep.subr.mxu0 0.0
        %4764 = vmatpush1.msra.mxu0 0.0
        %4765 = vmatprep.subr.mxu0 0.0
        %4766 = vmatpush1.msra.mxu0 0.0
        %4767 = vmatprep.subr.mxu0 0.0
        %4768 = vmatpush1.msra.mxu0 0.0
        %4769 = vmatprep.subr.mxu0 0.0
        %4770 = vmatpush1.msra.mxu0 0.0
        %4771 = vmatprep.subr.mxu0 0.0
        %4772 = vmatpush1.msra.mxu0 0.0
        %4773 = vmatprep.subr.mxu0 0.0
        %4774 = vmatpush1.msra.mxu0 0.0
        %4775 = vmatprep.subr.mxu0 0.0
        %4776 = vmatpush1.msra.mxu0 0.0
        %4777 = vmatprep.subr.mxu0 0.0
        %4778 = vmatpush1.msra.mxu0 0.0
        %4779 = vmatprep.subr.mxu0 0.0
        %4780 = vmatpush1.msra.mxu0 0.0
        %4781 = vmatprep.subr.mxu0 0.0
        %4782 = vmatpush1.msra.mxu0 0.0
        %4783 = vmatprep.subr.mxu0 0.0
        %4784 = vmatpush1.msra.mxu0 0.0
        %4785 = vmatprep.subr.mxu0 0.0
        %4786 = vmatpush1.msra.mxu0 0.0
        %4787 = vmatprep.subr.mxu0 0.0
        %4788 = vmatpush1.msra.mxu0 0.0
        %4789 = vmatprep.subr.mxu0 0.0
        %4790 = vmatpush1.msra.mxu0 0.0
        %4791 = vmatprep.subr.mxu0 0.0
        %4792 = vmatpush1.msra.mxu0 0.0
        %4793 = vmatprep.subr.mxu0 0.0
        %4794 = vmatpush1.msra.mxu0 0.0
        %4795 = vmatprep.subr.mxu0 0.0
        %4796 = vmatpush1.msra.mxu0 0.0
        %4797 = vmatprep.subr.mxu0 0.0
        %4798 = vmatpush1.msra.mxu0 0.0
        %4799 = vmatprep.subr.mxu0 0.0
        %4800 = vmatpush1.msra.mxu0 0.0
        %4801 = vmatprep.mubr.f32.mxu0 0.0
        %4802 = vmatmul.mubr.f32.gmra.mrb[0].mxu0 %v4735
        %v4803 = vpop.f32.mrb[0].mxu0
        %v4804 = vadd.f32 %v4731, %v4803
        %v4805 = vpop.f32.mrb[0].mxu0
        %4806 = vdwg.mxu0
        %s4807 = scalar_lea.vmem %s7, 8
        %v4808 = vld [vmem:[%s4807] sm:$0xf]
        %v4810 = vsel %vm4503, %v4808, 0
        %4812 = vmatprep.subr.mxu0 0.0
        %4813 = vmatpush1.msra.mxu0 %v4500
        %4814 = vmatprep.subr.mxu0 0.0
        %4815 = vmatpush1.msra.mxu0 %v4501
        %4816 = vmatprep.subr.mxu0 0.0
        %4817 = vmatpush1.msra.mxu0 0.0
        %4818 = vmatprep.subr.mxu0 0.0
        %4819 = vmatpush1.msra.mxu0 0.0
        %4820 = vmatprep.subr.mxu0 0.0
        %4821 = vmatpush1.msra.mxu0 0.0
        %4822 = vmatprep.subr.mxu0 0.0
        %4823 = vmatpush1.msra.mxu0 0.0
        %4824 = vmatprep.subr.mxu0 0.0
        %4825 = vmatpush1.msra.mxu0 0.0
        %4826 = vmatprep.subr.mxu0 0.0
        %4827 = vmatpush1.msra.mxu0 0.0
        %4828 = vmatprep.subr.mxu0 0.0
        %4829 = vmatpush1.msra.mxu0 0.0
        %4830 = vmatprep.subr.mxu0 0.0
        %4831 = vmatpush1.msra.mxu0 0.0
        %4832 = vmatprep.subr.mxu0 0.0
        %4833 = vmatpush1.msra.mxu0 0.0
        %4834 = vmatprep.subr.mxu0 0.0
        %4835 = vmatpush1.msra.mxu0 0.0
        %4836 = vmatprep.subr.mxu0 0.0
        %4837 = vmatpush1.msra.mxu0 0.0
        %4838 = vmatprep.subr.mxu0 0.0
        %4839 = vmatpush1.msra.mxu0 0.0
        %4840 = vmatprep.subr.mxu0 0.0
        %4841 = vmatpush1.msra.mxu0 0.0
        %4842 = vmatprep.subr.mxu0 0.0
        %4843 = vmatpush1.msra.mxu0 0.0
        %4844 = vmatprep.subr.mxu0 0.0
        %4845 = vmatpush1.msra.mxu0 0.0
        %4846 = vmatprep.subr.mxu0 0.0
        %4847 = vmatpush1.msra.mxu0 0.0
        %4848 = vmatprep.subr.mxu0 0.0
        %4849 = vmatpush1.msra.mxu0 0.0
        %4850 = vmatprep.subr.mxu0 0.0
        %4851 = vmatpush1.msra.mxu0 0.0
        %4852 = vmatprep.subr.mxu0 0.0
        %4853 = vmatpush1.msra.mxu0 0.0
        %4854 = vmatprep.subr.mxu0 0.0
        %4855 = vmatpush1.msra.mxu0 0.0
        %4856 = vmatprep.subr.mxu0 0.0
        %4857 = vmatpush1.msra.mxu0 0.0
        %4858 = vmatprep.subr.mxu0 0.0
        %4859 = vmatpush1.msra.mxu0 0.0
        %4860 = vmatprep.subr.mxu0 0.0
        %4861 = vmatpush1.msra.mxu0 0.0
        %4862 = vmatprep.subr.mxu0 0.0
        %4863 = vmatpush1.msra.mxu0 0.0
        %4864 = vmatprep.subr.mxu0 0.0
        %4865 = vmatpush1.msra.mxu0 0.0
        %4866 = vmatprep.subr.mxu0 0.0
        %4867 = vmatpush1.msra.mxu0 0.0
        %4868 = vmatprep.subr.mxu0 0.0
        %4869 = vmatpush1.msra.mxu0 0.0
        %4870 = vmatprep.subr.mxu0 0.0
        %4871 = vmatpush1.msra.mxu0 0.0
        %4872 = vmatprep.subr.mxu0 0.0
        %4873 = vmatpush1.msra.mxu0 0.0
        %4874 = vmatprep.subr.mxu0 0.0
        %4875 = vmatpush1.msra.mxu0 0.0
        %4876 = vmatprep.mubr.f32.mxu0 0.0
        %4877 = vmatmul.mubr.f32.gmra.mrb[0].mxu0 %v4810
        %v4878 = vpop.f32.mrb[0].mxu0
        %v4879 = vadd.f32 0.0, %v4878
        %v4880 = vpop.f32.mrb[0].mxu0
        %4881 = vdwg.mxu0
        %s4882 = scalar_lea.vmem %s8, 64
        %v4883 = vld [vmem:[%s4882] sm:$0xff]
        %v4884 = vld [vmem:[%s4882 + $0x8] sm:$0xff]
        %v4885 = vld [vmem:[%s4882 + $0x10] sm:$0xff]
        %v4886 = vld [vmem:[%s4882 + $0x18] sm:$0xff]
        %v4888 = vsel %vm3114, %v4879, 0
        %4890 = vmatprep.subr.mxu0 0.0
        %4891 = vmatpush1.msra.mxu0 %v4883
        %4892 = vmatprep.subr.mxu0 0.0
        %4893 = vmatpush1.msra.mxu0 %v4884
        %4894 = vmatprep.subr.mxu0 0.0
        %4895 = vmatpush1.msra.mxu0 %v4885
        %4896 = vmatprep.subr.mxu0 0.0
        %4897 = vmatpush1.msra.mxu0 %v4886
        %4898 = vmatprep.subr.mxu0 0.0
        %4899 = vmatpush1.msra.mxu0 0.0
        %4900 = vmatprep.subr.mxu0 0.0
        %4901 = vmatpush1.msra.mxu0 0.0
        %4902 = vmatprep.subr.mxu0 0.0
        %4903 = vmatpush1.msra.mxu0 0.0
        %4904 = vmatprep.subr.mxu0 0.0
        %4905 = vmatpush1.msra.mxu0 0.0
        %4906 = vmatprep.subr.mxu0 0.0
        %4907 = vmatpush1.msra.mxu0 0.0
        %4908 = vmatprep.subr.mxu0 0.0
        %4909 = vmatpush1.msra.mxu0 0.0
        %4910 = vmatprep.subr.mxu0 0.0
        %4911 = vmatpush1.msra.mxu0 0.0
        %4912 = vmatprep.subr.mxu0 0.0
        %4913 = vmatpush1.msra.mxu0 0.0
        %4914 = vmatprep.subr.mxu0 0.0
        %4915 = vmatpush1.msra.mxu0 0.0
        %4916 = vmatprep.subr.mxu0 0.0
        %4917 = vmatpush1.msra.mxu0 0.0
        %4918 = vmatprep.subr.mxu0 0.0
        %4919 = vmatpush1.msra.mxu0 0.0
        %4920 = vmatprep.subr.mxu0 0.0
        %4921 = vmatpush1.msra.mxu0 0.0
        %4922 = vmatprep.subr.mxu0 0.0
        %4923 = vmatpush1.msra.mxu0 0.0
        %4924 = vmatprep.subr.mxu0 0.0
        %4925 = vmatpush1.msra.mxu0 0.0
        %4926 = vmatprep.subr.mxu0 0.0
        %4927 = vmatpush1.msra.mxu0 0.0
        %4928 = vmatprep.subr.mxu0 0.0
        %4929 = vmatpush1.msra.mxu0 0.0
        %4930 = vmatprep.subr.mxu0 0.0
        %4931 = vmatpush1.msra.mxu0 0.0
        %4932 = vmatprep.subr.mxu0 0.0
        %4933 = vmatpush1.msra.mxu0 0.0
        %4934 = vmatprep.subr.mxu0 0.0
        %4935 = vmatpush1.msra.mxu0 0.0
        %4936 = vmatprep.subr.mxu0 0.0
        %4937 = vmatpush1.msra.mxu0 0.0
        %4938 = vmatprep.subr.mxu0 0.0
        %4939 = vmatpush1.msra.mxu0 0.0
        %4940 = vmatprep.subr.mxu0 0.0
        %4941 = vmatpush1.msra.mxu0 0.0
        %4942 = vmatprep.subr.mxu0 0.0
        %4943 = vmatpush1.msra.mxu0 0.0
        %4944 = vmatprep.subr.mxu0 0.0
        %4945 = vmatpush1.msra.mxu0 0.0
        %4946 = vmatprep.subr.mxu0 0.0
        %4947 = vmatpush1.msra.mxu0 0.0
        %4948 = vmatprep.subr.mxu0 0.0
        %4949 = vmatpush1.msra.mxu0 0.0
        %4950 = vmatprep.subr.mxu0 0.0
        %4951 = vmatpush1.msra.mxu0 0.0
        %4952 = vmatprep.subr.mxu0 0.0
        %4953 = vmatpush1.msra.mxu0 0.0
        %4954 = vmatprep.mubr.f32.mxu0 0.0
        %4955 = vmatmul.mubr.f32.gmra.mrb[0].mxu0 %v4888
        %v4956 = vpop.f32.mrb[0].mxu0
        %v4957 = vadd.f32 0.0, %v4956
        %v4958 = vpop.f32.mrb[0].mxu0
        %4959 = vdwg.mxu0
        %v4960 = vadd.f32 %v4804, %v4957
        %s4961 = scalar_lea.vmem %s7, 12
        %v4962 = vld [vmem:[%s4961] sm:$0xf]
        %v4964 = vsel %vm4503, %v4962, 0
        %4966 = vmatprep.subr.mxu0 0.0
        %4967 = vmatpush1.msra.mxu0 %v4500
        %4968 = vmatprep.subr.mxu0 0.0
        %4969 = vmatpush1.msra.mxu0 %v4501
        %4970 = vmatprep.subr.mxu0 0.0
        %4971 = vmatpush1.msra.mxu0 0.0
        %4972 = vmatprep.subr.mxu0 0.0
        %4973 = vmatpush1.msra.mxu0 0.0
        %4974 = vmatprep.subr.mxu0 0.0
        %4975 = vmatpush1.msra.mxu0 0.0
        %4976 = vmatprep.subr.mxu0 0.0
        %4977 = vmatpush1.msra.mxu0 0.0
        %4978 = vmatprep.subr.mxu0 0.0
        %4979 = vmatpush1.msra.mxu0 0.0
        %4980 = vmatprep.subr.mxu0 0.0
        %4981 = vmatpush1.msra.mxu0 0.0
        %4982 = vmatprep.subr.mxu0 0.0
        %4983 = vmatpush1.msra.mxu0 0.0
        %4984 = vmatprep.subr.mxu0 0.0
        %4985 = vmatpush1.msra.mxu0 0.0
        %4986 = vmatprep.subr.mxu0 0.0
        %4987 = vmatpush1.msra.mxu0 0.0
        %4988 = vmatprep.subr.mxu0 0.0
        %4989 = vmatpush1.msra.mxu0 0.0
        %4990 = vmatprep.subr.mxu0 0.0
        %4991 = vmatpush1.msra.mxu0 0.0
        %4992 = vmatprep.subr.mxu0 0.0
        %4993 = vmatpush1.msra.mxu0 0.0
        %4994 = vmatprep.subr.mxu0 0.0
        %4995 = vmatpush1.msra.mxu0 0.0
        %4996 = vmatprep.subr.mxu0 0.0
        %4997 = vmatpush1.msra.mxu0 0.0
        %4998 = vmatprep.subr.mxu0 0.0
        %4999 = vmatpush1.msra.mxu0 0.0
        %5000 = vmatprep.subr.mxu0 0.0
        %5001 = vmatpush1.msra.mxu0 0.0
        %5002 = vmatprep.subr.mxu0 0.0
        %5003 = vmatpush1.msra.mxu0 0.0
        %5004 = vmatprep.subr.mxu0 0.0
        %5005 = vmatpush1.msra.mxu0 0.0
        %5006 = vmatprep.subr.mxu0 0.0
        %5007 = vmatpush1.msra.mxu0 0.0
        %5008 = vmatprep.subr.mxu0 0.0
        %5009 = vmatpush1.msra.mxu0 0.0
        %5010 = vmatprep.subr.mxu0 0.0
        %5011 = vmatpush1.msra.mxu0 0.0
        %5012 = vmatprep.subr.mxu0 0.0
        %5013 = vmatpush1.msra.mxu0 0.0
        %5014 = vmatprep.subr.mxu0 0.0
        %5015 = vmatpush1.msra.mxu0 0.0
        %5016 = vmatprep.subr.mxu0 0.0
        %5017 = vmatpush1.msra.mxu0 0.0
        %5018 = vmatprep.subr.mxu0 0.0
        %5019 = vmatpush1.msra.mxu0 0.0
        %5020 = vmatprep.subr.mxu0 0.0
        %5021 = vmatpush1.msra.mxu0 0.0
        %5022 = vmatprep.subr.mxu0 0.0
        %5023 = vmatpush1.msra.mxu0 0.0
        %5024 = vmatprep.subr.mxu0 0.0
        %5025 = vmatpush1.msra.mxu0 0.0
        %5026 = vmatprep.subr.mxu0 0.0
        %5027 = vmatpush1.msra.mxu0 0.0
        %5028 = vmatprep.subr.mxu0 0.0
        %5029 = vmatpush1.msra.mxu0 0.0
        %5030 = vmatprep.mubr.f32.mxu0 0.0
        %5031 = vmatmul.mubr.f32.gmra.mrb[0].mxu0 %v4964
        %v5032 = vpop.f32.mrb[0].mxu0
        %v5033 = vadd.f32 0.0, %v5032
        %v5034 = vpop.f32.mrb[0].mxu0
        %5035 = vdwg.mxu0
        %s5036 = scalar_lea.vmem %s8, 96
        %v5037 = vld [vmem:[%s5036] sm:$0xff]
        %v5038 = vld [vmem:[%s5036 + $0x8] sm:$0xff]
        %v5039 = vld [vmem:[%s5036 + $0x10] sm:$0xff]
        %v5040 = vld [vmem:[%s5036 + $0x18] sm:$0xff]
        %v5042 = vsel %vm3114, %v5033, 0
        %5044 = vmatprep.subr.mxu0 0.0
        %5045 = vmatpush1.msra.mxu0 %v5037
        %5046 = vmatprep.subr.mxu0 0.0
        %5047 = vmatpush1.msra.mxu0 %v5038
        %5048 = vmatprep.subr.mxu0 0.0
        %5049 = vmatpush1.msra.mxu0 %v5039
        %5050 = vmatprep.subr.mxu0 0.0
        %5051 = vmatpush1.msra.mxu0 %v5040
        %5052 = vmatprep.subr.mxu0 0.0
        %5053 = vmatpush1.msra.mxu0 0.0
        %5054 = vmatprep.subr.mxu0 0.0
        %5055 = vmatpush1.msra.mxu0 0.0
        %5056 = vmatprep.subr.mxu0 0.0
        %5057 = vmatpush1.msra.mxu0 0.0
        %5058 = vmatprep.subr.mxu0 0.0
        %5059 = vmatpush1.msra.mxu0 0.0
        %5060 = vmatprep.subr.mxu0 0.0
        %5061 = vmatpush1.msra.mxu0 0.0
        %5062 = vmatprep.subr.mxu0 0.0
        %5063 = vmatpush1.msra.mxu0 0.0
        %5064 = vmatprep.subr.mxu0 0.0
        %5065 = vmatpush1.msra.mxu0 0.0
        %5066 = vmatprep.subr.mxu0 0.0
        %5067 = vmatpush1.msra.mxu0 0.0
        %5068 = vmatprep.subr.mxu0 0.0
        %5069 = vmatpush1.msra.mxu0 0.0
        %5070 = vmatprep.subr.mxu0 0.0
        %5071 = vmatpush1.msra.mxu0 0.0
        %5072 = vmatprep.subr.mxu0 0.0
        %5073 = vmatpush1.msra.mxu0 0.0
        %5074 = vmatprep.subr.mxu0 0.0
        %5075 = vmatpush1.msra.mxu0 0.0
        %5076 = vmatprep.subr.mxu0 0.0
        %5077 = vmatpush1.msra.mxu0 0.0
        %5078 = vmatprep.subr.mxu0 0.0
        %5079 = vmatpush1.msra.mxu0 0.0
        %5080 = vmatprep.subr.mxu0 0.0
        %5081 = vmatpush1.msra.mxu0 0.0
        %5082 = vmatprep.subr.mxu0 0.0
        %5083 = vmatpush1.msra.mxu0 0.0
        %5084 = vmatprep.subr.mxu0 0.0
        %5085 = vmatpush1.msra.mxu0 0.0
        %5086 = vmatprep.subr.mxu0 0.0
        %5087 = vmatpush1.msra.mxu0 0.0
        %5088 = vmatprep.subr.mxu0 0.0
        %5089 = vmatpush1.msra.mxu0 0.0
        %5090 = vmatprep.subr.mxu0 0.0
        %5091 = vmatpush1.msra.mxu0 0.0
        %5092 = vmatprep.subr.mxu0 0.0
        %5093 = vmatpush1.msra.mxu0 0.0
        %5094 = vmatprep.subr.mxu0 0.0
        %5095 = vmatpush1.msra.mxu0 0.0
        %5096 = vmatprep.subr.mxu0 0.0
        %5097 = vmatpush1.msra.mxu0 0.0
        %5098 = vmatprep.subr.mxu0 0.0
        %5099 = vmatpush1.msra.mxu0 0.0
        %5100 = vmatprep.subr.mxu0 0.0
        %5101 = vmatpush1.msra.mxu0 0.0
        %5102 = vmatprep.subr.mxu0 0.0
        %5103 = vmatpush1.msra.mxu0 0.0
        %5104 = vmatprep.subr.mxu0 0.0
        %5105 = vmatpush1.msra.mxu0 0.0
        %5106 = vmatprep.subr.mxu0 0.0
        %5107 = vmatpush1.msra.mxu0 0.0
        %5108 = vmatprep.mubr.f32.mxu0 0.0
        %5109 = vmatmul.mubr.f32.gmra.mrb[0].mxu0 %v5042
        %v5110 = vpop.f32.mrb[0].mxu0
        %v5111 = vadd.f32 0.0, %v5110
        %v5112 = vpop.f32.mrb[0].mxu0
        %5113 = vdwg.mxu0
        %v5114 = vadd.f32 %v4960, %v5111
        %s5115 = scalar_lea.vmem %s7, 16
        %v5116 = vld [vmem:[%s5115] sm:$0xf]
        %v5118 = vsel %vm4503, %v5116, 0
        %5120 = vmatprep.subr.mxu0 0.0
        %5121 = vmatpush1.msra.mxu0 %v4500
        %5122 = vmatprep.subr.mxu0 0.0
        %5123 = vmatpush1.msra.mxu0 %v4501
        %5124 = vmatprep.subr.mxu0 0.0
        %5125 = vmatpush1.msra.mxu0 0.0
        %5126 = vmatprep.subr.mxu0 0.0
        %5127 = vmatpush1.msra.mxu0 0.0
        %5128 = vmatprep.subr.mxu0 0.0
        %5129 = vmatpush1.msra.mxu0 0.0
        %5130 = vmatprep.subr.mxu0 0.0
        %5131 = vmatpush1.msra.mxu0 0.0
        %5132 = vmatprep.subr.mxu0 0.0
        %5133 = vmatpush1.msra.mxu0 0.0
        %5134 = vmatprep.subr.mxu0 0.0
        %5135 = vmatpush1.msra.mxu0 0.0
        %5136 = vmatprep.subr.mxu0 0.0
        %5137 = vmatpush1.msra.mxu0 0.0
        %5138 = vmatprep.subr.mxu0 0.0
        %5139 = vmatpush1.msra.mxu0 0.0
        %5140 = vmatprep.subr.mxu0 0.0
        %5141 = vmatpush1.msra.mxu0 0.0
        %5142 = vmatprep.subr.mxu0 0.0
        %5143 = vmatpush1.msra.mxu0 0.0
        %5144 = vmatprep.subr.mxu0 0.0
        %5145 = vmatpush1.msra.mxu0 0.0
        %5146 = vmatprep.subr.mxu0 0.0
        %5147 = vmatpush1.msra.mxu0 0.0
        %5148 = vmatprep.subr.mxu0 0.0
        %5149 = vmatpush1.msra.mxu0 0.0
        %5150 = vmatprep.subr.mxu0 0.0
        %5151 = vmatpush1.msra.mxu0 0.0
        %5152 = vmatprep.subr.mxu0 0.0
        %5153 = vmatpush1.msra.mxu0 0.0
        %5154 = vmatprep.subr.mxu0 0.0
        %5155 = vmatpush1.msra.mxu0 0.0
        %5156 = vmatprep.subr.mxu0 0.0
        %5157 = vmatpush1.msra.mxu0 0.0
        %5158 = vmatprep.subr.mxu0 0.0
        %5159 = vmatpush1.msra.mxu0 0.0
        %5160 = vmatprep.subr.mxu0 0.0
        %5161 = vmatpush1.msra.mxu0 0.0
        %5162 = vmatprep.subr.mxu0 0.0
        %5163 = vmatpush1.msra.mxu0 0.0
        %5164 = vmatprep.subr.mxu0 0.0
        %5165 = vmatpush1.msra.mxu0 0.0
        %5166 = vmatprep.subr.mxu0 0.0
        %5167 = vmatpush1.msra.mxu0 0.0
        %5168 = vmatprep.subr.mxu0 0.0
        %5169 = vmatpush1.msra.mxu0 0.0
        %5170 = vmatprep.subr.mxu0 0.0
        %5171 = vmatpush1.msra.mxu0 0.0
        %5172 = vmatprep.subr.mxu0 0.0
        %5173 = vmatpush1.msra.mxu0 0.0
        %5174 = vmatprep.subr.mxu0 0.0
        %5175 = vmatpush1.msra.mxu0 0.0
        %5176 = vmatprep.subr.mxu0 0.0
        %5177 = vmatpush1.msra.mxu0 0.0
        %5178 = vmatprep.subr.mxu0 0.0
        %5179 = vmatpush1.msra.mxu0 0.0
        %5180 = vmatprep.subr.mxu0 0.0
        %5181 = vmatpush1.msra.mxu0 0.0
        %5182 = vmatprep.subr.mxu0 0.0
        %5183 = vmatpush1.msra.mxu0 0.0
        %5184 = vmatprep.mubr.f32.mxu0 0.0
        %5185 = vmatmul.mubr.f32.gmra.mrb[0].mxu0 %v5118
        %v5186 = vpop.f32.mrb[0].mxu0
        %v5187 = vadd.f32 0.0, %v5186
        %v5188 = vpop.f32.mrb[0].mxu0
        %5189 = vdwg.mxu0
        %s5190 = scalar_lea.vmem %s8, 128
        %v5191 = vld [vmem:[%s5190] sm:$0xff]
        %v5192 = vld [vmem:[%s5190 + $0x8] sm:$0xff]
        %v5193 = vld [vmem:[%s5190 + $0x10] sm:$0xff]
        %v5194 = vld [vmem:[%s5190 + $0x18] sm:$0xff]
        %v5196 = vsel %vm3114, %v5187, 0
        %5198 = vmatprep.subr.mxu0 0.0
        %5199 = vmatpush1.msra.mxu0 %v5191
        %5200 = vmatprep.subr.mxu0 0.0
        %5201 = vmatpush1.msra.mxu0 %v5192
        %5202 = vmatprep.subr.mxu0 0.0
        %5203 = vmatpush1.msra.mxu0 %v5193
        %5204 = vmatprep.subr.mxu0 0.0
        %5205 = vmatpush1.msra.mxu0 %v5194
        %5206 = vmatprep.subr.mxu0 0.0
        %5207 = vmatpush1.msra.mxu0 0.0
        %5208 = vmatprep.subr.mxu0 0.0
        %5209 = vmatpush1.msra.mxu0 0.0
        %5210 = vmatprep.subr.mxu0 0.0
        %5211 = vmatpush1.msra.mxu0 0.0
        %5212 = vmatprep.subr.mxu0 0.0
        %5213 = vmatpush1.msra.mxu0 0.0
        %5214 = vmatprep.subr.mxu0 0.0
        %5215 = vmatpush1.msra.mxu0 0.0
        %5216 = vmatprep.subr.mxu0 0.0
        %5217 = vmatpush1.msra.mxu0 0.0
        %5218 = vmatprep.subr.mxu0 0.0
        %5219 = vmatpush1.msra.mxu0 0.0
        %5220 = vmatprep.subr.mxu0 0.0
        %5221 = vmatpush1.msra.mxu0 0.0
        %5222 = vmatprep.subr.mxu0 0.0
        %5223 = vmatpush1.msra.mxu0 0.0
        %5224 = vmatprep.subr.mxu0 0.0
        %5225 = vmatpush1.msra.mxu0 0.0
        %5226 = vmatprep.subr.mxu0 0.0
        %5227 = vmatpush1.msra.mxu0 0.0
        %5228 = vmatprep.subr.mxu0 0.0
        %5229 = vmatpush1.msra.mxu0 0.0
        %5230 = vmatprep.subr.mxu0 0.0
        %5231 = vmatpush1.msra.mxu0 0.0
        %5232 = vmatprep.subr.mxu0 0.0
        %5233 = vmatpush1.msra.mxu0 0.0
        %5234 = vmatprep.subr.mxu0 0.0
        %5235 = vmatpush1.msra.mxu0 0.0
        %5236 = vmatprep.subr.mxu0 0.0
        %5237 = vmatpush1.msra.mxu0 0.0
        %5238 = vmatprep.subr.mxu0 0.0
        %5239 = vmatpush1.msra.mxu0 0.0
        %5240 = vmatprep.subr.mxu0 0.0
        %5241 = vmatpush1.msra.mxu0 0.0
        %5242 = vmatprep.subr.mxu0 0.0
        %5243 = vmatpush1.msra.mxu0 0.0
        %5244 = vmatprep.subr.mxu0 0.0
        %5245 = vmatpush1.msra.mxu0 0.0
        %5246 = vmatprep.subr.mxu0 0.0
        %5247 = vmatpush1.msra.mxu0 0.0
        %5248 = vmatprep.subr.mxu0 0.0
        %5249 = vmatpush1.msra.mxu0 0.0
        %5250 = vmatprep.subr.mxu0 0.0
        %5251 = vmatpush1.msra.mxu0 0.0
        %5252 = vmatprep.subr.mxu0 0.0
        %5253 = vmatpush1.msra.mxu0 0.0
        %5254 = vmatprep.subr.mxu0 0.0
        %5255 = vmatpush1.msra.mxu0 0.0
        %5256 = vmatprep.subr.mxu0 0.0
        %5257 = vmatpush1.msra.mxu0 0.0
        %5258 = vmatprep.subr.mxu0 0.0
        %5259 = vmatpush1.msra.mxu0 0.0
        %5260 = vmatprep.subr.mxu0 0.0
        %5261 = vmatpush1.msra.mxu0 0.0
        %5262 = vmatprep.mubr.f32.mxu0 0.0
        %5263 = vmatmul.mubr.f32.gmra.mrb[0].mxu0 %v5196
        %v5264 = vpop.f32.mrb[0].mxu0
        %v5265 = vadd.f32 0.0, %v5264
        %v5266 = vpop.f32.mrb[0].mxu0
        %5267 = vdwg.mxu0
        %v5268 = vadd.f32 %v5114, %v5265
        %s5269 = scalar_lea.vmem %s7, 20
        %v5270 = vld [vmem:[%s5269] sm:$0xf]
        %v5272 = vsel %vm4503, %v5270, 0
        %5274 = vmatprep.subr.mxu0 0.0
        %5275 = vmatpush1.msra.mxu0 %v4500
        %5276 = vmatprep.subr.mxu0 0.0
        %5277 = vmatpush1.msra.mxu0 %v4501
        %5278 = vmatprep.subr.mxu0 0.0
        %5279 = vmatpush1.msra.mxu0 0.0
        %5280 = vmatprep.subr.mxu0 0.0
        %5281 = vmatpush1.msra.mxu0 0.0
        %5282 = vmatprep.subr.mxu0 0.0
        %5283 = vmatpush1.msra.mxu0 0.0
        %5284 = vmatprep.subr.mxu0 0.0
        %5285 = vmatpush1.msra.mxu0 0.0
        %5286 = vmatprep.subr.mxu0 0.0
        %5287 = vmatpush1.msra.mxu0 0.0
        %5288 = vmatprep.subr.mxu0 0.0
        %5289 = vmatpush1.msra.mxu0 0.0
        %5290 = vmatprep.subr.mxu0 0.0
        %5291 = vmatpush1.msra.mxu0 0.0
        %5292 = vmatprep.subr.mxu0 0.0
        %5293 = vmatpush1.msra.mxu0 0.0
        %5294 = vmatprep.subr.mxu0 0.0
        %5295 = vmatpush1.msra.mxu0 0.0
        %5296 = vmatprep.subr.mxu0 0.0
        %5297 = vmatpush1.msra.mxu0 0.0
        %5298 = vmatprep.subr.mxu0 0.0
        %5299 = vmatpush1.msra.mxu0 0.0
        %5300 = vmatprep.subr.mxu0 0.0
        %5301 = vmatpush1.msra.mxu0 0.0
        %5302 = vmatprep.subr.mxu0 0.0
        %5303 = vmatpush1.msra.mxu0 0.0
        %5304 = vmatprep.subr.mxu0 0.0
        %5305 = vmatpush1.msra.mxu0 0.0
        %5306 = vmatprep.subr.mxu0 0.0
        %5307 = vmatpush1.msra.mxu0 0.0
        %5308 = vmatprep.subr.mxu0 0.0
        %5309 = vmatpush1.msra.mxu0 0.0
        %5310 = vmatprep.subr.mxu0 0.0
        %5311 = vmatpush1.msra.mxu0 0.0
        %5312 = vmatprep.subr.mxu0 0.0
        %5313 = vmatpush1.msra.mxu0 0.0
        %5314 = vmatprep.subr.mxu0 0.0
        %5315 = vmatpush1.msra.mxu0 0.0
        %5316 = vmatprep.subr.mxu0 0.0
        %5317 = vmatpush1.msra.mxu0 0.0
        %5318 = vmatprep.subr.mxu0 0.0
        %5319 = vmatpush1.msra.mxu0 0.0
        %5320 = vmatprep.subr.mxu0 0.0
        %5321 = vmatpush1.msra.mxu0 0.0
        %5322 = vmatprep.subr.mxu0 0.0
        %5323 = vmatpush1.msra.mxu0 0.0
        %5324 = vmatprep.subr.mxu0 0.0
        %5325 = vmatpush1.msra.mxu0 0.0
        %5326 = vmatprep.subr.mxu0 0.0
        %5327 = vmatpush1.msra.mxu0 0.0
        %5328 = vmatprep.subr.mxu0 0.0
        %5329 = vmatpush1.msra.mxu0 0.0
        %5330 = vmatprep.subr.mxu0 0.0
        %5331 = vmatpush1.msra.mxu0 0.0
        %5332 = vmatprep.subr.mxu0 0.0
        %5333 = vmatpush1.msra.mxu0 0.0
        %5334 = vmatprep.subr.mxu0 0.0
        %5335 = vmatpush1.msra.mxu0 0.0
        %5336 = vmatprep.subr.mxu0 0.0
        %5337 = vmatpush1.msra.mxu0 0.0
        %5338 = vmatprep.mubr.f32.mxu0 0.0
        %5339 = vmatmul.mubr.f32.gmra.mrb[0].mxu0 %v5272
        %v5340 = vpop.f32.mrb[0].mxu0
        %v5341 = vadd.f32 0.0, %v5340
        %v5342 = vpop.f32.mrb[0].mxu0
        %5343 = vdwg.mxu0
        %s5344 = scalar_lea.vmem %s8, 160
        %v5345 = vld [vmem:[%s5344] sm:$0xff]
        %v5346 = vld [vmem:[%s5344 + $0x8] sm:$0xff]
        %v5347 = vld [vmem:[%s5344 + $0x10] sm:$0xff]
        %v5348 = vld [vmem:[%s5344 + $0x18] sm:$0xff]
        %v5350 = vsel %vm3114, %v5341, 0
        %5352 = vmatprep.subr.mxu0 0.0
        %5353 = vmatpush1.msra.mxu0 %v5345
        %5354 = vmatprep.subr.mxu0 0.0
        %5355 = vmatpush1.msra.mxu0 %v5346
        %5356 = vmatprep.subr.mxu0 0.0
        %5357 = vmatpush1.msra.mxu0 %v5347
        %5358 = vmatprep.subr.mxu0 0.0
        %5359 = vmatpush1.msra.mxu0 %v5348
        %5360 = vmatprep.subr.mxu0 0.0
        %5361 = vmatpush1.msra.mxu0 0.0
        %5362 = vmatprep.subr.mxu0 0.0
        %5363 = vmatpush1.msra.mxu0 0.0
        %5364 = vmatprep.subr.mxu0 0.0
        %5365 = vmatpush1.msra.mxu0 0.0
        %5366 = vmatprep.subr.mxu0 0.0
        %5367 = vmatpush1.msra.mxu0 0.0
        %5368 = vmatprep.subr.mxu0 0.0
        %5369 = vmatpush1.msra.mxu0 0.0
        %5370 = vmatprep.subr.mxu0 0.0
        %5371 = vmatpush1.msra.mxu0 0.0
        %5372 = vmatprep.subr.mxu0 0.0
        %5373 = vmatpush1.msra.mxu0 0.0
        %5374 = vmatprep.subr.mxu0 0.0
        %5375 = vmatpush1.msra.mxu0 0.0
        %5376 = vmatprep.subr.mxu0 0.0
        %5377 = vmatpush1.msra.mxu0 0.0
        %5378 = vmatprep.subr.mxu0 0.0
        %5379 = vmatpush1.msra.mxu0 0.0
        %5380 = vmatprep.subr.mxu0 0.0
        %5381 = vmatpush1.msra.mxu0 0.0
        %5382 = vmatprep.subr.mxu0 0.0
        %5383 = vmatpush1.msra.mxu0 0.0
        %5384 = vmatprep.subr.mxu0 0.0
        %5385 = vmatpush1.msra.mxu0 0.0
        %5386 = vmatprep.subr.mxu0 0.0
        %5387 = vmatpush1.msra.mxu0 0.0
        %5388 = vmatprep.subr.mxu0 0.0
        %5389 = vmatpush1.msra.mxu0 0.0
        %5390 = vmatprep.subr.mxu0 0.0
        %5391 = vmatpush1.msra.mxu0 0.0
        %5392 = vmatprep.subr.mxu0 0.0
        %5393 = vmatpush1.msra.mxu0 0.0
        %5394 = vmatprep.subr.mxu0 0.0
        %5395 = vmatpush1.msra.mxu0 0.0
        %5396 = vmatprep.subr.mxu0 0.0
        %5397 = vmatpush1.msra.mxu0 0.0
        %5398 = vmatprep.subr.mxu0 0.0
        %5399 = vmatpush1.msra.mxu0 0.0
        %5400 = vmatprep.subr.mxu0 0.0
        %5401 = vmatpush1.msra.mxu0 0.0
        %5402 = vmatprep.subr.mxu0 0.0
        %5403 = vmatpush1.msra.mxu0 0.0
        %5404 = vmatprep.subr.mxu0 0.0
        %5405 = vmatpush1.msra.mxu0 0.0
        %5406 = vmatprep.subr.mxu0 0.0
        %5407 = vmatpush1.msra.mxu0 0.0
        %5408 = vmatprep.subr.mxu0 0.0
        %5409 = vmatpush1.msra.mxu0 0.0
        %5410 = vmatprep.subr.mxu0 0.0
        %5411 = vmatpush1.msra.mxu0 0.0
        %5412 = vmatprep.subr.mxu0 0.0
        %5413 = vmatpush1.msra.mxu0 0.0
        %5414 = vmatprep.subr.mxu0 0.0
        %5415 = vmatpush1.msra.mxu0 0.0
        %5416 = vmatprep.mubr.f32.mxu0 0.0
        %5417 = vmatmul.mubr.f32.gmra.mrb[0].mxu0 %v5350
        %v5418 = vpop.f32.mrb[0].mxu0
        %v5419 = vadd.f32 0.0, %v5418
        %v5420 = vpop.f32.mrb[0].mxu0
        %5421 = vdwg.mxu0
        %v5422 = vadd.f32 %v5268, %v5419
        %s5423 = scalar_lea.vmem %s7, 24
        %v5424 = vld [vmem:[%s5423] sm:$0xf]
        %v5426 = vsel %vm4503, %v5424, 0
        %5428 = vmatprep.subr.mxu0 0.0
        %5429 = vmatpush1.msra.mxu0 %v4500
        %5430 = vmatprep.subr.mxu0 0.0
        %5431 = vmatpush1.msra.mxu0 %v4501
        %5432 = vmatprep.subr.mxu0 0.0
        %5433 = vmatpush1.msra.mxu0 0.0
        %5434 = vmatprep.subr.mxu0 0.0
        %5435 = vmatpush1.msra.mxu0 0.0
        %5436 = vmatprep.subr.mxu0 0.0
        %5437 = vmatpush1.msra.mxu0 0.0
        %5438 = vmatprep.subr.mxu0 0.0
        %5439 = vmatpush1.msra.mxu0 0.0
        %5440 = vmatprep.subr.mxu0 0.0
        %5441 = vmatpush1.msra.mxu0 0.0
        %5442 = vmatprep.subr.mxu0 0.0
        %5443 = vmatpush1.msra.mxu0 0.0
        %5444 = vmatprep.subr.mxu0 0.0
        %5445 = vmatpush1.msra.mxu0 0.0
        %5446 = vmatprep.subr.mxu0 0.0
        %5447 = vmatpush1.msra.mxu0 0.0
        %5448 = vmatprep.subr.mxu0 0.0
        %5449 = vmatpush1.msra.mxu0 0.0
        %5450 = vmatprep.subr.mxu0 0.0
        %5451 = vmatpush1.msra.mxu0 0.0
        %5452 = vmatprep.subr.mxu0 0.0
        %5453 = vmatpush1.msra.mxu0 0.0
        %5454 = vmatprep.subr.mxu0 0.0
        %5455 = vmatpush1.msra.mxu0 0.0
        %5456 = vmatprep.subr.mxu0 0.0
        %5457 = vmatpush1.msra.mxu0 0.0
        %5458 = vmatprep.subr.mxu0 0.0
        %5459 = vmatpush1.msra.mxu0 0.0
        %5460 = vmatprep.subr.mxu0 0.0
        %5461 = vmatpush1.msra.mxu0 0.0
        %5462 = vmatprep.subr.mxu0 0.0
        %5463 = vmatpush1.msra.mxu0 0.0
        %5464 = vmatprep.subr.mxu0 0.0
        %5465 = vmatpush1.msra.mxu0 0.0
        %5466 = vmatprep.subr.mxu0 0.0
        %5467 = vmatpush1.msra.mxu0 0.0
        %5468 = vmatprep.subr.mxu0 0.0
        %5469 = vmatpush1.msra.mxu0 0.0
        %5470 = vmatprep.subr.mxu0 0.0
        %5471 = vmatpush1.msra.mxu0 0.0
        %5472 = vmatprep.subr.mxu0 0.0
        %5473 = vmatpush1.msra.mxu0 0.0
        %5474 = vmatprep.subr.mxu0 0.0
        %5475 = vmatpush1.msra.mxu0 0.0
        %5476 = vmatprep.subr.mxu0 0.0
        %5477 = vmatpush1.msra.mxu0 0.0
        %5478 = vmatprep.subr.mxu0 0.0
        %5479 = vmatpush1.msra.mxu0 0.0
        %5480 = vmatprep.subr.mxu0 0.0
        %5481 = vmatpush1.msra.mxu0 0.0
        %5482 = vmatprep.subr.mxu0 0.0
        %5483 = vmatpush1.msra.mxu0 0.0
        %5484 = vmatprep.subr.mxu0 0.0
        %5485 = vmatpush1.msra.mxu0 0.0
        %5486 = vmatprep.subr.mxu0 0.0
        %5487 = vmatpush1.msra.mxu0 0.0
        %5488 = vmatprep.subr.mxu0 0.0
        %5489 = vmatpush1.msra.mxu0 0.0
        %5490 = vmatprep.subr.mxu0 0.0
        %5491 = vmatpush1.msra.mxu0 0.0
        %5492 = vmatprep.mubr.f32.mxu0 0.0
        %5493 = vmatmul.mubr.f32.gmra.mrb[0].mxu0 %v5426
        %v5494 = vpop.f32.mrb[0].mxu0
        %v5495 = vadd.f32 0.0, %v5494
        %v5496 = vpop.f32.mrb[0].mxu0
        %5497 = vdwg.mxu0
        %s5498 = scalar_lea.vmem %s8, 192
        %v5499 = vld [vmem:[%s5498] sm:$0xff]
        %v5500 = vld [vmem:[%s5498 + $0x8] sm:$0xff]
        %v5501 = vld [vmem:[%s5498 + $0x10] sm:$0xff]
        %v5502 = vld [vmem:[%s5498 + $0x18] sm:$0xff]
        %v5504 = vsel %vm3114, %v5495, 0
        %5506 = vmatprep.subr.mxu0 0.0
        %5507 = vmatpush1.msra.mxu0 %v5499
        %5508 = vmatprep.subr.mxu0 0.0
        %5509 = vmatpush1.msra.mxu0 %v5500
        %5510 = vmatprep.subr.mxu0 0.0
        %5511 = vmatpush1.msra.mxu0 %v5501
        %5512 = vmatprep.subr.mxu0 0.0
        %5513 = vmatpush1.msra.mxu0 %v5502
        %5514 = vmatprep.subr.mxu0 0.0
        %5515 = vmatpush1.msra.mxu0 0.0
        %5516 = vmatprep.subr.mxu0 0.0
        %5517 = vmatpush1.msra.mxu0 0.0
        %5518 = vmatprep.subr.mxu0 0.0
        %5519 = vmatpush1.msra.mxu0 0.0
        %5520 = vmatprep.subr.mxu0 0.0
        %5521 = vmatpush1.msra.mxu0 0.0
        %5522 = vmatprep.subr.mxu0 0.0
        %5523 = vmatpush1.msra.mxu0 0.0
        %5524 = vmatprep.subr.mxu0 0.0
        %5525 = vmatpush1.msra.mxu0 0.0
        %5526 = vmatprep.subr.mxu0 0.0
        %5527 = vmatpush1.msra.mxu0 0.0
        %5528 = vmatprep.subr.mxu0 0.0
        %5529 = vmatpush1.msra.mxu0 0.0
        %5530 = vmatprep.subr.mxu0 0.0
        %5531 = vmatpush1.msra.mxu0 0.0
        %5532 = vmatprep.subr.mxu0 0.0
        %5533 = vmatpush1.msra.mxu0 0.0
        %5534 = vmatprep.subr.mxu0 0.0
        %5535 = vmatpush1.msra.mxu0 0.0
        %5536 = vmatprep.subr.mxu0 0.0
        %5537 = vmatpush1.msra.mxu0 0.0
        %5538 = vmatprep.subr.mxu0 0.0
        %5539 = vmatpush1.msra.mxu0 0.0
        %5540 = vmatprep.subr.mxu0 0.0
        %5541 = vmatpush1.msra.mxu0 0.0
        %5542 = vmatprep.subr.mxu0 0.0
        %5543 = vmatpush1.msra.mxu0 0.0
        %5544 = vmatprep.subr.mxu0 0.0
        %5545 = vmatpush1.msra.mxu0 0.0
        %5546 = vmatprep.subr.mxu0 0.0
        %5547 = vmatpush1.msra.mxu0 0.0
        %5548 = vmatprep.subr.mxu0 0.0
        %5549 = vmatpush1.msra.mxu0 0.0
        %5550 = vmatprep.subr.mxu0 0.0
        %5551 = vmatpush1.msra.mxu0 0.0
        %5552 = vmatprep.subr.mxu0 0.0
        %5553 = vmatpush1.msra.mxu0 0.0
        %5554 = vmatprep.subr.mxu0 0.0
        %5555 = vmatpush1.msra.mxu0 0.0
        %5556 = vmatprep.subr.mxu0 0.0
        %5557 = vmatpush1.msra.mxu0 0.0
        %5558 = vmatprep.subr.mxu0 0.0
        %5559 = vmatpush1.msra.mxu0 0.0
        %5560 = vmatprep.subr.mxu0 0.0
        %5561 = vmatpush1.msra.mxu0 0.0
        %5562 = vmatprep.subr.mxu0 0.0
        %5563 = vmatpush1.msra.mxu0 0.0
        %5564 = vmatprep.subr.mxu0 0.0
        %5565 = vmatpush1.msra.mxu0 0.0
        %5566 = vmatprep.subr.mxu0 0.0
        %5567 = vmatpush1.msra.mxu0 0.0
        %5568 = vmatprep.subr.mxu0 0.0
        %5569 = vmatpush1.msra.mxu0 0.0
        %5570 = vmatprep.mubr.f32.mxu0 0.0
        %5571 = vmatmul.mubr.f32.gmra.mrb[0].mxu0 %v5504
        %v5572 = vpop.f32.mrb[0].mxu0
        %v5573 = vadd.f32 0.0, %v5572
        %v5574 = vpop.f32.mrb[0].mxu0
        %5575 = vdwg.mxu0
        %v5576 = vadd.f32 %v5422, %v5573
        %s5577 = scalar_lea.vmem %s7, 28
        %v5578 = vld [vmem:[%s5577] sm:$0xf]
        %v5580 = vsel %vm4503, %v5578, 0
        %5582 = vmatprep.subr.mxu0 0.0
        %5583 = vmatpush1.msra.mxu0 %v4500
        %5584 = vmatprep.subr.mxu0 0.0
        %5585 = vmatpush1.msra.mxu0 %v4501
        %5586 = vmatprep.subr.mxu0 0.0
        %5587 = vmatpush1.msra.mxu0 0.0
        %5588 = vmatprep.subr.mxu0 0.0
        %5589 = vmatpush1.msra.mxu0 0.0
        %5590 = vmatprep.subr.mxu0 0.0
        %5591 = vmatpush1.msra.mxu0 0.0
        %5592 = vmatprep.subr.mxu0 0.0
        %5593 = vmatpush1.msra.mxu0 0.0
        %5594 = vmatprep.subr.mxu0 0.0
        %5595 = vmatpush1.msra.mxu0 0.0
        %5596 = vmatprep.subr.mxu0 0.0
        %5597 = vmatpush1.msra.mxu0 0.0
        %5598 = vmatprep.subr.mxu0 0.0
        %5599 = vmatpush1.msra.mxu0 0.0
        %5600 = vmatprep.subr.mxu0 0.0
        %5601 = vmatpush1.msra.mxu0 0.0
        %5602 = vmatprep.subr.mxu0 0.0
        %5603 = vmatpush1.msra.mxu0 0.0
        %5604 = vmatprep.subr.mxu0 0.0
        %5605 = vmatpush1.msra.mxu0 0.0
        %5606 = vmatprep.subr.mxu0 0.0
        %5607 = vmatpush1.msra.mxu0 0.0
        %5608 = vmatprep.subr.mxu0 0.0
        %5609 = vmatpush1.msra.mxu0 0.0
        %5610 = vmatprep.subr.mxu0 0.0
        %5611 = vmatpush1.msra.mxu0 0.0
        %5612 = vmatprep.subr.mxu0 0.0
        %5613 = vmatpush1.msra.mxu0 0.0
        %5614 = vmatprep.subr.mxu0 0.0
        %5615 = vmatpush1.msra.mxu0 0.0
        %5616 = vmatprep.subr.mxu0 0.0
        %5617 = vmatpush1.msra.mxu0 0.0
        %5618 = vmatprep.subr.mxu0 0.0
        %5619 = vmatpush1.msra.mxu0 0.0
        %5620 = vmatprep.subr.mxu0 0.0
        %5621 = vmatpush1.msra.mxu0 0.0
        %5622 = vmatprep.subr.mxu0 0.0
        %5623 = vmatpush1.msra.mxu0 0.0
        %5624 = vmatprep.subr.mxu0 0.0
        %5625 = vmatpush1.msra.mxu0 0.0
        %5626 = vmatprep.subr.mxu0 0.0
        %5627 = vmatpush1.msra.mxu0 0.0
        %5628 = vmatprep.subr.mxu0 0.0
        %5629 = vmatpush1.msra.mxu0 0.0
        %5630 = vmatprep.subr.mxu0 0.0
        %5631 = vmatpush1.msra.mxu0 0.0
        %5632 = vmatprep.subr.mxu0 0.0
        %5633 = vmatpush1.msra.mxu0 0.0
        %5634 = vmatprep.subr.mxu0 0.0
        %5635 = vmatpush1.msra.mxu0 0.0
        %5636 = vmatprep.subr.mxu0 0.0
        %5637 = vmatpush1.msra.mxu0 0.0
        %5638 = vmatprep.subr.mxu0 0.0
        %5639 = vmatpush1.msra.mxu0 0.0
        %5640 = vmatprep.subr.mxu0 0.0
        %5641 = vmatpush1.msra.mxu0 0.0
        %5642 = vmatprep.subr.mxu0 0.0
        %5643 = vmatpush1.msra.mxu0 0.0
        %5644 = vmatprep.subr.mxu0 0.0
        %5645 = vmatpush1.msra.mxu0 0.0
        %5646 = vmatprep.mubr.f32.mxu0 0.0
        %5647 = vmatmul.mubr.f32.gmra.mrb[0].mxu0 %v5580
        %v5648 = vpop.f32.mrb[0].mxu0
        %v5649 = vadd.f32 0.0, %v5648
        %v5650 = vpop.f32.mrb[0].mxu0
        %5651 = vdwg.mxu0
        %s5652 = scalar_lea.vmem %s8, 224
        %v5653 = vld [vmem:[%s5652] sm:$0xff]
        %v5654 = vld [vmem:[%s5652 + $0x8] sm:$0xff]
        %v5655 = vld [vmem:[%s5652 + $0x10] sm:$0xff]
        %v5656 = vld [vmem:[%s5652 + $0x18] sm:$0xff]
        %v5658 = vsel %vm3114, %v5649, 0
        %5660 = vmatprep.subr.mxu0 0.0
        %5661 = vmatpush1.msra.mxu0 %v5653
        %5662 = vmatprep.subr.mxu0 0.0
        %5663 = vmatpush1.msra.mxu0 %v5654
        %5664 = vmatprep.subr.mxu0 0.0
        %5665 = vmatpush1.msra.mxu0 %v5655
        %5666 = vmatprep.subr.mxu0 0.0
        %5667 = vmatpush1.msra.mxu0 %v5656
        %5668 = vmatprep.subr.mxu0 0.0
        %5669 = vmatpush1.msra.mxu0 0.0
        %5670 = vmatprep.subr.mxu0 0.0
        %5671 = vmatpush1.msra.mxu0 0.0
        %5672 = vmatprep.subr.mxu0 0.0
        %5673 = vmatpush1.msra.mxu0 0.0
        %5674 = vmatprep.subr.mxu0 0.0
        %5675 = vmatpush1.msra.mxu0 0.0
        %5676 = vmatprep.subr.mxu0 0.0
        %5677 = vmatpush1.msra.mxu0 0.0
        %5678 = vmatprep.subr.mxu0 0.0
        %5679 = vmatpush1.msra.mxu0 0.0
        %5680 = vmatprep.subr.mxu0 0.0
        %5681 = vmatpush1.msra.mxu0 0.0
        %5682 = vmatprep.subr.mxu0 0.0
        %5683 = vmatpush1.msra.mxu0 0.0
        %5684 = vmatprep.subr.mxu0 0.0
        %5685 = vmatpush1.msra.mxu0 0.0
        %5686 = vmatprep.subr.mxu0 0.0
        %5687 = vmatpush1.msra.mxu0 0.0
        %5688 = vmatprep.subr.mxu0 0.0
        %5689 = vmatpush1.msra.mxu0 0.0
        %5690 = vmatprep.subr.mxu0 0.0
        %5691 = vmatpush1.msra.mxu0 0.0
        %5692 = vmatprep.subr.mxu0 0.0
        %5693 = vmatpush1.msra.mxu0 0.0
        %5694 = vmatprep.subr.mxu0 0.0
        %5695 = vmatpush1.msra.mxu0 0.0
        %5696 = vmatprep.subr.mxu0 0.0
        %5697 = vmatpush1.msra.mxu0 0.0
        %5698 = vmatprep.subr.mxu0 0.0
        %5699 = vmatpush1.msra.mxu0 0.0
        %5700 = vmatprep.subr.mxu0 0.0
        %5701 = vmatpush1.msra.mxu0 0.0
        %5702 = vmatprep.subr.mxu0 0.0
        %5703 = vmatpush1.msra.mxu0 0.0
        %5704 = vmatprep.subr.mxu0 0.0
        %5705 = vmatpush1.msra.mxu0 0.0
        %5706 = vmatprep.subr.mxu0 0.0
        %5707 = vmatpush1.msra.mxu0 0.0
        %5708 = vmatprep.subr.mxu0 0.0
        %5709 = vmatpush1.msra.mxu0 0.0
        %5710 = vmatprep.subr.mxu0 0.0
        %5711 = vmatpush1.msra.mxu0 0.0
        %5712 = vmatprep.subr.mxu0 0.0
        %5713 = vmatpush1.msra.mxu0 0.0
        %5714 = vmatprep.subr.mxu0 0.0
        %5715 = vmatpush1.msra.mxu0 0.0
        %5716 = vmatprep.subr.mxu0 0.0
        %5717 = vmatpush1.msra.mxu0 0.0
        %5718 = vmatprep.subr.mxu0 0.0
        %5719 = vmatpush1.msra.mxu0 0.0
        %5720 = vmatprep.subr.mxu0 0.0
        %5721 = vmatpush1.msra.mxu0 0.0
        %5722 = vmatprep.subr.mxu0 0.0
        %5723 = vmatpush1.msra.mxu0 0.0
        %5724 = vmatprep.mubr.f32.mxu0 0.0
        %5725 = vmatmul.mubr.f32.gmra.mrb[0].mxu0 %v5658
        %v5726 = vpop.f32.mrb[0].mxu0
        %v5727 = vadd.f32 0.0, %v5726
        %v5728 = vpop.f32.mrb[0].mxu0
        %5729 = vdwg.mxu0
        %v5730 = vadd.f32 %v5576, %v5727
        %s5731 = scalar_lea.vmem %s7, 32
        %v5732 = vld [vmem:[%s5731] sm:$0xf]
        %v5734 = vsel %vm4503, %v5732, 0
        %5736 = vmatprep.subr.mxu0 0.0
        %5737 = vmatpush1.msra.mxu0 %v4500
        %5738 = vmatprep.subr.mxu0 0.0
        %5739 = vmatpush1.msra.mxu0 %v4501
        %5740 = vmatprep.subr.mxu0 0.0
        %5741 = vmatpush1.msra.mxu0 0.0
        %5742 = vmatprep.subr.mxu0 0.0
        %5743 = vmatpush1.msra.mxu0 0.0
        %5744 = vmatprep.subr.mxu0 0.0
        %5745 = vmatpush1.msra.mxu0 0.0
        %5746 = vmatprep.subr.mxu0 0.0
        %5747 = vmatpush1.msra.mxu0 0.0
        %5748 = vmatprep.subr.mxu0 0.0
        %5749 = vmatpush1.msra.mxu0 0.0
        %5750 = vmatprep.subr.mxu0 0.0
        %5751 = vmatpush1.msra.mxu0 0.0
        %5752 = vmatprep.subr.mxu0 0.0
        %5753 = vmatpush1.msra.mxu0 0.0
        %5754 = vmatprep.subr.mxu0 0.0
        %5755 = vmatpush1.msra.mxu0 0.0
        %5756 = vmatprep.subr.mxu0 0.0
        %5757 = vmatpush1.msra.mxu0 0.0
        %5758 = vmatprep.subr.mxu0 0.0
        %5759 = vmatpush1.msra.mxu0 0.0
        %5760 = vmatprep.subr.mxu0 0.0
        %5761 = vmatpush1.msra.mxu0 0.0
        %5762 = vmatprep.subr.mxu0 0.0
        %5763 = vmatpush1.msra.mxu0 0.0
        %5764 = vmatprep.subr.mxu0 0.0
        %5765 = vmatpush1.msra.mxu0 0.0
        %5766 = vmatprep.subr.mxu0 0.0
        %5767 = vmatpush1.msra.mxu0 0.0
        %5768 = vmatprep.subr.mxu0 0.0
        %5769 = vmatpush1.msra.mxu0 0.0
        %5770 = vmatprep.subr.mxu0 0.0
        %5771 = vmatpush1.msra.mxu0 0.0
        %5772 = vmatprep.subr.mxu0 0.0
        %5773 = vmatpush1.msra.mxu0 0.0
        %5774 = vmatprep.subr.mxu0 0.0
        %5775 = vmatpush1.msra.mxu0 0.0
        %5776 = vmatprep.subr.mxu0 0.0
        %5777 = vmatpush1.msra.mxu0 0.0
        %5778 = vmatprep.subr.mxu0 0.0
        %5779 = vmatpush1.msra.mxu0 0.0
        %5780 = vmatprep.subr.mxu0 0.0
        %5781 = vmatpush1.msra.mxu0 0.0
        %5782 = vmatprep.subr.mxu0 0.0
        %5783 = vmatpush1.msra.mxu0 0.0
        %5784 = vmatprep.subr.mxu0 0.0
        %5785 = vmatpush1.msra.mxu0 0.0
        %5786 = vmatprep.subr.mxu0 0.0
        %5787 = vmatpush1.msra.mxu0 0.0
        %5788 = vmatprep.subr.mxu0 0.0
        %5789 = vmatpush1.msra.mxu0 0.0
        %5790 = vmatprep.subr.mxu0 0.0
        %5791 = vmatpush1.msra.mxu0 0.0
        %5792 = vmatprep.subr.mxu0 0.0
        %5793 = vmatpush1.msra.mxu0 0.0
        %5794 = vmatprep.subr.mxu0 0.0
        %5795 = vmatpush1.msra.mxu0 0.0
        %5796 = vmatprep.subr.mxu0 0.0
        %5797 = vmatpush1.msra.mxu0 0.0
        %5798 = vmatprep.subr.mxu0 0.0
        %5799 = vmatpush1.msra.mxu0 0.0
        %5800 = vmatprep.mubr.f32.mxu0 0.0
        %5801 = vmatmul.mubr.f32.gmra.mrb[0].mxu0 %v5734
        %v5802 = vpop.f32.mrb[0].mxu0
        %v5803 = vadd.f32 0.0, %v5802
        %v5804 = vpop.f32.mrb[0].mxu0
        %5805 = vdwg.mxu0
        %s5806 = scalar_lea.vmem %s8, 256
        %v5807 = vld [vmem:[%s5806] sm:$0xff]
        %v5808 = vld [vmem:[%s5806 + $0x8] sm:$0xff]
        %v5809 = vld [vmem:[%s5806 + $0x10] sm:$0xff]
        %v5810 = vld [vmem:[%s5806 + $0x18] sm:$0xff]
        %v5812 = vsel %vm3114, %v5803, 0
        %5814 = vmatprep.subr.mxu0 0.0
        %5815 = vmatpush1.msra.mxu0 %v5807
        %5816 = vmatprep.subr.mxu0 0.0
        %5817 = vmatpush1.msra.mxu0 %v5808
        %5818 = vmatprep.subr.mxu0 0.0
        %5819 = vmatpush1.msra.mxu0 %v5809
        %5820 = vmatprep.subr.mxu0 0.0
        %5821 = vmatpush1.msra.mxu0 %v5810
        %5822 = vmatprep.subr.mxu0 0.0
        %5823 = vmatpush1.msra.mxu0 0.0
        %5824 = vmatprep.subr.mxu0 0.0
        %5825 = vmatpush1.msra.mxu0 0.0
        %5826 = vmatprep.subr.mxu0 0.0
        %5827 = vmatpush1.msra.mxu0 0.0
        %5828 = vmatprep.subr.mxu0 0.0
        %5829 = vmatpush1.msra.mxu0 0.0
        %5830 = vmatprep.subr.mxu0 0.0
        %5831 = vmatpush1.msra.mxu0 0.0
        %5832 = vmatprep.subr.mxu0 0.0
        %5833 = vmatpush1.msra.mxu0 0.0
        %5834 = vmatprep.subr.mxu0 0.0
        %5835 = vmatpush1.msra.mxu0 0.0
        %5836 = vmatprep.subr.mxu0 0.0
        %5837 = vmatpush1.msra.mxu0 0.0
        %5838 = vmatprep.subr.mxu0 0.0
        %5839 = vmatpush1.msra.mxu0 0.0
        %5840 = vmatprep.subr.mxu0 0.0
        %5841 = vmatpush1.msra.mxu0 0.0
        %5842 = vmatprep.subr.mxu0 0.0
        %5843 = vmatpush1.msra.mxu0 0.0
        %5844 = vmatprep.subr.mxu0 0.0
        %5845 = vmatpush1.msra.mxu0 0.0
        %5846 = vmatprep.subr.mxu0 0.0
        %5847 = vmatpush1.msra.mxu0 0.0
        %5848 = vmatprep.subr.mxu0 0.0
        %5849 = vmatpush1.msra.mxu0 0.0
        %5850 = vmatprep.subr.mxu0 0.0
        %5851 = vmatpush1.msra.mxu0 0.0
        %5852 = vmatprep.subr.mxu0 0.0
        %5853 = vmatpush1.msra.mxu0 0.0
        %5854 = vmatprep.subr.mxu0 0.0
        %5855 = vmatpush1.msra.mxu0 0.0
        %5856 = vmatprep.subr.mxu0 0.0
        %5857 = vmatpush1.msra.mxu0 0.0
        %5858 = vmatprep.subr.mxu0 0.0
        %5859 = vmatpush1.msra.mxu0 0.0
        %5860 = vmatprep.subr.mxu0 0.0
        %5861 = vmatpush1.msra.mxu0 0.0
        %5862 = vmatprep.subr.mxu0 0.0
        %5863 = vmatpush1.msra.mxu0 0.0
        %5864 = vmatprep.subr.mxu0 0.0
        %5865 = vmatpush1.msra.mxu0 0.0
        %5866 = vmatprep.subr.mxu0 0.0
        %5867 = vmatpush1.msra.mxu0 0.0
        %5868 = vmatprep.subr.mxu0 0.0
        %5869 = vmatpush1.msra.mxu0 0.0
        %5870 = vmatprep.subr.mxu0 0.0
        %5871 = vmatpush1.msra.mxu0 0.0
        %5872 = vmatprep.subr.mxu0 0.0
        %5873 = vmatpush1.msra.mxu0 0.0
        %5874 = vmatprep.subr.mxu0 0.0
        %5875 = vmatpush1.msra.mxu0 0.0
        %5876 = vmatprep.subr.mxu0 0.0
        %5877 = vmatpush1.msra.mxu0 0.0
        %5878 = vmatprep.mubr.f32.mxu0 0.0
        %5879 = vmatmul.mubr.f32.gmra.mrb[0].mxu0 %v5812
        %v5880 = vpop.f32.mrb[0].mxu0
        %v5881 = vadd.f32 0.0, %v5880
        %v5882 = vpop.f32.mrb[0].mxu0
        %5883 = vdwg.mxu0
        %v5884 = vadd.f32 %v5730, %v5881
        %v5885 = vld [vmem:[%s9] sm:$0x1]
        %v5887 = vlaneseq
        %v5888 = vshrl.u32 %v5887, 7
        %v5889 = vsub.s32 0, %v5888
        %v5890 = vrot.slane %v5885, %v5889
        %v5892 = vadd.f32 %v5884, %v5890
        %vm5893 = vcmp.gt.f32.partialorder %v5892, 0.0
        %v5894 = vmin.f32 %v5892, 0.0
        %v5895 = vmul.f32 %v5894, 1.442695
        %v5896 = vpow.pop %v5895
        %v5897 = vsub.f32 %v5896, 1.0
        %v5898 = vsel %vm5893, %v5892, %v5897
        %v5899 = vld [vmem:[%s10] sm:$0x1]
        %v5901 = vsel %vm760, %v5899, 0
        %v5904 = vsel %vm785, %v5898, 0
        %5906 = vmatprep.subr.mxu0 0.0
        %5907 = vmatpush1.msra.mxu0 %v5904
        %5908 = vmatprep.subr.mxu0 0.0
        %5909 = vmatpush1.msra.mxu0 0.0
        %5910 = vmatprep.subr.mxu0 0.0
        %5911 = vmatpush1.msra.mxu0 0.0
        %5912 = vmatprep.subr.mxu0 0.0
        %5913 = vmatpush1.msra.mxu0 0.0
        %5914 = vmatprep.subr.mxu0 0.0
        %5915 = vmatpush1.msra.mxu0 0.0
        %5916 = vmatprep.subr.mxu0 0.0
        %5917 = vmatpush1.msra.mxu0 0.0
        %5918 = vmatprep.subr.mxu0 0.0
        %5919 = vmatpush1.msra.mxu0 0.0
        %5920 = vmatprep.subr.mxu0 0.0
        %5921 = vmatpush1.msra.mxu0 0.0
        %5922 = vmatprep.subr.mxu0 0.0
        %5923 = vmatpush1.msra.mxu0 0.0
        %5924 = vmatprep.subr.mxu0 0.0
        %5925 = vmatpush1.msra.mxu0 0.0
        %5926 = vmatprep.subr.mxu0 0.0
        %5927 = vmatpush1.msra.mxu0 0.0
        %5928 = vmatprep.subr.mxu0 0.0
        %5929 = vmatpush1.msra.mxu0 0.0
        %5930 = vmatprep.subr.mxu0 0.0
        %5931 = vmatpush1.msra.mxu0 0.0
        %5932 = vmatprep.subr.mxu0 0.0
        %5933 = vmatpush1.msra.mxu0 0.0
        %5934 = vmatprep.subr.mxu0 0.0
        %5935 = vmatpush1.msra.mxu0 0.0
        %5936 = vmatprep.subr.mxu0 0.0
        %5937 = vmatpush1.msra.mxu0 0.0
        %5938 = vmatprep.subr.mxu0 0.0
        %5939 = vmatpush1.msra.mxu0 0.0
        %5940 = vmatprep.subr.mxu0 0.0
        %5941 = vmatpush1.msra.mxu0 0.0
        %5942 = vmatprep.subr.mxu0 0.0
        %5943 = vmatpush1.msra.mxu0 0.0
        %5944 = vmatprep.subr.mxu0 0.0
        %5945 = vmatpush1.msra.mxu0 0.0
        %5946 = vmatprep.subr.mxu0 0.0
        %5947 = vmatpush1.msra.mxu0 0.0
        %5948 = vmatprep.subr.mxu0 0.0
        %5949 = vmatpush1.msra.mxu0 0.0
        %5950 = vmatprep.subr.mxu0 0.0
        %5951 = vmatpush1.msra.mxu0 0.0
        %5952 = vmatprep.subr.mxu0 0.0
        %5953 = vmatpush1.msra.mxu0 0.0
        %5954 = vmatprep.subr.mxu0 0.0
        %5955 = vmatpush1.msra.mxu0 0.0
        %5956 = vmatprep.subr.mxu0 0.0
        %5957 = vmatpush1.msra.mxu0 0.0
        %5958 = vmatprep.subr.mxu0 0.0
        %5959 = vmatpush1.msra.mxu0 0.0
        %5960 = vmatprep.subr.mxu0 0.0
        %5961 = vmatpush1.msra.mxu0 0.0
        %5962 = vmatprep.subr.mxu0 0.0
        %5963 = vmatpush1.msra.mxu0 0.0
        %5964 = vmatprep.subr.mxu0 0.0
        %5965 = vmatpush1.msra.mxu0 0.0
        %5966 = vmatprep.subr.mxu0 0.0
        %5967 = vmatpush1.msra.mxu0 0.0
        %5968 = vmatprep.subr.mxu0 0.0
        %5969 = vmatpush1.msra.mxu0 0.0
        %5970 = vmatprep.mubr.f32.mxu0 0.0
        %5971 = vmatmul.mubr.f32.gmra.mrb[0].mxu0 %v5901
        %v5972 = vpop.f32.mrb[0].mxu0
        %v5973 = vadd.f32 0.0, %v5972
        %v5974 = vpop.f32.mrb[0].mxu0
        %5975 = vdwg.mxu0
        %v5976 = vld [vmem:[#allocation7] sm:$0xff]
        %v5977 = vld [vmem:[#allocation7 + $0x8] sm:$0xff]
        %v5978 = vld [vmem:[#allocation7 + $0x10] sm:$0xff]
        %v5979 = vld [vmem:[#allocation7 + $0x18] sm:$0xff]
        %s5980 = scalar_lea.vmem %s10, 1
        %v5981 = vld [vmem:[%s5980] sm:$0x1]
        %v5983 = vsel %vm760, %v5981, 0
        %5985 = vmatprep.subr.mxu0 0.0
        %5986 = vmatpush1.msra.mxu0 %v5904
        %5987 = vmatprep.subr.mxu0 0.0
        %5988 = vmatpush1.msra.mxu0 0.0
        %5989 = vmatprep.subr.mxu0 0.0
        %5990 = vmatpush1.msra.mxu0 0.0
        %5991 = vmatprep.subr.mxu0 0.0
        %5992 = vmatpush1.msra.mxu0 0.0
        %5993 = vmatprep.subr.mxu0 0.0
        %5994 = vmatpush1.msra.mxu0 0.0
        %5995 = vmatprep.subr.mxu0 0.0
        %5996 = vmatpush1.msra.mxu0 0.0
        %5997 = vmatprep.subr.mxu0 0.0
        %5998 = vmatpush1.msra.mxu0 0.0
        %5999 = vmatprep.subr.mxu0 0.0
        %6000 = vmatpush1.msra.mxu0 0.0
        %6001 = vmatprep.subr.mxu0 0.0
        %6002 = vmatpush1.msra.mxu0 0.0
        %6003 = vmatprep.subr.mxu0 0.0
        %6004 = vmatpush1.msra.mxu0 0.0
        %6005 = vmatprep.subr.mxu0 0.0
        %6006 = vmatpush1.msra.mxu0 0.0
        %6007 = vmatprep.subr.mxu0 0.0
        %6008 = vmatpush1.msra.mxu0 0.0
        %6009 = vmatprep.subr.mxu0 0.0
        %6010 = vmatpush1.msra.mxu0 0.0
        %6011 = vmatprep.subr.mxu0 0.0
        %6012 = vmatpush1.msra.mxu0 0.0
        %6013 = vmatprep.subr.mxu0 0.0
        %6014 = vmatpush1.msra.mxu0 0.0
        %6015 = vmatprep.subr.mxu0 0.0
        %6016 = vmatpush1.msra.mxu0 0.0
        %6017 = vmatprep.subr.mxu0 0.0
        %6018 = vmatpush1.msra.mxu0 0.0
        %6019 = vmatprep.subr.mxu0 0.0
        %6020 = vmatpush1.msra.mxu0 0.0
        %6021 = vmatprep.subr.mxu0 0.0
        %6022 = vmatpush1.msra.mxu0 0.0
        %6023 = vmatprep.subr.mxu0 0.0
        %6024 = vmatpush1.msra.mxu0 0.0
        %6025 = vmatprep.subr.mxu0 0.0
        %6026 = vmatpush1.msra.mxu0 0.0
        %6027 = vmatprep.subr.mxu0 0.0
        %6028 = vmatpush1.msra.mxu0 0.0
        %6029 = vmatprep.subr.mxu0 0.0
        %6030 = vmatpush1.msra.mxu0 0.0
        %6031 = vmatprep.subr.mxu0 0.0
        %6032 = vmatpush1.msra.mxu0 0.0
        %6033 = vmatprep.subr.mxu0 0.0
        %6034 = vmatpush1.msra.mxu0 0.0
        %6035 = vmatprep.subr.mxu0 0.0
        %6036 = vmatpush1.msra.mxu0 0.0
        %6037 = vmatprep.subr.mxu0 0.0
        %6038 = vmatpush1.msra.mxu0 0.0
        %6039 = vmatprep.subr.mxu0 0.0
        %6040 = vmatpush1.msra.mxu0 0.0
        %6041 = vmatprep.subr.mxu0 0.0
        %6042 = vmatpush1.msra.mxu0 0.0
        %6043 = vmatprep.subr.mxu0 0.0
        %6044 = vmatpush1.msra.mxu0 0.0
        %6045 = vmatprep.subr.mxu0 0.0
        %6046 = vmatpush1.msra.mxu0 0.0
        %6047 = vmatprep.subr.mxu0 0.0
        %6048 = vmatpush1.msra.mxu0 0.0
        %6049 = vmatprep.mubr.f32.mxu0 0.0
        %6050 = vmatmul.mubr.f32.gmra.mrb[0].mxu0 %v5983
        %v6051 = vpop.f32.mrb[0].mxu0
        %v6052 = vadd.f32 0.0, %v6051
        %v6053 = vpop.f32.mrb[0].mxu0
        %6054 = vdwg.mxu0
        %s6055 = scalar_lea.vmem [#allocation7], 32
        %v6056 = vld [vmem:[%s6055] sm:$0xff]
        %v6057 = vld [vmem:[%s6055 + $0x8] sm:$0xff]
        %v6058 = vld [vmem:[%s6055 + $0x10] sm:$0xff]
        %v6059 = vld [vmem:[%s6055 + $0x18] sm:$0xff]
        %v6061 = vsel %vm3114, %v6052, 0
        %6063 = vmatprep.subr.mxu0 0.0
        %6064 = vmatpush1.msra.mxu0 %v6056
        %6065 = vmatprep.subr.mxu0 0.0
        %6066 = vmatpush1.msra.mxu0 %v6057
        %6067 = vmatprep.subr.mxu0 0.0
        %6068 = vmatpush1.msra.mxu0 %v6058
        %6069 = vmatprep.subr.mxu0 0.0
        %6070 = vmatpush1.msra.mxu0 %v6059
        %6071 = vmatprep.subr.mxu0 0.0
        %6072 = vmatpush1.msra.mxu0 0.0
        %6073 = vmatprep.subr.mxu0 0.0
        %6074 = vmatpush1.msra.mxu0 0.0
        %6075 = vmatprep.subr.mxu0 0.0
        %6076 = vmatpush1.msra.mxu0 0.0
        %6077 = vmatprep.subr.mxu0 0.0
        %6078 = vmatpush1.msra.mxu0 0.0
        %6079 = vmatprep.subr.mxu0 0.0
        %6080 = vmatpush1.msra.mxu0 0.0
        %6081 = vmatprep.subr.mxu0 0.0
        %6082 = vmatpush1.msra.mxu0 0.0
        %6083 = vmatprep.subr.mxu0 0.0
        %6084 = vmatpush1.msra.mxu0 0.0
        %6085 = vmatprep.subr.mxu0 0.0
        %6086 = vmatpush1.msra.mxu0 0.0
        %6087 = vmatprep.subr.mxu0 0.0
        %6088 = vmatpush1.msra.mxu0 0.0
        %6089 = vmatprep.subr.mxu0 0.0
        %6090 = vmatpush1.msra.mxu0 0.0
        %6091 = vmatprep.subr.mxu0 0.0
        %6092 = vmatpush1.msra.mxu0 0.0
        %6093 = vmatprep.subr.mxu0 0.0
        %6094 = vmatpush1.msra.mxu0 0.0
        %6095 = vmatprep.subr.mxu0 0.0
        %6096 = vmatpush1.msra.mxu0 0.0
        %6097 = vmatprep.subr.mxu0 0.0
        %6098 = vmatpush1.msra.mxu0 0.0
        %6099 = vmatprep.subr.mxu0 0.0
        %6100 = vmatpush1.msra.mxu0 0.0
        %6101 = vmatprep.subr.mxu0 0.0
        %6102 = vmatpush1.msra.mxu0 0.0
        %6103 = vmatprep.subr.mxu0 0.0
        %6104 = vmatpush1.msra.mxu0 0.0
        %6105 = vmatprep.subr.mxu0 0.0
        %6106 = vmatpush1.msra.mxu0 0.0
        %6107 = vmatprep.subr.mxu0 0.0
        %6108 = vmatpush1.msra.mxu0 0.0
        %6109 = vmatprep.subr.mxu0 0.0
        %6110 = vmatpush1.msra.mxu0 0.0
        %6111 = vmatprep.subr.mxu0 0.0
        %6112 = vmatpush1.msra.mxu0 0.0
        %6113 = vmatprep.subr.mxu0 0.0
        %6114 = vmatpush1.msra.mxu0 0.0
        %6115 = vmatprep.subr.mxu0 0.0
        %6116 = vmatpush1.msra.mxu0 0.0
        %6117 = vmatprep.subr.mxu0 0.0
        %6118 = vmatpush1.msra.mxu0 0.0
        %6119 = vmatprep.subr.mxu0 0.0
        %6120 = vmatpush1.msra.mxu0 0.0
        %6121 = vmatprep.subr.mxu0 0.0
        %6122 = vmatpush1.msra.mxu0 0.0
        %6123 = vmatprep.subr.mxu0 0.0
        %6124 = vmatpush1.msra.mxu0 0.0
        %6125 = vmatprep.subr.mxu0 0.0
        %6126 = vmatpush1.msra.mxu0 0.0
        %6127 = vmatprep.mubr.f32.mxu0 0.0
        %6128 = vmatmul.mubr.f32.gmra.mrb[0].mxu0 %v6061
        %v6129 = vpop.f32.mrb[0].mxu0
        %v6130 = vadd.f32 0.0, %v6129
        %v6131 = vpop.f32.mrb[0].mxu0
        %6132 = vdwg.mxu0
        %v6134 = vsel %vm3114, %v5973, 0
        %6136 = vmatprep.subr.mxu0 0.0
        %6137 = vmatpush1.msra.mxu0 %v5976
        %6138 = vmatprep.subr.mxu0 0.0
        %6139 = vmatpush1.msra.mxu0 %v5977
        %6140 = vmatprep.subr.mxu0 0.0
        %6141 = vmatpush1.msra.mxu0 %v5978
        %6142 = vmatprep.subr.mxu0 0.0
        %6143 = vmatpush1.msra.mxu0 %v5979
        %6144 = vmatprep.subr.mxu0 0.0
        %6145 = vmatpush1.msra.mxu0 0.0
        %6146 = vmatprep.subr.mxu0 0.0
        %6147 = vmatpush1.msra.mxu0 0.0
        %6148 = vmatprep.subr.mxu0 0.0
        %6149 = vmatpush1.msra.mxu0 0.0
        %6150 = vmatprep.subr.mxu0 0.0
        %6151 = vmatpush1.msra.mxu0 0.0
        %6152 = vmatprep.subr.mxu0 0.0
        %6153 = vmatpush1.msra.mxu0 0.0
        %6154 = vmatprep.subr.mxu0 0.0
        %6155 = vmatpush1.msra.mxu0 0.0
        %6156 = vmatprep.subr.mxu0 0.0
        %6157 = vmatpush1.msra.mxu0 0.0
        %6158 = vmatprep.subr.mxu0 0.0
        %6159 = vmatpush1.msra.mxu0 0.0
        %6160 = vmatprep.subr.mxu0 0.0
        %6161 = vmatpush1.msra.mxu0 0.0
        %6162 = vmatprep.subr.mxu0 0.0
        %6163 = vmatpush1.msra.mxu0 0.0
        %6164 = vmatprep.subr.mxu0 0.0
        %6165 = vmatpush1.msra.mxu0 0.0
        %6166 = vmatprep.subr.mxu0 0.0
        %6167 = vmatpush1.msra.mxu0 0.0
        %6168 = vmatprep.subr.mxu0 0.0
        %6169 = vmatpush1.msra.mxu0 0.0
        %6170 = vmatprep.subr.mxu0 0.0
        %6171 = vmatpush1.msra.mxu0 0.0
        %6172 = vmatprep.subr.mxu0 0.0
        %6173 = vmatpush1.msra.mxu0 0.0
        %6174 = vmatprep.subr.mxu0 0.0
        %6175 = vmatpush1.msra.mxu0 0.0
        %6176 = vmatprep.subr.mxu0 0.0
        %6177 = vmatpush1.msra.mxu0 0.0
        %6178 = vmatprep.subr.mxu0 0.0
        %6179 = vmatpush1.msra.mxu0 0.0
        %6180 = vmatprep.subr.mxu0 0.0
        %6181 = vmatpush1.msra.mxu0 0.0
        %6182 = vmatprep.subr.mxu0 0.0
        %6183 = vmatpush1.msra.mxu0 0.0
        %6184 = vmatprep.subr.mxu0 0.0
        %6185 = vmatpush1.msra.mxu0 0.0
        %6186 = vmatprep.subr.mxu0 0.0
        %6187 = vmatpush1.msra.mxu0 0.0
        %6188 = vmatprep.subr.mxu0 0.0
        %6189 = vmatpush1.msra.mxu0 0.0
        %6190 = vmatprep.subr.mxu0 0.0
        %6191 = vmatpush1.msra.mxu0 0.0
        %6192 = vmatprep.subr.mxu0 0.0
        %6193 = vmatpush1.msra.mxu0 0.0
        %6194 = vmatprep.subr.mxu0 0.0
        %6195 = vmatpush1.msra.mxu0 0.0
        %6196 = vmatprep.subr.mxu0 0.0
        %6197 = vmatpush1.msra.mxu0 0.0
        %6198 = vmatprep.subr.mxu0 0.0
        %6199 = vmatpush1.msra.mxu0 0.0
        %6200 = vmatprep.mubr.f32.mxu0 0.0
        %6201 = vmatmul.mubr.f32.gmra.mrb[0].mxu0 %v6134
        %v6202 = vpop.f32.mrb[0].mxu0
        %v6203 = vadd.f32 %v6130, %v6202
        %v6204 = vpop.f32.mrb[0].mxu0
        %6205 = vdwg.mxu0
        %s6206 = scalar_lea.vmem %s10, 2
        %v6207 = vld [vmem:[%s6206] sm:$0x1]
        %v6209 = vsel %vm760, %v6207, 0
        %6211 = vmatprep.subr.mxu0 0.0
        %6212 = vmatpush1.msra.mxu0 %v5904
        %6213 = vmatprep.subr.mxu0 0.0
        %6214 = vmatpush1.msra.mxu0 0.0
        %6215 = vmatprep.subr.mxu0 0.0
        %6216 = vmatpush1.msra.mxu0 0.0
        %6217 = vmatprep.subr.mxu0 0.0
        %6218 = vmatpush1.msra.mxu0 0.0
        %6219 = vmatprep.subr.mxu0 0.0
        %6220 = vmatpush1.msra.mxu0 0.0
        %6221 = vmatprep.subr.mxu0 0.0
        %6222 = vmatpush1.msra.mxu0 0.0
        %6223 = vmatprep.subr.mxu0 0.0
        %6224 = vmatpush1.msra.mxu0 0.0
        %6225 = vmatprep.subr.mxu0 0.0
        %6226 = vmatpush1.msra.mxu0 0.0
        %6227 = vmatprep.subr.mxu0 0.0
        %6228 = vmatpush1.msra.mxu0 0.0
        %6229 = vmatprep.subr.mxu0 0.0
        %6230 = vmatpush1.msra.mxu0 0.0
        %6231 = vmatprep.subr.mxu0 0.0
        %6232 = vmatpush1.msra.mxu0 0.0
        %6233 = vmatprep.subr.mxu0 0.0
        %6234 = vmatpush1.msra.mxu0 0.0
        %6235 = vmatprep.subr.mxu0 0.0
        %6236 = vmatpush1.msra.mxu0 0.0
        %6237 = vmatprep.subr.mxu0 0.0
        %6238 = vmatpush1.msra.mxu0 0.0
        %6239 = vmatprep.subr.mxu0 0.0
        %6240 = vmatpush1.msra.mxu0 0.0
        %6241 = vmatprep.subr.mxu0 0.0
        %6242 = vmatpush1.msra.mxu0 0.0
        %6243 = vmatprep.subr.mxu0 0.0
        %6244 = vmatpush1.msra.mxu0 0.0
        %6245 = vmatprep.subr.mxu0 0.0
        %6246 = vmatpush1.msra.mxu0 0.0
        %6247 = vmatprep.subr.mxu0 0.0
        %6248 = vmatpush1.msra.mxu0 0.0
        %6249 = vmatprep.subr.mxu0 0.0
        %6250 = vmatpush1.msra.mxu0 0.0
        %6251 = vmatprep.subr.mxu0 0.0
        %6252 = vmatpush1.msra.mxu0 0.0
        %6253 = vmatprep.subr.mxu0 0.0
        %6254 = vmatpush1.msra.mxu0 0.0
        %6255 = vmatprep.subr.mxu0 0.0
        %6256 = vmatpush1.msra.mxu0 0.0
        %6257 = vmatprep.subr.mxu0 0.0
        %6258 = vmatpush1.msra.mxu0 0.0
        %6259 = vmatprep.subr.mxu0 0.0
        %6260 = vmatpush1.msra.mxu0 0.0
        %6261 = vmatprep.subr.mxu0 0.0
        %6262 = vmatpush1.msra.mxu0 0.0
        %6263 = vmatprep.subr.mxu0 0.0
        %6264 = vmatpush1.msra.mxu0 0.0
        %6265 = vmatprep.subr.mxu0 0.0
        %6266 = vmatpush1.msra.mxu0 0.0
        %6267 = vmatprep.subr.mxu0 0.0
        %6268 = vmatpush1.msra.mxu0 0.0
        %6269 = vmatprep.subr.mxu0 0.0
        %6270 = vmatpush1.msra.mxu0 0.0
        %6271 = vmatprep.subr.mxu0 0.0
        %6272 = vmatpush1.msra.mxu0 0.0
        %6273 = vmatprep.subr.mxu0 0.0
        %6274 = vmatpush1.msra.mxu0 0.0
        %6275 = vmatprep.mubr.f32.mxu0 0.0
        %6276 = vmatmul.mubr.f32.gmra.mrb[0].mxu0 %v6209
        %v6277 = vpop.f32.mrb[0].mxu0
        %v6278 = vadd.f32 0.0, %v6277
        %v6279 = vpop.f32.mrb[0].mxu0
        %6280 = vdwg.mxu0
        %s6281 = scalar_lea.vmem [#allocation7], 64
        %v6282 = vld [vmem:[%s6281] sm:$0xff]
        %v6283 = vld [vmem:[%s6281 + $0x8] sm:$0xff]
        %v6284 = vld [vmem:[%s6281 + $0x10] sm:$0xff]
        %v6285 = vld [vmem:[%s6281 + $0x18] sm:$0xff]
        %v6287 = vsel %vm3114, %v6278, 0
        %6289 = vmatprep.subr.mxu0 0.0
        %6290 = vmatpush1.msra.mxu0 %v6282
        %6291 = vmatprep.subr.mxu0 0.0
        %6292 = vmatpush1.msra.mxu0 %v6283
        %6293 = vmatprep.subr.mxu0 0.0
        %6294 = vmatpush1.msra.mxu0 %v6284
        %6295 = vmatprep.subr.mxu0 0.0
        %6296 = vmatpush1.msra.mxu0 %v6285
        %6297 = vmatprep.subr.mxu0 0.0
        %6298 = vmatpush1.msra.mxu0 0.0
        %6299 = vmatprep.subr.mxu0 0.0
        %6300 = vmatpush1.msra.mxu0 0.0
        %6301 = vmatprep.subr.mxu0 0.0
        %6302 = vmatpush1.msra.mxu0 0.0
        %6303 = vmatprep.subr.mxu0 0.0
        %6304 = vmatpush1.msra.mxu0 0.0
        %6305 = vmatprep.subr.mxu0 0.0
        %6306 = vmatpush1.msra.mxu0 0.0
        %6307 = vmatprep.subr.mxu0 0.0
        %6308 = vmatpush1.msra.mxu0 0.0
        %6309 = vmatprep.subr.mxu0 0.0
        %6310 = vmatpush1.msra.mxu0 0.0
        %6311 = vmatprep.subr.mxu0 0.0
        %6312 = vmatpush1.msra.mxu0 0.0
        %6313 = vmatprep.subr.mxu0 0.0
        %6314 = vmatpush1.msra.mxu0 0.0
        %6315 = vmatprep.subr.mxu0 0.0
        %6316 = vmatpush1.msra.mxu0 0.0
        %6317 = vmatprep.subr.mxu0 0.0
        %6318 = vmatpush1.msra.mxu0 0.0
        %6319 = vmatprep.subr.mxu0 0.0
        %6320 = vmatpush1.msra.mxu0 0.0
        %6321 = vmatprep.subr.mxu0 0.0
        %6322 = vmatpush1.msra.mxu0 0.0
        %6323 = vmatprep.subr.mxu0 0.0
        %6324 = vmatpush1.msra.mxu0 0.0
        %6325 = vmatprep.subr.mxu0 0.0
        %6326 = vmatpush1.msra.mxu0 0.0
        %6327 = vmatprep.subr.mxu0 0.0
        %6328 = vmatpush1.msra.mxu0 0.0
        %6329 = vmatprep.subr.mxu0 0.0
        %6330 = vmatpush1.msra.mxu0 0.0
        %6331 = vmatprep.subr.mxu0 0.0
        %6332 = vmatpush1.msra.mxu0 0.0
        %6333 = vmatprep.subr.mxu0 0.0
        %6334 = vmatpush1.msra.mxu0 0.0
        %6335 = vmatprep.subr.mxu0 0.0
        %6336 = vmatpush1.msra.mxu0 0.0
        %6337 = vmatprep.subr.mxu0 0.0
        %6338 = vmatpush1.msra.mxu0 0.0
        %6339 = vmatprep.subr.mxu0 0.0
        %6340 = vmatpush1.msra.mxu0 0.0
        %6341 = vmatprep.subr.mxu0 0.0
        %6342 = vmatpush1.msra.mxu0 0.0
        %6343 = vmatprep.subr.mxu0 0.0
        %6344 = vmatpush1.msra.mxu0 0.0
        %6345 = vmatprep.subr.mxu0 0.0
        %6346 = vmatpush1.msra.mxu0 0.0
        %6347 = vmatprep.subr.mxu0 0.0
        %6348 = vmatpush1.msra.mxu0 0.0
        %6349 = vmatprep.subr.mxu0 0.0
        %6350 = vmatpush1.msra.mxu0 0.0
        %6351 = vmatprep.subr.mxu0 0.0
        %6352 = vmatpush1.msra.mxu0 0.0
        %6353 = vmatprep.mubr.f32.mxu0 0.0
        %6354 = vmatmul.mubr.f32.gmra.mrb[0].mxu0 %v6287
        %v6355 = vpop.f32.mrb[0].mxu0
        %v6356 = vadd.f32 0.0, %v6355
        %v6357 = vpop.f32.mrb[0].mxu0
        %6358 = vdwg.mxu0
        %v6359 = vadd.f32 %v6203, %v6356
        %s6360 = scalar_lea.vmem %s10, 3
        %v6361 = vld [vmem:[%s6360] sm:$0x1]
        %v6363 = vsel %vm760, %v6361, 0
        %6365 = vmatprep.subr.mxu0 0.0
        %6366 = vmatpush1.msra.mxu0 %v5904
        %6367 = vmatprep.subr.mxu0 0.0
        %6368 = vmatpush1.msra.mxu0 0.0
        %6369 = vmatprep.subr.mxu0 0.0
        %6370 = vmatpush1.msra.mxu0 0.0
        %6371 = vmatprep.subr.mxu0 0.0
        %6372 = vmatpush1.msra.mxu0 0.0
        %6373 = vmatprep.subr.mxu0 0.0
        %6374 = vmatpush1.msra.mxu0 0.0
        %6375 = vmatprep.subr.mxu0 0.0
        %6376 = vmatpush1.msra.mxu0 0.0
        %6377 = vmatprep.subr.mxu0 0.0
        %6378 = vmatpush1.msra.mxu0 0.0
        %6379 = vmatprep.subr.mxu0 0.0
        %6380 = vmatpush1.msra.mxu0 0.0
        %6381 = vmatprep.subr.mxu0 0.0
        %6382 = vmatpush1.msra.mxu0 0.0
        %6383 = vmatprep.subr.mxu0 0.0
        %6384 = vmatpush1.msra.mxu0 0.0
        %6385 = vmatprep.subr.mxu0 0.0
        %6386 = vmatpush1.msra.mxu0 0.0
        %6387 = vmatprep.subr.mxu0 0.0
        %6388 = vmatpush1.msra.mxu0 0.0
        %6389 = vmatprep.subr.mxu0 0.0
        %6390 = vmatpush1.msra.mxu0 0.0
        %6391 = vmatprep.subr.mxu0 0.0
        %6392 = vmatpush1.msra.mxu0 0.0
        %6393 = vmatprep.subr.mxu0 0.0
        %6394 = vmatpush1.msra.mxu0 0.0
        %6395 = vmatprep.subr.mxu0 0.0
        %6396 = vmatpush1.msra.mxu0 0.0
        %6397 = vmatprep.subr.mxu0 0.0
        %6398 = vmatpush1.msra.mxu0 0.0
        %6399 = vmatprep.subr.mxu0 0.0
        %6400 = vmatpush1.msra.mxu0 0.0
        %6401 = vmatprep.subr.mxu0 0.0
        %6402 = vmatpush1.msra.mxu0 0.0
        %6403 = vmatprep.subr.mxu0 0.0
        %6404 = vmatpush1.msra.mxu0 0.0
        %6405 = vmatprep.subr.mxu0 0.0
        %6406 = vmatpush1.msra.mxu0 0.0
        %6407 = vmatprep.subr.mxu0 0.0
        %6408 = vmatpush1.msra.mxu0 0.0
        %6409 = vmatprep.subr.mxu0 0.0
        %6410 = vmatpush1.msra.mxu0 0.0
        %6411 = vmatprep.subr.mxu0 0.0
        %6412 = vmatpush1.msra.mxu0 0.0
        %6413 = vmatprep.subr.mxu0 0.0
        %6414 = vmatpush1.msra.mxu0 0.0
        %6415 = vmatprep.subr.mxu0 0.0
        %6416 = vmatpush1.msra.mxu0 0.0
        %6417 = vmatprep.subr.mxu0 0.0
        %6418 = vmatpush1.msra.mxu0 0.0
        %6419 = vmatprep.subr.mxu0 0.0
        %6420 = vmatpush1.msra.mxu0 0.0
        %6421 = vmatprep.subr.mxu0 0.0
        %6422 = vmatpush1.msra.mxu0 0.0
        %6423 = vmatprep.subr.mxu0 0.0
        %6424 = vmatpush1.msra.mxu0 0.0
        %6425 = vmatprep.subr.mxu0 0.0
        %6426 = vmatpush1.msra.mxu0 0.0
        %6427 = vmatprep.subr.mxu0 0.0
        %6428 = vmatpush1.msra.mxu0 0.0
        %6429 = vmatprep.mubr.f32.mxu0 0.0
        %6430 = vmatmul.mubr.f32.gmra.mrb[0].mxu0 %v6363
        %v6431 = vpop.f32.mrb[0].mxu0
        %v6432 = vadd.f32 0.0, %v6431
        %v6433 = vpop.f32.mrb[0].mxu0
        %6434 = vdwg.mxu0
        %s6435 = scalar_lea.vmem [#allocation7], 96
        %v6436 = vld [vmem:[%s6435] sm:$0xff]
        %v6437 = vld [vmem:[%s6435 + $0x8] sm:$0xff]
        %v6438 = vld [vmem:[%s6435 + $0x10] sm:$0xff]
        %v6439 = vld [vmem:[%s6435 + $0x18] sm:$0xff]
        %v6441 = vsel %vm3114, %v6432, 0
        %6443 = vmatprep.subr.mxu0 0.0
        %6444 = vmatpush1.msra.mxu0 %v6436
        %6445 = vmatprep.subr.mxu0 0.0
        %6446 = vmatpush1.msra.mxu0 %v6437
        %6447 = vmatprep.subr.mxu0 0.0
        %6448 = vmatpush1.msra.mxu0 %v6438
        %6449 = vmatprep.subr.mxu0 0.0
        %6450 = vmatpush1.msra.mxu0 %v6439
        %6451 = vmatprep.subr.mxu0 0.0
        %6452 = vmatpush1.msra.mxu0 0.0
        %6453 = vmatprep.subr.mxu0 0.0
        %6454 = vmatpush1.msra.mxu0 0.0
        %6455 = vmatprep.subr.mxu0 0.0
        %6456 = vmatpush1.msra.mxu0 0.0
        %6457 = vmatprep.subr.mxu0 0.0
        %6458 = vmatpush1.msra.mxu0 0.0
        %6459 = vmatprep.subr.mxu0 0.0
        %6460 = vmatpush1.msra.mxu0 0.0
        %6461 = vmatprep.subr.mxu0 0.0
        %6462 = vmatpush1.msra.mxu0 0.0
        %6463 = vmatprep.subr.mxu0 0.0
        %6464 = vmatpush1.msra.mxu0 0.0
        %6465 = vmatprep.subr.mxu0 0.0
        %6466 = vmatpush1.msra.mxu0 0.0
        %6467 = vmatprep.subr.mxu0 0.0
        %6468 = vmatpush1.msra.mxu0 0.0
        %6469 = vmatprep.subr.mxu0 0.0
        %6470 = vmatpush1.msra.mxu0 0.0
        %6471 = vmatprep.subr.mxu0 0.0
        %6472 = vmatpush1.msra.mxu0 0.0
        %6473 = vmatprep.subr.mxu0 0.0
        %6474 = vmatpush1.msra.mxu0 0.0
        %6475 = vmatprep.subr.mxu0 0.0
        %6476 = vmatpush1.msra.mxu0 0.0
        %6477 = vmatprep.subr.mxu0 0.0
        %6478 = vmatpush1.msra.mxu0 0.0
        %6479 = vmatprep.subr.mxu0 0.0
        %6480 = vmatpush1.msra.mxu0 0.0
        %6481 = vmatprep.subr.mxu0 0.0
        %6482 = vmatpush1.msra.mxu0 0.0
        %6483 = vmatprep.subr.mxu0 0.0
        %6484 = vmatpush1.msra.mxu0 0.0
        %6485 = vmatprep.subr.mxu0 0.0
        %6486 = vmatpush1.msra.mxu0 0.0
        %6487 = vmatprep.subr.mxu0 0.0
        %6488 = vmatpush1.msra.mxu0 0.0
        %6489 = vmatprep.subr.mxu0 0.0
        %6490 = vmatpush1.msra.mxu0 0.0
        %6491 = vmatprep.subr.mxu0 0.0
        %6492 = vmatpush1.msra.mxu0 0.0
        %6493 = vmatprep.subr.mxu0 0.0
        %6494 = vmatpush1.msra.mxu0 0.0
        %6495 = vmatprep.subr.mxu0 0.0
        %6496 = vmatpush1.msra.mxu0 0.0
        %6497 = vmatprep.subr.mxu0 0.0
        %6498 = vmatpush1.msra.mxu0 0.0
        %6499 = vmatprep.subr.mxu0 0.0
        %6500 = vmatpush1.msra.mxu0 0.0
        %6501 = vmatprep.subr.mxu0 0.0
        %6502 = vmatpush1.msra.mxu0 0.0
        %6503 = vmatprep.subr.mxu0 0.0
        %6504 = vmatpush1.msra.mxu0 0.0
        %6505 = vmatprep.subr.mxu0 0.0
        %6506 = vmatpush1.msra.mxu0 0.0
        %6507 = vmatprep.mubr.f32.mxu0 0.0
        %6508 = vmatmul.mubr.f32.gmra.mrb[0].mxu0 %v6441
        %v6509 = vpop.f32.mrb[0].mxu0
        %v6510 = vadd.f32 0.0, %v6509
        %v6511 = vpop.f32.mrb[0].mxu0
        %6512 = vdwg.mxu0
        %v6513 = vadd.f32 %v6359, %v6510
        %s6514 = scalar_lea.vmem %s10, 4
        %v6515 = vld [vmem:[%s6514] sm:$0x1]
        %v6517 = vsel %vm760, %v6515, 0
        %6519 = vmatprep.subr.mxu0 0.0
        %6520 = vmatpush1.msra.mxu0 %v5904
        %6521 = vmatprep.subr.mxu0 0.0
        %6522 = vmatpush1.msra.mxu0 0.0
        %6523 = vmatprep.subr.mxu0 0.0
        %6524 = vmatpush1.msra.mxu0 0.0
        %6525 = vmatprep.subr.mxu0 0.0
        %6526 = vmatpush1.msra.mxu0 0.0
        %6527 = vmatprep.subr.mxu0 0.0
        %6528 = vmatpush1.msra.mxu0 0.0
        %6529 = vmatprep.subr.mxu0 0.0
        %6530 = vmatpush1.msra.mxu0 0.0
        %6531 = vmatprep.subr.mxu0 0.0
        %6532 = vmatpush1.msra.mxu0 0.0
        %6533 = vmatprep.subr.mxu0 0.0
        %6534 = vmatpush1.msra.mxu0 0.0
        %6535 = vmatprep.subr.mxu0 0.0
        %6536 = vmatpush1.msra.mxu0 0.0
        %6537 = vmatprep.subr.mxu0 0.0
        %6538 = vmatpush1.msra.mxu0 0.0
        %6539 = vmatprep.subr.mxu0 0.0
        %6540 = vmatpush1.msra.mxu0 0.0
        %6541 = vmatprep.subr.mxu0 0.0
        %6542 = vmatpush1.msra.mxu0 0.0
        %6543 = vmatprep.subr.mxu0 0.0
        %6544 = vmatpush1.msra.mxu0 0.0
        %6545 = vmatprep.subr.mxu0 0.0
        %6546 = vmatpush1.msra.mxu0 0.0
        %6547 = vmatprep.subr.mxu0 0.0
        %6548 = vmatpush1.msra.mxu0 0.0
        %6549 = vmatprep.subr.mxu0 0.0
        %6550 = vmatpush1.msra.mxu0 0.0
        %6551 = vmatprep.subr.mxu0 0.0
        %6552 = vmatpush1.msra.mxu0 0.0
        %6553 = vmatprep.subr.mxu0 0.0
        %6554 = vmatpush1.msra.mxu0 0.0
        %6555 = vmatprep.subr.mxu0 0.0
        %6556 = vmatpush1.msra.mxu0 0.0
        %6557 = vmatprep.subr.mxu0 0.0
        %6558 = vmatpush1.msra.mxu0 0.0
        %6559 = vmatprep.subr.mxu0 0.0
        %6560 = vmatpush1.msra.mxu0 0.0
        %6561 = vmatprep.subr.mxu0 0.0
        %6562 = vmatpush1.msra.mxu0 0.0
        %6563 = vmatprep.subr.mxu0 0.0
        %6564 = vmatpush1.msra.mxu0 0.0
        %6565 = vmatprep.subr.mxu0 0.0
        %6566 = vmatpush1.msra.mxu0 0.0
        %6567 = vmatprep.subr.mxu0 0.0
        %6568 = vmatpush1.msra.mxu0 0.0
        %6569 = vmatprep.subr.mxu0 0.0
        %6570 = vmatpush1.msra.mxu0 0.0
        %6571 = vmatprep.subr.mxu0 0.0
        %6572 = vmatpush1.msra.mxu0 0.0
        %6573 = vmatprep.subr.mxu0 0.0
        %6574 = vmatpush1.msra.mxu0 0.0
        %6575 = vmatprep.subr.mxu0 0.0
        %6576 = vmatpush1.msra.mxu0 0.0
        %6577 = vmatprep.subr.mxu0 0.0
        %6578 = vmatpush1.msra.mxu0 0.0
        %6579 = vmatprep.subr.mxu0 0.0
        %6580 = vmatpush1.msra.mxu0 0.0
        %6581 = vmatprep.subr.mxu0 0.0
        %6582 = vmatpush1.msra.mxu0 0.0
        %6583 = vmatprep.mubr.f32.mxu0 0.0
        %6584 = vmatmul.mubr.f32.gmra.mrb[0].mxu0 %v6517
        %v6585 = vpop.f32.mrb[0].mxu0
        %v6586 = vadd.f32 0.0, %v6585
        %v6587 = vpop.f32.mrb[0].mxu0
        %6588 = vdwg.mxu0
        %s6589 = scalar_lea.vmem [#allocation7], 128
        %v6590 = vld [vmem:[%s6589] sm:$0xff]
        %v6591 = vld [vmem:[%s6589 + $0x8] sm:$0xff]
        %v6592 = vld [vmem:[%s6589 + $0x10] sm:$0xff]
        %v6593 = vld [vmem:[%s6589 + $0x18] sm:$0xff]
        %v6595 = vsel %vm3114, %v6586, 0
        %6597 = vmatprep.subr.mxu0 0.0
        %6598 = vmatpush1.msra.mxu0 %v6590
        %6599 = vmatprep.subr.mxu0 0.0
        %6600 = vmatpush1.msra.mxu0 %v6591
        %6601 = vmatprep.subr.mxu0 0.0
        %6602 = vmatpush1.msra.mxu0 %v6592
        %6603 = vmatprep.subr.mxu0 0.0
        %6604 = vmatpush1.msra.mxu0 %v6593
        %6605 = vmatprep.subr.mxu0 0.0
        %6606 = vmatpush1.msra.mxu0 0.0
        %6607 = vmatprep.subr.mxu0 0.0
        %6608 = vmatpush1.msra.mxu0 0.0
        %6609 = vmatprep.subr.mxu0 0.0
        %6610 = vmatpush1.msra.mxu0 0.0
        %6611 = vmatprep.subr.mxu0 0.0
        %6612 = vmatpush1.msra.mxu0 0.0
        %6613 = vmatprep.subr.mxu0 0.0
        %6614 = vmatpush1.msra.mxu0 0.0
        %6615 = vmatprep.subr.mxu0 0.0
        %6616 = vmatpush1.msra.mxu0 0.0
        %6617 = vmatprep.subr.mxu0 0.0
        %6618 = vmatpush1.msra.mxu0 0.0
        %6619 = vmatprep.subr.mxu0 0.0
        %6620 = vmatpush1.msra.mxu0 0.0
        %6621 = vmatprep.subr.mxu0 0.0
        %6622 = vmatpush1.msra.mxu0 0.0
        %6623 = vmatprep.subr.mxu0 0.0
        %6624 = vmatpush1.msra.mxu0 0.0
        %6625 = vmatprep.subr.mxu0 0.0
        %6626 = vmatpush1.msra.mxu0 0.0
        %6627 = vmatprep.subr.mxu0 0.0
        %6628 = vmatpush1.msra.mxu0 0.0
        %6629 = vmatprep.subr.mxu0 0.0
        %6630 = vmatpush1.msra.mxu0 0.0
        %6631 = vmatprep.subr.mxu0 0.0
        %6632 = vmatpush1.msra.mxu0 0.0
        %6633 = vmatprep.subr.mxu0 0.0
        %6634 = vmatpush1.msra.mxu0 0.0
        %6635 = vmatprep.subr.mxu0 0.0
        %6636 = vmatpush1.msra.mxu0 0.0
        %6637 = vmatprep.subr.mxu0 0.0
        %6638 = vmatpush1.msra.mxu0 0.0
        %6639 = vmatprep.subr.mxu0 0.0
        %6640 = vmatpush1.msra.mxu0 0.0
        %6641 = vmatprep.subr.mxu0 0.0
        %6642 = vmatpush1.msra.mxu0 0.0
        %6643 = vmatprep.subr.mxu0 0.0
        %6644 = vmatpush1.msra.mxu0 0.0
        %6645 = vmatprep.subr.mxu0 0.0
        %6646 = vmatpush1.msra.mxu0 0.0
        %6647 = vmatprep.subr.mxu0 0.0
        %6648 = vmatpush1.msra.mxu0 0.0
        %6649 = vmatprep.subr.mxu0 0.0
        %6650 = vmatpush1.msra.mxu0 0.0
        %6651 = vmatprep.subr.mxu0 0.0
        %6652 = vmatpush1.msra.mxu0 0.0
        %6653 = vmatprep.subr.mxu0 0.0
        %6654 = vmatpush1.msra.mxu0 0.0
        %6655 = vmatprep.subr.mxu0 0.0
        %6656 = vmatpush1.msra.mxu0 0.0
        %6657 = vmatprep.subr.mxu0 0.0
        %6658 = vmatpush1.msra.mxu0 0.0
        %6659 = vmatprep.subr.mxu0 0.0
        %6660 = vmatpush1.msra.mxu0 0.0
        %6661 = vmatprep.mubr.f32.mxu0 0.0
        %6662 = vmatmul.mubr.f32.gmra.mrb[0].mxu0 %v6595
        %v6663 = vpop.f32.mrb[0].mxu0
        %v6664 = vadd.f32 0.0, %v6663
        %v6665 = vpop.f32.mrb[0].mxu0
        %6666 = vdwg.mxu0
        %v6667 = vadd.f32 %v6513, %v6664
        %s6668 = scalar_lea.vmem %s10, 5
        %v6669 = vld [vmem:[%s6668] sm:$0x1]
        %v6671 = vsel %vm760, %v6669, 0
        %6673 = vmatprep.subr.mxu0 0.0
        %6674 = vmatpush1.msra.mxu0 %v5904
        %6675 = vmatprep.subr.mxu0 0.0
        %6676 = vmatpush1.msra.mxu0 0.0
        %6677 = vmatprep.subr.mxu0 0.0
        %6678 = vmatpush1.msra.mxu0 0.0
        %6679 = vmatprep.subr.mxu0 0.0
        %6680 = vmatpush1.msra.mxu0 0.0
        %6681 = vmatprep.subr.mxu0 0.0
        %6682 = vmatpush1.msra.mxu0 0.0
        %6683 = vmatprep.subr.mxu0 0.0
        %6684 = vmatpush1.msra.mxu0 0.0
        %6685 = vmatprep.subr.mxu0 0.0
        %6686 = vmatpush1.msra.mxu0 0.0
        %6687 = vmatprep.subr.mxu0 0.0
        %6688 = vmatpush1.msra.mxu0 0.0
        %6689 = vmatprep.subr.mxu0 0.0
        %6690 = vmatpush1.msra.mxu0 0.0
        %6691 = vmatprep.subr.mxu0 0.0
        %6692 = vmatpush1.msra.mxu0 0.0
        %6693 = vmatprep.subr.mxu0 0.0
        %6694 = vmatpush1.msra.mxu0 0.0
        %6695 = vmatprep.subr.mxu0 0.0
        %6696 = vmatpush1.msra.mxu0 0.0
        %6697 = vmatprep.subr.mxu0 0.0
        %6698 = vmatpush1.msra.mxu0 0.0
        %6699 = vmatprep.subr.mxu0 0.0
        %6700 = vmatpush1.msra.mxu0 0.0
        %6701 = vmatprep.subr.mxu0 0.0
        %6702 = vmatpush1.msra.mxu0 0.0
        %6703 = vmatprep.subr.mxu0 0.0
        %6704 = vmatpush1.msra.mxu0 0.0
        %6705 = vmatprep.subr.mxu0 0.0
        %6706 = vmatpush1.msra.mxu0 0.0
        %6707 = vmatprep.subr.mxu0 0.0
        %6708 = vmatpush1.msra.mxu0 0.0
        %6709 = vmatprep.subr.mxu0 0.0
        %6710 = vmatpush1.msra.mxu0 0.0
        %6711 = vmatprep.subr.mxu0 0.0
        %6712 = vmatpush1.msra.mxu0 0.0
        %6713 = vmatprep.subr.mxu0 0.0
        %6714 = vmatpush1.msra.mxu0 0.0
        %6715 = vmatprep.subr.mxu0 0.0
        %6716 = vmatpush1.msra.mxu0 0.0
        %6717 = vmatprep.subr.mxu0 0.0
        %6718 = vmatpush1.msra.mxu0 0.0
        %6719 = vmatprep.subr.mxu0 0.0
        %6720 = vmatpush1.msra.mxu0 0.0
        %6721 = vmatprep.subr.mxu0 0.0
        %6722 = vmatpush1.msra.mxu0 0.0
        %6723 = vmatprep.subr.mxu0 0.0
        %6724 = vmatpush1.msra.mxu0 0.0
        %6725 = vmatprep.subr.mxu0 0.0
        %6726 = vmatpush1.msra.mxu0 0.0
        %6727 = vmatprep.subr.mxu0 0.0
        %6728 = vmatpush1.msra.mxu0 0.0
        %6729 = vmatprep.subr.mxu0 0.0
        %6730 = vmatpush1.msra.mxu0 0.0
        %6731 = vmatprep.subr.mxu0 0.0
        %6732 = vmatpush1.msra.mxu0 0.0
        %6733 = vmatprep.subr.mxu0 0.0
        %6734 = vmatpush1.msra.mxu0 0.0
        %6735 = vmatprep.subr.mxu0 0.0
        %6736 = vmatpush1.msra.mxu0 0.0
        %6737 = vmatprep.mubr.f32.mxu0 0.0
        %6738 = vmatmul.mubr.f32.gmra.mrb[0].mxu0 %v6671
        %v6739 = vpop.f32.mrb[0].mxu0
        %v6740 = vadd.f32 0.0, %v6739
        %v6741 = vpop.f32.mrb[0].mxu0
        %6742 = vdwg.mxu0
        %s6743 = scalar_lea.vmem [#allocation7], 160
        %v6744 = vld [vmem:[%s6743] sm:$0xff]
        %v6745 = vld [vmem:[%s6743 + $0x8] sm:$0xff]
        %v6746 = vld [vmem:[%s6743 + $0x10] sm:$0xff]
        %v6747 = vld [vmem:[%s6743 + $0x18] sm:$0xff]
        %v6749 = vsel %vm3114, %v6740, 0
        %6751 = vmatprep.subr.mxu0 0.0
        %6752 = vmatpush1.msra.mxu0 %v6744
        %6753 = vmatprep.subr.mxu0 0.0
        %6754 = vmatpush1.msra.mxu0 %v6745
        %6755 = vmatprep.subr.mxu0 0.0
        %6756 = vmatpush1.msra.mxu0 %v6746
        %6757 = vmatprep.subr.mxu0 0.0
        %6758 = vmatpush1.msra.mxu0 %v6747
        %6759 = vmatprep.subr.mxu0 0.0
        %6760 = vmatpush1.msra.mxu0 0.0
        %6761 = vmatprep.subr.mxu0 0.0
        %6762 = vmatpush1.msra.mxu0 0.0
        %6763 = vmatprep.subr.mxu0 0.0
        %6764 = vmatpush1.msra.mxu0 0.0
        %6765 = vmatprep.subr.mxu0 0.0
        %6766 = vmatpush1.msra.mxu0 0.0
        %6767 = vmatprep.subr.mxu0 0.0
        %6768 = vmatpush1.msra.mxu0 0.0
        %6769 = vmatprep.subr.mxu0 0.0
        %6770 = vmatpush1.msra.mxu0 0.0
        %6771 = vmatprep.subr.mxu0 0.0
        %6772 = vmatpush1.msra.mxu0 0.0
        %6773 = vmatprep.subr.mxu0 0.0
        %6774 = vmatpush1.msra.mxu0 0.0
        %6775 = vmatprep.subr.mxu0 0.0
        %6776 = vmatpush1.msra.mxu0 0.0
        %6777 = vmatprep.subr.mxu0 0.0
        %6778 = vmatpush1.msra.mxu0 0.0
        %6779 = vmatprep.subr.mxu0 0.0
        %6780 = vmatpush1.msra.mxu0 0.0
        %6781 = vmatprep.subr.mxu0 0.0
        %6782 = vmatpush1.msra.mxu0 0.0
        %6783 = vmatprep.subr.mxu0 0.0
        %6784 = vmatpush1.msra.mxu0 0.0
        %6785 = vmatprep.subr.mxu0 0.0
        %6786 = vmatpush1.msra.mxu0 0.0
        %6787 = vmatprep.subr.mxu0 0.0
        %6788 = vmatpush1.msra.mxu0 0.0
        %6789 = vmatprep.subr.mxu0 0.0
        %6790 = vmatpush1.msra.mxu0 0.0
        %6791 = vmatprep.subr.mxu0 0.0
        %6792 = vmatpush1.msra.mxu0 0.0
        %6793 = vmatprep.subr.mxu0 0.0
        %6794 = vmatpush1.msra.mxu0 0.0
        %6795 = vmatprep.subr.mxu0 0.0
        %6796 = vmatpush1.msra.mxu0 0.0
        %6797 = vmatprep.subr.mxu0 0.0
        %6798 = vmatpush1.msra.mxu0 0.0
        %6799 = vmatprep.subr.mxu0 0.0
        %6800 = vmatpush1.msra.mxu0 0.0
        %6801 = vmatprep.subr.mxu0 0.0
        %6802 = vmatpush1.msra.mxu0 0.0
        %6803 = vmatprep.subr.mxu0 0.0
        %6804 = vmatpush1.msra.mxu0 0.0
        %6805 = vmatprep.subr.mxu0 0.0
        %6806 = vmatpush1.msra.mxu0 0.0
        %6807 = vmatprep.subr.mxu0 0.0
        %6808 = vmatpush1.msra.mxu0 0.0
        %6809 = vmatprep.subr.mxu0 0.0
        %6810 = vmatpush1.msra.mxu0 0.0
        %6811 = vmatprep.subr.mxu0 0.0
        %6812 = vmatpush1.msra.mxu0 0.0
        %6813 = vmatprep.subr.mxu0 0.0
        %6814 = vmatpush1.msra.mxu0 0.0
        %6815 = vmatprep.mubr.f32.mxu0 0.0
        %6816 = vmatmul.mubr.f32.gmra.mrb[0].mxu0 %v6749
        %v6817 = vpop.f32.mrb[0].mxu0
        %v6818 = vadd.f32 0.0, %v6817
        %v6819 = vpop.f32.mrb[0].mxu0
        %6820 = vdwg.mxu0
        %v6821 = vadd.f32 %v6667, %v6818
        %s6822 = scalar_lea.vmem %s10, 6
        %v6823 = vld [vmem:[%s6822] sm:$0x1]
        %v6825 = vsel %vm760, %v6823, 0
        %6827 = vmatprep.subr.mxu0 0.0
        %6828 = vmatpush1.msra.mxu0 %v5904
        %6829 = vmatprep.subr.mxu0 0.0
        %6830 = vmatpush1.msra.mxu0 0.0
        %6831 = vmatprep.subr.mxu0 0.0
        %6832 = vmatpush1.msra.mxu0 0.0
        %6833 = vmatprep.subr.mxu0 0.0
        %6834 = vmatpush1.msra.mxu0 0.0
        %6835 = vmatprep.subr.mxu0 0.0
        %6836 = vmatpush1.msra.mxu0 0.0
        %6837 = vmatprep.subr.mxu0 0.0
        %6838 = vmatpush1.msra.mxu0 0.0
        %6839 = vmatprep.subr.mxu0 0.0
        %6840 = vmatpush1.msra.mxu0 0.0
        %6841 = vmatprep.subr.mxu0 0.0
        %6842 = vmatpush1.msra.mxu0 0.0
        %6843 = vmatprep.subr.mxu0 0.0
        %6844 = vmatpush1.msra.mxu0 0.0
        %6845 = vmatprep.subr.mxu0 0.0
        %6846 = vmatpush1.msra.mxu0 0.0
        %6847 = vmatprep.subr.mxu0 0.0
        %6848 = vmatpush1.msra.mxu0 0.0
        %6849 = vmatprep.subr.mxu0 0.0
        %6850 = vmatpush1.msra.mxu0 0.0
        %6851 = vmatprep.subr.mxu0 0.0
        %6852 = vmatpush1.msra.mxu0 0.0
        %6853 = vmatprep.subr.mxu0 0.0
        %6854 = vmatpush1.msra.mxu0 0.0
        %6855 = vmatprep.subr.mxu0 0.0
        %6856 = vmatpush1.msra.mxu0 0.0
        %6857 = vmatprep.subr.mxu0 0.0
        %6858 = vmatpush1.msra.mxu0 0.0
        %6859 = vmatprep.subr.mxu0 0.0
        %6860 = vmatpush1.msra.mxu0 0.0
        %6861 = vmatprep.subr.mxu0 0.0
        %6862 = vmatpush1.msra.mxu0 0.0
        %6863 = vmatprep.subr.mxu0 0.0
        %6864 = vmatpush1.msra.mxu0 0.0
        %6865 = vmatprep.subr.mxu0 0.0
        %6866 = vmatpush1.msra.mxu0 0.0
        %6867 = vmatprep.subr.mxu0 0.0
        %6868 = vmatpush1.msra.mxu0 0.0
        %6869 = vmatprep.subr.mxu0 0.0
        %6870 = vmatpush1.msra.mxu0 0.0
        %6871 = vmatprep.subr.mxu0 0.0
        %6872 = vmatpush1.msra.mxu0 0.0
        %6873 = vmatprep.subr.mxu0 0.0
        %6874 = vmatpush1.msra.mxu0 0.0
        %6875 = vmatprep.subr.mxu0 0.0
        %6876 = vmatpush1.msra.mxu0 0.0
        %6877 = vmatprep.subr.mxu0 0.0
        %6878 = vmatpush1.msra.mxu0 0.0
        %6879 = vmatprep.subr.mxu0 0.0
        %6880 = vmatpush1.msra.mxu0 0.0
        %6881 = vmatprep.subr.mxu0 0.0
        %6882 = vmatpush1.msra.mxu0 0.0
        %6883 = vmatprep.subr.mxu0 0.0
        %6884 = vmatpush1.msra.mxu0 0.0
        %6885 = vmatprep.subr.mxu0 0.0
        %6886 = vmatpush1.msra.mxu0 0.0
        %6887 = vmatprep.subr.mxu0 0.0
        %6888 = vmatpush1.msra.mxu0 0.0
        %6889 = vmatprep.subr.mxu0 0.0
        %6890 = vmatpush1.msra.mxu0 0.0
        %6891 = vmatprep.mubr.f32.mxu0 0.0
        %6892 = vmatmul.mubr.f32.gmra.mrb[0].mxu0 %v6825
        %v6893 = vpop.f32.mrb[0].mxu0
        %v6894 = vadd.f32 0.0, %v6893
        %v6895 = vpop.f32.mrb[0].mxu0
        %6896 = vdwg.mxu0
        %s6897 = scalar_lea.vmem [#allocation7], 192
        %v6898 = vld [vmem:[%s6897] sm:$0xff]
        %v6899 = vld [vmem:[%s6897 + $0x8] sm:$0xff]
        %v6900 = vld [vmem:[%s6897 + $0x10] sm:$0xff]
        %v6901 = vld [vmem:[%s6897 + $0x18] sm:$0xff]
        %v6903 = vsel %vm3114, %v6894, 0
        %6905 = vmatprep.subr.mxu0 0.0
        %6906 = vmatpush1.msra.mxu0 %v6898
        %6907 = vmatprep.subr.mxu0 0.0
        %6908 = vmatpush1.msra.mxu0 %v6899
        %6909 = vmatprep.subr.mxu0 0.0
        %6910 = vmatpush1.msra.mxu0 %v6900
        %6911 = vmatprep.subr.mxu0 0.0
        %6912 = vmatpush1.msra.mxu0 %v6901
        %6913 = vmatprep.subr.mxu0 0.0
        %6914 = vmatpush1.msra.mxu0 0.0
        %6915 = vmatprep.subr.mxu0 0.0
        %6916 = vmatpush1.msra.mxu0 0.0
        %6917 = vmatprep.subr.mxu0 0.0
        %6918 = vmatpush1.msra.mxu0 0.0
        %6919 = vmatprep.subr.mxu0 0.0
        %6920 = vmatpush1.msra.mxu0 0.0
        %6921 = vmatprep.subr.mxu0 0.0
        %6922 = vmatpush1.msra.mxu0 0.0
        %6923 = vmatprep.subr.mxu0 0.0
        %6924 = vmatpush1.msra.mxu0 0.0
        %6925 = vmatprep.subr.mxu0 0.0
        %6926 = vmatpush1.msra.mxu0 0.0
        %6927 = vmatprep.subr.mxu0 0.0
        %6928 = vmatpush1.msra.mxu0 0.0
        %6929 = vmatprep.subr.mxu0 0.0
        %6930 = vmatpush1.msra.mxu0 0.0
        %6931 = vmatprep.subr.mxu0 0.0
        %6932 = vmatpush1.msra.mxu0 0.0
        %6933 = vmatprep.subr.mxu0 0.0
        %6934 = vmatpush1.msra.mxu0 0.0
        %6935 = vmatprep.subr.mxu0 0.0
        %6936 = vmatpush1.msra.mxu0 0.0
        %6937 = vmatprep.subr.mxu0 0.0
        %6938 = vmatpush1.msra.mxu0 0.0
        %6939 = vmatprep.subr.mxu0 0.0
        %6940 = vmatpush1.msra.mxu0 0.0
        %6941 = vmatprep.subr.mxu0 0.0
        %6942 = vmatpush1.msra.mxu0 0.0
        %6943 = vmatprep.subr.mxu0 0.0
        %6944 = vmatpush1.msra.mxu0 0.0
        %6945 = vmatprep.subr.mxu0 0.0
        %6946 = vmatpush1.msra.mxu0 0.0
        %6947 = vmatprep.subr.mxu0 0.0
        %6948 = vmatpush1.msra.mxu0 0.0
        %6949 = vmatprep.subr.mxu0 0.0
        %6950 = vmatpush1.msra.mxu0 0.0
        %6951 = vmatprep.subr.mxu0 0.0
        %6952 = vmatpush1.msra.mxu0 0.0
        %6953 = vmatprep.subr.mxu0 0.0
        %6954 = vmatpush1.msra.mxu0 0.0
        %6955 = vmatprep.subr.mxu0 0.0
        %6956 = vmatpush1.msra.mxu0 0.0
        %6957 = vmatprep.subr.mxu0 0.0
        %6958 = vmatpush1.msra.mxu0 0.0
        %6959 = vmatprep.subr.mxu0 0.0
        %6960 = vmatpush1.msra.mxu0 0.0
        %6961 = vmatprep.subr.mxu0 0.0
        %6962 = vmatpush1.msra.mxu0 0.0
        %6963 = vmatprep.subr.mxu0 0.0
        %6964 = vmatpush1.msra.mxu0 0.0
        %6965 = vmatprep.subr.mxu0 0.0
        %6966 = vmatpush1.msra.mxu0 0.0
        %6967 = vmatprep.subr.mxu0 0.0
        %6968 = vmatpush1.msra.mxu0 0.0
        %6969 = vmatprep.mubr.f32.mxu0 0.0
        %6970 = vmatmul.mubr.f32.gmra.mrb[0].mxu0 %v6903
        %v6971 = vpop.f32.mrb[0].mxu0
        %v6972 = vadd.f32 0.0, %v6971
        %v6973 = vpop.f32.mrb[0].mxu0
        %6974 = vdwg.mxu0
        %v6975 = vadd.f32 %v6821, %v6972
        %s6976 = scalar_lea.vmem %s10, 7
        %v6977 = vld [vmem:[%s6976] sm:$0x1]
        %v6979 = vsel %vm760, %v6977, 0
        %6981 = vmatprep.subr.mxu0 0.0
        %6982 = vmatpush1.msra.mxu0 %v5904
        %6983 = vmatprep.subr.mxu0 0.0
        %6984 = vmatpush1.msra.mxu0 0.0
        %6985 = vmatprep.subr.mxu0 0.0
        %6986 = vmatpush1.msra.mxu0 0.0
        %6987 = vmatprep.subr.mxu0 0.0
        %6988 = vmatpush1.msra.mxu0 0.0
        %6989 = vmatprep.subr.mxu0 0.0
        %6990 = vmatpush1.msra.mxu0 0.0
        %6991 = vmatprep.subr.mxu0 0.0
        %6992 = vmatpush1.msra.mxu0 0.0
        %6993 = vmatprep.subr.mxu0 0.0
        %6994 = vmatpush1.msra.mxu0 0.0
        %6995 = vmatprep.subr.mxu0 0.0
        %6996 = vmatpush1.msra.mxu0 0.0
        %6997 = vmatprep.subr.mxu0 0.0
        %6998 = vmatpush1.msra.mxu0 0.0
        %6999 = vmatprep.subr.mxu0 0.0
        %7000 = vmatpush1.msra.mxu0 0.0
        %7001 = vmatprep.subr.mxu0 0.0
        %7002 = vmatpush1.msra.mxu0 0.0
        %7003 = vmatprep.subr.mxu0 0.0
        %7004 = vmatpush1.msra.mxu0 0.0
        %7005 = vmatprep.subr.mxu0 0.0
        %7006 = vmatpush1.msra.mxu0 0.0
        %7007 = vmatprep.subr.mxu0 0.0
        %7008 = vmatpush1.msra.mxu0 0.0
        %7009 = vmatprep.subr.mxu0 0.0
        %7010 = vmatpush1.msra.mxu0 0.0
        %7011 = vmatprep.subr.mxu0 0.0
        %7012 = vmatpush1.msra.mxu0 0.0
        %7013 = vmatprep.subr.mxu0 0.0
        %7014 = vmatpush1.msra.mxu0 0.0
        %7015 = vmatprep.subr.mxu0 0.0
        %7016 = vmatpush1.msra.mxu0 0.0
        %7017 = vmatprep.subr.mxu0 0.0
        %7018 = vmatpush1.msra.mxu0 0.0
        %7019 = vmatprep.subr.mxu0 0.0
        %7020 = vmatpush1.msra.mxu0 0.0
        %7021 = vmatprep.subr.mxu0 0.0
        %7022 = vmatpush1.msra.mxu0 0.0
        %7023 = vmatprep.subr.mxu0 0.0
        %7024 = vmatpush1.msra.mxu0 0.0
        %7025 = vmatprep.subr.mxu0 0.0
        %7026 = vmatpush1.msra.mxu0 0.0
        %7027 = vmatprep.subr.mxu0 0.0
        %7028 = vmatpush1.msra.mxu0 0.0
        %7029 = vmatprep.subr.mxu0 0.0
        %7030 = vmatpush1.msra.mxu0 0.0
        %7031 = vmatprep.subr.mxu0 0.0
        %7032 = vmatpush1.msra.mxu0 0.0
        %7033 = vmatprep.subr.mxu0 0.0
        %7034 = vmatpush1.msra.mxu0 0.0
        %7035 = vmatprep.subr.mxu0 0.0
        %7036 = vmatpush1.msra.mxu0 0.0
        %7037 = vmatprep.subr.mxu0 0.0
        %7038 = vmatpush1.msra.mxu0 0.0
        %7039 = vmatprep.subr.mxu0 0.0
        %7040 = vmatpush1.msra.mxu0 0.0
        %7041 = vmatprep.subr.mxu0 0.0
        %7042 = vmatpush1.msra.mxu0 0.0
        %7043 = vmatprep.subr.mxu0 0.0
        %7044 = vmatpush1.msra.mxu0 0.0
        %7045 = vmatprep.mubr.f32.mxu0 0.0
        %7046 = vmatmul.mubr.f32.gmra.mrb[0].mxu0 %v6979
        %v7047 = vpop.f32.mrb[0].mxu0
        %v7048 = vadd.f32 0.0, %v7047
        %v7049 = vpop.f32.mrb[0].mxu0
        %7050 = vdwg.mxu0
        %s7051 = scalar_lea.vmem [#allocation7], 224
        %v7052 = vld [vmem:[%s7051] sm:$0xff]
        %v7053 = vld [vmem:[%s7051 + $0x8] sm:$0xff]
        %v7054 = vld [vmem:[%s7051 + $0x10] sm:$0xff]
        %v7055 = vld [vmem:[%s7051 + $0x18] sm:$0xff]
        %v7057 = vsel %vm3114, %v7048, 0
        %7059 = vmatprep.subr.mxu0 0.0
        %7060 = vmatpush1.msra.mxu0 %v7052
        %7061 = vmatprep.subr.mxu0 0.0
        %7062 = vmatpush1.msra.mxu0 %v7053
        %7063 = vmatprep.subr.mxu0 0.0
        %7064 = vmatpush1.msra.mxu0 %v7054
        %7065 = vmatprep.subr.mxu0 0.0
        %7066 = vmatpush1.msra.mxu0 %v7055
        %7067 = vmatprep.subr.mxu0 0.0
        %7068 = vmatpush1.msra.mxu0 0.0
        %7069 = vmatprep.subr.mxu0 0.0
        %7070 = vmatpush1.msra.mxu0 0.0
        %7071 = vmatprep.subr.mxu0 0.0
        %7072 = vmatpush1.msra.mxu0 0.0
        %7073 = vmatprep.subr.mxu0 0.0
        %7074 = vmatpush1.msra.mxu0 0.0
        %7075 = vmatprep.subr.mxu0 0.0
        %7076 = vmatpush1.msra.mxu0 0.0
        %7077 = vmatprep.subr.mxu0 0.0
        %7078 = vmatpush1.msra.mxu0 0.0
        %7079 = vmatprep.subr.mxu0 0.0
        %7080 = vmatpush1.msra.mxu0 0.0
        %7081 = vmatprep.subr.mxu0 0.0
        %7082 = vmatpush1.msra.mxu0 0.0
        %7083 = vmatprep.subr.mxu0 0.0
        %7084 = vmatpush1.msra.mxu0 0.0
        %7085 = vmatprep.subr.mxu0 0.0
        %7086 = vmatpush1.msra.mxu0 0.0
        %7087 = vmatprep.subr.mxu0 0.0
        %7088 = vmatpush1.msra.mxu0 0.0
        %7089 = vmatprep.subr.mxu0 0.0
        %7090 = vmatpush1.msra.mxu0 0.0
        %7091 = vmatprep.subr.mxu0 0.0
        %7092 = vmatpush1.msra.mxu0 0.0
        %7093 = vmatprep.subr.mxu0 0.0
        %7094 = vmatpush1.msra.mxu0 0.0
        %7095 = vmatprep.subr.mxu0 0.0
        %7096 = vmatpush1.msra.mxu0 0.0
        %7097 = vmatprep.subr.mxu0 0.0
        %7098 = vmatpush1.msra.mxu0 0.0
        %7099 = vmatprep.subr.mxu0 0.0
        %7100 = vmatpush1.msra.mxu0 0.0
        %7101 = vmatprep.subr.mxu0 0.0
        %7102 = vmatpush1.msra.mxu0 0.0
        %7103 = vmatprep.subr.mxu0 0.0
        %7104 = vmatpush1.msra.mxu0 0.0
        %7105 = vmatprep.subr.mxu0 0.0
        %7106 = vmatpush1.msra.mxu0 0.0
        %7107 = vmatprep.subr.mxu0 0.0
        %7108 = vmatpush1.msra.mxu0 0.0
        %7109 = vmatprep.subr.mxu0 0.0
        %7110 = vmatpush1.msra.mxu0 0.0
        %7111 = vmatprep.subr.mxu0 0.0
        %7112 = vmatpush1.msra.mxu0 0.0
        %7113 = vmatprep.subr.mxu0 0.0
        %7114 = vmatpush1.msra.mxu0 0.0
        %7115 = vmatprep.subr.mxu0 0.0
        %7116 = vmatpush1.msra.mxu0 0.0
        %7117 = vmatprep.subr.mxu0 0.0
        %7118 = vmatpush1.msra.mxu0 0.0
        %7119 = vmatprep.subr.mxu0 0.0
        %7120 = vmatpush1.msra.mxu0 0.0
        %7121 = vmatprep.subr.mxu0 0.0
        %7122 = vmatpush1.msra.mxu0 0.0
        %7123 = vmatprep.mubr.f32.mxu0 0.0
        %7124 = vmatmul.mubr.f32.gmra.mrb[0].mxu0 %v7057
        %v7125 = vpop.f32.mrb[0].mxu0
        %v7126 = vadd.f32 0.0, %v7125
        %v7127 = vpop.f32.mrb[0].mxu0
        %7128 = vdwg.mxu0
        %v7129 = vadd.f32 %v6975, %v7126
        %s7130 = scalar_lea.vmem %s10, 8
        %v7131 = vld [vmem:[%s7130] sm:$0x1]
        %v7133 = vsel %vm760, %v7131, 0
        %7135 = vmatprep.subr.mxu0 0.0
        %7136 = vmatpush1.msra.mxu0 %v5904
        %7137 = vmatprep.subr.mxu0 0.0
        %7138 = vmatpush1.msra.mxu0 0.0
        %7139 = vmatprep.subr.mxu0 0.0
        %7140 = vmatpush1.msra.mxu0 0.0
        %7141 = vmatprep.subr.mxu0 0.0
        %7142 = vmatpush1.msra.mxu0 0.0
        %7143 = vmatprep.subr.mxu0 0.0
        %7144 = vmatpush1.msra.mxu0 0.0
        %7145 = vmatprep.subr.mxu0 0.0
        %7146 = vmatpush1.msra.mxu0 0.0
        %7147 = vmatprep.subr.mxu0 0.0
        %7148 = vmatpush1.msra.mxu0 0.0
        %7149 = vmatprep.subr.mxu0 0.0
        %7150 = vmatpush1.msra.mxu0 0.0
        %7151 = vmatprep.subr.mxu0 0.0
        %7152 = vmatpush1.msra.mxu0 0.0
        %7153 = vmatprep.subr.mxu0 0.0
        %7154 = vmatpush1.msra.mxu0 0.0
        %7155 = vmatprep.subr.mxu0 0.0
        %7156 = vmatpush1.msra.mxu0 0.0
        %7157 = vmatprep.subr.mxu0 0.0
        %7158 = vmatpush1.msra.mxu0 0.0
        %7159 = vmatprep.subr.mxu0 0.0
        %7160 = vmatpush1.msra.mxu0 0.0
        %7161 = vmatprep.subr.mxu0 0.0
        %7162 = vmatpush1.msra.mxu0 0.0
        %7163 = vmatprep.subr.mxu0 0.0
        %7164 = vmatpush1.msra.mxu0 0.0
        %7165 = vmatprep.subr.mxu0 0.0
        %7166 = vmatpush1.msra.mxu0 0.0
        %7167 = vmatprep.subr.mxu0 0.0
        %7168 = vmatpush1.msra.mxu0 0.0
        %7169 = vmatprep.subr.mxu0 0.0
        %7170 = vmatpush1.msra.mxu0 0.0
        %7171 = vmatprep.subr.mxu0 0.0
        %7172 = vmatpush1.msra.mxu0 0.0
        %7173 = vmatprep.subr.mxu0 0.0
        %7174 = vmatpush1.msra.mxu0 0.0
        %7175 = vmatprep.subr.mxu0 0.0
        %7176 = vmatpush1.msra.mxu0 0.0
        %7177 = vmatprep.subr.mxu0 0.0
        %7178 = vmatpush1.msra.mxu0 0.0
        %7179 = vmatprep.subr.mxu0 0.0
        %7180 = vmatpush1.msra.mxu0 0.0
        %7181 = vmatprep.subr.mxu0 0.0
        %7182 = vmatpush1.msra.mxu0 0.0
        %7183 = vmatprep.subr.mxu0 0.0
        %7184 = vmatpush1.msra.mxu0 0.0
        %7185 = vmatprep.subr.mxu0 0.0
        %7186 = vmatpush1.msra.mxu0 0.0
        %7187 = vmatprep.subr.mxu0 0.0
        %7188 = vmatpush1.msra.mxu0 0.0
        %7189 = vmatprep.subr.mxu0 0.0
        %7190 = vmatpush1.msra.mxu0 0.0
        %7191 = vmatprep.subr.mxu0 0.0
        %7192 = vmatpush1.msra.mxu0 0.0
        %7193 = vmatprep.subr.mxu0 0.0
        %7194 = vmatpush1.msra.mxu0 0.0
        %7195 = vmatprep.subr.mxu0 0.0
        %7196 = vmatpush1.msra.mxu0 0.0
        %7197 = vmatprep.subr.mxu0 0.0
        %7198 = vmatpush1.msra.mxu0 0.0
        %7199 = vmatprep.mubr.f32.mxu0 0.0
        %7200 = vmatmul.mubr.f32.gmra.mrb[0].mxu0 %v7133
        %v7201 = vpop.f32.mrb[0].mxu0
        %v7202 = vadd.f32 0.0, %v7201
        %v7203 = vpop.f32.mrb[0].mxu0
        %7204 = vdwg.mxu0
        %s7205 = scalar_lea.vmem [#allocation7], 256
        %v7206 = vld [vmem:[%s7205] sm:$0xff]
        %v7207 = vld [vmem:[%s7205 + $0x8] sm:$0xff]
        %v7208 = vld [vmem:[%s7205 + $0x10] sm:$0xff]
        %v7209 = vld [vmem:[%s7205 + $0x18] sm:$0xff]
        %v7211 = vsel %vm3114, %v7202, 0
        %7213 = vmatprep.subr.mxu0 0.0
        %7214 = vmatpush1.msra.mxu0 %v7206
        %7215 = vmatprep.subr.mxu0 0.0
        %7216 = vmatpush1.msra.mxu0 %v7207
        %7217 = vmatprep.subr.mxu0 0.0
        %7218 = vmatpush1.msra.mxu0 %v7208
        %7219 = vmatprep.subr.mxu0 0.0
        %7220 = vmatpush1.msra.mxu0 %v7209
        %7221 = vmatprep.subr.mxu0 0.0
        %7222 = vmatpush1.msra.mxu0 0.0
        %7223 = vmatprep.subr.mxu0 0.0
        %7224 = vmatpush1.msra.mxu0 0.0
        %7225 = vmatprep.subr.mxu0 0.0
        %7226 = vmatpush1.msra.mxu0 0.0
        %7227 = vmatprep.subr.mxu0 0.0
        %7228 = vmatpush1.msra.mxu0 0.0
        %7229 = vmatprep.subr.mxu0 0.0
        %7230 = vmatpush1.msra.mxu0 0.0
        %7231 = vmatprep.subr.mxu0 0.0
        %7232 = vmatpush1.msra.mxu0 0.0
        %7233 = vmatprep.subr.mxu0 0.0
        %7234 = vmatpush1.msra.mxu0 0.0
        %7235 = vmatprep.subr.mxu0 0.0
        %7236 = vmatpush1.msra.mxu0 0.0
        %7237 = vmatprep.subr.mxu0 0.0
        %7238 = vmatpush1.msra.mxu0 0.0
        %7239 = vmatprep.subr.mxu0 0.0
        %7240 = vmatpush1.msra.mxu0 0.0
        %7241 = vmatprep.subr.mxu0 0.0
        %7242 = vmatpush1.msra.mxu0 0.0
        %7243 = vmatprep.subr.mxu0 0.0
        %7244 = vmatpush1.msra.mxu0 0.0
        %7245 = vmatprep.subr.mxu0 0.0
        %7246 = vmatpush1.msra.mxu0 0.0
        %7247 = vmatprep.subr.mxu0 0.0
        %7248 = vmatpush1.msra.mxu0 0.0
        %7249 = vmatprep.subr.mxu0 0.0
        %7250 = vmatpush1.msra.mxu0 0.0
        %7251 = vmatprep.subr.mxu0 0.0
        %7252 = vmatpush1.msra.mxu0 0.0
        %7253 = vmatprep.subr.mxu0 0.0
        %7254 = vmatpush1.msra.mxu0 0.0
        %7255 = vmatprep.subr.mxu0 0.0
        %7256 = vmatpush1.msra.mxu0 0.0
        %7257 = vmatprep.subr.mxu0 0.0
        %7258 = vmatpush1.msra.mxu0 0.0
        %7259 = vmatprep.subr.mxu0 0.0
        %7260 = vmatpush1.msra.mxu0 0.0
        %7261 = vmatprep.subr.mxu0 0.0
        %7262 = vmatpush1.msra.mxu0 0.0
        %7263 = vmatprep.subr.mxu0 0.0
        %7264 = vmatpush1.msra.mxu0 0.0
        %7265 = vmatprep.subr.mxu0 0.0
        %7266 = vmatpush1.msra.mxu0 0.0
        %7267 = vmatprep.subr.mxu0 0.0
        %7268 = vmatpush1.msra.mxu0 0.0
        %7269 = vmatprep.subr.mxu0 0.0
        %7270 = vmatpush1.msra.mxu0 0.0
        %7271 = vmatprep.subr.mxu0 0.0
        %7272 = vmatpush1.msra.mxu0 0.0
        %7273 = vmatprep.subr.mxu0 0.0
        %7274 = vmatpush1.msra.mxu0 0.0
        %7275 = vmatprep.subr.mxu0 0.0
        %7276 = vmatpush1.msra.mxu0 0.0
        %7277 = vmatprep.mubr.f32.mxu0 0.0
        %7278 = vmatmul.mubr.f32.gmra.mrb[0].mxu0 %v7211
        %v7279 = vpop.f32.mrb[0].mxu0
        %v7280 = vadd.f32 0.0, %v7279
        %v7281 = vpop.f32.mrb[0].mxu0
        %7282 = vdwg.mxu0
        %v7283 = vadd.f32 %v7129, %v7280
        %v7284 = vld [vmem:[%s12] sm:$0x1]
        %v7285 = vadd.f32 %v7283, %v7284
        %vm7286 = vcmp.gt.f32.partialorder %v7285, 0.0
        %v7287 = vmin.f32 %v7285, 0.0
        %v7288 = vmul.f32 %v7287, 1.442695
        %v7289 = vpow.pop %v7288
        %v7290 = vsub.f32 %v7289, 1.0
        %v7291 = vsel %vm7286, %v7285, %v7290
        %vm7292 = vcmask 253952
        %7293 = vst.msk [vmem:[%s476] sm:$0x1] %vm7292, %v7291
        %s7294 = sand.u32 %s315, 1
        %s7295 = scalar_lea.sflag [#allocation4], %s7294
        %s7296 = sand.u32 %s315, 1
        %s7297 = scalar_lea.vmem [#allocation8], %s7296
        // Predicated region
        $region85: #{encoder_forward.1} parent=71 // pred_check
          %p7298 = pneg %p325
        $region86: #{encoder_forward.1} parent=71 // pred_check_branch
          %7300 = sbr.rel (%p7298) target = $region88
        $region87: #{encoder_forward.1} parent=71 // pred_region
          %s7302 = ssub.s32 16, 16
          %7303 = vsyncadd %s7295, %s7302
          %s7304 = smul.addr %s29, 16
          %s7305 = scalar_lea.hbm %s13, %s7304
          %s7307 = sshll.u32 %s7297, 4
          %s7308 = int_to_ptr.vmem [resolvable:$true] %s7307
          %7310 = dma.vmem_to_hbm [thread:$0]  %s7308, 16, %s7305, %s7295
        $region88: #{encoder_forward.1} parent=71 // pred_fallthru
          _
      $region72: #{encoder_forward.1} parent=5 // pred_fallthru
        _
      %p7311 = scmp.le.s32.totalorder 2, %s24
      // Predicated region
      $region89: #{encoder_forward.1} parent=5 // pred_check
        %p7312 = pneg %p7311
      $region90: #{encoder_forward.1} parent=5 // pred_check_branch
        %7314 = sbr.rel (%p7312) target = $region92
      $region91: #{encoder_forward.1} parent=5 // pred_region
        %s7315 = ssub.s32 %s24, 2
        // Predicated region
        $region93: #{encoder_forward.1} parent=91 // pred_check
          %p7316 = pneg %p331
        $region94: #{encoder_forward.1} parent=91 // pred_check_branch
          %7318 = sbr.rel (%p7316) target = $region96
        $region95: #{encoder_forward.1} parent=91 // pred_region
          %s7319 = sand.u32 %s316, 1
          %s7320 = scalar_lea.sflag [#allocation4], %s7319
          %s7321 = sand.u32 %s316, 1
          %s7322 = scalar_lea.vmem [#allocation8], %s7321
          %7323 = dma.done %s7320, 16
        $region96: #{encoder_forward.1} parent=91 // pred_fallthru
          _
      $region92: #{encoder_forward.1} parent=5 // pred_fallthru
        _
    $region6: #{encoder_forward.1} parent=1 // loop_footer
      %s28 = sadd.s32 1, %s24
    $region7: #{encoder_forward.1} parent=1 // loop_footer_branch
      %23 = sbr.rel target = $region3
    $region8: #{encoder_forward.1} parent=1 // loop_exit
      _
    %7324 = vsyncpa [#allocation3], 1
    %s7325 = scalar_lea.sflag [#allocation3], 1
    %7326 = vsyncpa %s7325, 1
    %7327 = vsyncpa [#allocation6], 1
    %7328 = vsyncpa [#allocation4], 1
    %s7329 = scalar_lea.sflag [#allocation4], 1
    %7330 = vsyncpa %s7329, 1

</llo_original>
